<compile_context>
chip_gen: v6e
topology: v6e:2x2x1
jax: 0.10.0
libtpu: 0.0.40
codegen_flags: <defaults>
</compile_context>

<pallas_src>
import functools
import math

import numpy as np
import jax
import jax.numpy as jnp
from jax import lax
from jax.experimental import pallas as pl
from jax.experimental.pallas import tpu as pltpu

BN_EPS = 1e-5


# ----------------------------- in-kernel helpers (trace-time Python) ---------------

def _shift2d(x, dh, dw):
    """y[i, j] = x[i + dh, j + dw], zero outside: the (dh, dw) tap of a zero-padded
    map, generated register-resident (slice + concat lower to XLU shifts; no VMEM
    halo scratch, no scratch zeroing, no unaligned masked reloads)."""
    H, W = x.shape
    if dh > 0:
        x = jnp.concatenate([x[dh:, :], jnp.zeros((dh, W), x.dtype)], axis=0)
    elif dh < 0:
        x = jnp.concatenate([jnp.zeros((-dh, W), x.dtype), x[:dh, :]], axis=0)
    if dw > 0:
        x = jnp.concatenate([x[:, dw:], jnp.zeros((H, dw), x.dtype)], axis=1)
    elif dw < 0:
        x = jnp.concatenate([jnp.zeros((H, -dw), x.dtype), x[:, :dw]], axis=1)
    return x


def _ghost_module_compute(p_ref, mod, get_tap, relu, Ho, Wo):
    """Trace one GhostModule.

    mod = static (k, cin, cinit, oup, wp_off, b1_off, wdw_off, b2_off).
    Weights/biases are scalars read from the SMEM param vector (BN pre-folded), so
    every FMA is scalar * (Ho, Wo) vreg tile.  Channels are Python-unrolled.
    Returns the list of `oup` per-channel (Ho, Wo) f32 maps (the channel concat)."""
    k, cin, cinit, oup, wp_off, b1_off, wdw_off, b2_off = mod

    # ---- primary KxK conv (+folded BN): two partial accumulators per out channel,
    # bias folded into the init of partial 0 (no zeros + separate bias add).
    acc_a = [jnp.full((Ho, Wo), p_ref[b1_off + co], dtype=jnp.float32)
             for co in range(cinit)]
    acc_b = [jnp.zeros((Ho, Wo), jnp.float32) for _ in range(cinit)]
    t = 0
    for di in range(k):
        for dj in range(k):
            for ci in range(cin):
                tap = get_tap(ci, di, dj)          # one (Ho, Wo) tile, loaded once
                base = wp_off + ((di * k + dj) * cin + ci) * cinit
                for co in range(cinit):
                    w = p_ref[base + co]           # SMEM scalar
                    if t % 2 == 0:
                        acc_a[co] = acc_a[co] + w * tap
                    else:
                        acc_b[co] = acc_b[co] + w * tap
                t += 1
    x1 = [a + b for a, b in zip(acc_a, acc_b)]
    if relu:
        x1 = [jnp.maximum(v, 0.0) for v in x1]

    # ---- cheap_operation: 3x3 depthwise conv (+folded BN), register-resident taps.
    x2 = []
    for c in range(cinit):
        d_a = jnp.full((Ho, Wo), p_ref[b2_off + c], dtype=jnp.float32)
        d_b = jnp.zeros((Ho, Wo), jnp.float32)
        for di in range(3):
            for dj in range(3):
                w = p_ref[wdw_off + (di * 3 + dj) * cinit + c]
                tap = _shift2d(x1[c], di - 1, dj - 1)
                if (di * 3 + dj) % 2 == 0:
                    d_a = d_a + w * tap
                else:
                    d_b = d_b + w * tap
        v = d_a + d_b
        if relu:
            v = jnp.maximum(v, 0.0)
        x2.append(v)

    # concat(x1, x2) + slice to oup channels (pure Python list op: channels unrolled)
    return (x1 + x2)[:oup]


# ----------------------------- fused ResidualBlock kernel --------------------------

def _residual_block_kernel(s, Ho, Wo, cin, oup, mods, p_ref, xph_ref, o_ref):
    """Whole ResidualBlock fused: left[0] -> left[1] -> (+ shortcut | identity) -> ReLU.

    p_ref   : 1-D f32 SMEM vector with all BN-folded weights/biases.
    xph_ref : (1, s*s*cin, Hph, Wph) stride-phase-split, zero-padded input (VMEM).
    o_ref   : (1, oup, Ho, Wo) NCHW output block."""
    mod_l0, mod_l1, mod_sc = mods

    def xwin(p, q, ci, a, b):
        # window of the padded input x: xpad[ci, a*s + p + ..., b*s + q + ...]
        pc = (p * s + q) * cin + ci
        return xph_ref[0, pc, a:a + Ho, b:b + Wo]

    # --- left[0]: 3x3 / stride-s ghost module; taps are unit-stride windows of xph.
    def tap_x(ci, di, dj):
        return xwin(di % s, dj % s, ci, di // s, dj // s)

    h = _ghost_module_compute(p_ref, mod_l0, tap_x, True, Ho, Wo)

    # --- left[1]: 3x3 / stride-1 ghost module over h (h never leaves vregs/VMEM).
    def tap_h(ci, di, dj):
        return _shift2d(h[ci], di - 1, dj - 1)

    out = _ghost_module_compute(p_ref, mod_l1, tap_h, False, Ho, Wo)

    # --- residual path: 1x1 / stride-s ghost module, or identity.
    if mod_sc is not None:
        # 1x1 conv, pad 0: out[i, j] = x[ci, i*s, j*s] = xpad[ci, i*s+1, j*s+1]
        def tap_sc(ci, di, dj):
            return xwin(1 % s, 1 % s, ci, 1 // s, 1 // s)
        res = _ghost_module_compute(p_ref, mod_sc, tap_sc, False, Ho, Wo)
    else:
        # identity shortcut (stride == 1 and cin == oup): x itself
        res = [xwin(0, 0, c, 1, 1) for c in range(oup)]

    # --- fused residual add + final ReLU, assembled in registers -> ONE NCHW store.
    o_ref[0, :, :, :] = jnp.stack(
        [jnp.maximum(out[c] + res[c], 0.0) for c in range(oup)], axis=0)


# ----------------------------- wrapper ----------------------------------------------

def fold_bn(gamma, beta, mean, var):
    scale = gamma / jnp.sqrt(var + BN_EPS)
    bias = beta - mean * scale
    return scale, bias


def _pack_ghost(p, off):
    """Fold BN into the conv weights and flatten this ghost module's params into 1-D
    pieces; return (pieces, static module descriptor, next offset)."""
    k = p["ksize"]
    oup = p["oup"]
    wp = p["w_primary"]                              # (k, k, cin, cinit) HWIO
    cin, cinit = wp.shape[2], wp.shape[3]
    s1, b1 = fold_bn(*p["bn1"])
    s2, b2 = fold_bn(*p["bn2"])
    wp_f = (wp * s1.reshape(1, 1, 1, cinit)).reshape(-1).astype(jnp.float32)
    wdw_f = (p["w_dw"] * s2.reshape(1, 1, cinit)).reshape(-1).astype(jnp.float32)
    pieces = [wp_f, b1.astype(jnp.float32), wdw_f, b2.astype(jnp.float32)]
    offs = []
    for a in pieces:
        offs.append(off)
        off += int(a.shape[0])
    mod = (k, cin, cinit, oup, offs[0], offs[1], offs[2], offs[3])
    return pieces, mod, off


def _ghost_flops(mod, Ho, Wo):
    k, cin, cinit = mod[0], mod[1], mod[2]
    return 2 * Ho * Wo * (k * k * cin * cinit + 9 * cinit)


def residual_block_fwd(x, params, stride):
    """x: (N, Cin, H, W) NCHW (PyTorch layout) -> (N, oup, Ho, Wo) NCHW."""
    N, cin, H, W = x.shape
    oup = params["left0"]["oup"]
    s = stride
    Ho = (H + 2 - 3) // s + 1            # 3x3, pad 1, stride s
    Wo = (W + 2 - 3) // s + 1

    # ---- fold BN + pack ALL module params into one 1-D SMEM vector (static offsets)
    pieces = []
    off = 0
    p0, mod_l0, off = _pack_ghost(params["left0"], off)
    p1, mod_l1, off = _pack_ghost(params["left1"], off)
    pieces += p0 + p1
    if params["shortcut"] is not None:
        p2, mod_sc, off = _pack_ghost(params["shortcut"], off)
        pieces += p2
    else:
        mod_sc = None
    pvec = jnp.concatenate(pieces)

    # ---- pad once + stride-phase split once, shared by left[0] and the shortcut.
    # Pure data movement (~1x input bytes); afterwards every primary-conv tap inside
    # the kernel is a unit-stride (Ho, Wo) window read.
    Hp, Wp = H + 2, W + 2
    Hr, Wr = pl.cdiv(Hp, s) * s, pl.cdiv(Wp, s) * s
    xpad = jnp.pad(x, ((0, 0), (0, 0), (1, 1 + Hr - Hp), (1, 1 + Wr - Wp)))
    Hph, Wph = Hr // s, Wr // s
    xph = (xpad.reshape(N, cin, Hph, s, Wph, s)
               .transpose(0, 3, 5, 1, 2, 4)        # (N, p, q, c, a, b)
               .reshape(N, s * s * cin, Hph, Wph))

    flops = N * (_ghost_flops(mod_l0, Ho, Wo) + _ghost_flops(mod_l1, Ho, Wo)
                 + (_ghost_flops(mod_sc, Ho, Wo) if mod_sc is not None else 0)
                 + 2 * Ho * Wo * oup)
    bytes_accessed = 4 * (int(xph.size) + int(pvec.size) + N * oup * Ho * Wo)

    return pl.pallas_call(
        functools.partial(_residual_block_kernel, s, Ho, Wo, cin, oup,
                          (mod_l0, mod_l1, mod_sc)),
        grid=(N,),
        in_specs=[
            # all BN-folded weights/biases as one small SMEM vector (scalar reads)
            pl.BlockSpec(memory_space=pltpu.MemorySpace.SMEM),
            # phase-split padded input, one batch element per grid step
            pl.BlockSpec((1, s * s * cin, Hph, Wph), lambda n: (n, 0, 0, 0)),
        ],
        out_specs=pl.BlockSpec((1, oup, Ho, Wo), lambda n: (n, 0, 0, 0)),
        out_shape=jax.ShapeDtypeStruct((N, oup, Ho, Wo), jnp.float32),
        compiler_params=pltpu.CompilerParams(
            dimension_semantics=("parallel",),
            vmem_limit_bytes=32 * 1024 * 1024),   # fits v7x's smaller VMEM too
        cost_estimate=pl.CostEstimate(flops=flops, transcendentals=0,
                                      bytes_accessed=bytes_accessed),
    )(pvec, xph)


# ----------------------------- parameter init ---------------------------------------

def init_bn(key, C):
    k1, k2, k3, k4 = jax.random.split(key, 4)
    gamma = 1.0 + 0.1 * jax.random.normal(k1, (C,), jnp.float32)
    beta = 0.1 * jax.random.normal(k2, (C,), jnp.float32)
    mean = 0.1 * jax.random.normal(k3, (C,), jnp.float32)
    var = jax.random.uniform(k4, (C,), jnp.float32, minval=0.5, maxval=1.5)
    return (gamma, beta, mean, var)


def init_ghost_params(key, inp, oup, kernel_size):
    # ratio=2, dw_size=3 (module defaults): new_channels == init_channels
    init_channels = math.ceil(oup / 2)
    k0, k1, k2, k3 = jax.random.split(key, 4)
    # primary conv weight stored HWIO (k,k,Cin,Cinit); torch layout is (Cinit,Cin,k,k)
    w_primary = jax.random.normal(k0, (kernel_size, kernel_size, inp, init_channels),
                                  jnp.float32) / math.sqrt(kernel_size * kernel_size * inp)
    # depthwise 3x3 weight stored (3,3,C); torch layout is (C,1,3,3)
    w_dw = jax.random.normal(k1, (3, 3, init_channels), jnp.float32) / 3.0
    return dict(
        ksize=kernel_size,
        oup=oup,
        w_primary=w_primary,
        bn1=init_bn(k2, init_channels),
        w_dw=w_dw,
        bn2=init_bn(k3, init_channels),
    )


def init_residual_block_params(key, inchannel, outchannel, stride):
    kl0, kl1, ks = jax.random.split(key, 3)
    params = dict(
        left0=init_ghost_params(kl0, inchannel, outchannel, 3),
        left1=init_ghost_params(kl1, outchannel, outchannel, 3),
        shortcut=None,
    )
    if stride != 1 or inchannel != outchannel:
        params["shortcut"] = init_ghost_params(ks, inchannel, outchannel, 1)
    return params


# ----------------------------- pure-JAX reference (verification) --------------------

def _ghost_module_ref(x, p, stride, relu):
    k = p["ksize"]
    pad = k // 2
    Cinit = p["w_primary"].shape[-1]
    s1, b1 = fold_bn(*p["bn1"])
    x1 = lax.conv_general_dilated(x, p["w_primary"], (stride, stride),
                                  [(pad, pad), (pad, pad)],
                                  dimension_numbers=("NHWC", "HWIO", "NHWC"))
    x1 = x1 * s1.reshape(1, 1, 1, -1) + b1.reshape(1, 1, 1, -1)
    if relu:
        x1 = jnp.maximum(x1, 0.0)
    s2, b2 = fold_bn(*p["bn2"])
    x2 = lax.conv_general_dilated(x1, p["w_dw"].reshape(3, 3, 1, Cinit), (1, 1),
                                  [(1, 1), (1, 1)],
                                  dimension_numbers=("NHWC", "HWIO", "NHWC"),
                                  feature_group_count=Cinit)
    x2 = x2 * s2.reshape(1, 1, 1, -1) + b2.reshape(1, 1, 1, -1)
    if relu:
        x2 = jnp.maximum(x2, 0.0)
    out = jnp.concatenate([x1, x2], axis=-1)
    return out[..., :p["oup"]]


def _residual_block_ref(x_nhwc, params, stride):
    out = _ghost_module_ref(x_nhwc, params["left0"], stride, True)
    out = _ghost_module_ref(out, params["left1"], 1, False)
    sc = (x_nhwc if params["shortcut"] is None
          else _ghost_module_ref(x_nhwc, params["shortcut"], stride, False))
    return jnp.maximum(out + sc, 0.0)


# ----------------------------- main --------------------------------------------------

if __name__ == "__main__":
    key = jax.random.PRNGKey(0)
    k1, k2, k3, k4 = jax.random.split(key, 4)

    # config A: stride-2 block with the GhostModule shortcut branch
    inc, outc, stride = 4, 8, 2
    x_a = jax.random.normal(k1, (2, inc, 16, 16), jnp.float32)      # NCHW (PyTorch)
    params_a = init_residual_block_params(k2, inc, outc, stride)
    out_a = jax.block_until_ready(residual_block_fwd(x_a, params_a, stride))
    ref_a = _residual_block_ref(jnp.transpose(x_a, (0, 2, 3, 1)), params_a, stride)
    np.testing.assert_allclose(np.asarray(out_a),
                               np.asarray(jnp.transpose(ref_a, (0, 3, 1, 2))),
                               rtol=1e-3, atol=1e-3)
    assert out_a.shape == (2, outc, 8, 8)

    # config B: stride-1 block with identity shortcut
    inc_b, outc_b, stride_b = 8, 8, 1
    x_b = jax.random.normal(k3, (2, inc_b, 16, 16), jnp.float32)
    params_b = init_residual_block_params(k4, inc_b, outc_b, stride_b)
    out_b = jax.block_until_ready(residual_block_fwd(x_b, params_b, stride_b))
    ref_b = _residual_block_ref(jnp.transpose(x_b, (0, 2, 3, 1)), params_b, stride_b)
    np.testing.assert_allclose(np.asarray(out_b),
                               np.asarray(jnp.transpose(ref_b, (0, 3, 1, 2))),
                               rtol=1e-3, atol=1e-3)
    assert out_b.shape == (2, outc_b, 16, 16)

    print("KERNEL_OK")
</pallas_src>

<mosaic_0001>
module attributes {stable_mosaic.version = 11 : i64} {
  func.func @_residual_block_kernel(%arg0: i32, %arg1: memref<580xf32, #tpu.memory_space<smem>>, %arg2: memref<1x16x9x9xf32, #tpu.memory_space<vmem>>, %arg3: memref<1x8x8x8xf32, #tpu.memory_space<vmem>>) attributes {dimension_semantics = [#tpu.dimension_semantics<parallel>], iteration_bounds = array<i64: 2>, scalar_prefetch = 0 : i64, scratch_operands = 0 : i64, tpu.core_type = #tpu.core_type<tc>, window_params = [{transform_indices = @transform_0, window_bounds = array<i64: 580>}, {transform_indices = @transform_1, window_bounds = array<i64: 1, 16, 9, 9>}, {transform_indices = @transform_2, window_bounds = array<i64: 1, 8, 8, 8>}]} {
    %c144 = arith.constant 144 : index
    %0 = memref.load %arg1[%c144] : memref<580xf32, #tpu.memory_space<smem>>
    %1 = vector.broadcast %0 : f32 to vector<8x8xf32>
    %c145 = arith.constant 145 : index
    %2 = memref.load %arg1[%c145] : memref<580xf32, #tpu.memory_space<smem>>
    %3 = vector.broadcast %2 : f32 to vector<8x8xf32>
    %c146 = arith.constant 146 : index
    %4 = memref.load %arg1[%c146] : memref<580xf32, #tpu.memory_space<smem>>
    %5 = vector.broadcast %4 : f32 to vector<8x8xf32>
    %c147 = arith.constant 147 : index
    %6 = memref.load %arg1[%c147] : memref<580xf32, #tpu.memory_space<smem>>
    %7 = vector.broadcast %6 : f32 to vector<8x8xf32>
    %cst = arith.constant 0.000000e+00 : f32
    %8 = vector.broadcast %cst : f32 to vector<8x8xf32>
    %cst_0 = arith.constant 0.000000e+00 : f32
    %9 = vector.broadcast %cst_0 : f32 to vector<8x8xf32>
    %cst_1 = arith.constant 0.000000e+00 : f32
    %10 = vector.broadcast %cst_1 : f32 to vector<8x8xf32>
    %cst_2 = arith.constant 0.000000e+00 : f32
    %11 = vector.broadcast %cst_2 : f32 to vector<8x8xf32>
    %c0 = arith.constant 0 : index
    %c0_3 = arith.constant 0 : index
    %c0_4 = arith.constant 0 : index
    %c0_5 = arith.constant 0 : index
    %12 = vector.load %arg2[%c0, %c0_3, %c0_4, %c0_5] : memref<1x16x9x9xf32, #tpu.memory_space<vmem>>, vector<1x1x8x8xf32>
    %13 = vector.shape_cast %12 : vector<1x1x8x8xf32> to vector<8x8xf32>
    %c0_6 = arith.constant 0 : index
    %14 = memref.load %arg1[%c0_6] : memref<580xf32, #tpu.memory_space<smem>>
    %15 = vector.broadcast %14 : f32 to vector<8x8xf32>
    %16 = arith.mulf %15, %13 : vector<8x8xf32>
    %17 = arith.addf %1, %16 : vector<8x8xf32>
    %c1 = arith.constant 1 : index
    %18 = memref.load %arg1[%c1] : memref<580xf32, #tpu.memory_space<smem>>
    %19 = vector.broadcast %18 : f32 to vector<8x8xf32>
    %20 = arith.mulf %19, %13 : vector<8x8xf32>
    %21 = arith.addf %3, %20 : vector<8x8xf32>
    %c2 = arith.constant 2 : index
    %22 = memref.load %arg1[%c2] : memref<580xf32, #tpu.memory_space<smem>>
    %23 = vector.broadcast %22 : f32 to vector<8x8xf32>
    %24 = arith.mulf %23, %13 : vector<8x8xf32>
    %25 = arith.addf %5, %24 : vector<8x8xf32>
    %c3 = arith.constant 3 : index
    %26 = memref.load %arg1[%c3] : memref<580xf32, #tpu.memory_space<smem>>
    %27 = vector.broadcast %26 : f32 to vector<8x8xf32>
    %28 = arith.mulf %27, %13 : vector<8x8xf32>
    %29 = arith.addf %7, %28 : vector<8x8xf32>
    %c0_7 = arith.constant 0 : index
    %c1_8 = arith.constant 1 : index
    %c0_9 = arith.constant 0 : index
    %c0_10 = arith.constant 0 : index
    %30 = vector.load %arg2[%c0_7, %c1_8, %c0_9, %c0_10] : memref<1x16x9x9xf32, #tpu.memory_space<vmem>>, vector<1x1x8x8xf32>
    %31 = vector.shape_cast %30 : vector<1x1x8x8xf32> to vector<8x8xf32>
    %c4 = arith.constant 4 : index
    %32 = memref.load %arg1[%c4] : memref<580xf32, #tpu.memory_space<smem>>
    %33 = vector.broadcast %32 : f32 to vector<8x8xf32>
    %34 = arith.mulf %33, %31 : vector<8x8xf32>
    %35 = arith.addf %8, %34 : vector<8x8xf32>
    %c5 = arith.constant 5 : index
    %36 = memref.load %arg1[%c5] : memref<580xf32, #tpu.memory_space<smem>>
    %37 = vector.broadcast %36 : f32 to vector<8x8xf32>
    %38 = arith.mulf %37, %31 : vector<8x8xf32>
    %39 = arith.addf %9, %38 : vector<8x8xf32>
    %c6 = arith.constant 6 : index
    %40 = memref.load %arg1[%c6] : memref<580xf32, #tpu.memory_space<smem>>
    %41 = vector.broadcast %40 : f32 to vector<8x8xf32>
    %42 = arith.mulf %41, %31 : vector<8x8xf32>
    %43 = arith.addf %10, %42 : vector<8x8xf32>
    %c7 = arith.constant 7 : index
    %44 = memref.load %arg1[%c7] : memref<580xf32, #tpu.memory_space<smem>>
    %45 = vector.broadcast %44 : f32 to vector<8x8xf32>
    %46 = arith.mulf %45, %31 : vector<8x8xf32>
    %47 = arith.addf %11, %46 : vector<8x8xf32>
    %c0_11 = arith.constant 0 : index
    %c2_12 = arith.constant 2 : index
    %c0_13 = arith.constant 0 : index
    %c0_14 = arith.constant 0 : index
    %48 = vector.load %arg2[%c0_11, %c2_12, %c0_13, %c0_14] : memref<1x16x9x9xf32, #tpu.memory_space<vmem>>, vector<1x1x8x8xf32>
    %49 = vector.shape_cast %48 : vector<1x1x8x8xf32> to vector<8x8xf32>
    %c8 = arith.constant 8 : index
    %50 = memref.load %arg1[%c8] : memref<580xf32, #tpu.memory_space<smem>>
    %51 = vector.broadcast %50 : f32 to vector<8x8xf32>
    %52 = arith.mulf %51, %49 : vector<8x8xf32>
    %53 = arith.addf %17, %52 : vector<8x8xf32>
    %c9 = arith.constant 9 : index
    %54 = memref.load %arg1[%c9] : memref<580xf32, #tpu.memory_space<smem>>
    %55 = vector.broadcast %54 : f32 to vector<8x8xf32>
    %56 = arith.mulf %55, %49 : vector<8x8xf32>
    %57 = arith.addf %21, %56 : vector<8x8xf32>
    %c10 = arith.constant 10 : index
    %58 = memref.load %arg1[%c10] : memref<580xf32, #tpu.memory_space<smem>>
    %59 = vector.broadcast %58 : f32 to vector<8x8xf32>
    %60 = arith.mulf %59, %49 : vector<8x8xf32>
    %61 = arith.addf %25, %60 : vector<8x8xf32>
    %c11 = arith.constant 11 : index
    %62 = memref.load %arg1[%c11] : memref<580xf32, #tpu.memory_space<smem>>
    %63 = vector.broadcast %62 : f32 to vector<8x8xf32>
    %64 = arith.mulf %63, %49 : vector<8x8xf32>
    %65 = arith.addf %29, %64 : vector<8x8xf32>
    %c0_15 = arith.constant 0 : index
    %c3_16 = arith.constant 3 : index
    %c0_17 = arith.constant 0 : index
    %c0_18 = arith.constant 0 : index
    %66 = vector.load %arg2[%c0_15, %c3_16, %c0_17, %c0_18] : memref<1x16x9x9xf32, #tpu.memory_space<vmem>>, vector<1x1x8x8xf32>
    %67 = vector.shape_cast %66 : vector<1x1x8x8xf32> to vector<8x8xf32>
    %c12 = arith.constant 12 : index
    %68 = memref.load %arg1[%c12] : memref<580xf32, #tpu.memory_space<smem>>
    %69 = vector.broadcast %68 : f32 to vector<8x8xf32>
    %70 = arith.mulf %69, %67 : vector<8x8xf32>
    %71 = arith.addf %35, %70 : vector<8x8xf32>
    %c13 = arith.constant 13 : index
    %72 = memref.load %arg1[%c13] : memref<580xf32, #tpu.memory_space<smem>>
    %73 = vector.broadcast %72 : f32 to vector<8x8xf32>
    %74 = arith.mulf %73, %67 : vector<8x8xf32>
    %75 = arith.addf %39, %74 : vector<8x8xf32>
    %c14 = arith.constant 14 : index
    %76 = memref.load %arg1[%c14] : memref<580xf32, #tpu.memory_space<smem>>
    %77 = vector.broadcast %76 : f32 to vector<8x8xf32>
    %78 = arith.mulf %77, %67 : vector<8x8xf32>
    %79 = arith.addf %43, %78 : vector<8x8xf32>
    %c15 = arith.constant 15 : index
    %80 = memref.load %arg1[%c15] : memref<580xf32, #tpu.memory_space<smem>>
    %81 = vector.broadcast %80 : f32 to vector<8x8xf32>
    %82 = arith.mulf %81, %67 : vector<8x8xf32>
    %83 = arith.addf %47, %82 : vector<8x8xf32>
    %c0_19 = arith.constant 0 : index
    %c4_20 = arith.constant 4 : index
    %c0_21 = arith.constant 0 : index
    %c0_22 = arith.constant 0 : index
    %84 = vector.load %arg2[%c0_19, %c4_20, %c0_21, %c0_22] : memref<1x16x9x9xf32, #tpu.memory_space<vmem>>, vector<1x1x8x8xf32>
    %85 = vector.shape_cast %84 : vector<1x1x8x8xf32> to vector<8x8xf32>
    %c16 = arith.constant 16 : index
    %86 = memref.load %arg1[%c16] : memref<580xf32, #tpu.memory_space<smem>>
    %87 = vector.broadcast %86 : f32 to vector<8x8xf32>
    %88 = arith.mulf %87, %85 : vector<8x8xf32>
    %89 = arith.addf %53, %88 : vector<8x8xf32>
    %c17 = arith.constant 17 : index
    %90 = memref.load %arg1[%c17] : memref<580xf32, #tpu.memory_space<smem>>
    %91 = vector.broadcast %90 : f32 to vector<8x8xf32>
    %92 = arith.mulf %91, %85 : vector<8x8xf32>
    %93 = arith.addf %57, %92 : vector<8x8xf32>
    %c18 = arith.constant 18 : index
    %94 = memref.load %arg1[%c18] : memref<580xf32, #tpu.memory_space<smem>>
    %95 = vector.broadcast %94 : f32 to vector<8x8xf32>
    %96 = arith.mulf %95, %85 : vector<8x8xf32>
    %97 = arith.addf %61, %96 : vector<8x8xf32>
    %c19 = arith.constant 19 : index
    %98 = memref.load %arg1[%c19] : memref<580xf32, #tpu.memory_space<smem>>
    %99 = vector.broadcast %98 : f32 to vector<8x8xf32>
    %100 = arith.mulf %99, %85 : vector<8x8xf32>
    %101 = arith.addf %65, %100 : vector<8x8xf32>
    %c0_23 = arith.constant 0 : index
    %c5_24 = arith.constant 5 : index
    %c0_25 = arith.constant 0 : index
    %c0_26 = arith.constant 0 : index
    %102 = vector.load %arg2[%c0_23, %c5_24, %c0_25, %c0_26] : memref<1x16x9x9xf32, #tpu.memory_space<vmem>>, vector<1x1x8x8xf32>
    %103 = vector.shape_cast %102 : vector<1x1x8x8xf32> to vector<8x8xf32>
    %c20 = arith.constant 20 : index
    %104 = memref.load %arg1[%c20] : memref<580xf32, #tpu.memory_space<smem>>
    %105 = vector.broadcast %104 : f32 to vector<8x8xf32>
    %106 = arith.mulf %105, %103 : vector<8x8xf32>
    %107 = arith.addf %71, %106 : vector<8x8xf32>
    %c21 = arith.constant 21 : index
    %108 = memref.load %arg1[%c21] : memref<580xf32, #tpu.memory_space<smem>>
    %109 = vector.broadcast %108 : f32 to vector<8x8xf32>
    %110 = arith.mulf %109, %103 : vector<8x8xf32>
    %111 = arith.addf %75, %110 : vector<8x8xf32>
    %c22 = arith.constant 22 : index
    %112 = memref.load %arg1[%c22] : memref<580xf32, #tpu.memory_space<smem>>
    %113 = vector.broadcast %112 : f32 to vector<8x8xf32>
    %114 = arith.mulf %113, %103 : vector<8x8xf32>
    %115 = arith.addf %79, %114 : vector<8x8xf32>
    %c23 = arith.constant 23 : index
    %116 = memref.load %arg1[%c23] : memref<580xf32, #tpu.memory_space<smem>>
    %117 = vector.broadcast %116 : f32 to vector<8x8xf32>
    %118 = arith.mulf %117, %103 : vector<8x8xf32>
    %119 = arith.addf %83, %118 : vector<8x8xf32>
    %c0_27 = arith.constant 0 : index
    %c6_28 = arith.constant 6 : index
    %c0_29 = arith.constant 0 : index
    %c0_30 = arith.constant 0 : index
    %120 = vector.load %arg2[%c0_27, %c6_28, %c0_29, %c0_30] : memref<1x16x9x9xf32, #tpu.memory_space<vmem>>, vector<1x1x8x8xf32>
    %121 = vector.shape_cast %120 : vector<1x1x8x8xf32> to vector<8x8xf32>
    %c24 = arith.constant 24 : index
    %122 = memref.load %arg1[%c24] : memref<580xf32, #tpu.memory_space<smem>>
    %123 = vector.broadcast %122 : f32 to vector<8x8xf32>
    %124 = arith.mulf %123, %121 : vector<8x8xf32>
    %125 = arith.addf %89, %124 : vector<8x8xf32>
    %c25 = arith.constant 25 : index
    %126 = memref.load %arg1[%c25] : memref<580xf32, #tpu.memory_space<smem>>
    %127 = vector.broadcast %126 : f32 to vector<8x8xf32>
    %128 = arith.mulf %127, %121 : vector<8x8xf32>
    %129 = arith.addf %93, %128 : vector<8x8xf32>
    %c26 = arith.constant 26 : index
    %130 = memref.load %arg1[%c26] : memref<580xf32, #tpu.memory_space<smem>>
    %131 = vector.broadcast %130 : f32 to vector<8x8xf32>
    %132 = arith.mulf %131, %121 : vector<8x8xf32>
    %133 = arith.addf %97, %132 : vector<8x8xf32>
    %c27 = arith.constant 27 : index
    %134 = memref.load %arg1[%c27] : memref<580xf32, #tpu.memory_space<smem>>
    %135 = vector.broadcast %134 : f32 to vector<8x8xf32>
    %136 = arith.mulf %135, %121 : vector<8x8xf32>
    %137 = arith.addf %101, %136 : vector<8x8xf32>
    %c0_31 = arith.constant 0 : index
    %c7_32 = arith.constant 7 : index
    %c0_33 = arith.constant 0 : index
    %c0_34 = arith.constant 0 : index
    %138 = vector.load %arg2[%c0_31, %c7_32, %c0_33, %c0_34] : memref<1x16x9x9xf32, #tpu.memory_space<vmem>>, vector<1x1x8x8xf32>
    %139 = vector.shape_cast %138 : vector<1x1x8x8xf32> to vector<8x8xf32>
    %c28 = arith.constant 28 : index
    %140 = memref.load %arg1[%c28] : memref<580xf32, #tpu.memory_space<smem>>
    %141 = vector.broadcast %140 : f32 to vector<8x8xf32>
    %142 = arith.mulf %141, %139 : vector<8x8xf32>
    %143 = arith.addf %107, %142 : vector<8x8xf32>
    %c29 = arith.constant 29 : index
    %144 = memref.load %arg1[%c29] : memref<580xf32, #tpu.memory_space<smem>>
    %145 = vector.broadcast %144 : f32 to vector<8x8xf32>
    %146 = arith.mulf %145, %139 : vector<8x8xf32>
    %147 = arith.addf %111, %146 : vector<8x8xf32>
    %c30 = arith.constant 30 : index
    %148 = memref.load %arg1[%c30] : memref<580xf32, #tpu.memory_space<smem>>
    %149 = vector.broadcast %148 : f32 to vector<8x8xf32>
    %150 = arith.mulf %149, %139 : vector<8x8xf32>
    %151 = arith.addf %115, %150 : vector<8x8xf32>
    %c31 = arith.constant 31 : index
    %152 = memref.load %arg1[%c31] : memref<580xf32, #tpu.memory_space<smem>>
    %153 = vector.broadcast %152 : f32 to vector<8x8xf32>
    %154 = arith.mulf %153, %139 : vector<8x8xf32>
    %155 = arith.addf %119, %154 : vector<8x8xf32>
    %c0_35 = arith.constant 0 : index
    %c0_36 = arith.constant 0 : index
    %c0_37 = arith.constant 0 : index
    %c1_38 = arith.constant 1 : index
    %156 = vector.load %arg2[%c0_35, %c0_36, %c0_37, %c1_38] : memref<1x16x9x9xf32, #tpu.memory_space<vmem>>, vector<1x1x8x8xf32>
    %157 = vector.shape_cast %156 : vector<1x1x8x8xf32> to vector<8x8xf32>
    %c32 = arith.constant 32 : index
    %158 = memref.load %arg1[%c32] : memref<580xf32, #tpu.memory_space<smem>>
    %159 = vector.broadcast %158 : f32 to vector<8x8xf32>
    %160 = arith.mulf %159, %157 : vector<8x8xf32>
    %161 = arith.addf %125, %160 : vector<8x8xf32>
    %c33 = arith.constant 33 : index
    %162 = memref.load %arg1[%c33] : memref<580xf32, #tpu.memory_space<smem>>
    %163 = vector.broadcast %162 : f32 to vector<8x8xf32>
    %164 = arith.mulf %163, %157 : vector<8x8xf32>
    %165 = arith.addf %129, %164 : vector<8x8xf32>
    %c34 = arith.constant 34 : index
    %166 = memref.load %arg1[%c34] : memref<580xf32, #tpu.memory_space<smem>>
    %167 = vector.broadcast %166 : f32 to vector<8x8xf32>
    %168 = arith.mulf %167, %157 : vector<8x8xf32>
    %169 = arith.addf %133, %168 : vector<8x8xf32>
    %c35 = arith.constant 35 : index
    %170 = memref.load %arg1[%c35] : memref<580xf32, #tpu.memory_space<smem>>
    %171 = vector.broadcast %170 : f32 to vector<8x8xf32>
    %172 = arith.mulf %171, %157 : vector<8x8xf32>
    %173 = arith.addf %137, %172 : vector<8x8xf32>
    %c0_39 = arith.constant 0 : index
    %c1_40 = arith.constant 1 : index
    %c0_41 = arith.constant 0 : index
    %c1_42 = arith.constant 1 : index
    %174 = vector.load %arg2[%c0_39, %c1_40, %c0_41, %c1_42] : memref<1x16x9x9xf32, #tpu.memory_space<vmem>>, vector<1x1x8x8xf32>
    %175 = vector.shape_cast %174 : vector<1x1x8x8xf32> to vector<8x8xf32>
    %c36 = arith.constant 36 : index
    %176 = memref.load %arg1[%c36] : memref<580xf32, #tpu.memory_space<smem>>
    %177 = vector.broadcast %176 : f32 to vector<8x8xf32>
    %178 = arith.mulf %177, %175 : vector<8x8xf32>
    %179 = arith.addf %143, %178 : vector<8x8xf32>
    %c37 = arith.constant 37 : index
    %180 = memref.load %arg1[%c37] : memref<580xf32, #tpu.memory_space<smem>>
    %181 = vector.broadcast %180 : f32 to vector<8x8xf32>
    %182 = arith.mulf %181, %175 : vector<8x8xf32>
    %183 = arith.addf %147, %182 : vector<8x8xf32>
    %c38 = arith.constant 38 : index
    %184 = memref.load %arg1[%c38] : memref<580xf32, #tpu.memory_space<smem>>
    %185 = vector.broadcast %184 : f32 to vector<8x8xf32>
    %186 = arith.mulf %185, %175 : vector<8x8xf32>
    %187 = arith.addf %151, %186 : vector<8x8xf32>
    %c39 = arith.constant 39 : index
    %188 = memref.load %arg1[%c39] : memref<580xf32, #tpu.memory_space<smem>>
    %189 = vector.broadcast %188 : f32 to vector<8x8xf32>
    %190 = arith.mulf %189, %175 : vector<8x8xf32>
    %191 = arith.addf %155, %190 : vector<8x8xf32>
    %c0_43 = arith.constant 0 : index
    %c2_44 = arith.constant 2 : index
    %c0_45 = arith.constant 0 : index
    %c1_46 = arith.constant 1 : index
    %192 = vector.load %arg2[%c0_43, %c2_44, %c0_45, %c1_46] : memref<1x16x9x9xf32, #tpu.memory_space<vmem>>, vector<1x1x8x8xf32>
    %193 = vector.shape_cast %192 : vector<1x1x8x8xf32> to vector<8x8xf32>
    %c40 = arith.constant 40 : index
    %194 = memref.load %arg1[%c40] : memref<580xf32, #tpu.memory_space<smem>>
    %195 = vector.broadcast %194 : f32 to vector<8x8xf32>
    %196 = arith.mulf %195, %193 : vector<8x8xf32>
    %197 = arith.addf %161, %196 : vector<8x8xf32>
    %c41 = arith.constant 41 : index
    %198 = memref.load %arg1[%c41] : memref<580xf32, #tpu.memory_space<smem>>
    %199 = vector.broadcast %198 : f32 to vector<8x8xf32>
    %200 = arith.mulf %199, %193 : vector<8x8xf32>
    %201 = arith.addf %165, %200 : vector<8x8xf32>
    %c42 = arith.constant 42 : index
    %202 = memref.load %arg1[%c42] : memref<580xf32, #tpu.memory_space<smem>>
    %203 = vector.broadcast %202 : f32 to vector<8x8xf32>
    %204 = arith.mulf %203, %193 : vector<8x8xf32>
    %205 = arith.addf %169, %204 : vector<8x8xf32>
    %c43 = arith.constant 43 : index
    %206 = memref.load %arg1[%c43] : memref<580xf32, #tpu.memory_space<smem>>
    %207 = vector.broadcast %206 : f32 to vector<8x8xf32>
    %208 = arith.mulf %207, %193 : vector<8x8xf32>
    %209 = arith.addf %173, %208 : vector<8x8xf32>
    %c0_47 = arith.constant 0 : index
    %c3_48 = arith.constant 3 : index
    %c0_49 = arith.constant 0 : index
    %c1_50 = arith.constant 1 : index
    %210 = vector.load %arg2[%c0_47, %c3_48, %c0_49, %c1_50] : memref<1x16x9x9xf32, #tpu.memory_space<vmem>>, vector<1x1x8x8xf32>
    %211 = vector.shape_cast %210 : vector<1x1x8x8xf32> to vector<8x8xf32>
    %c44 = arith.constant 44 : index
    %212 = memref.load %arg1[%c44] : memref<580xf32, #tpu.memory_space<smem>>
    %213 = vector.broadcast %212 : f32 to vector<8x8xf32>
    %214 = arith.mulf %213, %211 : vector<8x8xf32>
    %215 = arith.addf %179, %214 : vector<8x8xf32>
    %c45 = arith.constant 45 : index
    %216 = memref.load %arg1[%c45] : memref<580xf32, #tpu.memory_space<smem>>
    %217 = vector.broadcast %216 : f32 to vector<8x8xf32>
    %218 = arith.mulf %217, %211 : vector<8x8xf32>
    %219 = arith.addf %183, %218 : vector<8x8xf32>
    %c46 = arith.constant 46 : index
    %220 = memref.load %arg1[%c46] : memref<580xf32, #tpu.memory_space<smem>>
    %221 = vector.broadcast %220 : f32 to vector<8x8xf32>
    %222 = arith.mulf %221, %211 : vector<8x8xf32>
    %223 = arith.addf %187, %222 : vector<8x8xf32>
    %c47 = arith.constant 47 : index
    %224 = memref.load %arg1[%c47] : memref<580xf32, #tpu.memory_space<smem>>
    %225 = vector.broadcast %224 : f32 to vector<8x8xf32>
    %226 = arith.mulf %225, %211 : vector<8x8xf32>
    %227 = arith.addf %191, %226 : vector<8x8xf32>
    %c0_51 = arith.constant 0 : index
    %c8_52 = arith.constant 8 : index
    %c0_53 = arith.constant 0 : index
    %c0_54 = arith.constant 0 : index
    %228 = vector.load %arg2[%c0_51, %c8_52, %c0_53, %c0_54] : memref<1x16x9x9xf32, #tpu.memory_space<vmem>>, vector<1x1x8x8xf32>
    %229 = vector.shape_cast %228 : vector<1x1x8x8xf32> to vector<8x8xf32>
    %c48 = arith.constant 48 : index
    %230 = memref.load %arg1[%c48] : memref<580xf32, #tpu.memory_space<smem>>
    %231 = vector.broadcast %230 : f32 to vector<8x8xf32>
    %232 = arith.mulf %231, %229 : vector<8x8xf32>
    %233 = arith.addf %197, %232 : vector<8x8xf32>
    %c49 = arith.constant 49 : index
    %234 = memref.load %arg1[%c49] : memref<580xf32, #tpu.memory_space<smem>>
    %235 = vector.broadcast %234 : f32 to vector<8x8xf32>
    %236 = arith.mulf %235, %229 : vector<8x8xf32>
    %237 = arith.addf %201, %236 : vector<8x8xf32>
    %c50 = arith.constant 50 : index
    %238 = memref.load %arg1[%c50] : memref<580xf32, #tpu.memory_space<smem>>
    %239 = vector.broadcast %238 : f32 to vector<8x8xf32>
    %240 = arith.mulf %239, %229 : vector<8x8xf32>
    %241 = arith.addf %205, %240 : vector<8x8xf32>
    %c51 = arith.constant 51 : index
    %242 = memref.load %arg1[%c51] : memref<580xf32, #tpu.memory_space<smem>>
    %243 = vector.broadcast %242 : f32 to vector<8x8xf32>
    %244 = arith.mulf %243, %229 : vector<8x8xf32>
    %245 = arith.addf %209, %244 : vector<8x8xf32>
    %c0_55 = arith.constant 0 : index
    %c9_56 = arith.constant 9 : index
    %c0_57 = arith.constant 0 : index
    %c0_58 = arith.constant 0 : index
    %246 = vector.load %arg2[%c0_55, %c9_56, %c0_57, %c0_58] : memref<1x16x9x9xf32, #tpu.memory_space<vmem>>, vector<1x1x8x8xf32>
    %247 = vector.shape_cast %246 : vector<1x1x8x8xf32> to vector<8x8xf32>
    %c52 = arith.constant 52 : index
    %248 = memref.load %arg1[%c52] : memref<580xf32, #tpu.memory_space<smem>>
    %249 = vector.broadcast %248 : f32 to vector<8x8xf32>
    %250 = arith.mulf %249, %247 : vector<8x8xf32>
    %251 = arith.addf %215, %250 : vector<8x8xf32>
    %c53 = arith.constant 53 : index
    %252 = memref.load %arg1[%c53] : memref<580xf32, #tpu.memory_space<smem>>
    %253 = vector.broadcast %252 : f32 to vector<8x8xf32>
    %254 = arith.mulf %253, %247 : vector<8x8xf32>
    %255 = arith.addf %219, %254 : vector<8x8xf32>
    %c54 = arith.constant 54 : index
    %256 = memref.load %arg1[%c54] : memref<580xf32, #tpu.memory_space<smem>>
    %257 = vector.broadcast %256 : f32 to vector<8x8xf32>
    %258 = arith.mulf %257, %247 : vector<8x8xf32>
    %259 = arith.addf %223, %258 : vector<8x8xf32>
    %c55 = arith.constant 55 : index
    %260 = memref.load %arg1[%c55] : memref<580xf32, #tpu.memory_space<smem>>
    %261 = vector.broadcast %260 : f32 to vector<8x8xf32>
    %262 = arith.mulf %261, %247 : vector<8x8xf32>
    %263 = arith.addf %227, %262 : vector<8x8xf32>
    %c0_59 = arith.constant 0 : index
    %c10_60 = arith.constant 10 : index
    %c0_61 = arith.constant 0 : index
    %c0_62 = arith.constant 0 : index
    %264 = vector.load %arg2[%c0_59, %c10_60, %c0_61, %c0_62] : memref<1x16x9x9xf32, #tpu.memory_space<vmem>>, vector<1x1x8x8xf32>
    %265 = vector.shape_cast %264 : vector<1x1x8x8xf32> to vector<8x8xf32>
    %c56 = arith.constant 56 : index
    %266 = memref.load %arg1[%c56] : memref<580xf32, #tpu.memory_space<smem>>
    %267 = vector.broadcast %266 : f32 to vector<8x8xf32>
    %268 = arith.mulf %267, %265 : vector<8x8xf32>
    %269 = arith.addf %233, %268 : vector<8x8xf32>
    %c57 = arith.constant 57 : index
    %270 = memref.load %arg1[%c57] : memref<580xf32, #tpu.memory_space<smem>>
    %271 = vector.broadcast %270 : f32 to vector<8x8xf32>
    %272 = arith.mulf %271, %265 : vector<8x8xf32>
    %273 = arith.addf %237, %272 : vector<8x8xf32>
    %c58 = arith.constant 58 : index
    %274 = memref.load %arg1[%c58] : memref<580xf32, #tpu.memory_space<smem>>
    %275 = vector.broadcast %274 : f32 to vector<8x8xf32>
    %276 = arith.mulf %275, %265 : vector<8x8xf32>
    %277 = arith.addf %241, %276 : vector<8x8xf32>
    %c59 = arith.constant 59 : index
    %278 = memref.load %arg1[%c59] : memref<580xf32, #tpu.memory_space<smem>>
    %279 = vector.broadcast %278 : f32 to vector<8x8xf32>
    %280 = arith.mulf %279, %265 : vector<8x8xf32>
    %281 = arith.addf %245, %280 : vector<8x8xf32>
    %c0_63 = arith.constant 0 : index
    %c11_64 = arith.constant 11 : index
    %c0_65 = arith.constant 0 : index
    %c0_66 = arith.constant 0 : index
    %282 = vector.load %arg2[%c0_63, %c11_64, %c0_65, %c0_66] : memref<1x16x9x9xf32, #tpu.memory_space<vmem>>, vector<1x1x8x8xf32>
    %283 = vector.shape_cast %282 : vector<1x1x8x8xf32> to vector<8x8xf32>
    %c60 = arith.constant 60 : index
    %284 = memref.load %arg1[%c60] : memref<580xf32, #tpu.memory_space<smem>>
    %285 = vector.broadcast %284 : f32 to vector<8x8xf32>
    %286 = arith.mulf %285, %283 : vector<8x8xf32>
    %287 = arith.addf %251, %286 : vector<8x8xf32>
    %c61 = arith.constant 61 : index
    %288 = memref.load %arg1[%c61] : memref<580xf32, #tpu.memory_space<smem>>
    %289 = vector.broadcast %288 : f32 to vector<8x8xf32>
    %290 = arith.mulf %289, %283 : vector<8x8xf32>
    %291 = arith.addf %255, %290 : vector<8x8xf32>
    %c62 = arith.constant 62 : index
    %292 = memref.load %arg1[%c62] : memref<580xf32, #tpu.memory_space<smem>>
    %293 = vector.broadcast %292 : f32 to vector<8x8xf32>
    %294 = arith.mulf %293, %283 : vector<8x8xf32>
    %295 = arith.addf %259, %294 : vector<8x8xf32>
    %c63 = arith.constant 63 : index
    %296 = memref.load %arg1[%c63] : memref<580xf32, #tpu.memory_space<smem>>
    %297 = vector.broadcast %296 : f32 to vector<8x8xf32>
    %298 = arith.mulf %297, %283 : vector<8x8xf32>
    %299 = arith.addf %263, %298 : vector<8x8xf32>
    %c0_67 = arith.constant 0 : index
    %c12_68 = arith.constant 12 : index
    %c0_69 = arith.constant 0 : index
    %c0_70 = arith.constant 0 : index
    %300 = vector.load %arg2[%c0_67, %c12_68, %c0_69, %c0_70] : memref<1x16x9x9xf32, #tpu.memory_space<vmem>>, vector<1x1x8x8xf32>
    %301 = vector.shape_cast %300 : vector<1x1x8x8xf32> to vector<8x8xf32>
    %c64 = arith.constant 64 : index
    %302 = memref.load %arg1[%c64] : memref<580xf32, #tpu.memory_space<smem>>
    %303 = vector.broadcast %302 : f32 to vector<8x8xf32>
    %304 = arith.mulf %303, %301 : vector<8x8xf32>
    %305 = arith.addf %269, %304 : vector<8x8xf32>
    %c65 = arith.constant 65 : index
    %306 = memref.load %arg1[%c65] : memref<580xf32, #tpu.memory_space<smem>>
    %307 = vector.broadcast %306 : f32 to vector<8x8xf32>
    %308 = arith.mulf %307, %301 : vector<8x8xf32>
    %309 = arith.addf %273, %308 : vector<8x8xf32>
    %c66 = arith.constant 66 : index
    %310 = memref.load %arg1[%c66] : memref<580xf32, #tpu.memory_space<smem>>
    %311 = vector.broadcast %310 : f32 to vector<8x8xf32>
    %312 = arith.mulf %311, %301 : vector<8x8xf32>
    %313 = arith.addf %277, %312 : vector<8x8xf32>
    %c67 = arith.constant 67 : index
    %314 = memref.load %arg1[%c67] : memref<580xf32, #tpu.memory_space<smem>>
    %315 = vector.broadcast %314 : f32 to vector<8x8xf32>
    %316 = arith.mulf %315, %301 : vector<8x8xf32>
    %317 = arith.addf %281, %316 : vector<8x8xf32>
    %c0_71 = arith.constant 0 : index
    %c13_72 = arith.constant 13 : index
    %c0_73 = arith.constant 0 : index
    %c0_74 = arith.constant 0 : index
    %318 = vector.load %arg2[%c0_71, %c13_72, %c0_73, %c0_74] : memref<1x16x9x9xf32, #tpu.memory_space<vmem>>, vector<1x1x8x8xf32>
    %319 = vector.shape_cast %318 : vector<1x1x8x8xf32> to vector<8x8xf32>
    %c68 = arith.constant 68 : index
    %320 = memref.load %arg1[%c68] : memref<580xf32, #tpu.memory_space<smem>>
    %321 = vector.broadcast %320 : f32 to vector<8x8xf32>
    %322 = arith.mulf %321, %319 : vector<8x8xf32>
    %323 = arith.addf %287, %322 : vector<8x8xf32>
    %c69 = arith.constant 69 : index
    %324 = memref.load %arg1[%c69] : memref<580xf32, #tpu.memory_space<smem>>
    %325 = vector.broadcast %324 : f32 to vector<8x8xf32>
    %326 = arith.mulf %325, %319 : vector<8x8xf32>
    %327 = arith.addf %291, %326 : vector<8x8xf32>
    %c70 = arith.constant 70 : index
    %328 = memref.load %arg1[%c70] : memref<580xf32, #tpu.memory_space<smem>>
    %329 = vector.broadcast %328 : f32 to vector<8x8xf32>
    %330 = arith.mulf %329, %319 : vector<8x8xf32>
    %331 = arith.addf %295, %330 : vector<8x8xf32>
    %c71 = arith.constant 71 : index
    %332 = memref.load %arg1[%c71] : memref<580xf32, #tpu.memory_space<smem>>
    %333 = vector.broadcast %332 : f32 to vector<8x8xf32>
    %334 = arith.mulf %333, %319 : vector<8x8xf32>
    %335 = arith.addf %299, %334 : vector<8x8xf32>
    %c0_75 = arith.constant 0 : index
    %c14_76 = arith.constant 14 : index
    %c0_77 = arith.constant 0 : index
    %c0_78 = arith.constant 0 : index
    %336 = vector.load %arg2[%c0_75, %c14_76, %c0_77, %c0_78] : memref<1x16x9x9xf32, #tpu.memory_space<vmem>>, vector<1x1x8x8xf32>
    %337 = vector.shape_cast %336 : vector<1x1x8x8xf32> to vector<8x8xf32>
    %c72 = arith.constant 72 : index
    %338 = memref.load %arg1[%c72] : memref<580xf32, #tpu.memory_space<smem>>
    %339 = vector.broadcast %338 : f32 to vector<8x8xf32>
    %340 = arith.mulf %339, %337 : vector<8x8xf32>
    %341 = arith.addf %305, %340 : vector<8x8xf32>
    %c73 = arith.constant 73 : index
    %342 = memref.load %arg1[%c73] : memref<580xf32, #tpu.memory_space<smem>>
    %343 = vector.broadcast %342 : f32 to vector<8x8xf32>
    %344 = arith.mulf %343, %337 : vector<8x8xf32>
    %345 = arith.addf %309, %344 : vector<8x8xf32>
    %c74 = arith.constant 74 : index
    %346 = memref.load %arg1[%c74] : memref<580xf32, #tpu.memory_space<smem>>
    %347 = vector.broadcast %346 : f32 to vector<8x8xf32>
    %348 = arith.mulf %347, %337 : vector<8x8xf32>
    %349 = arith.addf %313, %348 : vector<8x8xf32>
    %c75 = arith.constant 75 : index
    %350 = memref.load %arg1[%c75] : memref<580xf32, #tpu.memory_space<smem>>
    %351 = vector.broadcast %350 : f32 to vector<8x8xf32>
    %352 = arith.mulf %351, %337 : vector<8x8xf32>
    %353 = arith.addf %317, %352 : vector<8x8xf32>
    %c0_79 = arith.constant 0 : index
    %c15_80 = arith.constant 15 : index
    %c0_81 = arith.constant 0 : index
    %c0_82 = arith.constant 0 : index
    %354 = vector.load %arg2[%c0_79, %c15_80, %c0_81, %c0_82] : memref<1x16x9x9xf32, #tpu.memory_space<vmem>>, vector<1x1x8x8xf32>
    %355 = vector.shape_cast %354 : vector<1x1x8x8xf32> to vector<8x8xf32>
    %c76 = arith.constant 76 : index
    %356 = memref.load %arg1[%c76] : memref<580xf32, #tpu.memory_space<smem>>
    %357 = vector.broadcast %356 : f32 to vector<8x8xf32>
    %358 = arith.mulf %357, %355 : vector<8x8xf32>
    %359 = arith.addf %323, %358 : vector<8x8xf32>
    %c77 = arith.constant 77 : index
    %360 = memref.load %arg1[%c77] : memref<580xf32, #tpu.memory_space<smem>>
    %361 = vector.broadcast %360 : f32 to vector<8x8xf32>
    %362 = arith.mulf %361, %355 : vector<8x8xf32>
    %363 = arith.addf %327, %362 : vector<8x8xf32>
    %c78 = arith.constant 78 : index
    %364 = memref.load %arg1[%c78] : memref<580xf32, #tpu.memory_space<smem>>
    %365 = vector.broadcast %364 : f32 to vector<8x8xf32>
    %366 = arith.mulf %365, %355 : vector<8x8xf32>
    %367 = arith.addf %331, %366 : vector<8x8xf32>
    %c79 = arith.constant 79 : index
    %368 = memref.load %arg1[%c79] : memref<580xf32, #tpu.memory_space<smem>>
    %369 = vector.broadcast %368 : f32 to vector<8x8xf32>
    %370 = arith.mulf %369, %355 : vector<8x8xf32>
    %371 = arith.addf %335, %370 : vector<8x8xf32>
    %c0_83 = arith.constant 0 : index
    %c8_84 = arith.constant 8 : index
    %c0_85 = arith.constant 0 : index
    %c1_86 = arith.constant 1 : index
    %372 = vector.load %arg2[%c0_83, %c8_84, %c0_85, %c1_86] : memref<1x16x9x9xf32, #tpu.memory_space<vmem>>, vector<1x1x8x8xf32>
    %373 = vector.shape_cast %372 : vector<1x1x8x8xf32> to vector<8x8xf32>
    %c80 = arith.constant 80 : index
    %374 = memref.load %arg1[%c80] : memref<580xf32, #tpu.memory_space<smem>>
    %375 = vector.broadcast %374 : f32 to vector<8x8xf32>
    %376 = arith.mulf %375, %373 : vector<8x8xf32>
    %377 = arith.addf %341, %376 : vector<8x8xf32>
    %c81 = arith.constant 81 : index
    %378 = memref.load %arg1[%c81] : memref<580xf32, #tpu.memory_space<smem>>
    %379 = vector.broadcast %378 : f32 to vector<8x8xf32>
    %380 = arith.mulf %379, %373 : vector<8x8xf32>
    %381 = arith.addf %345, %380 : vector<8x8xf32>
    %c82 = arith.constant 82 : index
    %382 = memref.load %arg1[%c82] : memref<580xf32, #tpu.memory_space<smem>>
    %383 = vector.broadcast %382 : f32 to vector<8x8xf32>
    %384 = arith.mulf %383, %373 : vector<8x8xf32>
    %385 = arith.addf %349, %384 : vector<8x8xf32>
    %c83 = arith.constant 83 : index
    %386 = memref.load %arg1[%c83] : memref<580xf32, #tpu.memory_space<smem>>
    %387 = vector.broadcast %386 : f32 to vector<8x8xf32>
    %388 = arith.mulf %387, %373 : vector<8x8xf32>
    %389 = arith.addf %353, %388 : vector<8x8xf32>
    %c0_87 = arith.constant 0 : index
    %c9_88 = arith.constant 9 : index
    %c0_89 = arith.constant 0 : index
    %c1_90 = arith.constant 1 : index
    %390 = vector.load %arg2[%c0_87, %c9_88, %c0_89, %c1_90] : memref<1x16x9x9xf32, #tpu.memory_space<vmem>>, vector<1x1x8x8xf32>
    %391 = vector.shape_cast %390 : vector<1x1x8x8xf32> to vector<8x8xf32>
    %c84 = arith.constant 84 : index
    %392 = memref.load %arg1[%c84] : memref<580xf32, #tpu.memory_space<smem>>
    %393 = vector.broadcast %392 : f32 to vector<8x8xf32>
    %394 = arith.mulf %393, %391 : vector<8x8xf32>
    %395 = arith.addf %359, %394 : vector<8x8xf32>
    %c85 = arith.constant 85 : index
    %396 = memref.load %arg1[%c85] : memref<580xf32, #tpu.memory_space<smem>>
    %397 = vector.broadcast %396 : f32 to vector<8x8xf32>
    %398 = arith.mulf %397, %391 : vector<8x8xf32>
    %399 = arith.addf %363, %398 : vector<8x8xf32>
    %c86 = arith.constant 86 : index
    %400 = memref.load %arg1[%c86] : memref<580xf32, #tpu.memory_space<smem>>
    %401 = vector.broadcast %400 : f32 to vector<8x8xf32>
    %402 = arith.mulf %401, %391 : vector<8x8xf32>
    %403 = arith.addf %367, %402 : vector<8x8xf32>
    %c87 = arith.constant 87 : index
    %404 = memref.load %arg1[%c87] : memref<580xf32, #tpu.memory_space<smem>>
    %405 = vector.broadcast %404 : f32 to vector<8x8xf32>
    %406 = arith.mulf %405, %391 : vector<8x8xf32>
    %407 = arith.addf %371, %406 : vector<8x8xf32>
    %c0_91 = arith.constant 0 : index
    %c10_92 = arith.constant 10 : index
    %c0_93 = arith.constant 0 : index
    %c1_94 = arith.constant 1 : index
    %408 = vector.load %arg2[%c0_91, %c10_92, %c0_93, %c1_94] : memref<1x16x9x9xf32, #tpu.memory_space<vmem>>, vector<1x1x8x8xf32>
    %409 = vector.shape_cast %408 : vector<1x1x8x8xf32> to vector<8x8xf32>
    %c88 = arith.constant 88 : index
    %410 = memref.load %arg1[%c88] : memref<580xf32, #tpu.memory_space<smem>>
    %411 = vector.broadcast %410 : f32 to vector<8x8xf32>
    %412 = arith.mulf %411, %409 : vector<8x8xf32>
    %413 = arith.addf %377, %412 : vector<8x8xf32>
    %c89 = arith.constant 89 : index
    %414 = memref.load %arg1[%c89] : memref<580xf32, #tpu.memory_space<smem>>
    %415 = vector.broadcast %414 : f32 to vector<8x8xf32>
    %416 = arith.mulf %415, %409 : vector<8x8xf32>
    %417 = arith.addf %381, %416 : vector<8x8xf32>
    %c90 = arith.constant 90 : index
    %418 = memref.load %arg1[%c90] : memref<580xf32, #tpu.memory_space<smem>>
    %419 = vector.broadcast %418 : f32 to vector<8x8xf32>
    %420 = arith.mulf %419, %409 : vector<8x8xf32>
    %421 = arith.addf %385, %420 : vector<8x8xf32>
    %c91 = arith.constant 91 : index
    %422 = memref.load %arg1[%c91] : memref<580xf32, #tpu.memory_space<smem>>
    %423 = vector.broadcast %422 : f32 to vector<8x8xf32>
    %424 = arith.mulf %423, %409 : vector<8x8xf32>
    %425 = arith.addf %389, %424 : vector<8x8xf32>
    %c0_95 = arith.constant 0 : index
    %c11_96 = arith.constant 11 : index
    %c0_97 = arith.constant 0 : index
    %c1_98 = arith.constant 1 : index
    %426 = vector.load %arg2[%c0_95, %c11_96, %c0_97, %c1_98] : memref<1x16x9x9xf32, #tpu.memory_space<vmem>>, vector<1x1x8x8xf32>
    %427 = vector.shape_cast %426 : vector<1x1x8x8xf32> to vector<8x8xf32>
    %c92 = arith.constant 92 : index
    %428 = memref.load %arg1[%c92] : memref<580xf32, #tpu.memory_space<smem>>
    %429 = vector.broadcast %428 : f32 to vector<8x8xf32>
    %430 = arith.mulf %429, %427 : vector<8x8xf32>
    %431 = arith.addf %395, %430 : vector<8x8xf32>
    %c93 = arith.constant 93 : index
    %432 = memref.load %arg1[%c93] : memref<580xf32, #tpu.memory_space<smem>>
    %433 = vector.broadcast %432 : f32 to vector<8x8xf32>
    %434 = arith.mulf %433, %427 : vector<8x8xf32>
    %435 = arith.addf %399, %434 : vector<8x8xf32>
    %c94 = arith.constant 94 : index
    %436 = memref.load %arg1[%c94] : memref<580xf32, #tpu.memory_space<smem>>
    %437 = vector.broadcast %436 : f32 to vector<8x8xf32>
    %438 = arith.mulf %437, %427 : vector<8x8xf32>
    %439 = arith.addf %403, %438 : vector<8x8xf32>
    %c95 = arith.constant 95 : index
    %440 = memref.load %arg1[%c95] : memref<580xf32, #tpu.memory_space<smem>>
    %441 = vector.broadcast %440 : f32 to vector<8x8xf32>
    %442 = arith.mulf %441, %427 : vector<8x8xf32>
    %443 = arith.addf %407, %442 : vector<8x8xf32>
    %c0_99 = arith.constant 0 : index
    %c0_100 = arith.constant 0 : index
    %c1_101 = arith.constant 1 : index
    %c0_102 = arith.constant 0 : index
    %444 = vector.load %arg2[%c0_99, %c0_100, %c1_101, %c0_102] : memref<1x16x9x9xf32, #tpu.memory_space<vmem>>, vector<1x1x8x8xf32>
    %445 = vector.shape_cast %444 : vector<1x1x8x8xf32> to vector<8x8xf32>
    %c96 = arith.constant 96 : index
    %446 = memref.load %arg1[%c96] : memref<580xf32, #tpu.memory_space<smem>>
    %447 = vector.broadcast %446 : f32 to vector<8x8xf32>
    %448 = arith.mulf %447, %445 : vector<8x8xf32>
    %449 = arith.addf %413, %448 : vector<8x8xf32>
    %c97 = arith.constant 97 : index
    %450 = memref.load %arg1[%c97] : memref<580xf32, #tpu.memory_space<smem>>
    %451 = vector.broadcast %450 : f32 to vector<8x8xf32>
    %452 = arith.mulf %451, %445 : vector<8x8xf32>
    %453 = arith.addf %417, %452 : vector<8x8xf32>
    %c98 = arith.constant 98 : index
    %454 = memref.load %arg1[%c98] : memref<580xf32, #tpu.memory_space<smem>>
    %455 = vector.broadcast %454 : f32 to vector<8x8xf32>
    %456 = arith.mulf %455, %445 : vector<8x8xf32>
    %457 = arith.addf %421, %456 : vector<8x8xf32>
    %c99 = arith.constant 99 : index
    %458 = memref.load %arg1[%c99] : memref<580xf32, #tpu.memory_space<smem>>
    %459 = vector.broadcast %458 : f32 to vector<8x8xf32>
    %460 = arith.mulf %459, %445 : vector<8x8xf32>
    %461 = arith.addf %425, %460 : vector<8x8xf32>
    %c0_103 = arith.constant 0 : index
    %c1_104 = arith.constant 1 : index
    %c1_105 = arith.constant 1 : index
    %c0_106 = arith.constant 0 : index
    %462 = vector.load %arg2[%c0_103, %c1_104, %c1_105, %c0_106] : memref<1x16x9x9xf32, #tpu.memory_space<vmem>>, vector<1x1x8x8xf32>
    %463 = vector.shape_cast %462 : vector<1x1x8x8xf32> to vector<8x8xf32>
    %c100 = arith.constant 100 : index
    %464 = memref.load %arg1[%c100] : memref<580xf32, #tpu.memory_space<smem>>
    %465 = vector.broadcast %464 : f32 to vector<8x8xf32>
    %466 = arith.mulf %465, %463 : vector<8x8xf32>
    %467 = arith.addf %431, %466 : vector<8x8xf32>
    %c101 = arith.constant 101 : index
    %468 = memref.load %arg1[%c101] : memref<580xf32, #tpu.memory_space<smem>>
    %469 = vector.broadcast %468 : f32 to vector<8x8xf32>
    %470 = arith.mulf %469, %463 : vector<8x8xf32>
    %471 = arith.addf %435, %470 : vector<8x8xf32>
    %c102 = arith.constant 102 : index
    %472 = memref.load %arg1[%c102] : memref<580xf32, #tpu.memory_space<smem>>
    %473 = vector.broadcast %472 : f32 to vector<8x8xf32>
    %474 = arith.mulf %473, %463 : vector<8x8xf32>
    %475 = arith.addf %439, %474 : vector<8x8xf32>
    %c103 = arith.constant 103 : index
    %476 = memref.load %arg1[%c103] : memref<580xf32, #tpu.memory_space<smem>>
    %477 = vector.broadcast %476 : f32 to vector<8x8xf32>
    %478 = arith.mulf %477, %463 : vector<8x8xf32>
    %479 = arith.addf %443, %478 : vector<8x8xf32>
    %c0_107 = arith.constant 0 : index
    %c2_108 = arith.constant 2 : index
    %c1_109 = arith.constant 1 : index
    %c0_110 = arith.constant 0 : index
    %480 = vector.load %arg2[%c0_107, %c2_108, %c1_109, %c0_110] : memref<1x16x9x9xf32, #tpu.memory_space<vmem>>, vector<1x1x8x8xf32>
    %481 = vector.shape_cast %480 : vector<1x1x8x8xf32> to vector<8x8xf32>
    %c104 = arith.constant 104 : index
    %482 = memref.load %arg1[%c104] : memref<580xf32, #tpu.memory_space<smem>>
    %483 = vector.broadcast %482 : f32 to vector<8x8xf32>
    %484 = arith.mulf %483, %481 : vector<8x8xf32>
    %485 = arith.addf %449, %484 : vector<8x8xf32>
    %c105 = arith.constant 105 : index
    %486 = memref.load %arg1[%c105] : memref<580xf32, #tpu.memory_space<smem>>
    %487 = vector.broadcast %486 : f32 to vector<8x8xf32>
    %488 = arith.mulf %487, %481 : vector<8x8xf32>
    %489 = arith.addf %453, %488 : vector<8x8xf32>
    %c106 = arith.constant 106 : index
    %490 = memref.load %arg1[%c106] : memref<580xf32, #tpu.memory_space<smem>>
    %491 = vector.broadcast %490 : f32 to vector<8x8xf32>
    %492 = arith.mulf %491, %481 : vector<8x8xf32>
    %493 = arith.addf %457, %492 : vector<8x8xf32>
    %c107 = arith.constant 107 : index
    %494 = memref.load %arg1[%c107] : memref<580xf32, #tpu.memory_space<smem>>
    %495 = vector.broadcast %494 : f32 to vector<8x8xf32>
    %496 = arith.mulf %495, %481 : vector<8x8xf32>
    %497 = arith.addf %461, %496 : vector<8x8xf32>
    %c0_111 = arith.constant 0 : index
    %c3_112 = arith.constant 3 : index
    %c1_113 = arith.constant 1 : index
    %c0_114 = arith.constant 0 : index
    %498 = vector.load %arg2[%c0_111, %c3_112, %c1_113, %c0_114] : memref<1x16x9x9xf32, #tpu.memory_space<vmem>>, vector<1x1x8x8xf32>
    %499 = vector.shape_cast %498 : vector<1x1x8x8xf32> to vector<8x8xf32>
    %c108 = arith.constant 108 : index
    %500 = memref.load %arg1[%c108] : memref<580xf32, #tpu.memory_space<smem>>
    %501 = vector.broadcast %500 : f32 to vector<8x8xf32>
    %502 = arith.mulf %501, %499 : vector<8x8xf32>
    %503 = arith.addf %467, %502 : vector<8x8xf32>
    %c109 = arith.constant 109 : index
    %504 = memref.load %arg1[%c109] : memref<580xf32, #tpu.memory_space<smem>>
    %505 = vector.broadcast %504 : f32 to vector<8x8xf32>
    %506 = arith.mulf %505, %499 : vector<8x8xf32>
    %507 = arith.addf %471, %506 : vector<8x8xf32>
    %c110 = arith.constant 110 : index
    %508 = memref.load %arg1[%c110] : memref<580xf32, #tpu.memory_space<smem>>
    %509 = vector.broadcast %508 : f32 to vector<8x8xf32>
    %510 = arith.mulf %509, %499 : vector<8x8xf32>
    %511 = arith.addf %475, %510 : vector<8x8xf32>
    %c111 = arith.constant 111 : index
    %512 = memref.load %arg1[%c111] : memref<580xf32, #tpu.memory_space<smem>>
    %513 = vector.broadcast %512 : f32 to vector<8x8xf32>
    %514 = arith.mulf %513, %499 : vector<8x8xf32>
    %515 = arith.addf %479, %514 : vector<8x8xf32>
    %c0_115 = arith.constant 0 : index
    %c4_116 = arith.constant 4 : index
    %c1_117 = arith.constant 1 : index
    %c0_118 = arith.constant 0 : index
    %516 = vector.load %arg2[%c0_115, %c4_116, %c1_117, %c0_118] : memref<1x16x9x9xf32, #tpu.memory_space<vmem>>, vector<1x1x8x8xf32>
    %517 = vector.shape_cast %516 : vector<1x1x8x8xf32> to vector<8x8xf32>
    %c112 = arith.constant 112 : index
    %518 = memref.load %arg1[%c112] : memref<580xf32, #tpu.memory_space<smem>>
    %519 = vector.broadcast %518 : f32 to vector<8x8xf32>
    %520 = arith.mulf %519, %517 : vector<8x8xf32>
    %521 = arith.addf %485, %520 : vector<8x8xf32>
    %c113 = arith.constant 113 : index
    %522 = memref.load %arg1[%c113] : memref<580xf32, #tpu.memory_space<smem>>
    %523 = vector.broadcast %522 : f32 to vector<8x8xf32>
    %524 = arith.mulf %523, %517 : vector<8x8xf32>
    %525 = arith.addf %489, %524 : vector<8x8xf32>
    %c114 = arith.constant 114 : index
    %526 = memref.load %arg1[%c114] : memref<580xf32, #tpu.memory_space<smem>>
    %527 = vector.broadcast %526 : f32 to vector<8x8xf32>
    %528 = arith.mulf %527, %517 : vector<8x8xf32>
    %529 = arith.addf %493, %528 : vector<8x8xf32>
    %c115 = arith.constant 115 : index
    %530 = memref.load %arg1[%c115] : memref<580xf32, #tpu.memory_space<smem>>
    %531 = vector.broadcast %530 : f32 to vector<8x8xf32>
    %532 = arith.mulf %531, %517 : vector<8x8xf32>
    %533 = arith.addf %497, %532 : vector<8x8xf32>
    %c0_119 = arith.constant 0 : index
    %c5_120 = arith.constant 5 : index
    %c1_121 = arith.constant 1 : index
    %c0_122 = arith.constant 0 : index
    %534 = vector.load %arg2[%c0_119, %c5_120, %c1_121, %c0_122] : memref<1x16x9x9xf32, #tpu.memory_space<vmem>>, vector<1x1x8x8xf32>
    %535 = vector.shape_cast %534 : vector<1x1x8x8xf32> to vector<8x8xf32>
    %c116 = arith.constant 116 : index
    %536 = memref.load %arg1[%c116] : memref<580xf32, #tpu.memory_space<smem>>
    %537 = vector.broadcast %536 : f32 to vector<8x8xf32>
    %538 = arith.mulf %537, %535 : vector<8x8xf32>
    %539 = arith.addf %503, %538 : vector<8x8xf32>
    %c117 = arith.constant 117 : index
    %540 = memref.load %arg1[%c117] : memref<580xf32, #tpu.memory_space<smem>>
    %541 = vector.broadcast %540 : f32 to vector<8x8xf32>
    %542 = arith.mulf %541, %535 : vector<8x8xf32>
    %543 = arith.addf %507, %542 : vector<8x8xf32>
    %c118 = arith.constant 118 : index
    %544 = memref.load %arg1[%c118] : memref<580xf32, #tpu.memory_space<smem>>
    %545 = vector.broadcast %544 : f32 to vector<8x8xf32>
    %546 = arith.mulf %545, %535 : vector<8x8xf32>
    %547 = arith.addf %511, %546 : vector<8x8xf32>
    %c119 = arith.constant 119 : index
    %548 = memref.load %arg1[%c119] : memref<580xf32, #tpu.memory_space<smem>>
    %549 = vector.broadcast %548 : f32 to vector<8x8xf32>
    %550 = arith.mulf %549, %535 : vector<8x8xf32>
    %551 = arith.addf %515, %550 : vector<8x8xf32>
    %c0_123 = arith.constant 0 : index
    %c6_124 = arith.constant 6 : index
    %c1_125 = arith.constant 1 : index
    %c0_126 = arith.constant 0 : index
    %552 = vector.load %arg2[%c0_123, %c6_124, %c1_125, %c0_126] : memref<1x16x9x9xf32, #tpu.memory_space<vmem>>, vector<1x1x8x8xf32>
    %553 = vector.shape_cast %552 : vector<1x1x8x8xf32> to vector<8x8xf32>
    %c120 = arith.constant 120 : index
    %554 = memref.load %arg1[%c120] : memref<580xf32, #tpu.memory_space<smem>>
    %555 = vector.broadcast %554 : f32 to vector<8x8xf32>
    %556 = arith.mulf %555, %553 : vector<8x8xf32>
    %557 = arith.addf %521, %556 : vector<8x8xf32>
    %c121 = arith.constant 121 : index
    %558 = memref.load %arg1[%c121] : memref<580xf32, #tpu.memory_space<smem>>
    %559 = vector.broadcast %558 : f32 to vector<8x8xf32>
    %560 = arith.mulf %559, %553 : vector<8x8xf32>
    %561 = arith.addf %525, %560 : vector<8x8xf32>
    %c122 = arith.constant 122 : index
    %562 = memref.load %arg1[%c122] : memref<580xf32, #tpu.memory_space<smem>>
    %563 = vector.broadcast %562 : f32 to vector<8x8xf32>
    %564 = arith.mulf %563, %553 : vector<8x8xf32>
    %565 = arith.addf %529, %564 : vector<8x8xf32>
    %c123 = arith.constant 123 : index
    %566 = memref.load %arg1[%c123] : memref<580xf32, #tpu.memory_space<smem>>
    %567 = vector.broadcast %566 : f32 to vector<8x8xf32>
    %568 = arith.mulf %567, %553 : vector<8x8xf32>
    %569 = arith.addf %533, %568 : vector<8x8xf32>
    %c0_127 = arith.constant 0 : index
    %c7_128 = arith.constant 7 : index
    %c1_129 = arith.constant 1 : index
    %c0_130 = arith.constant 0 : index
    %570 = vector.load %arg2[%c0_127, %c7_128, %c1_129, %c0_130] : memref<1x16x9x9xf32, #tpu.memory_space<vmem>>, vector<1x1x8x8xf32>
    %571 = vector.shape_cast %570 : vector<1x1x8x8xf32> to vector<8x8xf32>
    %c124 = arith.constant 124 : index
    %572 = memref.load %arg1[%c124] : memref<580xf32, #tpu.memory_space<smem>>
    %573 = vector.broadcast %572 : f32 to vector<8x8xf32>
    %574 = arith.mulf %573, %571 : vector<8x8xf32>
    %575 = arith.addf %539, %574 : vector<8x8xf32>
    %c125 = arith.constant 125 : index
    %576 = memref.load %arg1[%c125] : memref<580xf32, #tpu.memory_space<smem>>
    %577 = vector.broadcast %576 : f32 to vector<8x8xf32>
    %578 = arith.mulf %577, %571 : vector<8x8xf32>
    %579 = arith.addf %543, %578 : vector<8x8xf32>
    %c126 = arith.constant 126 : index
    %580 = memref.load %arg1[%c126] : memref<580xf32, #tpu.memory_space<smem>>
    %581 = vector.broadcast %580 : f32 to vector<8x8xf32>
    %582 = arith.mulf %581, %571 : vector<8x8xf32>
    %583 = arith.addf %547, %582 : vector<8x8xf32>
    %c127 = arith.constant 127 : index
    %584 = memref.load %arg1[%c127] : memref<580xf32, #tpu.memory_space<smem>>
    %585 = vector.broadcast %584 : f32 to vector<8x8xf32>
    %586 = arith.mulf %585, %571 : vector<8x8xf32>
    %587 = arith.addf %551, %586 : vector<8x8xf32>
    %c0_131 = arith.constant 0 : index
    %c0_132 = arith.constant 0 : index
    %c1_133 = arith.constant 1 : index
    %c1_134 = arith.constant 1 : index
    %588 = vector.load %arg2[%c0_131, %c0_132, %c1_133, %c1_134] : memref<1x16x9x9xf32, #tpu.memory_space<vmem>>, vector<1x1x8x8xf32>
    %589 = vector.shape_cast %588 : vector<1x1x8x8xf32> to vector<8x8xf32>
    %c128 = arith.constant 128 : index
    %590 = memref.load %arg1[%c128] : memref<580xf32, #tpu.memory_space<smem>>
    %591 = vector.broadcast %590 : f32 to vector<8x8xf32>
    %592 = arith.mulf %591, %589 : vector<8x8xf32>
    %593 = arith.addf %557, %592 : vector<8x8xf32>
    %c129 = arith.constant 129 : index
    %594 = memref.load %arg1[%c129] : memref<580xf32, #tpu.memory_space<smem>>
    %595 = vector.broadcast %594 : f32 to vector<8x8xf32>
    %596 = arith.mulf %595, %589 : vector<8x8xf32>
    %597 = arith.addf %561, %596 : vector<8x8xf32>
    %c130 = arith.constant 130 : index
    %598 = memref.load %arg1[%c130] : memref<580xf32, #tpu.memory_space<smem>>
    %599 = vector.broadcast %598 : f32 to vector<8x8xf32>
    %600 = arith.mulf %599, %589 : vector<8x8xf32>
    %601 = arith.addf %565, %600 : vector<8x8xf32>
    %c131 = arith.constant 131 : index
    %602 = memref.load %arg1[%c131] : memref<580xf32, #tpu.memory_space<smem>>
    %603 = vector.broadcast %602 : f32 to vector<8x8xf32>
    %604 = arith.mulf %603, %589 : vector<8x8xf32>
    %605 = arith.addf %569, %604 : vector<8x8xf32>
    %c0_135 = arith.constant 0 : index
    %c1_136 = arith.constant 1 : index
    %c1_137 = arith.constant 1 : index
    %c1_138 = arith.constant 1 : index
    %606 = vector.load %arg2[%c0_135, %c1_136, %c1_137, %c1_138] : memref<1x16x9x9xf32, #tpu.memory_space<vmem>>, vector<1x1x8x8xf32>
    %607 = vector.shape_cast %606 : vector<1x1x8x8xf32> to vector<8x8xf32>
    %c132 = arith.constant 132 : index
    %608 = memref.load %arg1[%c132] : memref<580xf32, #tpu.memory_space<smem>>
    %609 = vector.broadcast %608 : f32 to vector<8x8xf32>
    %610 = arith.mulf %609, %607 : vector<8x8xf32>
    %611 = arith.addf %575, %610 : vector<8x8xf32>
    %c133 = arith.constant 133 : index
    %612 = memref.load %arg1[%c133] : memref<580xf32, #tpu.memory_space<smem>>
    %613 = vector.broadcast %612 : f32 to vector<8x8xf32>
    %614 = arith.mulf %613, %607 : vector<8x8xf32>
    %615 = arith.addf %579, %614 : vector<8x8xf32>
    %c134 = arith.constant 134 : index
    %616 = memref.load %arg1[%c134] : memref<580xf32, #tpu.memory_space<smem>>
    %617 = vector.broadcast %616 : f32 to vector<8x8xf32>
    %618 = arith.mulf %617, %607 : vector<8x8xf32>
    %619 = arith.addf %583, %618 : vector<8x8xf32>
    %c135 = arith.constant 135 : index
    %620 = memref.load %arg1[%c135] : memref<580xf32, #tpu.memory_space<smem>>
    %621 = vector.broadcast %620 : f32 to vector<8x8xf32>
    %622 = arith.mulf %621, %607 : vector<8x8xf32>
    %623 = arith.addf %587, %622 : vector<8x8xf32>
    %c0_139 = arith.constant 0 : index
    %c2_140 = arith.constant 2 : index
    %c1_141 = arith.constant 1 : index
    %c1_142 = arith.constant 1 : index
    %624 = vector.load %arg2[%c0_139, %c2_140, %c1_141, %c1_142] : memref<1x16x9x9xf32, #tpu.memory_space<vmem>>, vector<1x1x8x8xf32>
    %625 = vector.shape_cast %624 : vector<1x1x8x8xf32> to vector<8x8xf32>
    %c136 = arith.constant 136 : index
    %626 = memref.load %arg1[%c136] : memref<580xf32, #tpu.memory_space<smem>>
    %627 = vector.broadcast %626 : f32 to vector<8x8xf32>
    %628 = arith.mulf %627, %625 : vector<8x8xf32>
    %629 = arith.addf %593, %628 : vector<8x8xf32>
    %c137 = arith.constant 137 : index
    %630 = memref.load %arg1[%c137] : memref<580xf32, #tpu.memory_space<smem>>
    %631 = vector.broadcast %630 : f32 to vector<8x8xf32>
    %632 = arith.mulf %631, %625 : vector<8x8xf32>
    %633 = arith.addf %597, %632 : vector<8x8xf32>
    %c138 = arith.constant 138 : index
    %634 = memref.load %arg1[%c138] : memref<580xf32, #tpu.memory_space<smem>>
    %635 = vector.broadcast %634 : f32 to vector<8x8xf32>
    %636 = arith.mulf %635, %625 : vector<8x8xf32>
    %637 = arith.addf %601, %636 : vector<8x8xf32>
    %c139 = arith.constant 139 : index
    %638 = memref.load %arg1[%c139] : memref<580xf32, #tpu.memory_space<smem>>
    %639 = vector.broadcast %638 : f32 to vector<8x8xf32>
    %640 = arith.mulf %639, %625 : vector<8x8xf32>
    %641 = arith.addf %605, %640 : vector<8x8xf32>
    %c0_143 = arith.constant 0 : index
    %c3_144 = arith.constant 3 : index
    %c1_145 = arith.constant 1 : index
    %c1_146 = arith.constant 1 : index
    %642 = vector.load %arg2[%c0_143, %c3_144, %c1_145, %c1_146] : memref<1x16x9x9xf32, #tpu.memory_space<vmem>>, vector<1x1x8x8xf32>
    %643 = vector.shape_cast %642 : vector<1x1x8x8xf32> to vector<8x8xf32>
    %c140 = arith.constant 140 : index
    %644 = memref.load %arg1[%c140] : memref<580xf32, #tpu.memory_space<smem>>
    %645 = vector.broadcast %644 : f32 to vector<8x8xf32>
    %646 = arith.mulf %645, %643 : vector<8x8xf32>
    %647 = arith.addf %611, %646 : vector<8x8xf32>
    %c141 = arith.constant 141 : index
    %648 = memref.load %arg1[%c141] : memref<580xf32, #tpu.memory_space<smem>>
    %649 = vector.broadcast %648 : f32 to vector<8x8xf32>
    %650 = arith.mulf %649, %643 : vector<8x8xf32>
    %651 = arith.addf %615, %650 : vector<8x8xf32>
    %c142 = arith.constant 142 : index
    %652 = memref.load %arg1[%c142] : memref<580xf32, #tpu.memory_space<smem>>
    %653 = vector.broadcast %652 : f32 to vector<8x8xf32>
    %654 = arith.mulf %653, %643 : vector<8x8xf32>
    %655 = arith.addf %619, %654 : vector<8x8xf32>
    %c143 = arith.constant 143 : index
    %656 = memref.load %arg1[%c143] : memref<580xf32, #tpu.memory_space<smem>>
    %657 = vector.broadcast %656 : f32 to vector<8x8xf32>
    %658 = arith.mulf %657, %643 : vector<8x8xf32>
    %659 = arith.addf %623, %658 : vector<8x8xf32>
    %660 = arith.addf %629, %647 : vector<8x8xf32>
    %661 = arith.addf %633, %651 : vector<8x8xf32>
    %662 = arith.addf %637, %655 : vector<8x8xf32>
    %663 = arith.addf %641, %659 : vector<8x8xf32>
    %cst_147 = arith.constant 0.000000e+00 : f32
    %664 = vector.broadcast %cst_147 : f32 to vector<8x8xf32>
    %665 = arith.maximumf %660, %664 : vector<8x8xf32>
    %cst_148 = arith.constant 0.000000e+00 : f32
    %666 = vector.broadcast %cst_148 : f32 to vector<8x8xf32>
    %667 = arith.maximumf %661, %666 : vector<8x8xf32>
    %cst_149 = arith.constant 0.000000e+00 : f32
    %668 = vector.broadcast %cst_149 : f32 to vector<8x8xf32>
    %669 = arith.maximumf %662, %668 : vector<8x8xf32>
    %cst_150 = arith.constant 0.000000e+00 : f32
    %670 = vector.broadcast %cst_150 : f32 to vector<8x8xf32>
    %671 = arith.maximumf %663, %670 : vector<8x8xf32>
    %c184 = arith.constant 184 : index
    %672 = memref.load %arg1[%c184] : memref<580xf32, #tpu.memory_space<smem>>
    %673 = vector.broadcast %672 : f32 to vector<8x8xf32>
    %cst_151 = arith.constant 0.000000e+00 : f32
    %674 = vector.broadcast %cst_151 : f32 to vector<8x8xf32>
    %c148 = arith.constant 148 : index
    %675 = memref.load %arg1[%c148] : memref<580xf32, #tpu.memory_space<smem>>
    %cst_152 = arith.constant 0.000000e+00 : f32
    %676 = vector.broadcast %cst_152 : f32 to vector<1x8xf32>
    %677 = vector.extract_strided_slice %665 {offsets = [0, 0], sizes = [7, 8], strides = [1, 1]} : vector<8x8xf32> to vector<7x8xf32>
    %678 = tpu.concatenate %676, %677 in 0 : vector<1x8xf32>, vector<7x8xf32> -> vector<8x8xf32>
    %cst_153 = arith.constant 0.000000e+00 : f32
    %679 = vector.broadcast %cst_153 : f32 to vector<8x1xf32>
    %680 = vector.extract_strided_slice %678 {offsets = [0, 0], sizes = [8, 7], strides = [1, 1]} : vector<8x8xf32> to vector<8x7xf32>
    %681 = tpu.concatenate %679, %680 in 1 : vector<8x1xf32>, vector<8x7xf32> -> vector<8x8xf32>
    %682 = vector.broadcast %675 : f32 to vector<8x8xf32>
    %683 = arith.mulf %682, %681 : vector<8x8xf32>
    %684 = arith.addf %673, %683 : vector<8x8xf32>
    %c152 = arith.constant 152 : index
    %685 = memref.load %arg1[%c152] : memref<580xf32, #tpu.memory_space<smem>>
    %cst_154 = arith.constant 0.000000e+00 : f32
    %686 = vector.broadcast %cst_154 : f32 to vector<1x8xf32>
    %687 = vector.extract_strided_slice %665 {offsets = [0, 0], sizes = [7, 8], strides = [1, 1]} : vector<8x8xf32> to vector<7x8xf32>
    %688 = tpu.concatenate %686, %687 in 0 : vector<1x8xf32>, vector<7x8xf32> -> vector<8x8xf32>
    %689 = vector.broadcast %685 : f32 to vector<8x8xf32>
    %690 = arith.mulf %689, %688 : vector<8x8xf32>
    %691 = arith.addf %674, %690 : vector<8x8xf32>
    %c156 = arith.constant 156 : index
    %692 = memref.load %arg1[%c156] : memref<580xf32, #tpu.memory_space<smem>>
    %cst_155 = arith.constant 0.000000e+00 : f32
    %693 = vector.broadcast %cst_155 : f32 to vector<1x8xf32>
    %694 = vector.extract_strided_slice %665 {offsets = [0, 0], sizes = [7, 8], strides = [1, 1]} : vector<8x8xf32> to vector<7x8xf32>
    %695 = tpu.concatenate %693, %694 in 0 : vector<1x8xf32>, vector<7x8xf32> -> vector<8x8xf32>
    %696 = vector.extract_strided_slice %695 {offsets = [0, 1], sizes = [8, 7], strides = [1, 1]} : vector<8x8xf32> to vector<8x7xf32>
    %cst_156 = arith.constant 0.000000e+00 : f32
    %697 = vector.broadcast %cst_156 : f32 to vector<8x1xf32>
    %698 = tpu.concatenate %696, %697 in 1 : vector<8x7xf32>, vector<8x1xf32> -> vector<8x8xf32>
    %699 = vector.broadcast %692 : f32 to vector<8x8xf32>
    %700 = arith.mulf %699, %698 : vector<8x8xf32>
    %701 = arith.addf %684, %700 : vector<8x8xf32>
    %c160 = arith.constant 160 : index
    %702 = memref.load %arg1[%c160] : memref<580xf32, #tpu.memory_space<smem>>
    %cst_157 = arith.constant 0.000000e+00 : f32
    %703 = vector.broadcast %cst_157 : f32 to vector<8x1xf32>
    %704 = vector.extract_strided_slice %665 {offsets = [0, 0], sizes = [8, 7], strides = [1, 1]} : vector<8x8xf32> to vector<8x7xf32>
    %705 = tpu.concatenate %703, %704 in 1 : vector<8x1xf32>, vector<8x7xf32> -> vector<8x8xf32>
    %706 = vector.broadcast %702 : f32 to vector<8x8xf32>
    %707 = arith.mulf %706, %705 : vector<8x8xf32>
    %708 = arith.addf %691, %707 : vector<8x8xf32>
    %c164 = arith.constant 164 : index
    %709 = memref.load %arg1[%c164] : memref<580xf32, #tpu.memory_space<smem>>
    %710 = vector.broadcast %709 : f32 to vector<8x8xf32>
    %711 = arith.mulf %710, %665 : vector<8x8xf32>
    %712 = arith.addf %701, %711 : vector<8x8xf32>
    %c168 = arith.constant 168 : index
    %713 = memref.load %arg1[%c168] : memref<580xf32, #tpu.memory_space<smem>>
    %714 = vector.extract_strided_slice %665 {offsets = [0, 1], sizes = [8, 7], strides = [1, 1]} : vector<8x8xf32> to vector<8x7xf32>
    %cst_158 = arith.constant 0.000000e+00 : f32
    %715 = vector.broadcast %cst_158 : f32 to vector<8x1xf32>
    %716 = tpu.concatenate %714, %715 in 1 : vector<8x7xf32>, vector<8x1xf32> -> vector<8x8xf32>
    %717 = vector.broadcast %713 : f32 to vector<8x8xf32>
    %718 = arith.mulf %717, %716 : vector<8x8xf32>
    %719 = arith.addf %708, %718 : vector<8x8xf32>
    %c172 = arith.constant 172 : index
    %720 = memref.load %arg1[%c172] : memref<580xf32, #tpu.memory_space<smem>>
    %721 = vector.extract_strided_slice %665 {offsets = [1, 0], sizes = [7, 8], strides = [1, 1]} : vector<8x8xf32> to vector<7x8xf32>
    %cst_159 = arith.constant 0.000000e+00 : f32
    %722 = vector.broadcast %cst_159 : f32 to vector<1x8xf32>
    %723 = tpu.concatenate %721, %722 in 0 : vector<7x8xf32>, vector<1x8xf32> -> vector<8x8xf32>
    %cst_160 = arith.constant 0.000000e+00 : f32
    %724 = vector.broadcast %cst_160 : f32 to vector<8x1xf32>
    %725 = vector.extract_strided_slice %723 {offsets = [0, 0], sizes = [8, 7], strides = [1, 1]} : vector<8x8xf32> to vector<8x7xf32>
    %726 = tpu.concatenate %724, %725 in 1 : vector<8x1xf32>, vector<8x7xf32> -> vector<8x8xf32>
    %727 = vector.broadcast %720 : f32 to vector<8x8xf32>
    %728 = arith.mulf %727, %726 : vector<8x8xf32>
    %729 = arith.addf %712, %728 : vector<8x8xf32>
    %c176 = arith.constant 176 : index
    %730 = memref.load %arg1[%c176] : memref<580xf32, #tpu.memory_space<smem>>
    %731 = vector.extract_strided_slice %665 {offsets = [1, 0], sizes = [7, 8], strides = [1, 1]} : vector<8x8xf32> to vector<7x8xf32>
    %cst_161 = arith.constant 0.000000e+00 : f32
    %732 = vector.broadcast %cst_161 : f32 to vector<1x8xf32>
    %733 = tpu.concatenate %731, %732 in 0 : vector<7x8xf32>, vector<1x8xf32> -> vector<8x8xf32>
    %734 = vector.broadcast %730 : f32 to vector<8x8xf32>
    %735 = arith.mulf %734, %733 : vector<8x8xf32>
    %736 = arith.addf %719, %735 : vector<8x8xf32>
    %c180 = arith.constant 180 : index
    %737 = memref.load %arg1[%c180] : memref<580xf32, #tpu.memory_space<smem>>
    %738 = vector.extract_strided_slice %665 {offsets = [1, 0], sizes = [7, 8], strides = [1, 1]} : vector<8x8xf32> to vector<7x8xf32>
    %cst_162 = arith.constant 0.000000e+00 : f32
    %739 = vector.broadcast %cst_162 : f32 to vector<1x8xf32>
    %740 = tpu.concatenate %738, %739 in 0 : vector<7x8xf32>, vector<1x8xf32> -> vector<8x8xf32>
    %741 = vector.extract_strided_slice %740 {offsets = [0, 1], sizes = [8, 7], strides = [1, 1]} : vector<8x8xf32> to vector<8x7xf32>
    %cst_163 = arith.constant 0.000000e+00 : f32
    %742 = vector.broadcast %cst_163 : f32 to vector<8x1xf32>
    %743 = tpu.concatenate %741, %742 in 1 : vector<8x7xf32>, vector<8x1xf32> -> vector<8x8xf32>
    %744 = vector.broadcast %737 : f32 to vector<8x8xf32>
    %745 = arith.mulf %744, %743 : vector<8x8xf32>
    %746 = arith.addf %729, %745 : vector<8x8xf32>
    %747 = arith.addf %746, %736 : vector<8x8xf32>
    %cst_164 = arith.constant 0.000000e+00 : f32
    %748 = vector.broadcast %cst_164 : f32 to vector<8x8xf32>
    %749 = arith.maximumf %747, %748 : vector<8x8xf32>
    %c185 = arith.constant 185 : index
    %750 = memref.load %arg1[%c185] : memref<580xf32, #tpu.memory_space<smem>>
    %751 = vector.broadcast %750 : f32 to vector<8x8xf32>
    %cst_165 = arith.constant 0.000000e+00 : f32
    %752 = vector.broadcast %cst_165 : f32 to vector<8x8xf32>
    %c149 = arith.constant 149 : index
    %753 = memref.load %arg1[%c149] : memref<580xf32, #tpu.memory_space<smem>>
    %cst_166 = arith.constant 0.000000e+00 : f32
    %754 = vector.broadcast %cst_166 : f32 to vector<1x8xf32>
    %755 = vector.extract_strided_slice %667 {offsets = [0, 0], sizes = [7, 8], strides = [1, 1]} : vector<8x8xf32> to vector<7x8xf32>
    %756 = tpu.concatenate %754, %755 in 0 : vector<1x8xf32>, vector<7x8xf32> -> vector<8x8xf32>
    %cst_167 = arith.constant 0.000000e+00 : f32
    %757 = vector.broadcast %cst_167 : f32 to vector<8x1xf32>
    %758 = vector.extract_strided_slice %756 {offsets = [0, 0], sizes = [8, 7], strides = [1, 1]} : vector<8x8xf32> to vector<8x7xf32>
    %759 = tpu.concatenate %757, %758 in 1 : vector<8x1xf32>, vector<8x7xf32> -> vector<8x8xf32>
    %760 = vector.broadcast %753 : f32 to vector<8x8xf32>
    %761 = arith.mulf %760, %759 : vector<8x8xf32>
    %762 = arith.addf %751, %761 : vector<8x8xf32>
    %c153 = arith.constant 153 : index
    %763 = memref.load %arg1[%c153] : memref<580xf32, #tpu.memory_space<smem>>
    %cst_168 = arith.constant 0.000000e+00 : f32
    %764 = vector.broadcast %cst_168 : f32 to vector<1x8xf32>
    %765 = vector.extract_strided_slice %667 {offsets = [0, 0], sizes = [7, 8], strides = [1, 1]} : vector<8x8xf32> to vector<7x8xf32>
    %766 = tpu.concatenate %764, %765 in 0 : vector<1x8xf32>, vector<7x8xf32> -> vector<8x8xf32>
    %767 = vector.broadcast %763 : f32 to vector<8x8xf32>
    %768 = arith.mulf %767, %766 : vector<8x8xf32>
    %769 = arith.addf %752, %768 : vector<8x8xf32>
    %c157 = arith.constant 157 : index
    %770 = memref.load %arg1[%c157] : memref<580xf32, #tpu.memory_space<smem>>
    %cst_169 = arith.constant 0.000000e+00 : f32
    %771 = vector.broadcast %cst_169 : f32 to vector<1x8xf32>
    %772 = vector.extract_strided_slice %667 {offsets = [0, 0], sizes = [7, 8], strides = [1, 1]} : vector<8x8xf32> to vector<7x8xf32>
    %773 = tpu.concatenate %771, %772 in 0 : vector<1x8xf32>, vector<7x8xf32> -> vector<8x8xf32>
    %774 = vector.extract_strided_slice %773 {offsets = [0, 1], sizes = [8, 7], strides = [1, 1]} : vector<8x8xf32> to vector<8x7xf32>
    %cst_170 = arith.constant 0.000000e+00 : f32
    %775 = vector.broadcast %cst_170 : f32 to vector<8x1xf32>
    %776 = tpu.concatenate %774, %775 in 1 : vector<8x7xf32>, vector<8x1xf32> -> vector<8x8xf32>
    %777 = vector.broadcast %770 : f32 to vector<8x8xf32>
    %778 = arith.mulf %777, %776 : vector<8x8xf32>
    %779 = arith.addf %762, %778 : vector<8x8xf32>
    %c161 = arith.constant 161 : index
    %780 = memref.load %arg1[%c161] : memref<580xf32, #tpu.memory_space<smem>>
    %cst_171 = arith.constant 0.000000e+00 : f32
    %781 = vector.broadcast %cst_171 : f32 to vector<8x1xf32>
    %782 = vector.extract_strided_slice %667 {offsets = [0, 0], sizes = [8, 7], strides = [1, 1]} : vector<8x8xf32> to vector<8x7xf32>
    %783 = tpu.concatenate %781, %782 in 1 : vector<8x1xf32>, vector<8x7xf32> -> vector<8x8xf32>
    %784 = vector.broadcast %780 : f32 to vector<8x8xf32>
    %785 = arith.mulf %784, %783 : vector<8x8xf32>
    %786 = arith.addf %769, %785 : vector<8x8xf32>
    %c165 = arith.constant 165 : index
    %787 = memref.load %arg1[%c165] : memref<580xf32, #tpu.memory_space<smem>>
    %788 = vector.broadcast %787 : f32 to vector<8x8xf32>
    %789 = arith.mulf %788, %667 : vector<8x8xf32>
    %790 = arith.addf %779, %789 : vector<8x8xf32>
    %c169 = arith.constant 169 : index
    %791 = memref.load %arg1[%c169] : memref<580xf32, #tpu.memory_space<smem>>
    %792 = vector.extract_strided_slice %667 {offsets = [0, 1], sizes = [8, 7], strides = [1, 1]} : vector<8x8xf32> to vector<8x7xf32>
    %cst_172 = arith.constant 0.000000e+00 : f32
    %793 = vector.broadcast %cst_172 : f32 to vector<8x1xf32>
    %794 = tpu.concatenate %792, %793 in 1 : vector<8x7xf32>, vector<8x1xf32> -> vector<8x8xf32>
    %795 = vector.broadcast %791 : f32 to vector<8x8xf32>
    %796 = arith.mulf %795, %794 : vector<8x8xf32>
    %797 = arith.addf %786, %796 : vector<8x8xf32>
    %c173 = arith.constant 173 : index
    %798 = memref.load %arg1[%c173] : memref<580xf32, #tpu.memory_space<smem>>
    %799 = vector.extract_strided_slice %667 {offsets = [1, 0], sizes = [7, 8], strides = [1, 1]} : vector<8x8xf32> to vector<7x8xf32>
    %cst_173 = arith.constant 0.000000e+00 : f32
    %800 = vector.broadcast %cst_173 : f32 to vector<1x8xf32>
    %801 = tpu.concatenate %799, %800 in 0 : vector<7x8xf32>, vector<1x8xf32> -> vector<8x8xf32>
    %cst_174 = arith.constant 0.000000e+00 : f32
    %802 = vector.broadcast %cst_174 : f32 to vector<8x1xf32>
    %803 = vector.extract_strided_slice %801 {offsets = [0, 0], sizes = [8, 7], strides = [1, 1]} : vector<8x8xf32> to vector<8x7xf32>
    %804 = tpu.concatenate %802, %803 in 1 : vector<8x1xf32>, vector<8x7xf32> -> vector<8x8xf32>
    %805 = vector.broadcast %798 : f32 to vector<8x8xf32>
    %806 = arith.mulf %805, %804 : vector<8x8xf32>
    %807 = arith.addf %790, %806 : vector<8x8xf32>
    %c177 = arith.constant 177 : index
    %808 = memref.load %arg1[%c177] : memref<580xf32, #tpu.memory_space<smem>>
    %809 = vector.extract_strided_slice %667 {offsets = [1, 0], sizes = [7, 8], strides = [1, 1]} : vector<8x8xf32> to vector<7x8xf32>
    %cst_175 = arith.constant 0.000000e+00 : f32
    %810 = vector.broadcast %cst_175 : f32 to vector<1x8xf32>
    %811 = tpu.concatenate %809, %810 in 0 : vector<7x8xf32>, vector<1x8xf32> -> vector<8x8xf32>
    %812 = vector.broadcast %808 : f32 to vector<8x8xf32>
    %813 = arith.mulf %812, %811 : vector<8x8xf32>
    %814 = arith.addf %797, %813 : vector<8x8xf32>
    %c181 = arith.constant 181 : index
    %815 = memref.load %arg1[%c181] : memref<580xf32, #tpu.memory_space<smem>>
    %816 = vector.extract_strided_slice %667 {offsets = [1, 0], sizes = [7, 8], strides = [1, 1]} : vector<8x8xf32> to vector<7x8xf32>
    %cst_176 = arith.constant 0.000000e+00 : f32
    %817 = vector.broadcast %cst_176 : f32 to vector<1x8xf32>
    %818 = tpu.concatenate %816, %817 in 0 : vector<7x8xf32>, vector<1x8xf32> -> vector<8x8xf32>
    %819 = vector.extract_strided_slice %818 {offsets = [0, 1], sizes = [8, 7], strides = [1, 1]} : vector<8x8xf32> to vector<8x7xf32>
    %cst_177 = arith.constant 0.000000e+00 : f32
    %820 = vector.broadcast %cst_177 : f32 to vector<8x1xf32>
    %821 = tpu.concatenate %819, %820 in 1 : vector<8x7xf32>, vector<8x1xf32> -> vector<8x8xf32>
    %822 = vector.broadcast %815 : f32 to vector<8x8xf32>
    %823 = arith.mulf %822, %821 : vector<8x8xf32>
    %824 = arith.addf %807, %823 : vector<8x8xf32>
    %825 = arith.addf %824, %814 : vector<8x8xf32>
    %cst_178 = arith.constant 0.000000e+00 : f32
    %826 = vector.broadcast %cst_178 : f32 to vector<8x8xf32>
    %827 = arith.maximumf %825, %826 : vector<8x8xf32>
    %c186 = arith.constant 186 : index
    %828 = memref.load %arg1[%c186] : memref<580xf32, #tpu.memory_space<smem>>
    %829 = vector.broadcast %828 : f32 to vector<8x8xf32>
    %cst_179 = arith.constant 0.000000e+00 : f32
    %830 = vector.broadcast %cst_179 : f32 to vector<8x8xf32>
    %c150 = arith.constant 150 : index
    %831 = memref.load %arg1[%c150] : memref<580xf32, #tpu.memory_space<smem>>
    %cst_180 = arith.constant 0.000000e+00 : f32
    %832 = vector.broadcast %cst_180 : f32 to vector<1x8xf32>
    %833 = vector.extract_strided_slice %669 {offsets = [0, 0], sizes = [7, 8], strides = [1, 1]} : vector<8x8xf32> to vector<7x8xf32>
    %834 = tpu.concatenate %832, %833 in 0 : vector<1x8xf32>, vector<7x8xf32> -> vector<8x8xf32>
    %cst_181 = arith.constant 0.000000e+00 : f32
    %835 = vector.broadcast %cst_181 : f32 to vector<8x1xf32>
    %836 = vector.extract_strided_slice %834 {offsets = [0, 0], sizes = [8, 7], strides = [1, 1]} : vector<8x8xf32> to vector<8x7xf32>
    %837 = tpu.concatenate %835, %836 in 1 : vector<8x1xf32>, vector<8x7xf32> -> vector<8x8xf32>
    %838 = vector.broadcast %831 : f32 to vector<8x8xf32>
    %839 = arith.mulf %838, %837 : vector<8x8xf32>
    %840 = arith.addf %829, %839 : vector<8x8xf32>
    %c154 = arith.constant 154 : index
    %841 = memref.load %arg1[%c154] : memref<580xf32, #tpu.memory_space<smem>>
    %cst_182 = arith.constant 0.000000e+00 : f32
    %842 = vector.broadcast %cst_182 : f32 to vector<1x8xf32>
    %843 = vector.extract_strided_slice %669 {offsets = [0, 0], sizes = [7, 8], strides = [1, 1]} : vector<8x8xf32> to vector<7x8xf32>
    %844 = tpu.concatenate %842, %843 in 0 : vector<1x8xf32>, vector<7x8xf32> -> vector<8x8xf32>
    %845 = vector.broadcast %841 : f32 to vector<8x8xf32>
    %846 = arith.mulf %845, %844 : vector<8x8xf32>
    %847 = arith.addf %830, %846 : vector<8x8xf32>
    %c158 = arith.constant 158 : index
    %848 = memref.load %arg1[%c158] : memref<580xf32, #tpu.memory_space<smem>>
    %cst_183 = arith.constant 0.000000e+00 : f32
    %849 = vector.broadcast %cst_183 : f32 to vector<1x8xf32>
    %850 = vector.extract_strided_slice %669 {offsets = [0, 0], sizes = [7, 8], strides = [1, 1]} : vector<8x8xf32> to vector<7x8xf32>
    %851 = tpu.concatenate %849, %850 in 0 : vector<1x8xf32>, vector<7x8xf32> -> vector<8x8xf32>
    %852 = vector.extract_strided_slice %851 {offsets = [0, 1], sizes = [8, 7], strides = [1, 1]} : vector<8x8xf32> to vector<8x7xf32>
    %cst_184 = arith.constant 0.000000e+00 : f32
    %853 = vector.broadcast %cst_184 : f32 to vector<8x1xf32>
    %854 = tpu.concatenate %852, %853 in 1 : vector<8x7xf32>, vector<8x1xf32> -> vector<8x8xf32>
    %855 = vector.broadcast %848 : f32 to vector<8x8xf32>
    %856 = arith.mulf %855, %854 : vector<8x8xf32>
    %857 = arith.addf %840, %856 : vector<8x8xf32>
    %c162 = arith.constant 162 : index
    %858 = memref.load %arg1[%c162] : memref<580xf32, #tpu.memory_space<smem>>
    %cst_185 = arith.constant 0.000000e+00 : f32
    %859 = vector.broadcast %cst_185 : f32 to vector<8x1xf32>
    %860 = vector.extract_strided_slice %669 {offsets = [0, 0], sizes = [8, 7], strides = [1, 1]} : vector<8x8xf32> to vector<8x7xf32>
    %861 = tpu.concatenate %859, %860 in 1 : vector<8x1xf32>, vector<8x7xf32> -> vector<8x8xf32>
    %862 = vector.broadcast %858 : f32 to vector<8x8xf32>
    %863 = arith.mulf %862, %861 : vector<8x8xf32>
    %864 = arith.addf %847, %863 : vector<8x8xf32>
    %c166 = arith.constant 166 : index
    %865 = memref.load %arg1[%c166] : memref<580xf32, #tpu.memory_space<smem>>
    %866 = vector.broadcast %865 : f32 to vector<8x8xf32>
    %867 = arith.mulf %866, %669 : vector<8x8xf32>
    %868 = arith.addf %857, %867 : vector<8x8xf32>
    %c170 = arith.constant 170 : index
    %869 = memref.load %arg1[%c170] : memref<580xf32, #tpu.memory_space<smem>>
    %870 = vector.extract_strided_slice %669 {offsets = [0, 1], sizes = [8, 7], strides = [1, 1]} : vector<8x8xf32> to vector<8x7xf32>
    %cst_186 = arith.constant 0.000000e+00 : f32
    %871 = vector.broadcast %cst_186 : f32 to vector<8x1xf32>
    %872 = tpu.concatenate %870, %871 in 1 : vector<8x7xf32>, vector<8x1xf32> -> vector<8x8xf32>
    %873 = vector.broadcast %869 : f32 to vector<8x8xf32>
    %874 = arith.mulf %873, %872 : vector<8x8xf32>
    %875 = arith.addf %864, %874 : vector<8x8xf32>
    %c174 = arith.constant 174 : index
    %876 = memref.load %arg1[%c174] : memref<580xf32, #tpu.memory_space<smem>>
    %877 = vector.extract_strided_slice %669 {offsets = [1, 0], sizes = [7, 8], strides = [1, 1]} : vector<8x8xf32> to vector<7x8xf32>
    %cst_187 = arith.constant 0.000000e+00 : f32
    %878 = vector.broadcast %cst_187 : f32 to vector<1x8xf32>
    %879 = tpu.concatenate %877, %878 in 0 : vector<7x8xf32>, vector<1x8xf32> -> vector<8x8xf32>
    %cst_188 = arith.constant 0.000000e+00 : f32
    %880 = vector.broadcast %cst_188 : f32 to vector<8x1xf32>
    %881 = vector.extract_strided_slice %879 {offsets = [0, 0], sizes = [8, 7], strides = [1, 1]} : vector<8x8xf32> to vector<8x7xf32>
    %882 = tpu.concatenate %880, %881 in 1 : vector<8x1xf32>, vector<8x7xf32> -> vector<8x8xf32>
    %883 = vector.broadcast %876 : f32 to vector<8x8xf32>
    %884 = arith.mulf %883, %882 : vector<8x8xf32>
    %885 = arith.addf %868, %884 : vector<8x8xf32>
    %c178 = arith.constant 178 : index
    %886 = memref.load %arg1[%c178] : memref<580xf32, #tpu.memory_space<smem>>
    %887 = vector.extract_strided_slice %669 {offsets = [1, 0], sizes = [7, 8], strides = [1, 1]} : vector<8x8xf32> to vector<7x8xf32>
    %cst_189 = arith.constant 0.000000e+00 : f32
    %888 = vector.broadcast %cst_189 : f32 to vector<1x8xf32>
    %889 = tpu.concatenate %887, %888 in 0 : vector<7x8xf32>, vector<1x8xf32> -> vector<8x8xf32>
    %890 = vector.broadcast %886 : f32 to vector<8x8xf32>
    %891 = arith.mulf %890, %889 : vector<8x8xf32>
    %892 = arith.addf %875, %891 : vector<8x8xf32>
    %c182 = arith.constant 182 : index
    %893 = memref.load %arg1[%c182] : memref<580xf32, #tpu.memory_space<smem>>
    %894 = vector.extract_strided_slice %669 {offsets = [1, 0], sizes = [7, 8], strides = [1, 1]} : vector<8x8xf32> to vector<7x8xf32>
    %cst_190 = arith.constant 0.000000e+00 : f32
    %895 = vector.broadcast %cst_190 : f32 to vector<1x8xf32>
    %896 = tpu.concatenate %894, %895 in 0 : vector<7x8xf32>, vector<1x8xf32> -> vector<8x8xf32>
    %897 = vector.extract_strided_slice %896 {offsets = [0, 1], sizes = [8, 7], strides = [1, 1]} : vector<8x8xf32> to vector<8x7xf32>
    %cst_191 = arith.constant 0.000000e+00 : f32
    %898 = vector.broadcast %cst_191 : f32 to vector<8x1xf32>
    %899 = tpu.concatenate %897, %898 in 1 : vector<8x7xf32>, vector<8x1xf32> -> vector<8x8xf32>
    %900 = vector.broadcast %893 : f32 to vector<8x8xf32>
    %901 = arith.mulf %900, %899 : vector<8x8xf32>
    %902 = arith.addf %885, %901 : vector<8x8xf32>
    %903 = arith.addf %902, %892 : vector<8x8xf32>
    %cst_192 = arith.constant 0.000000e+00 : f32
    %904 = vector.broadcast %cst_192 : f32 to vector<8x8xf32>
    %905 = arith.maximumf %903, %904 : vector<8x8xf32>
    %c187 = arith.constant 187 : index
    %906 = memref.load %arg1[%c187] : memref<580xf32, #tpu.memory_space<smem>>
    %907 = vector.broadcast %906 : f32 to vector<8x8xf32>
    %cst_193 = arith.constant 0.000000e+00 : f32
    %908 = vector.broadcast %cst_193 : f32 to vector<8x8xf32>
    %c151 = arith.constant 151 : index
    %909 = memref.load %arg1[%c151] : memref<580xf32, #tpu.memory_space<smem>>
    %cst_194 = arith.constant 0.000000e+00 : f32
    %910 = vector.broadcast %cst_194 : f32 to vector<1x8xf32>
    %911 = vector.extract_strided_slice %671 {offsets = [0, 0], sizes = [7, 8], strides = [1, 1]} : vector<8x8xf32> to vector<7x8xf32>
    %912 = tpu.concatenate %910, %911 in 0 : vector<1x8xf32>, vector<7x8xf32> -> vector<8x8xf32>
    %cst_195 = arith.constant 0.000000e+00 : f32
    %913 = vector.broadcast %cst_195 : f32 to vector<8x1xf32>
    %914 = vector.extract_strided_slice %912 {offsets = [0, 0], sizes = [8, 7], strides = [1, 1]} : vector<8x8xf32> to vector<8x7xf32>
    %915 = tpu.concatenate %913, %914 in 1 : vector<8x1xf32>, vector<8x7xf32> -> vector<8x8xf32>
    %916 = vector.broadcast %909 : f32 to vector<8x8xf32>
    %917 = arith.mulf %916, %915 : vector<8x8xf32>
    %918 = arith.addf %907, %917 : vector<8x8xf32>
    %c155 = arith.constant 155 : index
    %919 = memref.load %arg1[%c155] : memref<580xf32, #tpu.memory_space<smem>>
    %cst_196 = arith.constant 0.000000e+00 : f32
    %920 = vector.broadcast %cst_196 : f32 to vector<1x8xf32>
    %921 = vector.extract_strided_slice %671 {offsets = [0, 0], sizes = [7, 8], strides = [1, 1]} : vector<8x8xf32> to vector<7x8xf32>
    %922 = tpu.concatenate %920, %921 in 0 : vector<1x8xf32>, vector<7x8xf32> -> vector<8x8xf32>
    %923 = vector.broadcast %919 : f32 to vector<8x8xf32>
    %924 = arith.mulf %923, %922 : vector<8x8xf32>
    %925 = arith.addf %908, %924 : vector<8x8xf32>
    %c159 = arith.constant 159 : index
    %926 = memref.load %arg1[%c159] : memref<580xf32, #tpu.memory_space<smem>>
    %cst_197 = arith.constant 0.000000e+00 : f32
    %927 = vector.broadcast %cst_197 : f32 to vector<1x8xf32>
    %928 = vector.extract_strided_slice %671 {offsets = [0, 0], sizes = [7, 8], strides = [1, 1]} : vector<8x8xf32> to vector<7x8xf32>
    %929 = tpu.concatenate %927, %928 in 0 : vector<1x8xf32>, vector<7x8xf32> -> vector<8x8xf32>
    %930 = vector.extract_strided_slice %929 {offsets = [0, 1], sizes = [8, 7], strides = [1, 1]} : vector<8x8xf32> to vector<8x7xf32>
    %cst_198 = arith.constant 0.000000e+00 : f32
    %931 = vector.broadcast %cst_198 : f32 to vector<8x1xf32>
    %932 = tpu.concatenate %930, %931 in 1 : vector<8x7xf32>, vector<8x1xf32> -> vector<8x8xf32>
    %933 = vector.broadcast %926 : f32 to vector<8x8xf32>
    %934 = arith.mulf %933, %932 : vector<8x8xf32>
    %935 = arith.addf %918, %934 : vector<8x8xf32>
    %c163 = arith.constant 163 : index
    %936 = memref.load %arg1[%c163] : memref<580xf32, #tpu.memory_space<smem>>
    %cst_199 = arith.constant 0.000000e+00 : f32
    %937 = vector.broadcast %cst_199 : f32 to vector<8x1xf32>
    %938 = vector.extract_strided_slice %671 {offsets = [0, 0], sizes = [8, 7], strides = [1, 1]} : vector<8x8xf32> to vector<8x7xf32>
    %939 = tpu.concatenate %937, %938 in 1 : vector<8x1xf32>, vector<8x7xf32> -> vector<8x8xf32>
    %940 = vector.broadcast %936 : f32 to vector<8x8xf32>
    %941 = arith.mulf %940, %939 : vector<8x8xf32>
    %942 = arith.addf %925, %941 : vector<8x8xf32>
    %c167 = arith.constant 167 : index
    %943 = memref.load %arg1[%c167] : memref<580xf32, #tpu.memory_space<smem>>
    %944 = vector.broadcast %943 : f32 to vector<8x8xf32>
    %945 = arith.mulf %944, %671 : vector<8x8xf32>
    %946 = arith.addf %935, %945 : vector<8x8xf32>
    %c171 = arith.constant 171 : index
    %947 = memref.load %arg1[%c171] : memref<580xf32, #tpu.memory_space<smem>>
    %948 = vector.extract_strided_slice %671 {offsets = [0, 1], sizes = [8, 7], strides = [1, 1]} : vector<8x8xf32> to vector<8x7xf32>
    %cst_200 = arith.constant 0.000000e+00 : f32
    %949 = vector.broadcast %cst_200 : f32 to vector<8x1xf32>
    %950 = tpu.concatenate %948, %949 in 1 : vector<8x7xf32>, vector<8x1xf32> -> vector<8x8xf32>
    %951 = vector.broadcast %947 : f32 to vector<8x8xf32>
    %952 = arith.mulf %951, %950 : vector<8x8xf32>
    %953 = arith.addf %942, %952 : vector<8x8xf32>
    %c175 = arith.constant 175 : index
    %954 = memref.load %arg1[%c175] : memref<580xf32, #tpu.memory_space<smem>>
    %955 = vector.extract_strided_slice %671 {offsets = [1, 0], sizes = [7, 8], strides = [1, 1]} : vector<8x8xf32> to vector<7x8xf32>
    %cst_201 = arith.constant 0.000000e+00 : f32
    %956 = vector.broadcast %cst_201 : f32 to vector<1x8xf32>
    %957 = tpu.concatenate %955, %956 in 0 : vector<7x8xf32>, vector<1x8xf32> -> vector<8x8xf32>
    %cst_202 = arith.constant 0.000000e+00 : f32
    %958 = vector.broadcast %cst_202 : f32 to vector<8x1xf32>
    %959 = vector.extract_strided_slice %957 {offsets = [0, 0], sizes = [8, 7], strides = [1, 1]} : vector<8x8xf32> to vector<8x7xf32>
    %960 = tpu.concatenate %958, %959 in 1 : vector<8x1xf32>, vector<8x7xf32> -> vector<8x8xf32>
    %961 = vector.broadcast %954 : f32 to vector<8x8xf32>
    %962 = arith.mulf %961, %960 : vector<8x8xf32>
    %963 = arith.addf %946, %962 : vector<8x8xf32>
    %c179 = arith.constant 179 : index
    %964 = memref.load %arg1[%c179] : memref<580xf32, #tpu.memory_space<smem>>
    %965 = vector.extract_strided_slice %671 {offsets = [1, 0], sizes = [7, 8], strides = [1, 1]} : vector<8x8xf32> to vector<7x8xf32>
    %cst_203 = arith.constant 0.000000e+00 : f32
    %966 = vector.broadcast %cst_203 : f32 to vector<1x8xf32>
    %967 = tpu.concatenate %965, %966 in 0 : vector<7x8xf32>, vector<1x8xf32> -> vector<8x8xf32>
    %968 = vector.broadcast %964 : f32 to vector<8x8xf32>
    %969 = arith.mulf %968, %967 : vector<8x8xf32>
    %970 = arith.addf %953, %969 : vector<8x8xf32>
    %c183 = arith.constant 183 : index
    %971 = memref.load %arg1[%c183] : memref<580xf32, #tpu.memory_space<smem>>
    %972 = vector.extract_strided_slice %671 {offsets = [1, 0], sizes = [7, 8], strides = [1, 1]} : vector<8x8xf32> to vector<7x8xf32>
    %cst_204 = arith.constant 0.000000e+00 : f32
    %973 = vector.broadcast %cst_204 : f32 to vector<1x8xf32>
    %974 = tpu.concatenate %972, %973 in 0 : vector<7x8xf32>, vector<1x8xf32> -> vector<8x8xf32>
    %975 = vector.extract_strided_slice %974 {offsets = [0, 1], sizes = [8, 7], strides = [1, 1]} : vector<8x8xf32> to vector<8x7xf32>
    %cst_205 = arith.constant 0.000000e+00 : f32
    %976 = vector.broadcast %cst_205 : f32 to vector<8x1xf32>
    %977 = tpu.concatenate %975, %976 in 1 : vector<8x7xf32>, vector<8x1xf32> -> vector<8x8xf32>
    %978 = vector.broadcast %971 : f32 to vector<8x8xf32>
    %979 = arith.mulf %978, %977 : vector<8x8xf32>
    %980 = arith.addf %963, %979 : vector<8x8xf32>
    %981 = arith.addf %980, %970 : vector<8x8xf32>
    %cst_206 = arith.constant 0.000000e+00 : f32
    %982 = vector.broadcast %cst_206 : f32 to vector<8x8xf32>
    %983 = arith.maximumf %981, %982 : vector<8x8xf32>
    %c476 = arith.constant 476 : index
    %984 = memref.load %arg1[%c476] : memref<580xf32, #tpu.memory_space<smem>>
    %985 = vector.broadcast %984 : f32 to vector<8x8xf32>
    %c477 = arith.constant 477 : index
    %986 = memref.load %arg1[%c477] : memref<580xf32, #tpu.memory_space<smem>>
    %987 = vector.broadcast %986 : f32 to vector<8x8xf32>
    %c478 = arith.constant 478 : index
    %988 = memref.load %arg1[%c478] : memref<580xf32, #tpu.memory_space<smem>>
    %989 = vector.broadcast %988 : f32 to vector<8x8xf32>
    %c479 = arith.constant 479 : index
    %990 = memref.load %arg1[%c479] : memref<580xf32, #tpu.memory_space<smem>>
    %991 = vector.broadcast %990 : f32 to vector<8x8xf32>
    %cst_207 = arith.constant 0.000000e+00 : f32
    %992 = vector.broadcast %cst_207 : f32 to vector<8x8xf32>
    %cst_208 = arith.constant 0.000000e+00 : f32
    %993 = vector.broadcast %cst_208 : f32 to vector<8x8xf32>
    %cst_209 = arith.constant 0.000000e+00 : f32
    %994 = vector.broadcast %cst_209 : f32 to vector<8x8xf32>
    %cst_210 = arith.constant 0.000000e+00 : f32
    %995 = vector.broadcast %cst_210 : f32 to vector<8x8xf32>
    %cst_211 = arith.constant 0.000000e+00 : f32
    %996 = vector.broadcast %cst_211 : f32 to vector<1x8xf32>
    %997 = vector.extract_strided_slice %665 {offsets = [0, 0], sizes = [7, 8], strides = [1, 1]} : vector<8x8xf32> to vector<7x8xf32>
    %998 = tpu.concatenate %996, %997 in 0 : vector<1x8xf32>, vector<7x8xf32> -> vector<8x8xf32>
    %cst_212 = arith.constant 0.000000e+00 : f32
    %999 = vector.broadcast %cst_212 : f32 to vector<8x1xf32>
    %1000 = vector.extract_strided_slice %998 {offsets = [0, 0], sizes = [8, 7], strides = [1, 1]} : vector<8x8xf32> to vector<8x7xf32>
    %1001 = tpu.concatenate %999, %1000 in 1 : vector<8x1xf32>, vector<8x7xf32> -> vector<8x8xf32>
    %c188 = arith.constant 188 : index
    %1002 = memref.load %arg1[%c188] : memref<580xf32, #tpu.memory_space<smem>>
    %1003 = vector.broadcast %1002 : f32 to vector<8x8xf32>
    %1004 = arith.mulf %1003, %1001 : vector<8x8xf32>
    %1005 = arith.addf %985, %1004 : vector<8x8xf32>
    %c189 = arith.constant 189 : index
    %1006 = memref.load %arg1[%c189] : memref<580xf32, #tpu.memory_space<smem>>
    %1007 = vector.broadcast %1006 : f32 to vector<8x8xf32>
    %1008 = arith.mulf %1007, %1001 : vector<8x8xf32>
    %1009 = arith.addf %987, %1008 : vector<8x8xf32>
    %c190 = arith.constant 190 : index
    %1010 = memref.load %arg1[%c190] : memref<580xf32, #tpu.memory_space<smem>>
    %1011 = vector.broadcast %1010 : f32 to vector<8x8xf32>
    %1012 = arith.mulf %1011, %1001 : vector<8x8xf32>
    %1013 = arith.addf %989, %1012 : vector<8x8xf32>
    %c191 = arith.constant 191 : index
    %1014 = memref.load %arg1[%c191] : memref<580xf32, #tpu.memory_space<smem>>
    %1015 = vector.broadcast %1014 : f32 to vector<8x8xf32>
    %1016 = arith.mulf %1015, %1001 : vector<8x8xf32>
    %1017 = arith.addf %991, %1016 : vector<8x8xf32>
    %cst_213 = arith.constant 0.000000e+00 : f32
    %1018 = vector.broadcast %cst_213 : f32 to vector<1x8xf32>
    %1019 = vector.extract_strided_slice %667 {offsets = [0, 0], sizes = [7, 8], strides = [1, 1]} : vector<8x8xf32> to vector<7x8xf32>
    %1020 = tpu.concatenate %1018, %1019 in 0 : vector<1x8xf32>, vector<7x8xf32> -> vector<8x8xf32>
    %cst_214 = arith.constant 0.000000e+00 : f32
    %1021 = vector.broadcast %cst_214 : f32 to vector<8x1xf32>
    %1022 = vector.extract_strided_slice %1020 {offsets = [0, 0], sizes = [8, 7], strides = [1, 1]} : vector<8x8xf32> to vector<8x7xf32>
    %1023 = tpu.concatenate %1021, %1022 in 1 : vector<8x1xf32>, vector<8x7xf32> -> vector<8x8xf32>
    %c192 = arith.constant 192 : index
    %1024 = memref.load %arg1[%c192] : memref<580xf32, #tpu.memory_space<smem>>
    %1025 = vector.broadcast %1024 : f32 to vector<8x8xf32>
    %1026 = arith.mulf %1025, %1023 : vector<8x8xf32>
    %1027 = arith.addf %992, %1026 : vector<8x8xf32>
    %c193 = arith.constant 193 : index
    %1028 = memref.load %arg1[%c193] : memref<580xf32, #tpu.memory_space<smem>>
    %1029 = vector.broadcast %1028 : f32 to vector<8x8xf32>
    %1030 = arith.mulf %1029, %1023 : vector<8x8xf32>
    %1031 = arith.addf %993, %1030 : vector<8x8xf32>
    %c194 = arith.constant 194 : index
    %1032 = memref.load %arg1[%c194] : memref<580xf32, #tpu.memory_space<smem>>
    %1033 = vector.broadcast %1032 : f32 to vector<8x8xf32>
    %1034 = arith.mulf %1033, %1023 : vector<8x8xf32>
    %1035 = arith.addf %994, %1034 : vector<8x8xf32>
    %c195 = arith.constant 195 : index
    %1036 = memref.load %arg1[%c195] : memref<580xf32, #tpu.memory_space<smem>>
    %1037 = vector.broadcast %1036 : f32 to vector<8x8xf32>
    %1038 = arith.mulf %1037, %1023 : vector<8x8xf32>
    %1039 = arith.addf %995, %1038 : vector<8x8xf32>
    %cst_215 = arith.constant 0.000000e+00 : f32
    %1040 = vector.broadcast %cst_215 : f32 to vector<1x8xf32>
    %1041 = vector.extract_strided_slice %669 {offsets = [0, 0], sizes = [7, 8], strides = [1, 1]} : vector<8x8xf32> to vector<7x8xf32>
    %1042 = tpu.concatenate %1040, %1041 in 0 : vector<1x8xf32>, vector<7x8xf32> -> vector<8x8xf32>
    %cst_216 = arith.constant 0.000000e+00 : f32
    %1043 = vector.broadcast %cst_216 : f32 to vector<8x1xf32>
    %1044 = vector.extract_strided_slice %1042 {offsets = [0, 0], sizes = [8, 7], strides = [1, 1]} : vector<8x8xf32> to vector<8x7xf32>
    %1045 = tpu.concatenate %1043, %1044 in 1 : vector<8x1xf32>, vector<8x7xf32> -> vector<8x8xf32>
    %c196 = arith.constant 196 : index
    %1046 = memref.load %arg1[%c196] : memref<580xf32, #tpu.memory_space<smem>>
    %1047 = vector.broadcast %1046 : f32 to vector<8x8xf32>
    %1048 = arith.mulf %1047, %1045 : vector<8x8xf32>
    %1049 = arith.addf %1005, %1048 : vector<8x8xf32>
    %c197 = arith.constant 197 : index
    %1050 = memref.load %arg1[%c197] : memref<580xf32, #tpu.memory_space<smem>>
    %1051 = vector.broadcast %1050 : f32 to vector<8x8xf32>
    %1052 = arith.mulf %1051, %1045 : vector<8x8xf32>
    %1053 = arith.addf %1009, %1052 : vector<8x8xf32>
    %c198 = arith.constant 198 : index
    %1054 = memref.load %arg1[%c198] : memref<580xf32, #tpu.memory_space<smem>>
    %1055 = vector.broadcast %1054 : f32 to vector<8x8xf32>
    %1056 = arith.mulf %1055, %1045 : vector<8x8xf32>
    %1057 = arith.addf %1013, %1056 : vector<8x8xf32>
    %c199 = arith.constant 199 : index
    %1058 = memref.load %arg1[%c199] : memref<580xf32, #tpu.memory_space<smem>>
    %1059 = vector.broadcast %1058 : f32 to vector<8x8xf32>
    %1060 = arith.mulf %1059, %1045 : vector<8x8xf32>
    %1061 = arith.addf %1017, %1060 : vector<8x8xf32>
    %cst_217 = arith.constant 0.000000e+00 : f32
    %1062 = vector.broadcast %cst_217 : f32 to vector<1x8xf32>
    %1063 = vector.extract_strided_slice %671 {offsets = [0, 0], sizes = [7, 8], strides = [1, 1]} : vector<8x8xf32> to vector<7x8xf32>
    %1064 = tpu.concatenate %1062, %1063 in 0 : vector<1x8xf32>, vector<7x8xf32> -> vector<8x8xf32>
    %cst_218 = arith.constant 0.000000e+00 : f32
    %1065 = vector.broadcast %cst_218 : f32 to vector<8x1xf32>
    %1066 = vector.extract_strided_slice %1064 {offsets = [0, 0], sizes = [8, 7], strides = [1, 1]} : vector<8x8xf32> to vector<8x7xf32>
    %1067 = tpu.concatenate %1065, %1066 in 1 : vector<8x1xf32>, vector<8x7xf32> -> vector<8x8xf32>
    %c200 = arith.constant 200 : index
    %1068 = memref.load %arg1[%c200] : memref<580xf32, #tpu.memory_space<smem>>
    %1069 = vector.broadcast %1068 : f32 to vector<8x8xf32>
    %1070 = arith.mulf %1069, %1067 : vector<8x8xf32>
    %1071 = arith.addf %1027, %1070 : vector<8x8xf32>
    %c201 = arith.constant 201 : index
    %1072 = memref.load %arg1[%c201] : memref<580xf32, #tpu.memory_space<smem>>
    %1073 = vector.broadcast %1072 : f32 to vector<8x8xf32>
    %1074 = arith.mulf %1073, %1067 : vector<8x8xf32>
    %1075 = arith.addf %1031, %1074 : vector<8x8xf32>
    %c202 = arith.constant 202 : index
    %1076 = memref.load %arg1[%c202] : memref<580xf32, #tpu.memory_space<smem>>
    %1077 = vector.broadcast %1076 : f32 to vector<8x8xf32>
    %1078 = arith.mulf %1077, %1067 : vector<8x8xf32>
    %1079 = arith.addf %1035, %1078 : vector<8x8xf32>
    %c203 = arith.constant 203 : index
    %1080 = memref.load %arg1[%c203] : memref<580xf32, #tpu.memory_space<smem>>
    %1081 = vector.broadcast %1080 : f32 to vector<8x8xf32>
    %1082 = arith.mulf %1081, %1067 : vector<8x8xf32>
    %1083 = arith.addf %1039, %1082 : vector<8x8xf32>
    %cst_219 = arith.constant 0.000000e+00 : f32
    %1084 = vector.broadcast %cst_219 : f32 to vector<1x8xf32>
    %1085 = vector.extract_strided_slice %749 {offsets = [0, 0], sizes = [7, 8], strides = [1, 1]} : vector<8x8xf32> to vector<7x8xf32>
    %1086 = tpu.concatenate %1084, %1085 in 0 : vector<1x8xf32>, vector<7x8xf32> -> vector<8x8xf32>
    %cst_220 = arith.constant 0.000000e+00 : f32
    %1087 = vector.broadcast %cst_220 : f32 to vector<8x1xf32>
    %1088 = vector.extract_strided_slice %1086 {offsets = [0, 0], sizes = [8, 7], strides = [1, 1]} : vector<8x8xf32> to vector<8x7xf32>
    %1089 = tpu.concatenate %1087, %1088 in 1 : vector<8x1xf32>, vector<8x7xf32> -> vector<8x8xf32>
    %c204 = arith.constant 204 : index
    %1090 = memref.load %arg1[%c204] : memref<580xf32, #tpu.memory_space<smem>>
    %1091 = vector.broadcast %1090 : f32 to vector<8x8xf32>
    %1092 = arith.mulf %1091, %1089 : vector<8x8xf32>
    %1093 = arith.addf %1049, %1092 : vector<8x8xf32>
    %c205 = arith.constant 205 : index
    %1094 = memref.load %arg1[%c205] : memref<580xf32, #tpu.memory_space<smem>>
    %1095 = vector.broadcast %1094 : f32 to vector<8x8xf32>
    %1096 = arith.mulf %1095, %1089 : vector<8x8xf32>
    %1097 = arith.addf %1053, %1096 : vector<8x8xf32>
    %c206 = arith.constant 206 : index
    %1098 = memref.load %arg1[%c206] : memref<580xf32, #tpu.memory_space<smem>>
    %1099 = vector.broadcast %1098 : f32 to vector<8x8xf32>
    %1100 = arith.mulf %1099, %1089 : vector<8x8xf32>
    %1101 = arith.addf %1057, %1100 : vector<8x8xf32>
    %c207 = arith.constant 207 : index
    %1102 = memref.load %arg1[%c207] : memref<580xf32, #tpu.memory_space<smem>>
    %1103 = vector.broadcast %1102 : f32 to vector<8x8xf32>
    %1104 = arith.mulf %1103, %1089 : vector<8x8xf32>
    %1105 = arith.addf %1061, %1104 : vector<8x8xf32>
    %cst_221 = arith.constant 0.000000e+00 : f32
    %1106 = vector.broadcast %cst_221 : f32 to vector<1x8xf32>
    %1107 = vector.extract_strided_slice %827 {offsets = [0, 0], sizes = [7, 8], strides = [1, 1]} : vector<8x8xf32> to vector<7x8xf32>
    %1108 = tpu.concatenate %1106, %1107 in 0 : vector<1x8xf32>, vector<7x8xf32> -> vector<8x8xf32>
    %cst_222 = arith.constant 0.000000e+00 : f32
    %1109 = vector.broadcast %cst_222 : f32 to vector<8x1xf32>
    %1110 = vector.extract_strided_slice %1108 {offsets = [0, 0], sizes = [8, 7], strides = [1, 1]} : vector<8x8xf32> to vector<8x7xf32>
    %1111 = tpu.concatenate %1109, %1110 in 1 : vector<8x1xf32>, vector<8x7xf32> -> vector<8x8xf32>
    %c208 = arith.constant 208 : index
    %1112 = memref.load %arg1[%c208] : memref<580xf32, #tpu.memory_space<smem>>
    %1113 = vector.broadcast %1112 : f32 to vector<8x8xf32>
    %1114 = arith.mulf %1113, %1111 : vector<8x8xf32>
    %1115 = arith.addf %1071, %1114 : vector<8x8xf32>
    %c209 = arith.constant 209 : index
    %1116 = memref.load %arg1[%c209] : memref<580xf32, #tpu.memory_space<smem>>
    %1117 = vector.broadcast %1116 : f32 to vector<8x8xf32>
    %1118 = arith.mulf %1117, %1111 : vector<8x8xf32>
    %1119 = arith.addf %1075, %1118 : vector<8x8xf32>
    %c210 = arith.constant 210 : index
    %1120 = memref.load %arg1[%c210] : memref<580xf32, #tpu.memory_space<smem>>
    %1121 = vector.broadcast %1120 : f32 to vector<8x8xf32>
    %1122 = arith.mulf %1121, %1111 : vector<8x8xf32>
    %1123 = arith.addf %1079, %1122 : vector<8x8xf32>
    %c211 = arith.constant 211 : index
    %1124 = memref.load %arg1[%c211] : memref<580xf32, #tpu.memory_space<smem>>
    %1125 = vector.broadcast %1124 : f32 to vector<8x8xf32>
    %1126 = arith.mulf %1125, %1111 : vector<8x8xf32>
    %1127 = arith.addf %1083, %1126 : vector<8x8xf32>
    %cst_223 = arith.constant 0.000000e+00 : f32
    %1128 = vector.broadcast %cst_223 : f32 to vector<1x8xf32>
    %1129 = vector.extract_strided_slice %905 {offsets = [0, 0], sizes = [7, 8], strides = [1, 1]} : vector<8x8xf32> to vector<7x8xf32>
    %1130 = tpu.concatenate %1128, %1129 in 0 : vector<1x8xf32>, vector<7x8xf32> -> vector<8x8xf32>
    %cst_224 = arith.constant 0.000000e+00 : f32
    %1131 = vector.broadcast %cst_224 : f32 to vector<8x1xf32>
    %1132 = vector.extract_strided_slice %1130 {offsets = [0, 0], sizes = [8, 7], strides = [1, 1]} : vector<8x8xf32> to vector<8x7xf32>
    %1133 = tpu.concatenate %1131, %1132 in 1 : vector<8x1xf32>, vector<8x7xf32> -> vector<8x8xf32>
    %c212 = arith.constant 212 : index
    %1134 = memref.load %arg1[%c212] : memref<580xf32, #tpu.memory_space<smem>>
    %1135 = vector.broadcast %1134 : f32 to vector<8x8xf32>
    %1136 = arith.mulf %1135, %1133 : vector<8x8xf32>
    %1137 = arith.addf %1093, %1136 : vector<8x8xf32>
    %c213 = arith.constant 213 : index
    %1138 = memref.load %arg1[%c213] : memref<580xf32, #tpu.memory_space<smem>>
    %1139 = vector.broadcast %1138 : f32 to vector<8x8xf32>
    %1140 = arith.mulf %1139, %1133 : vector<8x8xf32>
    %1141 = arith.addf %1097, %1140 : vector<8x8xf32>
    %c214 = arith.constant 214 : index
    %1142 = memref.load %arg1[%c214] : memref<580xf32, #tpu.memory_space<smem>>
    %1143 = vector.broadcast %1142 : f32 to vector<8x8xf32>
    %1144 = arith.mulf %1143, %1133 : vector<8x8xf32>
    %1145 = arith.addf %1101, %1144 : vector<8x8xf32>
    %c215 = arith.constant 215 : index
    %1146 = memref.load %arg1[%c215] : memref<580xf32, #tpu.memory_space<smem>>
    %1147 = vector.broadcast %1146 : f32 to vector<8x8xf32>
    %1148 = arith.mulf %1147, %1133 : vector<8x8xf32>
    %1149 = arith.addf %1105, %1148 : vector<8x8xf32>
    %cst_225 = arith.constant 0.000000e+00 : f32
    %1150 = vector.broadcast %cst_225 : f32 to vector<1x8xf32>
    %1151 = vector.extract_strided_slice %983 {offsets = [0, 0], sizes = [7, 8], strides = [1, 1]} : vector<8x8xf32> to vector<7x8xf32>
    %1152 = tpu.concatenate %1150, %1151 in 0 : vector<1x8xf32>, vector<7x8xf32> -> vector<8x8xf32>
    %cst_226 = arith.constant 0.000000e+00 : f32
    %1153 = vector.broadcast %cst_226 : f32 to vector<8x1xf32>
    %1154 = vector.extract_strided_slice %1152 {offsets = [0, 0], sizes = [8, 7], strides = [1, 1]} : vector<8x8xf32> to vector<8x7xf32>
    %1155 = tpu.concatenate %1153, %1154 in 1 : vector<8x1xf32>, vector<8x7xf32> -> vector<8x8xf32>
    %c216 = arith.constant 216 : index
    %1156 = memref.load %arg1[%c216] : memref<580xf32, #tpu.memory_space<smem>>
    %1157 = vector.broadcast %1156 : f32 to vector<8x8xf32>
    %1158 = arith.mulf %1157, %1155 : vector<8x8xf32>
    %1159 = arith.addf %1115, %1158 : vector<8x8xf32>
    %c217 = arith.constant 217 : index
    %1160 = memref.load %arg1[%c217] : memref<580xf32, #tpu.memory_space<smem>>
    %1161 = vector.broadcast %1160 : f32 to vector<8x8xf32>
    %1162 = arith.mulf %1161, %1155 : vector<8x8xf32>
    %1163 = arith.addf %1119, %1162 : vector<8x8xf32>
    %c218 = arith.constant 218 : index
    %1164 = memref.load %arg1[%c218] : memref<580xf32, #tpu.memory_space<smem>>
    %1165 = vector.broadcast %1164 : f32 to vector<8x8xf32>
    %1166 = arith.mulf %1165, %1155 : vector<8x8xf32>
    %1167 = arith.addf %1123, %1166 : vector<8x8xf32>
    %c219 = arith.constant 219 : index
    %1168 = memref.load %arg1[%c219] : memref<580xf32, #tpu.memory_space<smem>>
    %1169 = vector.broadcast %1168 : f32 to vector<8x8xf32>
    %1170 = arith.mulf %1169, %1155 : vector<8x8xf32>
    %1171 = arith.addf %1127, %1170 : vector<8x8xf32>
    %cst_227 = arith.constant 0.000000e+00 : f32
    %1172 = vector.broadcast %cst_227 : f32 to vector<1x8xf32>
    %1173 = vector.extract_strided_slice %665 {offsets = [0, 0], sizes = [7, 8], strides = [1, 1]} : vector<8x8xf32> to vector<7x8xf32>
    %1174 = tpu.concatenate %1172, %1173 in 0 : vector<1x8xf32>, vector<7x8xf32> -> vector<8x8xf32>
    %c220 = arith.constant 220 : index
    %1175 = memref.load %arg1[%c220] : memref<580xf32, #tpu.memory_space<smem>>
    %1176 = vector.broadcast %1175 : f32 to vector<8x8xf32>
    %1177 = arith.mulf %1176, %1174 : vector<8x8xf32>
    %1178 = arith.addf %1137, %1177 : vector<8x8xf32>
    %c221 = arith.constant 221 : index
    %1179 = memref.load %arg1[%c221] : memref<580xf32, #tpu.memory_space<smem>>
    %1180 = vector.broadcast %1179 : f32 to vector<8x8xf32>
    %1181 = arith.mulf %1180, %1174 : vector<8x8xf32>
    %1182 = arith.addf %1141, %1181 : vector<8x8xf32>
    %c222 = arith.constant 222 : index
    %1183 = memref.load %arg1[%c222] : memref<580xf32, #tpu.memory_space<smem>>
    %1184 = vector.broadcast %1183 : f32 to vector<8x8xf32>
    %1185 = arith.mulf %1184, %1174 : vector<8x8xf32>
    %1186 = arith.addf %1145, %1185 : vector<8x8xf32>
    %c223 = arith.constant 223 : index
    %1187 = memref.load %arg1[%c223] : memref<580xf32, #tpu.memory_space<smem>>
    %1188 = vector.broadcast %1187 : f32 to vector<8x8xf32>
    %1189 = arith.mulf %1188, %1174 : vector<8x8xf32>
    %1190 = arith.addf %1149, %1189 : vector<8x8xf32>
    %cst_228 = arith.constant 0.000000e+00 : f32
    %1191 = vector.broadcast %cst_228 : f32 to vector<1x8xf32>
    %1192 = vector.extract_strided_slice %667 {offsets = [0, 0], sizes = [7, 8], strides = [1, 1]} : vector<8x8xf32> to vector<7x8xf32>
    %1193 = tpu.concatenate %1191, %1192 in 0 : vector<1x8xf32>, vector<7x8xf32> -> vector<8x8xf32>
    %c224 = arith.constant 224 : index
    %1194 = memref.load %arg1[%c224] : memref<580xf32, #tpu.memory_space<smem>>
    %1195 = vector.broadcast %1194 : f32 to vector<8x8xf32>
    %1196 = arith.mulf %1195, %1193 : vector<8x8xf32>
    %1197 = arith.addf %1159, %1196 : vector<8x8xf32>
    %c225 = arith.constant 225 : index
    %1198 = memref.load %arg1[%c225] : memref<580xf32, #tpu.memory_space<smem>>
    %1199 = vector.broadcast %1198 : f32 to vector<8x8xf32>
    %1200 = arith.mulf %1199, %1193 : vector<8x8xf32>
    %1201 = arith.addf %1163, %1200 : vector<8x8xf32>
    %c226 = arith.constant 226 : index
    %1202 = memref.load %arg1[%c226] : memref<580xf32, #tpu.memory_space<smem>>
    %1203 = vector.broadcast %1202 : f32 to vector<8x8xf32>
    %1204 = arith.mulf %1203, %1193 : vector<8x8xf32>
    %1205 = arith.addf %1167, %1204 : vector<8x8xf32>
    %c227 = arith.constant 227 : index
    %1206 = memref.load %arg1[%c227] : memref<580xf32, #tpu.memory_space<smem>>
    %1207 = vector.broadcast %1206 : f32 to vector<8x8xf32>
    %1208 = arith.mulf %1207, %1193 : vector<8x8xf32>
    %1209 = arith.addf %1171, %1208 : vector<8x8xf32>
    %cst_229 = arith.constant 0.000000e+00 : f32
    %1210 = vector.broadcast %cst_229 : f32 to vector<1x8xf32>
    %1211 = vector.extract_strided_slice %669 {offsets = [0, 0], sizes = [7, 8], strides = [1, 1]} : vector<8x8xf32> to vector<7x8xf32>
    %1212 = tpu.concatenate %1210, %1211 in 0 : vector<1x8xf32>, vector<7x8xf32> -> vector<8x8xf32>
    %c228 = arith.constant 228 : index
    %1213 = memref.load %arg1[%c228] : memref<580xf32, #tpu.memory_space<smem>>
    %1214 = vector.broadcast %1213 : f32 to vector<8x8xf32>
    %1215 = arith.mulf %1214, %1212 : vector<8x8xf32>
    %1216 = arith.addf %1178, %1215 : vector<8x8xf32>
    %c229 = arith.constant 229 : index
    %1217 = memref.load %arg1[%c229] : memref<580xf32, #tpu.memory_space<smem>>
    %1218 = vector.broadcast %1217 : f32 to vector<8x8xf32>
    %1219 = arith.mulf %1218, %1212 : vector<8x8xf32>
    %1220 = arith.addf %1182, %1219 : vector<8x8xf32>
    %c230 = arith.constant 230 : index
    %1221 = memref.load %arg1[%c230] : memref<580xf32, #tpu.memory_space<smem>>
    %1222 = vector.broadcast %1221 : f32 to vector<8x8xf32>
    %1223 = arith.mulf %1222, %1212 : vector<8x8xf32>
    %1224 = arith.addf %1186, %1223 : vector<8x8xf32>
    %c231 = arith.constant 231 : index
    %1225 = memref.load %arg1[%c231] : memref<580xf32, #tpu.memory_space<smem>>
    %1226 = vector.broadcast %1225 : f32 to vector<8x8xf32>
    %1227 = arith.mulf %1226, %1212 : vector<8x8xf32>
    %1228 = arith.addf %1190, %1227 : vector<8x8xf32>
    %cst_230 = arith.constant 0.000000e+00 : f32
    %1229 = vector.broadcast %cst_230 : f32 to vector<1x8xf32>
    %1230 = vector.extract_strided_slice %671 {offsets = [0, 0], sizes = [7, 8], strides = [1, 1]} : vector<8x8xf32> to vector<7x8xf32>
    %1231 = tpu.concatenate %1229, %1230 in 0 : vector<1x8xf32>, vector<7x8xf32> -> vector<8x8xf32>
    %c232 = arith.constant 232 : index
    %1232 = memref.load %arg1[%c232] : memref<580xf32, #tpu.memory_space<smem>>
    %1233 = vector.broadcast %1232 : f32 to vector<8x8xf32>
    %1234 = arith.mulf %1233, %1231 : vector<8x8xf32>
    %1235 = arith.addf %1197, %1234 : vector<8x8xf32>
    %c233 = arith.constant 233 : index
    %1236 = memref.load %arg1[%c233] : memref<580xf32, #tpu.memory_space<smem>>
    %1237 = vector.broadcast %1236 : f32 to vector<8x8xf32>
    %1238 = arith.mulf %1237, %1231 : vector<8x8xf32>
    %1239 = arith.addf %1201, %1238 : vector<8x8xf32>
    %c234 = arith.constant 234 : index
    %1240 = memref.load %arg1[%c234] : memref<580xf32, #tpu.memory_space<smem>>
    %1241 = vector.broadcast %1240 : f32 to vector<8x8xf32>
    %1242 = arith.mulf %1241, %1231 : vector<8x8xf32>
    %1243 = arith.addf %1205, %1242 : vector<8x8xf32>
    %c235 = arith.constant 235 : index
    %1244 = memref.load %arg1[%c235] : memref<580xf32, #tpu.memory_space<smem>>
    %1245 = vector.broadcast %1244 : f32 to vector<8x8xf32>
    %1246 = arith.mulf %1245, %1231 : vector<8x8xf32>
    %1247 = arith.addf %1209, %1246 : vector<8x8xf32>
    %cst_231 = arith.constant 0.000000e+00 : f32
    %1248 = vector.broadcast %cst_231 : f32 to vector<1x8xf32>
    %1249 = vector.extract_strided_slice %749 {offsets = [0, 0], sizes = [7, 8], strides = [1, 1]} : vector<8x8xf32> to vector<7x8xf32>
    %1250 = tpu.concatenate %1248, %1249 in 0 : vector<1x8xf32>, vector<7x8xf32> -> vector<8x8xf32>
    %c236 = arith.constant 236 : index
    %1251 = memref.load %arg1[%c236] : memref<580xf32, #tpu.memory_space<smem>>
    %1252 = vector.broadcast %1251 : f32 to vector<8x8xf32>
    %1253 = arith.mulf %1252, %1250 : vector<8x8xf32>
    %1254 = arith.addf %1216, %1253 : vector<8x8xf32>
    %c237 = arith.constant 237 : index
    %1255 = memref.load %arg1[%c237] : memref<580xf32, #tpu.memory_space<smem>>
    %1256 = vector.broadcast %1255 : f32 to vector<8x8xf32>
    %1257 = arith.mulf %1256, %1250 : vector<8x8xf32>
    %1258 = arith.addf %1220, %1257 : vector<8x8xf32>
    %c238 = arith.constant 238 : index
    %1259 = memref.load %arg1[%c238] : memref<580xf32, #tpu.memory_space<smem>>
    %1260 = vector.broadcast %1259 : f32 to vector<8x8xf32>
    %1261 = arith.mulf %1260, %1250 : vector<8x8xf32>
    %1262 = arith.addf %1224, %1261 : vector<8x8xf32>
    %c239 = arith.constant 239 : index
    %1263 = memref.load %arg1[%c239] : memref<580xf32, #tpu.memory_space<smem>>
    %1264 = vector.broadcast %1263 : f32 to vector<8x8xf32>
    %1265 = arith.mulf %1264, %1250 : vector<8x8xf32>
    %1266 = arith.addf %1228, %1265 : vector<8x8xf32>
    %cst_232 = arith.constant 0.000000e+00 : f32
    %1267 = vector.broadcast %cst_232 : f32 to vector<1x8xf32>
    %1268 = vector.extract_strided_slice %827 {offsets = [0, 0], sizes = [7, 8], strides = [1, 1]} : vector<8x8xf32> to vector<7x8xf32>
    %1269 = tpu.concatenate %1267, %1268 in 0 : vector<1x8xf32>, vector<7x8xf32> -> vector<8x8xf32>
    %c240 = arith.constant 240 : index
    %1270 = memref.load %arg1[%c240] : memref<580xf32, #tpu.memory_space<smem>>
    %1271 = vector.broadcast %1270 : f32 to vector<8x8xf32>
    %1272 = arith.mulf %1271, %1269 : vector<8x8xf32>
    %1273 = arith.addf %1235, %1272 : vector<8x8xf32>
    %c241 = arith.constant 241 : index
    %1274 = memref.load %arg1[%c241] : memref<580xf32, #tpu.memory_space<smem>>
    %1275 = vector.broadcast %1274 : f32 to vector<8x8xf32>
    %1276 = arith.mulf %1275, %1269 : vector<8x8xf32>
    %1277 = arith.addf %1239, %1276 : vector<8x8xf32>
    %c242 = arith.constant 242 : index
    %1278 = memref.load %arg1[%c242] : memref<580xf32, #tpu.memory_space<smem>>
    %1279 = vector.broadcast %1278 : f32 to vector<8x8xf32>
    %1280 = arith.mulf %1279, %1269 : vector<8x8xf32>
    %1281 = arith.addf %1243, %1280 : vector<8x8xf32>
    %c243 = arith.constant 243 : index
    %1282 = memref.load %arg1[%c243] : memref<580xf32, #tpu.memory_space<smem>>
    %1283 = vector.broadcast %1282 : f32 to vector<8x8xf32>
    %1284 = arith.mulf %1283, %1269 : vector<8x8xf32>
    %1285 = arith.addf %1247, %1284 : vector<8x8xf32>
    %cst_233 = arith.constant 0.000000e+00 : f32
    %1286 = vector.broadcast %cst_233 : f32 to vector<1x8xf32>
    %1287 = vector.extract_strided_slice %905 {offsets = [0, 0], sizes = [7, 8], strides = [1, 1]} : vector<8x8xf32> to vector<7x8xf32>
    %1288 = tpu.concatenate %1286, %1287 in 0 : vector<1x8xf32>, vector<7x8xf32> -> vector<8x8xf32>
    %c244 = arith.constant 244 : index
    %1289 = memref.load %arg1[%c244] : memref<580xf32, #tpu.memory_space<smem>>
    %1290 = vector.broadcast %1289 : f32 to vector<8x8xf32>
    %1291 = arith.mulf %1290, %1288 : vector<8x8xf32>
    %1292 = arith.addf %1254, %1291 : vector<8x8xf32>
    %c245 = arith.constant 245 : index
    %1293 = memref.load %arg1[%c245] : memref<580xf32, #tpu.memory_space<smem>>
    %1294 = vector.broadcast %1293 : f32 to vector<8x8xf32>
    %1295 = arith.mulf %1294, %1288 : vector<8x8xf32>
    %1296 = arith.addf %1258, %1295 : vector<8x8xf32>
    %c246 = arith.constant 246 : index
    %1297 = memref.load %arg1[%c246] : memref<580xf32, #tpu.memory_space<smem>>
    %1298 = vector.broadcast %1297 : f32 to vector<8x8xf32>
    %1299 = arith.mulf %1298, %1288 : vector<8x8xf32>
    %1300 = arith.addf %1262, %1299 : vector<8x8xf32>
    %c247 = arith.constant 247 : index
    %1301 = memref.load %arg1[%c247] : memref<580xf32, #tpu.memory_space<smem>>
    %1302 = vector.broadcast %1301 : f32 to vector<8x8xf32>
    %1303 = arith.mulf %1302, %1288 : vector<8x8xf32>
    %1304 = arith.addf %1266, %1303 : vector<8x8xf32>
    %cst_234 = arith.constant 0.000000e+00 : f32
    %1305 = vector.broadcast %cst_234 : f32 to vector<1x8xf32>
    %1306 = vector.extract_strided_slice %983 {offsets = [0, 0], sizes = [7, 8], strides = [1, 1]} : vector<8x8xf32> to vector<7x8xf32>
    %1307 = tpu.concatenate %1305, %1306 in 0 : vector<1x8xf32>, vector<7x8xf32> -> vector<8x8xf32>
    %c248 = arith.constant 248 : index
    %1308 = memref.load %arg1[%c248] : memref<580xf32, #tpu.memory_space<smem>>
    %1309 = vector.broadcast %1308 : f32 to vector<8x8xf32>
    %1310 = arith.mulf %1309, %1307 : vector<8x8xf32>
    %1311 = arith.addf %1273, %1310 : vector<8x8xf32>
    %c249 = arith.constant 249 : index
    %1312 = memref.load %arg1[%c249] : memref<580xf32, #tpu.memory_space<smem>>
    %1313 = vector.broadcast %1312 : f32 to vector<8x8xf32>
    %1314 = arith.mulf %1313, %1307 : vector<8x8xf32>
    %1315 = arith.addf %1277, %1314 : vector<8x8xf32>
    %c250 = arith.constant 250 : index
    %1316 = memref.load %arg1[%c250] : memref<580xf32, #tpu.memory_space<smem>>
    %1317 = vector.broadcast %1316 : f32 to vector<8x8xf32>
    %1318 = arith.mulf %1317, %1307 : vector<8x8xf32>
    %1319 = arith.addf %1281, %1318 : vector<8x8xf32>
    %c251 = arith.constant 251 : index
    %1320 = memref.load %arg1[%c251] : memref<580xf32, #tpu.memory_space<smem>>
    %1321 = vector.broadcast %1320 : f32 to vector<8x8xf32>
    %1322 = arith.mulf %1321, %1307 : vector<8x8xf32>
    %1323 = arith.addf %1285, %1322 : vector<8x8xf32>
    %cst_235 = arith.constant 0.000000e+00 : f32
    %1324 = vector.broadcast %cst_235 : f32 to vector<1x8xf32>
    %1325 = vector.extract_strided_slice %665 {offsets = [0, 0], sizes = [7, 8], strides = [1, 1]} : vector<8x8xf32> to vector<7x8xf32>
    %1326 = tpu.concatenate %1324, %1325 in 0 : vector<1x8xf32>, vector<7x8xf32> -> vector<8x8xf32>
    %1327 = vector.extract_strided_slice %1326 {offsets = [0, 1], sizes = [8, 7], strides = [1, 1]} : vector<8x8xf32> to vector<8x7xf32>
    %cst_236 = arith.constant 0.000000e+00 : f32
    %1328 = vector.broadcast %cst_236 : f32 to vector<8x1xf32>
    %1329 = tpu.concatenate %1327, %1328 in 1 : vector<8x7xf32>, vector<8x1xf32> -> vector<8x8xf32>
    %c252 = arith.constant 252 : index
    %1330 = memref.load %arg1[%c252] : memref<580xf32, #tpu.memory_space<smem>>
    %1331 = vector.broadcast %1330 : f32 to vector<8x8xf32>
    %1332 = arith.mulf %1331, %1329 : vector<8x8xf32>
    %1333 = arith.addf %1292, %1332 : vector<8x8xf32>
    %c253 = arith.constant 253 : index
    %1334 = memref.load %arg1[%c253] : memref<580xf32, #tpu.memory_space<smem>>
    %1335 = vector.broadcast %1334 : f32 to vector<8x8xf32>
    %1336 = arith.mulf %1335, %1329 : vector<8x8xf32>
    %1337 = arith.addf %1296, %1336 : vector<8x8xf32>
    %c254 = arith.constant 254 : index
    %1338 = memref.load %arg1[%c254] : memref<580xf32, #tpu.memory_space<smem>>
    %1339 = vector.broadcast %1338 : f32 to vector<8x8xf32>
    %1340 = arith.mulf %1339, %1329 : vector<8x8xf32>
    %1341 = arith.addf %1300, %1340 : vector<8x8xf32>
    %c255 = arith.constant 255 : index
    %1342 = memref.load %arg1[%c255] : memref<580xf32, #tpu.memory_space<smem>>
    %1343 = vector.broadcast %1342 : f32 to vector<8x8xf32>
    %1344 = arith.mulf %1343, %1329 : vector<8x8xf32>
    %1345 = arith.addf %1304, %1344 : vector<8x8xf32>
    %cst_237 = arith.constant 0.000000e+00 : f32
    %1346 = vector.broadcast %cst_237 : f32 to vector<1x8xf32>
    %1347 = vector.extract_strided_slice %667 {offsets = [0, 0], sizes = [7, 8], strides = [1, 1]} : vector<8x8xf32> to vector<7x8xf32>
    %1348 = tpu.concatenate %1346, %1347 in 0 : vector<1x8xf32>, vector<7x8xf32> -> vector<8x8xf32>
    %1349 = vector.extract_strided_slice %1348 {offsets = [0, 1], sizes = [8, 7], strides = [1, 1]} : vector<8x8xf32> to vector<8x7xf32>
    %cst_238 = arith.constant 0.000000e+00 : f32
    %1350 = vector.broadcast %cst_238 : f32 to vector<8x1xf32>
    %1351 = tpu.concatenate %1349, %1350 in 1 : vector<8x7xf32>, vector<8x1xf32> -> vector<8x8xf32>
    %c256 = arith.constant 256 : index
    %1352 = memref.load %arg1[%c256] : memref<580xf32, #tpu.memory_space<smem>>
    %1353 = vector.broadcast %1352 : f32 to vector<8x8xf32>
    %1354 = arith.mulf %1353, %1351 : vector<8x8xf32>
    %1355 = arith.addf %1311, %1354 : vector<8x8xf32>
    %c257 = arith.constant 257 : index
    %1356 = memref.load %arg1[%c257] : memref<580xf32, #tpu.memory_space<smem>>
    %1357 = vector.broadcast %1356 : f32 to vector<8x8xf32>
    %1358 = arith.mulf %1357, %1351 : vector<8x8xf32>
    %1359 = arith.addf %1315, %1358 : vector<8x8xf32>
    %c258 = arith.constant 258 : index
    %1360 = memref.load %arg1[%c258] : memref<580xf32, #tpu.memory_space<smem>>
    %1361 = vector.broadcast %1360 : f32 to vector<8x8xf32>
    %1362 = arith.mulf %1361, %1351 : vector<8x8xf32>
    %1363 = arith.addf %1319, %1362 : vector<8x8xf32>
    %c259 = arith.constant 259 : index
    %1364 = memref.load %arg1[%c259] : memref<580xf32, #tpu.memory_space<smem>>
    %1365 = vector.broadcast %1364 : f32 to vector<8x8xf32>
    %1366 = arith.mulf %1365, %1351 : vector<8x8xf32>
    %1367 = arith.addf %1323, %1366 : vector<8x8xf32>
    %cst_239 = arith.constant 0.000000e+00 : f32
    %1368 = vector.broadcast %cst_239 : f32 to vector<1x8xf32>
    %1369 = vector.extract_strided_slice %669 {offsets = [0, 0], sizes = [7, 8], strides = [1, 1]} : vector<8x8xf32> to vector<7x8xf32>
    %1370 = tpu.concatenate %1368, %1369 in 0 : vector<1x8xf32>, vector<7x8xf32> -> vector<8x8xf32>
    %1371 = vector.extract_strided_slice %1370 {offsets = [0, 1], sizes = [8, 7], strides = [1, 1]} : vector<8x8xf32> to vector<8x7xf32>
    %cst_240 = arith.constant 0.000000e+00 : f32
    %1372 = vector.broadcast %cst_240 : f32 to vector<8x1xf32>
    %1373 = tpu.concatenate %1371, %1372 in 1 : vector<8x7xf32>, vector<8x1xf32> -> vector<8x8xf32>
    %c260 = arith.constant 260 : index
    %1374 = memref.load %arg1[%c260] : memref<580xf32, #tpu.memory_space<smem>>
    %1375 = vector.broadcast %1374 : f32 to vector<8x8xf32>
    %1376 = arith.mulf %1375, %1373 : vector<8x8xf32>
    %1377 = arith.addf %1333, %1376 : vector<8x8xf32>
    %c261 = arith.constant 261 : index
    %1378 = memref.load %arg1[%c261] : memref<580xf32, #tpu.memory_space<smem>>
    %1379 = vector.broadcast %1378 : f32 to vector<8x8xf32>
    %1380 = arith.mulf %1379, %1373 : vector<8x8xf32>
    %1381 = arith.addf %1337, %1380 : vector<8x8xf32>
    %c262 = arith.constant 262 : index
    %1382 = memref.load %arg1[%c262] : memref<580xf32, #tpu.memory_space<smem>>
    %1383 = vector.broadcast %1382 : f32 to vector<8x8xf32>
    %1384 = arith.mulf %1383, %1373 : vector<8x8xf32>
    %1385 = arith.addf %1341, %1384 : vector<8x8xf32>
    %c263 = arith.constant 263 : index
    %1386 = memref.load %arg1[%c263] : memref<580xf32, #tpu.memory_space<smem>>
    %1387 = vector.broadcast %1386 : f32 to vector<8x8xf32>
    %1388 = arith.mulf %1387, %1373 : vector<8x8xf32>
    %1389 = arith.addf %1345, %1388 : vector<8x8xf32>
    %cst_241 = arith.constant 0.000000e+00 : f32
    %1390 = vector.broadcast %cst_241 : f32 to vector<1x8xf32>
    %1391 = vector.extract_strided_slice %671 {offsets = [0, 0], sizes = [7, 8], strides = [1, 1]} : vector<8x8xf32> to vector<7x8xf32>
    %1392 = tpu.concatenate %1390, %1391 in 0 : vector<1x8xf32>, vector<7x8xf32> -> vector<8x8xf32>
    %1393 = vector.extract_strided_slice %1392 {offsets = [0, 1], sizes = [8, 7], strides = [1, 1]} : vector<8x8xf32> to vector<8x7xf32>
    %cst_242 = arith.constant 0.000000e+00 : f32
    %1394 = vector.broadcast %cst_242 : f32 to vector<8x1xf32>
    %1395 = tpu.concatenate %1393, %1394 in 1 : vector<8x7xf32>, vector<8x1xf32> -> vector<8x8xf32>
    %c264 = arith.constant 264 : index
    %1396 = memref.load %arg1[%c264] : memref<580xf32, #tpu.memory_space<smem>>
    %1397 = vector.broadcast %1396 : f32 to vector<8x8xf32>
    %1398 = arith.mulf %1397, %1395 : vector<8x8xf32>
    %1399 = arith.addf %1355, %1398 : vector<8x8xf32>
    %c265 = arith.constant 265 : index
    %1400 = memref.load %arg1[%c265] : memref<580xf32, #tpu.memory_space<smem>>
    %1401 = vector.broadcast %1400 : f32 to vector<8x8xf32>
    %1402 = arith.mulf %1401, %1395 : vector<8x8xf32>
    %1403 = arith.addf %1359, %1402 : vector<8x8xf32>
    %c266 = arith.constant 266 : index
    %1404 = memref.load %arg1[%c266] : memref<580xf32, #tpu.memory_space<smem>>
    %1405 = vector.broadcast %1404 : f32 to vector<8x8xf32>
    %1406 = arith.mulf %1405, %1395 : vector<8x8xf32>
    %1407 = arith.addf %1363, %1406 : vector<8x8xf32>
    %c267 = arith.constant 267 : index
    %1408 = memref.load %arg1[%c267] : memref<580xf32, #tpu.memory_space<smem>>
    %1409 = vector.broadcast %1408 : f32 to vector<8x8xf32>
    %1410 = arith.mulf %1409, %1395 : vector<8x8xf32>
    %1411 = arith.addf %1367, %1410 : vector<8x8xf32>
    %cst_243 = arith.constant 0.000000e+00 : f32
    %1412 = vector.broadcast %cst_243 : f32 to vector<1x8xf32>
    %1413 = vector.extract_strided_slice %749 {offsets = [0, 0], sizes = [7, 8], strides = [1, 1]} : vector<8x8xf32> to vector<7x8xf32>
    %1414 = tpu.concatenate %1412, %1413 in 0 : vector<1x8xf32>, vector<7x8xf32> -> vector<8x8xf32>
    %1415 = vector.extract_strided_slice %1414 {offsets = [0, 1], sizes = [8, 7], strides = [1, 1]} : vector<8x8xf32> to vector<8x7xf32>
    %cst_244 = arith.constant 0.000000e+00 : f32
    %1416 = vector.broadcast %cst_244 : f32 to vector<8x1xf32>
    %1417 = tpu.concatenate %1415, %1416 in 1 : vector<8x7xf32>, vector<8x1xf32> -> vector<8x8xf32>
    %c268 = arith.constant 268 : index
    %1418 = memref.load %arg1[%c268] : memref<580xf32, #tpu.memory_space<smem>>
    %1419 = vector.broadcast %1418 : f32 to vector<8x8xf32>
    %1420 = arith.mulf %1419, %1417 : vector<8x8xf32>
    %1421 = arith.addf %1377, %1420 : vector<8x8xf32>
    %c269 = arith.constant 269 : index
    %1422 = memref.load %arg1[%c269] : memref<580xf32, #tpu.memory_space<smem>>
    %1423 = vector.broadcast %1422 : f32 to vector<8x8xf32>
    %1424 = arith.mulf %1423, %1417 : vector<8x8xf32>
    %1425 = arith.addf %1381, %1424 : vector<8x8xf32>
    %c270 = arith.constant 270 : index
    %1426 = memref.load %arg1[%c270] : memref<580xf32, #tpu.memory_space<smem>>
    %1427 = vector.broadcast %1426 : f32 to vector<8x8xf32>
    %1428 = arith.mulf %1427, %1417 : vector<8x8xf32>
    %1429 = arith.addf %1385, %1428 : vector<8x8xf32>
    %c271 = arith.constant 271 : index
    %1430 = memref.load %arg1[%c271] : memref<580xf32, #tpu.memory_space<smem>>
    %1431 = vector.broadcast %1430 : f32 to vector<8x8xf32>
    %1432 = arith.mulf %1431, %1417 : vector<8x8xf32>
    %1433 = arith.addf %1389, %1432 : vector<8x8xf32>
    %cst_245 = arith.constant 0.000000e+00 : f32
    %1434 = vector.broadcast %cst_245 : f32 to vector<1x8xf32>
    %1435 = vector.extract_strided_slice %827 {offsets = [0, 0], sizes = [7, 8], strides = [1, 1]} : vector<8x8xf32> to vector<7x8xf32>
    %1436 = tpu.concatenate %1434, %1435 in 0 : vector<1x8xf32>, vector<7x8xf32> -> vector<8x8xf32>
    %1437 = vector.extract_strided_slice %1436 {offsets = [0, 1], sizes = [8, 7], strides = [1, 1]} : vector<8x8xf32> to vector<8x7xf32>
    %cst_246 = arith.constant 0.000000e+00 : f32
    %1438 = vector.broadcast %cst_246 : f32 to vector<8x1xf32>
    %1439 = tpu.concatenate %1437, %1438 in 1 : vector<8x7xf32>, vector<8x1xf32> -> vector<8x8xf32>
    %c272 = arith.constant 272 : index
    %1440 = memref.load %arg1[%c272] : memref<580xf32, #tpu.memory_space<smem>>
    %1441 = vector.broadcast %1440 : f32 to vector<8x8xf32>
    %1442 = arith.mulf %1441, %1439 : vector<8x8xf32>
    %1443 = arith.addf %1399, %1442 : vector<8x8xf32>
    %c273 = arith.constant 273 : index
    %1444 = memref.load %arg1[%c273] : memref<580xf32, #tpu.memory_space<smem>>
    %1445 = vector.broadcast %1444 : f32 to vector<8x8xf32>
    %1446 = arith.mulf %1445, %1439 : vector<8x8xf32>
    %1447 = arith.addf %1403, %1446 : vector<8x8xf32>
    %c274 = arith.constant 274 : index
    %1448 = memref.load %arg1[%c274] : memref<580xf32, #tpu.memory_space<smem>>
    %1449 = vector.broadcast %1448 : f32 to vector<8x8xf32>
    %1450 = arith.mulf %1449, %1439 : vector<8x8xf32>
    %1451 = arith.addf %1407, %1450 : vector<8x8xf32>
    %c275 = arith.constant 275 : index
    %1452 = memref.load %arg1[%c275] : memref<580xf32, #tpu.memory_space<smem>>
    %1453 = vector.broadcast %1452 : f32 to vector<8x8xf32>
    %1454 = arith.mulf %1453, %1439 : vector<8x8xf32>
    %1455 = arith.addf %1411, %1454 : vector<8x8xf32>
    %cst_247 = arith.constant 0.000000e+00 : f32
    %1456 = vector.broadcast %cst_247 : f32 to vector<1x8xf32>
    %1457 = vector.extract_strided_slice %905 {offsets = [0, 0], sizes = [7, 8], strides = [1, 1]} : vector<8x8xf32> to vector<7x8xf32>
    %1458 = tpu.concatenate %1456, %1457 in 0 : vector<1x8xf32>, vector<7x8xf32> -> vector<8x8xf32>
    %1459 = vector.extract_strided_slice %1458 {offsets = [0, 1], sizes = [8, 7], strides = [1, 1]} : vector<8x8xf32> to vector<8x7xf32>
    %cst_248 = arith.constant 0.000000e+00 : f32
    %1460 = vector.broadcast %cst_248 : f32 to vector<8x1xf32>
    %1461 = tpu.concatenate %1459, %1460 in 1 : vector<8x7xf32>, vector<8x1xf32> -> vector<8x8xf32>
    %c276 = arith.constant 276 : index
    %1462 = memref.load %arg1[%c276] : memref<580xf32, #tpu.memory_space<smem>>
    %1463 = vector.broadcast %1462 : f32 to vector<8x8xf32>
    %1464 = arith.mulf %1463, %1461 : vector<8x8xf32>
    %1465 = arith.addf %1421, %1464 : vector<8x8xf32>
    %c277 = arith.constant 277 : index
    %1466 = memref.load %arg1[%c277] : memref<580xf32, #tpu.memory_space<smem>>
    %1467 = vector.broadcast %1466 : f32 to vector<8x8xf32>
    %1468 = arith.mulf %1467, %1461 : vector<8x8xf32>
    %1469 = arith.addf %1425, %1468 : vector<8x8xf32>
    %c278 = arith.constant 278 : index
    %1470 = memref.load %arg1[%c278] : memref<580xf32, #tpu.memory_space<smem>>
    %1471 = vector.broadcast %1470 : f32 to vector<8x8xf32>
    %1472 = arith.mulf %1471, %1461 : vector<8x8xf32>
    %1473 = arith.addf %1429, %1472 : vector<8x8xf32>
    %c279 = arith.constant 279 : index
    %1474 = memref.load %arg1[%c279] : memref<580xf32, #tpu.memory_space<smem>>
    %1475 = vector.broadcast %1474 : f32 to vector<8x8xf32>
    %1476 = arith.mulf %1475, %1461 : vector<8x8xf32>
    %1477 = arith.addf %1433, %1476 : vector<8x8xf32>
    %cst_249 = arith.constant 0.000000e+00 : f32
    %1478 = vector.broadcast %cst_249 : f32 to vector<1x8xf32>
    %1479 = vector.extract_strided_slice %983 {offsets = [0, 0], sizes = [7, 8], strides = [1, 1]} : vector<8x8xf32> to vector<7x8xf32>
    %1480 = tpu.concatenate %1478, %1479 in 0 : vector<1x8xf32>, vector<7x8xf32> -> vector<8x8xf32>
    %1481 = vector.extract_strided_slice %1480 {offsets = [0, 1], sizes = [8, 7], strides = [1, 1]} : vector<8x8xf32> to vector<8x7xf32>
    %cst_250 = arith.constant 0.000000e+00 : f32
    %1482 = vector.broadcast %cst_250 : f32 to vector<8x1xf32>
    %1483 = tpu.concatenate %1481, %1482 in 1 : vector<8x7xf32>, vector<8x1xf32> -> vector<8x8xf32>
    %c280 = arith.constant 280 : index
    %1484 = memref.load %arg1[%c280] : memref<580xf32, #tpu.memory_space<smem>>
    %1485 = vector.broadcast %1484 : f32 to vector<8x8xf32>
    %1486 = arith.mulf %1485, %1483 : vector<8x8xf32>
    %1487 = arith.addf %1443, %1486 : vector<8x8xf32>
    %c281 = arith.constant 281 : index
    %1488 = memref.load %arg1[%c281] : memref<580xf32, #tpu.memory_space<smem>>
    %1489 = vector.broadcast %1488 : f32 to vector<8x8xf32>
    %1490 = arith.mulf %1489, %1483 : vector<8x8xf32>
    %1491 = arith.addf %1447, %1490 : vector<8x8xf32>
    %c282 = arith.constant 282 : index
    %1492 = memref.load %arg1[%c282] : memref<580xf32, #tpu.memory_space<smem>>
    %1493 = vector.broadcast %1492 : f32 to vector<8x8xf32>
    %1494 = arith.mulf %1493, %1483 : vector<8x8xf32>
    %1495 = arith.addf %1451, %1494 : vector<8x8xf32>
    %c283 = arith.constant 283 : index
    %1496 = memref.load %arg1[%c283] : memref<580xf32, #tpu.memory_space<smem>>
    %1497 = vector.broadcast %1496 : f32 to vector<8x8xf32>
    %1498 = arith.mulf %1497, %1483 : vector<8x8xf32>
    %1499 = arith.addf %1455, %1498 : vector<8x8xf32>
    %cst_251 = arith.constant 0.000000e+00 : f32
    %1500 = vector.broadcast %cst_251 : f32 to vector<8x1xf32>
    %1501 = vector.extract_strided_slice %665 {offsets = [0, 0], sizes = [8, 7], strides = [1, 1]} : vector<8x8xf32> to vector<8x7xf32>
    %1502 = tpu.concatenate %1500, %1501 in 1 : vector<8x1xf32>, vector<8x7xf32> -> vector<8x8xf32>
    %c284 = arith.constant 284 : index
    %1503 = memref.load %arg1[%c284] : memref<580xf32, #tpu.memory_space<smem>>
    %1504 = vector.broadcast %1503 : f32 to vector<8x8xf32>
    %1505 = arith.mulf %1504, %1502 : vector<8x8xf32>
    %1506 = arith.addf %1465, %1505 : vector<8x8xf32>
    %c285 = arith.constant 285 : index
    %1507 = memref.load %arg1[%c285] : memref<580xf32, #tpu.memory_space<smem>>
    %1508 = vector.broadcast %1507 : f32 to vector<8x8xf32>
    %1509 = arith.mulf %1508, %1502 : vector<8x8xf32>
    %1510 = arith.addf %1469, %1509 : vector<8x8xf32>
    %c286 = arith.constant 286 : index
    %1511 = memref.load %arg1[%c286] : memref<580xf32, #tpu.memory_space<smem>>
    %1512 = vector.broadcast %1511 : f32 to vector<8x8xf32>
    %1513 = arith.mulf %1512, %1502 : vector<8x8xf32>
    %1514 = arith.addf %1473, %1513 : vector<8x8xf32>
    %c287 = arith.constant 287 : index
    %1515 = memref.load %arg1[%c287] : memref<580xf32, #tpu.memory_space<smem>>
    %1516 = vector.broadcast %1515 : f32 to vector<8x8xf32>
    %1517 = arith.mulf %1516, %1502 : vector<8x8xf32>
    %1518 = arith.addf %1477, %1517 : vector<8x8xf32>
    %cst_252 = arith.constant 0.000000e+00 : f32
    %1519 = vector.broadcast %cst_252 : f32 to vector<8x1xf32>
    %1520 = vector.extract_strided_slice %667 {offsets = [0, 0], sizes = [8, 7], strides = [1, 1]} : vector<8x8xf32> to vector<8x7xf32>
    %1521 = tpu.concatenate %1519, %1520 in 1 : vector<8x1xf32>, vector<8x7xf32> -> vector<8x8xf32>
    %c288 = arith.constant 288 : index
    %1522 = memref.load %arg1[%c288] : memref<580xf32, #tpu.memory_space<smem>>
    %1523 = vector.broadcast %1522 : f32 to vector<8x8xf32>
    %1524 = arith.mulf %1523, %1521 : vector<8x8xf32>
    %1525 = arith.addf %1487, %1524 : vector<8x8xf32>
    %c289 = arith.constant 289 : index
    %1526 = memref.load %arg1[%c289] : memref<580xf32, #tpu.memory_space<smem>>
    %1527 = vector.broadcast %1526 : f32 to vector<8x8xf32>
    %1528 = arith.mulf %1527, %1521 : vector<8x8xf32>
    %1529 = arith.addf %1491, %1528 : vector<8x8xf32>
    %c290 = arith.constant 290 : index
    %1530 = memref.load %arg1[%c290] : memref<580xf32, #tpu.memory_space<smem>>
    %1531 = vector.broadcast %1530 : f32 to vector<8x8xf32>
    %1532 = arith.mulf %1531, %1521 : vector<8x8xf32>
    %1533 = arith.addf %1495, %1532 : vector<8x8xf32>
    %c291 = arith.constant 291 : index
    %1534 = memref.load %arg1[%c291] : memref<580xf32, #tpu.memory_space<smem>>
    %1535 = vector.broadcast %1534 : f32 to vector<8x8xf32>
    %1536 = arith.mulf %1535, %1521 : vector<8x8xf32>
    %1537 = arith.addf %1499, %1536 : vector<8x8xf32>
    %cst_253 = arith.constant 0.000000e+00 : f32
    %1538 = vector.broadcast %cst_253 : f32 to vector<8x1xf32>
    %1539 = vector.extract_strided_slice %669 {offsets = [0, 0], sizes = [8, 7], strides = [1, 1]} : vector<8x8xf32> to vector<8x7xf32>
    %1540 = tpu.concatenate %1538, %1539 in 1 : vector<8x1xf32>, vector<8x7xf32> -> vector<8x8xf32>
    %c292 = arith.constant 292 : index
    %1541 = memref.load %arg1[%c292] : memref<580xf32, #tpu.memory_space<smem>>
    %1542 = vector.broadcast %1541 : f32 to vector<8x8xf32>
    %1543 = arith.mulf %1542, %1540 : vector<8x8xf32>
    %1544 = arith.addf %1506, %1543 : vector<8x8xf32>
    %c293 = arith.constant 293 : index
    %1545 = memref.load %arg1[%c293] : memref<580xf32, #tpu.memory_space<smem>>
    %1546 = vector.broadcast %1545 : f32 to vector<8x8xf32>
    %1547 = arith.mulf %1546, %1540 : vector<8x8xf32>
    %1548 = arith.addf %1510, %1547 : vector<8x8xf32>
    %c294 = arith.constant 294 : index
    %1549 = memref.load %arg1[%c294] : memref<580xf32, #tpu.memory_space<smem>>
    %1550 = vector.broadcast %1549 : f32 to vector<8x8xf32>
    %1551 = arith.mulf %1550, %1540 : vector<8x8xf32>
    %1552 = arith.addf %1514, %1551 : vector<8x8xf32>
    %c295 = arith.constant 295 : index
    %1553 = memref.load %arg1[%c295] : memref<580xf32, #tpu.memory_space<smem>>
    %1554 = vector.broadcast %1553 : f32 to vector<8x8xf32>
    %1555 = arith.mulf %1554, %1540 : vector<8x8xf32>
    %1556 = arith.addf %1518, %1555 : vector<8x8xf32>
    %cst_254 = arith.constant 0.000000e+00 : f32
    %1557 = vector.broadcast %cst_254 : f32 to vector<8x1xf32>
    %1558 = vector.extract_strided_slice %671 {offsets = [0, 0], sizes = [8, 7], strides = [1, 1]} : vector<8x8xf32> to vector<8x7xf32>
    %1559 = tpu.concatenate %1557, %1558 in 1 : vector<8x1xf32>, vector<8x7xf32> -> vector<8x8xf32>
    %c296 = arith.constant 296 : index
    %1560 = memref.load %arg1[%c296] : memref<580xf32, #tpu.memory_space<smem>>
    %1561 = vector.broadcast %1560 : f32 to vector<8x8xf32>
    %1562 = arith.mulf %1561, %1559 : vector<8x8xf32>
    %1563 = arith.addf %1525, %1562 : vector<8x8xf32>
    %c297 = arith.constant 297 : index
    %1564 = memref.load %arg1[%c297] : memref<580xf32, #tpu.memory_space<smem>>
    %1565 = vector.broadcast %1564 : f32 to vector<8x8xf32>
    %1566 = arith.mulf %1565, %1559 : vector<8x8xf32>
    %1567 = arith.addf %1529, %1566 : vector<8x8xf32>
    %c298 = arith.constant 298 : index
    %1568 = memref.load %arg1[%c298] : memref<580xf32, #tpu.memory_space<smem>>
    %1569 = vector.broadcast %1568 : f32 to vector<8x8xf32>
    %1570 = arith.mulf %1569, %1559 : vector<8x8xf32>
    %1571 = arith.addf %1533, %1570 : vector<8x8xf32>
    %c299 = arith.constant 299 : index
    %1572 = memref.load %arg1[%c299] : memref<580xf32, #tpu.memory_space<smem>>
    %1573 = vector.broadcast %1572 : f32 to vector<8x8xf32>
    %1574 = arith.mulf %1573, %1559 : vector<8x8xf32>
    %1575 = arith.addf %1537, %1574 : vector<8x8xf32>
    %cst_255 = arith.constant 0.000000e+00 : f32
    %1576 = vector.broadcast %cst_255 : f32 to vector<8x1xf32>
    %1577 = vector.extract_strided_slice %749 {offsets = [0, 0], sizes = [8, 7], strides = [1, 1]} : vector<8x8xf32> to vector<8x7xf32>
    %1578 = tpu.concatenate %1576, %1577 in 1 : vector<8x1xf32>, vector<8x7xf32> -> vector<8x8xf32>
    %c300 = arith.constant 300 : index
    %1579 = memref.load %arg1[%c300] : memref<580xf32, #tpu.memory_space<smem>>
    %1580 = vector.broadcast %1579 : f32 to vector<8x8xf32>
    %1581 = arith.mulf %1580, %1578 : vector<8x8xf32>
    %1582 = arith.addf %1544, %1581 : vector<8x8xf32>
    %c301 = arith.constant 301 : index
    %1583 = memref.load %arg1[%c301] : memref<580xf32, #tpu.memory_space<smem>>
    %1584 = vector.broadcast %1583 : f32 to vector<8x8xf32>
    %1585 = arith.mulf %1584, %1578 : vector<8x8xf32>
    %1586 = arith.addf %1548, %1585 : vector<8x8xf32>
    %c302 = arith.constant 302 : index
    %1587 = memref.load %arg1[%c302] : memref<580xf32, #tpu.memory_space<smem>>
    %1588 = vector.broadcast %1587 : f32 to vector<8x8xf32>
    %1589 = arith.mulf %1588, %1578 : vector<8x8xf32>
    %1590 = arith.addf %1552, %1589 : vector<8x8xf32>
    %c303 = arith.constant 303 : index
    %1591 = memref.load %arg1[%c303] : memref<580xf32, #tpu.memory_space<smem>>
    %1592 = vector.broadcast %1591 : f32 to vector<8x8xf32>
    %1593 = arith.mulf %1592, %1578 : vector<8x8xf32>
    %1594 = arith.addf %1556, %1593 : vector<8x8xf32>
    %cst_256 = arith.constant 0.000000e+00 : f32
    %1595 = vector.broadcast %cst_256 : f32 to vector<8x1xf32>
    %1596 = vector.extract_strided_slice %827 {offsets = [0, 0], sizes = [8, 7], strides = [1, 1]} : vector<8x8xf32> to vector<8x7xf32>
    %1597 = tpu.concatenate %1595, %1596 in 1 : vector<8x1xf32>, vector<8x7xf32> -> vector<8x8xf32>
    %c304 = arith.constant 304 : index
    %1598 = memref.load %arg1[%c304] : memref<580xf32, #tpu.memory_space<smem>>
    %1599 = vector.broadcast %1598 : f32 to vector<8x8xf32>
    %1600 = arith.mulf %1599, %1597 : vector<8x8xf32>
    %1601 = arith.addf %1563, %1600 : vector<8x8xf32>
    %c305 = arith.constant 305 : index
    %1602 = memref.load %arg1[%c305] : memref<580xf32, #tpu.memory_space<smem>>
    %1603 = vector.broadcast %1602 : f32 to vector<8x8xf32>
    %1604 = arith.mulf %1603, %1597 : vector<8x8xf32>
    %1605 = arith.addf %1567, %1604 : vector<8x8xf32>
    %c306 = arith.constant 306 : index
    %1606 = memref.load %arg1[%c306] : memref<580xf32, #tpu.memory_space<smem>>
    %1607 = vector.broadcast %1606 : f32 to vector<8x8xf32>
    %1608 = arith.mulf %1607, %1597 : vector<8x8xf32>
    %1609 = arith.addf %1571, %1608 : vector<8x8xf32>
    %c307 = arith.constant 307 : index
    %1610 = memref.load %arg1[%c307] : memref<580xf32, #tpu.memory_space<smem>>
    %1611 = vector.broadcast %1610 : f32 to vector<8x8xf32>
    %1612 = arith.mulf %1611, %1597 : vector<8x8xf32>
    %1613 = arith.addf %1575, %1612 : vector<8x8xf32>
    %cst_257 = arith.constant 0.000000e+00 : f32
    %1614 = vector.broadcast %cst_257 : f32 to vector<8x1xf32>
    %1615 = vector.extract_strided_slice %905 {offsets = [0, 0], sizes = [8, 7], strides = [1, 1]} : vector<8x8xf32> to vector<8x7xf32>
    %1616 = tpu.concatenate %1614, %1615 in 1 : vector<8x1xf32>, vector<8x7xf32> -> vector<8x8xf32>
    %c308 = arith.constant 308 : index
    %1617 = memref.load %arg1[%c308] : memref<580xf32, #tpu.memory_space<smem>>
    %1618 = vector.broadcast %1617 : f32 to vector<8x8xf32>
    %1619 = arith.mulf %1618, %1616 : vector<8x8xf32>
    %1620 = arith.addf %1582, %1619 : vector<8x8xf32>
    %c309 = arith.constant 309 : index
    %1621 = memref.load %arg1[%c309] : memref<580xf32, #tpu.memory_space<smem>>
    %1622 = vector.broadcast %1621 : f32 to vector<8x8xf32>
    %1623 = arith.mulf %1622, %1616 : vector<8x8xf32>
    %1624 = arith.addf %1586, %1623 : vector<8x8xf32>
    %c310 = arith.constant 310 : index
    %1625 = memref.load %arg1[%c310] : memref<580xf32, #tpu.memory_space<smem>>
    %1626 = vector.broadcast %1625 : f32 to vector<8x8xf32>
    %1627 = arith.mulf %1626, %1616 : vector<8x8xf32>
    %1628 = arith.addf %1590, %1627 : vector<8x8xf32>
    %c311 = arith.constant 311 : index
    %1629 = memref.load %arg1[%c311] : memref<580xf32, #tpu.memory_space<smem>>
    %1630 = vector.broadcast %1629 : f32 to vector<8x8xf32>
    %1631 = arith.mulf %1630, %1616 : vector<8x8xf32>
    %1632 = arith.addf %1594, %1631 : vector<8x8xf32>
    %cst_258 = arith.constant 0.000000e+00 : f32
    %1633 = vector.broadcast %cst_258 : f32 to vector<8x1xf32>
    %1634 = vector.extract_strided_slice %983 {offsets = [0, 0], sizes = [8, 7], strides = [1, 1]} : vector<8x8xf32> to vector<8x7xf32>
    %1635 = tpu.concatenate %1633, %1634 in 1 : vector<8x1xf32>, vector<8x7xf32> -> vector<8x8xf32>
    %c312 = arith.constant 312 : index
    %1636 = memref.load %arg1[%c312] : memref<580xf32, #tpu.memory_space<smem>>
    %1637 = vector.broadcast %1636 : f32 to vector<8x8xf32>
    %1638 = arith.mulf %1637, %1635 : vector<8x8xf32>
    %1639 = arith.addf %1601, %1638 : vector<8x8xf32>
    %c313 = arith.constant 313 : index
    %1640 = memref.load %arg1[%c313] : memref<580xf32, #tpu.memory_space<smem>>
    %1641 = vector.broadcast %1640 : f32 to vector<8x8xf32>
    %1642 = arith.mulf %1641, %1635 : vector<8x8xf32>
    %1643 = arith.addf %1605, %1642 : vector<8x8xf32>
    %c314 = arith.constant 314 : index
    %1644 = memref.load %arg1[%c314] : memref<580xf32, #tpu.memory_space<smem>>
    %1645 = vector.broadcast %1644 : f32 to vector<8x8xf32>
    %1646 = arith.mulf %1645, %1635 : vector<8x8xf32>
    %1647 = arith.addf %1609, %1646 : vector<8x8xf32>
    %c315 = arith.constant 315 : index
    %1648 = memref.load %arg1[%c315] : memref<580xf32, #tpu.memory_space<smem>>
    %1649 = vector.broadcast %1648 : f32 to vector<8x8xf32>
    %1650 = arith.mulf %1649, %1635 : vector<8x8xf32>
    %1651 = arith.addf %1613, %1650 : vector<8x8xf32>
    %c316 = arith.constant 316 : index
    %1652 = memref.load %arg1[%c316] : memref<580xf32, #tpu.memory_space<smem>>
    %1653 = vector.broadcast %1652 : f32 to vector<8x8xf32>
    %1654 = arith.mulf %1653, %665 : vector<8x8xf32>
    %1655 = arith.addf %1620, %1654 : vector<8x8xf32>
    %c317 = arith.constant 317 : index
    %1656 = memref.load %arg1[%c317] : memref<580xf32, #tpu.memory_space<smem>>
    %1657 = vector.broadcast %1656 : f32 to vector<8x8xf32>
    %1658 = arith.mulf %1657, %665 : vector<8x8xf32>
    %1659 = arith.addf %1624, %1658 : vector<8x8xf32>
    %c318 = arith.constant 318 : index
    %1660 = memref.load %arg1[%c318] : memref<580xf32, #tpu.memory_space<smem>>
    %1661 = vector.broadcast %1660 : f32 to vector<8x8xf32>
    %1662 = arith.mulf %1661, %665 : vector<8x8xf32>
    %1663 = arith.addf %1628, %1662 : vector<8x8xf32>
    %c319 = arith.constant 319 : index
    %1664 = memref.load %arg1[%c319] : memref<580xf32, #tpu.memory_space<smem>>
    %1665 = vector.broadcast %1664 : f32 to vector<8x8xf32>
    %1666 = arith.mulf %1665, %665 : vector<8x8xf32>
    %1667 = arith.addf %1632, %1666 : vector<8x8xf32>
    %c320 = arith.constant 320 : index
    %1668 = memref.load %arg1[%c320] : memref<580xf32, #tpu.memory_space<smem>>
    %1669 = vector.broadcast %1668 : f32 to vector<8x8xf32>
    %1670 = arith.mulf %1669, %667 : vector<8x8xf32>
    %1671 = arith.addf %1639, %1670 : vector<8x8xf32>
    %c321 = arith.constant 321 : index
    %1672 = memref.load %arg1[%c321] : memref<580xf32, #tpu.memory_space<smem>>
    %1673 = vector.broadcast %1672 : f32 to vector<8x8xf32>
    %1674 = arith.mulf %1673, %667 : vector<8x8xf32>
    %1675 = arith.addf %1643, %1674 : vector<8x8xf32>
    %c322 = arith.constant 322 : index
    %1676 = memref.load %arg1[%c322] : memref<580xf32, #tpu.memory_space<smem>>
    %1677 = vector.broadcast %1676 : f32 to vector<8x8xf32>
    %1678 = arith.mulf %1677, %667 : vector<8x8xf32>
    %1679 = arith.addf %1647, %1678 : vector<8x8xf32>
    %c323 = arith.constant 323 : index
    %1680 = memref.load %arg1[%c323] : memref<580xf32, #tpu.memory_space<smem>>
    %1681 = vector.broadcast %1680 : f32 to vector<8x8xf32>
    %1682 = arith.mulf %1681, %667 : vector<8x8xf32>
    %1683 = arith.addf %1651, %1682 : vector<8x8xf32>
    %c324 = arith.constant 324 : index
    %1684 = memref.load %arg1[%c324] : memref<580xf32, #tpu.memory_space<smem>>
    %1685 = vector.broadcast %1684 : f32 to vector<8x8xf32>
    %1686 = arith.mulf %1685, %669 : vector<8x8xf32>
    %1687 = arith.addf %1655, %1686 : vector<8x8xf32>
    %c325 = arith.constant 325 : index
    %1688 = memref.load %arg1[%c325] : memref<580xf32, #tpu.memory_space<smem>>
    %1689 = vector.broadcast %1688 : f32 to vector<8x8xf32>
    %1690 = arith.mulf %1689, %669 : vector<8x8xf32>
    %1691 = arith.addf %1659, %1690 : vector<8x8xf32>
    %c326 = arith.constant 326 : index
    %1692 = memref.load %arg1[%c326] : memref<580xf32, #tpu.memory_space<smem>>
    %1693 = vector.broadcast %1692 : f32 to vector<8x8xf32>
    %1694 = arith.mulf %1693, %669 : vector<8x8xf32>
    %1695 = arith.addf %1663, %1694 : vector<8x8xf32>
    %c327 = arith.constant 327 : index
    %1696 = memref.load %arg1[%c327] : memref<580xf32, #tpu.memory_space<smem>>
    %1697 = vector.broadcast %1696 : f32 to vector<8x8xf32>
    %1698 = arith.mulf %1697, %669 : vector<8x8xf32>
    %1699 = arith.addf %1667, %1698 : vector<8x8xf32>
    %c328 = arith.constant 328 : index
    %1700 = memref.load %arg1[%c328] : memref<580xf32, #tpu.memory_space<smem>>
    %1701 = vector.broadcast %1700 : f32 to vector<8x8xf32>
    %1702 = arith.mulf %1701, %671 : vector<8x8xf32>
    %1703 = arith.addf %1671, %1702 : vector<8x8xf32>
    %c329 = arith.constant 329 : index
    %1704 = memref.load %arg1[%c329] : memref<580xf32, #tpu.memory_space<smem>>
    %1705 = vector.broadcast %1704 : f32 to vector<8x8xf32>
    %1706 = arith.mulf %1705, %671 : vector<8x8xf32>
    %1707 = arith.addf %1675, %1706 : vector<8x8xf32>
    %c330 = arith.constant 330 : index
    %1708 = memref.load %arg1[%c330] : memref<580xf32, #tpu.memory_space<smem>>
    %1709 = vector.broadcast %1708 : f32 to vector<8x8xf32>
    %1710 = arith.mulf %1709, %671 : vector<8x8xf32>
    %1711 = arith.addf %1679, %1710 : vector<8x8xf32>
    %c331 = arith.constant 331 : index
    %1712 = memref.load %arg1[%c331] : memref<580xf32, #tpu.memory_space<smem>>
    %1713 = vector.broadcast %1712 : f32 to vector<8x8xf32>
    %1714 = arith.mulf %1713, %671 : vector<8x8xf32>
    %1715 = arith.addf %1683, %1714 : vector<8x8xf32>
    %c332 = arith.constant 332 : index
    %1716 = memref.load %arg1[%c332] : memref<580xf32, #tpu.memory_space<smem>>
    %1717 = vector.broadcast %1716 : f32 to vector<8x8xf32>
    %1718 = arith.mulf %1717, %749 : vector<8x8xf32>
    %1719 = arith.addf %1687, %1718 : vector<8x8xf32>
    %c333 = arith.constant 333 : index
    %1720 = memref.load %arg1[%c333] : memref<580xf32, #tpu.memory_space<smem>>
    %1721 = vector.broadcast %1720 : f32 to vector<8x8xf32>
    %1722 = arith.mulf %1721, %749 : vector<8x8xf32>
    %1723 = arith.addf %1691, %1722 : vector<8x8xf32>
    %c334 = arith.constant 334 : index
    %1724 = memref.load %arg1[%c334] : memref<580xf32, #tpu.memory_space<smem>>
    %1725 = vector.broadcast %1724 : f32 to vector<8x8xf32>
    %1726 = arith.mulf %1725, %749 : vector<8x8xf32>
    %1727 = arith.addf %1695, %1726 : vector<8x8xf32>
    %c335 = arith.constant 335 : index
    %1728 = memref.load %arg1[%c335] : memref<580xf32, #tpu.memory_space<smem>>
    %1729 = vector.broadcast %1728 : f32 to vector<8x8xf32>
    %1730 = arith.mulf %1729, %749 : vector<8x8xf32>
    %1731 = arith.addf %1699, %1730 : vector<8x8xf32>
    %c336 = arith.constant 336 : index
    %1732 = memref.load %arg1[%c336] : memref<580xf32, #tpu.memory_space<smem>>
    %1733 = vector.broadcast %1732 : f32 to vector<8x8xf32>
    %1734 = arith.mulf %1733, %827 : vector<8x8xf32>
    %1735 = arith.addf %1703, %1734 : vector<8x8xf32>
    %c337 = arith.constant 337 : index
    %1736 = memref.load %arg1[%c337] : memref<580xf32, #tpu.memory_space<smem>>
    %1737 = vector.broadcast %1736 : f32 to vector<8x8xf32>
    %1738 = arith.mulf %1737, %827 : vector<8x8xf32>
    %1739 = arith.addf %1707, %1738 : vector<8x8xf32>
    %c338 = arith.constant 338 : index
    %1740 = memref.load %arg1[%c338] : memref<580xf32, #tpu.memory_space<smem>>
    %1741 = vector.broadcast %1740 : f32 to vector<8x8xf32>
    %1742 = arith.mulf %1741, %827 : vector<8x8xf32>
    %1743 = arith.addf %1711, %1742 : vector<8x8xf32>
    %c339 = arith.constant 339 : index
    %1744 = memref.load %arg1[%c339] : memref<580xf32, #tpu.memory_space<smem>>
    %1745 = vector.broadcast %1744 : f32 to vector<8x8xf32>
    %1746 = arith.mulf %1745, %827 : vector<8x8xf32>
    %1747 = arith.addf %1715, %1746 : vector<8x8xf32>
    %c340 = arith.constant 340 : index
    %1748 = memref.load %arg1[%c340] : memref<580xf32, #tpu.memory_space<smem>>
    %1749 = vector.broadcast %1748 : f32 to vector<8x8xf32>
    %1750 = arith.mulf %1749, %905 : vector<8x8xf32>
    %1751 = arith.addf %1719, %1750 : vector<8x8xf32>
    %c341 = arith.constant 341 : index
    %1752 = memref.load %arg1[%c341] : memref<580xf32, #tpu.memory_space<smem>>
    %1753 = vector.broadcast %1752 : f32 to vector<8x8xf32>
    %1754 = arith.mulf %1753, %905 : vector<8x8xf32>
    %1755 = arith.addf %1723, %1754 : vector<8x8xf32>
    %c342 = arith.constant 342 : index
    %1756 = memref.load %arg1[%c342] : memref<580xf32, #tpu.memory_space<smem>>
    %1757 = vector.broadcast %1756 : f32 to vector<8x8xf32>
    %1758 = arith.mulf %1757, %905 : vector<8x8xf32>
    %1759 = arith.addf %1727, %1758 : vector<8x8xf32>
    %c343 = arith.constant 343 : index
    %1760 = memref.load %arg1[%c343] : memref<580xf32, #tpu.memory_space<smem>>
    %1761 = vector.broadcast %1760 : f32 to vector<8x8xf32>
    %1762 = arith.mulf %1761, %905 : vector<8x8xf32>
    %1763 = arith.addf %1731, %1762 : vector<8x8xf32>
    %c344 = arith.constant 344 : index
    %1764 = memref.load %arg1[%c344] : memref<580xf32, #tpu.memory_space<smem>>
    %1765 = vector.broadcast %1764 : f32 to vector<8x8xf32>
    %1766 = arith.mulf %1765, %983 : vector<8x8xf32>
    %1767 = arith.addf %1735, %1766 : vector<8x8xf32>
    %c345 = arith.constant 345 : index
    %1768 = memref.load %arg1[%c345] : memref<580xf32, #tpu.memory_space<smem>>
    %1769 = vector.broadcast %1768 : f32 to vector<8x8xf32>
    %1770 = arith.mulf %1769, %983 : vector<8x8xf32>
    %1771 = arith.addf %1739, %1770 : vector<8x8xf32>
    %c346 = arith.constant 346 : index
    %1772 = memref.load %arg1[%c346] : memref<580xf32, #tpu.memory_space<smem>>
    %1773 = vector.broadcast %1772 : f32 to vector<8x8xf32>
    %1774 = arith.mulf %1773, %983 : vector<8x8xf32>
    %1775 = arith.addf %1743, %1774 : vector<8x8xf32>
    %c347 = arith.constant 347 : index
    %1776 = memref.load %arg1[%c347] : memref<580xf32, #tpu.memory_space<smem>>
    %1777 = vector.broadcast %1776 : f32 to vector<8x8xf32>
    %1778 = arith.mulf %1777, %983 : vector<8x8xf32>
    %1779 = arith.addf %1747, %1778 : vector<8x8xf32>
    %1780 = vector.extract_strided_slice %665 {offsets = [0, 1], sizes = [8, 7], strides = [1, 1]} : vector<8x8xf32> to vector<8x7xf32>
    %cst_259 = arith.constant 0.000000e+00 : f32
    %1781 = vector.broadcast %cst_259 : f32 to vector<8x1xf32>
    %1782 = tpu.concatenate %1780, %1781 in 1 : vector<8x7xf32>, vector<8x1xf32> -> vector<8x8xf32>
    %c348 = arith.constant 348 : index
    %1783 = memref.load %arg1[%c348] : memref<580xf32, #tpu.memory_space<smem>>
    %1784 = vector.broadcast %1783 : f32 to vector<8x8xf32>
    %1785 = arith.mulf %1784, %1782 : vector<8x8xf32>
    %1786 = arith.addf %1751, %1785 : vector<8x8xf32>
    %c349 = arith.constant 349 : index
    %1787 = memref.load %arg1[%c349] : memref<580xf32, #tpu.memory_space<smem>>
    %1788 = vector.broadcast %1787 : f32 to vector<8x8xf32>
    %1789 = arith.mulf %1788, %1782 : vector<8x8xf32>
    %1790 = arith.addf %1755, %1789 : vector<8x8xf32>
    %c350 = arith.constant 350 : index
    %1791 = memref.load %arg1[%c350] : memref<580xf32, #tpu.memory_space<smem>>
    %1792 = vector.broadcast %1791 : f32 to vector<8x8xf32>
    %1793 = arith.mulf %1792, %1782 : vector<8x8xf32>
    %1794 = arith.addf %1759, %1793 : vector<8x8xf32>
    %c351 = arith.constant 351 : index
    %1795 = memref.load %arg1[%c351] : memref<580xf32, #tpu.memory_space<smem>>
    %1796 = vector.broadcast %1795 : f32 to vector<8x8xf32>
    %1797 = arith.mulf %1796, %1782 : vector<8x8xf32>
    %1798 = arith.addf %1763, %1797 : vector<8x8xf32>
    %1799 = vector.extract_strided_slice %667 {offsets = [0, 1], sizes = [8, 7], strides = [1, 1]} : vector<8x8xf32> to vector<8x7xf32>
    %cst_260 = arith.constant 0.000000e+00 : f32
    %1800 = vector.broadcast %cst_260 : f32 to vector<8x1xf32>
    %1801 = tpu.concatenate %1799, %1800 in 1 : vector<8x7xf32>, vector<8x1xf32> -> vector<8x8xf32>
    %c352 = arith.constant 352 : index
    %1802 = memref.load %arg1[%c352] : memref<580xf32, #tpu.memory_space<smem>>
    %1803 = vector.broadcast %1802 : f32 to vector<8x8xf32>
    %1804 = arith.mulf %1803, %1801 : vector<8x8xf32>
    %1805 = arith.addf %1767, %1804 : vector<8x8xf32>
    %c353 = arith.constant 353 : index
    %1806 = memref.load %arg1[%c353] : memref<580xf32, #tpu.memory_space<smem>>
    %1807 = vector.broadcast %1806 : f32 to vector<8x8xf32>
    %1808 = arith.mulf %1807, %1801 : vector<8x8xf32>
    %1809 = arith.addf %1771, %1808 : vector<8x8xf32>
    %c354 = arith.constant 354 : index
    %1810 = memref.load %arg1[%c354] : memref<580xf32, #tpu.memory_space<smem>>
    %1811 = vector.broadcast %1810 : f32 to vector<8x8xf32>
    %1812 = arith.mulf %1811, %1801 : vector<8x8xf32>
    %1813 = arith.addf %1775, %1812 : vector<8x8xf32>
    %c355 = arith.constant 355 : index
    %1814 = memref.load %arg1[%c355] : memref<580xf32, #tpu.memory_space<smem>>
    %1815 = vector.broadcast %1814 : f32 to vector<8x8xf32>
    %1816 = arith.mulf %1815, %1801 : vector<8x8xf32>
    %1817 = arith.addf %1779, %1816 : vector<8x8xf32>
    %1818 = vector.extract_strided_slice %669 {offsets = [0, 1], sizes = [8, 7], strides = [1, 1]} : vector<8x8xf32> to vector<8x7xf32>
    %cst_261 = arith.constant 0.000000e+00 : f32
    %1819 = vector.broadcast %cst_261 : f32 to vector<8x1xf32>
    %1820 = tpu.concatenate %1818, %1819 in 1 : vector<8x7xf32>, vector<8x1xf32> -> vector<8x8xf32>
    %c356 = arith.constant 356 : index
    %1821 = memref.load %arg1[%c356] : memref<580xf32, #tpu.memory_space<smem>>
    %1822 = vector.broadcast %1821 : f32 to vector<8x8xf32>
    %1823 = arith.mulf %1822, %1820 : vector<8x8xf32>
    %1824 = arith.addf %1786, %1823 : vector<8x8xf32>
    %c357 = arith.constant 357 : index
    %1825 = memref.load %arg1[%c357] : memref<580xf32, #tpu.memory_space<smem>>
    %1826 = vector.broadcast %1825 : f32 to vector<8x8xf32>
    %1827 = arith.mulf %1826, %1820 : vector<8x8xf32>
    %1828 = arith.addf %1790, %1827 : vector<8x8xf32>
    %c358 = arith.constant 358 : index
    %1829 = memref.load %arg1[%c358] : memref<580xf32, #tpu.memory_space<smem>>
    %1830 = vector.broadcast %1829 : f32 to vector<8x8xf32>
    %1831 = arith.mulf %1830, %1820 : vector<8x8xf32>
    %1832 = arith.addf %1794, %1831 : vector<8x8xf32>
    %c359 = arith.constant 359 : index
    %1833 = memref.load %arg1[%c359] : memref<580xf32, #tpu.memory_space<smem>>
    %1834 = vector.broadcast %1833 : f32 to vector<8x8xf32>
    %1835 = arith.mulf %1834, %1820 : vector<8x8xf32>
    %1836 = arith.addf %1798, %1835 : vector<8x8xf32>
    %1837 = vector.extract_strided_slice %671 {offsets = [0, 1], sizes = [8, 7], strides = [1, 1]} : vector<8x8xf32> to vector<8x7xf32>
    %cst_262 = arith.constant 0.000000e+00 : f32
    %1838 = vector.broadcast %cst_262 : f32 to vector<8x1xf32>
    %1839 = tpu.concatenate %1837, %1838 in 1 : vector<8x7xf32>, vector<8x1xf32> -> vector<8x8xf32>
    %c360 = arith.constant 360 : index
    %1840 = memref.load %arg1[%c360] : memref<580xf32, #tpu.memory_space<smem>>
    %1841 = vector.broadcast %1840 : f32 to vector<8x8xf32>
    %1842 = arith.mulf %1841, %1839 : vector<8x8xf32>
    %1843 = arith.addf %1805, %1842 : vector<8x8xf32>
    %c361 = arith.constant 361 : index
    %1844 = memref.load %arg1[%c361] : memref<580xf32, #tpu.memory_space<smem>>
    %1845 = vector.broadcast %1844 : f32 to vector<8x8xf32>
    %1846 = arith.mulf %1845, %1839 : vector<8x8xf32>
    %1847 = arith.addf %1809, %1846 : vector<8x8xf32>
    %c362 = arith.constant 362 : index
    %1848 = memref.load %arg1[%c362] : memref<580xf32, #tpu.memory_space<smem>>
    %1849 = vector.broadcast %1848 : f32 to vector<8x8xf32>
    %1850 = arith.mulf %1849, %1839 : vector<8x8xf32>
    %1851 = arith.addf %1813, %1850 : vector<8x8xf32>
    %c363 = arith.constant 363 : index
    %1852 = memref.load %arg1[%c363] : memref<580xf32, #tpu.memory_space<smem>>
    %1853 = vector.broadcast %1852 : f32 to vector<8x8xf32>
    %1854 = arith.mulf %1853, %1839 : vector<8x8xf32>
    %1855 = arith.addf %1817, %1854 : vector<8x8xf32>
    %1856 = vector.extract_strided_slice %749 {offsets = [0, 1], sizes = [8, 7], strides = [1, 1]} : vector<8x8xf32> to vector<8x7xf32>
    %cst_263 = arith.constant 0.000000e+00 : f32
    %1857 = vector.broadcast %cst_263 : f32 to vector<8x1xf32>
    %1858 = tpu.concatenate %1856, %1857 in 1 : vector<8x7xf32>, vector<8x1xf32> -> vector<8x8xf32>
    %c364 = arith.constant 364 : index
    %1859 = memref.load %arg1[%c364] : memref<580xf32, #tpu.memory_space<smem>>
    %1860 = vector.broadcast %1859 : f32 to vector<8x8xf32>
    %1861 = arith.mulf %1860, %1858 : vector<8x8xf32>
    %1862 = arith.addf %1824, %1861 : vector<8x8xf32>
    %c365 = arith.constant 365 : index
    %1863 = memref.load %arg1[%c365] : memref<580xf32, #tpu.memory_space<smem>>
    %1864 = vector.broadcast %1863 : f32 to vector<8x8xf32>
    %1865 = arith.mulf %1864, %1858 : vector<8x8xf32>
    %1866 = arith.addf %1828, %1865 : vector<8x8xf32>
    %c366 = arith.constant 366 : index
    %1867 = memref.load %arg1[%c366] : memref<580xf32, #tpu.memory_space<smem>>
    %1868 = vector.broadcast %1867 : f32 to vector<8x8xf32>
    %1869 = arith.mulf %1868, %1858 : vector<8x8xf32>
    %1870 = arith.addf %1832, %1869 : vector<8x8xf32>
    %c367 = arith.constant 367 : index
    %1871 = memref.load %arg1[%c367] : memref<580xf32, #tpu.memory_space<smem>>
    %1872 = vector.broadcast %1871 : f32 to vector<8x8xf32>
    %1873 = arith.mulf %1872, %1858 : vector<8x8xf32>
    %1874 = arith.addf %1836, %1873 : vector<8x8xf32>
    %1875 = vector.extract_strided_slice %827 {offsets = [0, 1], sizes = [8, 7], strides = [1, 1]} : vector<8x8xf32> to vector<8x7xf32>
    %cst_264 = arith.constant 0.000000e+00 : f32
    %1876 = vector.broadcast %cst_264 : f32 to vector<8x1xf32>
    %1877 = tpu.concatenate %1875, %1876 in 1 : vector<8x7xf32>, vector<8x1xf32> -> vector<8x8xf32>
    %c368 = arith.constant 368 : index
    %1878 = memref.load %arg1[%c368] : memref<580xf32, #tpu.memory_space<smem>>
    %1879 = vector.broadcast %1878 : f32 to vector<8x8xf32>
    %1880 = arith.mulf %1879, %1877 : vector<8x8xf32>
    %1881 = arith.addf %1843, %1880 : vector<8x8xf32>
    %c369 = arith.constant 369 : index
    %1882 = memref.load %arg1[%c369] : memref<580xf32, #tpu.memory_space<smem>>
    %1883 = vector.broadcast %1882 : f32 to vector<8x8xf32>
    %1884 = arith.mulf %1883, %1877 : vector<8x8xf32>
    %1885 = arith.addf %1847, %1884 : vector<8x8xf32>
    %c370 = arith.constant 370 : index
    %1886 = memref.load %arg1[%c370] : memref<580xf32, #tpu.memory_space<smem>>
    %1887 = vector.broadcast %1886 : f32 to vector<8x8xf32>
    %1888 = arith.mulf %1887, %1877 : vector<8x8xf32>
    %1889 = arith.addf %1851, %1888 : vector<8x8xf32>
    %c371 = arith.constant 371 : index
    %1890 = memref.load %arg1[%c371] : memref<580xf32, #tpu.memory_space<smem>>
    %1891 = vector.broadcast %1890 : f32 to vector<8x8xf32>
    %1892 = arith.mulf %1891, %1877 : vector<8x8xf32>
    %1893 = arith.addf %1855, %1892 : vector<8x8xf32>
    %1894 = vector.extract_strided_slice %905 {offsets = [0, 1], sizes = [8, 7], strides = [1, 1]} : vector<8x8xf32> to vector<8x7xf32>
    %cst_265 = arith.constant 0.000000e+00 : f32
    %1895 = vector.broadcast %cst_265 : f32 to vector<8x1xf32>
    %1896 = tpu.concatenate %1894, %1895 in 1 : vector<8x7xf32>, vector<8x1xf32> -> vector<8x8xf32>
    %c372 = arith.constant 372 : index
    %1897 = memref.load %arg1[%c372] : memref<580xf32, #tpu.memory_space<smem>>
    %1898 = vector.broadcast %1897 : f32 to vector<8x8xf32>
    %1899 = arith.mulf %1898, %1896 : vector<8x8xf32>
    %1900 = arith.addf %1862, %1899 : vector<8x8xf32>
    %c373 = arith.constant 373 : index
    %1901 = memref.load %arg1[%c373] : memref<580xf32, #tpu.memory_space<smem>>
    %1902 = vector.broadcast %1901 : f32 to vector<8x8xf32>
    %1903 = arith.mulf %1902, %1896 : vector<8x8xf32>
    %1904 = arith.addf %1866, %1903 : vector<8x8xf32>
    %c374 = arith.constant 374 : index
    %1905 = memref.load %arg1[%c374] : memref<580xf32, #tpu.memory_space<smem>>
    %1906 = vector.broadcast %1905 : f32 to vector<8x8xf32>
    %1907 = arith.mulf %1906, %1896 : vector<8x8xf32>
    %1908 = arith.addf %1870, %1907 : vector<8x8xf32>
    %c375 = arith.constant 375 : index
    %1909 = memref.load %arg1[%c375] : memref<580xf32, #tpu.memory_space<smem>>
    %1910 = vector.broadcast %1909 : f32 to vector<8x8xf32>
    %1911 = arith.mulf %1910, %1896 : vector<8x8xf32>
    %1912 = arith.addf %1874, %1911 : vector<8x8xf32>
    %1913 = vector.extract_strided_slice %983 {offsets = [0, 1], sizes = [8, 7], strides = [1, 1]} : vector<8x8xf32> to vector<8x7xf32>
    %cst_266 = arith.constant 0.000000e+00 : f32
    %1914 = vector.broadcast %cst_266 : f32 to vector<8x1xf32>
    %1915 = tpu.concatenate %1913, %1914 in 1 : vector<8x7xf32>, vector<8x1xf32> -> vector<8x8xf32>
    %c376 = arith.constant 376 : index
    %1916 = memref.load %arg1[%c376] : memref<580xf32, #tpu.memory_space<smem>>
    %1917 = vector.broadcast %1916 : f32 to vector<8x8xf32>
    %1918 = arith.mulf %1917, %1915 : vector<8x8xf32>
    %1919 = arith.addf %1881, %1918 : vector<8x8xf32>
    %c377 = arith.constant 377 : index
    %1920 = memref.load %arg1[%c377] : memref<580xf32, #tpu.memory_space<smem>>
    %1921 = vector.broadcast %1920 : f32 to vector<8x8xf32>
    %1922 = arith.mulf %1921, %1915 : vector<8x8xf32>
    %1923 = arith.addf %1885, %1922 : vector<8x8xf32>
    %c378 = arith.constant 378 : index
    %1924 = memref.load %arg1[%c378] : memref<580xf32, #tpu.memory_space<smem>>
    %1925 = vector.broadcast %1924 : f32 to vector<8x8xf32>
    %1926 = arith.mulf %1925, %1915 : vector<8x8xf32>
    %1927 = arith.addf %1889, %1926 : vector<8x8xf32>
    %c379 = arith.constant 379 : index
    %1928 = memref.load %arg1[%c379] : memref<580xf32, #tpu.memory_space<smem>>
    %1929 = vector.broadcast %1928 : f32 to vector<8x8xf32>
    %1930 = arith.mulf %1929, %1915 : vector<8x8xf32>
    %1931 = arith.addf %1893, %1930 : vector<8x8xf32>
    %1932 = vector.extract_strided_slice %665 {offsets = [1, 0], sizes = [7, 8], strides = [1, 1]} : vector<8x8xf32> to vector<7x8xf32>
    %cst_267 = arith.constant 0.000000e+00 : f32
    %1933 = vector.broadcast %cst_267 : f32 to vector<1x8xf32>
    %1934 = tpu.concatenate %1932, %1933 in 0 : vector<7x8xf32>, vector<1x8xf32> -> vector<8x8xf32>
    %cst_268 = arith.constant 0.000000e+00 : f32
    %1935 = vector.broadcast %cst_268 : f32 to vector<8x1xf32>
    %1936 = vector.extract_strided_slice %1934 {offsets = [0, 0], sizes = [8, 7], strides = [1, 1]} : vector<8x8xf32> to vector<8x7xf32>
    %1937 = tpu.concatenate %1935, %1936 in 1 : vector<8x1xf32>, vector<8x7xf32> -> vector<8x8xf32>
    %c380 = arith.constant 380 : index
    %1938 = memref.load %arg1[%c380] : memref<580xf32, #tpu.memory_space<smem>>
    %1939 = vector.broadcast %1938 : f32 to vector<8x8xf32>
    %1940 = arith.mulf %1939, %1937 : vector<8x8xf32>
    %1941 = arith.addf %1900, %1940 : vector<8x8xf32>
    %c381 = arith.constant 381 : index
    %1942 = memref.load %arg1[%c381] : memref<580xf32, #tpu.memory_space<smem>>
    %1943 = vector.broadcast %1942 : f32 to vector<8x8xf32>
    %1944 = arith.mulf %1943, %1937 : vector<8x8xf32>
    %1945 = arith.addf %1904, %1944 : vector<8x8xf32>
    %c382 = arith.constant 382 : index
    %1946 = memref.load %arg1[%c382] : memref<580xf32, #tpu.memory_space<smem>>
    %1947 = vector.broadcast %1946 : f32 to vector<8x8xf32>
    %1948 = arith.mulf %1947, %1937 : vector<8x8xf32>
    %1949 = arith.addf %1908, %1948 : vector<8x8xf32>
    %c383 = arith.constant 383 : index
    %1950 = memref.load %arg1[%c383] : memref<580xf32, #tpu.memory_space<smem>>
    %1951 = vector.broadcast %1950 : f32 to vector<8x8xf32>
    %1952 = arith.mulf %1951, %1937 : vector<8x8xf32>
    %1953 = arith.addf %1912, %1952 : vector<8x8xf32>
    %1954 = vector.extract_strided_slice %667 {offsets = [1, 0], sizes = [7, 8], strides = [1, 1]} : vector<8x8xf32> to vector<7x8xf32>
    %cst_269 = arith.constant 0.000000e+00 : f32
    %1955 = vector.broadcast %cst_269 : f32 to vector<1x8xf32>
    %1956 = tpu.concatenate %1954, %1955 in 0 : vector<7x8xf32>, vector<1x8xf32> -> vector<8x8xf32>
    %cst_270 = arith.constant 0.000000e+00 : f32
    %1957 = vector.broadcast %cst_270 : f32 to vector<8x1xf32>
    %1958 = vector.extract_strided_slice %1956 {offsets = [0, 0], sizes = [8, 7], strides = [1, 1]} : vector<8x8xf32> to vector<8x7xf32>
    %1959 = tpu.concatenate %1957, %1958 in 1 : vector<8x1xf32>, vector<8x7xf32> -> vector<8x8xf32>
    %c384 = arith.constant 384 : index
    %1960 = memref.load %arg1[%c384] : memref<580xf32, #tpu.memory_space<smem>>
    %1961 = vector.broadcast %1960 : f32 to vector<8x8xf32>
    %1962 = arith.mulf %1961, %1959 : vector<8x8xf32>
    %1963 = arith.addf %1919, %1962 : vector<8x8xf32>
    %c385 = arith.constant 385 : index
    %1964 = memref.load %arg1[%c385] : memref<580xf32, #tpu.memory_space<smem>>
    %1965 = vector.broadcast %1964 : f32 to vector<8x8xf32>
    %1966 = arith.mulf %1965, %1959 : vector<8x8xf32>
    %1967 = arith.addf %1923, %1966 : vector<8x8xf32>
    %c386 = arith.constant 386 : index
    %1968 = memref.load %arg1[%c386] : memref<580xf32, #tpu.memory_space<smem>>
    %1969 = vector.broadcast %1968 : f32 to vector<8x8xf32>
    %1970 = arith.mulf %1969, %1959 : vector<8x8xf32>
    %1971 = arith.addf %1927, %1970 : vector<8x8xf32>
    %c387 = arith.constant 387 : index
    %1972 = memref.load %arg1[%c387] : memref<580xf32, #tpu.memory_space<smem>>
    %1973 = vector.broadcast %1972 : f32 to vector<8x8xf32>
    %1974 = arith.mulf %1973, %1959 : vector<8x8xf32>
    %1975 = arith.addf %1931, %1974 : vector<8x8xf32>
    %1976 = vector.extract_strided_slice %669 {offsets = [1, 0], sizes = [7, 8], strides = [1, 1]} : vector<8x8xf32> to vector<7x8xf32>
    %cst_271 = arith.constant 0.000000e+00 : f32
    %1977 = vector.broadcast %cst_271 : f32 to vector<1x8xf32>
    %1978 = tpu.concatenate %1976, %1977 in 0 : vector<7x8xf32>, vector<1x8xf32> -> vector<8x8xf32>
    %cst_272 = arith.constant 0.000000e+00 : f32
    %1979 = vector.broadcast %cst_272 : f32 to vector<8x1xf32>
    %1980 = vector.extract_strided_slice %1978 {offsets = [0, 0], sizes = [8, 7], strides = [1, 1]} : vector<8x8xf32> to vector<8x7xf32>
    %1981 = tpu.concatenate %1979, %1980 in 1 : vector<8x1xf32>, vector<8x7xf32> -> vector<8x8xf32>
    %c388 = arith.constant 388 : index
    %1982 = memref.load %arg1[%c388] : memref<580xf32, #tpu.memory_space<smem>>
    %1983 = vector.broadcast %1982 : f32 to vector<8x8xf32>
    %1984 = arith.mulf %1983, %1981 : vector<8x8xf32>
    %1985 = arith.addf %1941, %1984 : vector<8x8xf32>
    %c389 = arith.constant 389 : index
    %1986 = memref.load %arg1[%c389] : memref<580xf32, #tpu.memory_space<smem>>
    %1987 = vector.broadcast %1986 : f32 to vector<8x8xf32>
    %1988 = arith.mulf %1987, %1981 : vector<8x8xf32>
    %1989 = arith.addf %1945, %1988 : vector<8x8xf32>
    %c390 = arith.constant 390 : index
    %1990 = memref.load %arg1[%c390] : memref<580xf32, #tpu.memory_space<smem>>
    %1991 = vector.broadcast %1990 : f32 to vector<8x8xf32>
    %1992 = arith.mulf %1991, %1981 : vector<8x8xf32>
    %1993 = arith.addf %1949, %1992 : vector<8x8xf32>
    %c391 = arith.constant 391 : index
    %1994 = memref.load %arg1[%c391] : memref<580xf32, #tpu.memory_space<smem>>
    %1995 = vector.broadcast %1994 : f32 to vector<8x8xf32>
    %1996 = arith.mulf %1995, %1981 : vector<8x8xf32>
    %1997 = arith.addf %1953, %1996 : vector<8x8xf32>
    %1998 = vector.extract_strided_slice %671 {offsets = [1, 0], sizes = [7, 8], strides = [1, 1]} : vector<8x8xf32> to vector<7x8xf32>
    %cst_273 = arith.constant 0.000000e+00 : f32
    %1999 = vector.broadcast %cst_273 : f32 to vector<1x8xf32>
    %2000 = tpu.concatenate %1998, %1999 in 0 : vector<7x8xf32>, vector<1x8xf32> -> vector<8x8xf32>
    %cst_274 = arith.constant 0.000000e+00 : f32
    %2001 = vector.broadcast %cst_274 : f32 to vector<8x1xf32>
    %2002 = vector.extract_strided_slice %2000 {offsets = [0, 0], sizes = [8, 7], strides = [1, 1]} : vector<8x8xf32> to vector<8x7xf32>
    %2003 = tpu.concatenate %2001, %2002 in 1 : vector<8x1xf32>, vector<8x7xf32> -> vector<8x8xf32>
    %c392 = arith.constant 392 : index
    %2004 = memref.load %arg1[%c392] : memref<580xf32, #tpu.memory_space<smem>>
    %2005 = vector.broadcast %2004 : f32 to vector<8x8xf32>
    %2006 = arith.mulf %2005, %2003 : vector<8x8xf32>
    %2007 = arith.addf %1963, %2006 : vector<8x8xf32>
    %c393 = arith.constant 393 : index
    %2008 = memref.load %arg1[%c393] : memref<580xf32, #tpu.memory_space<smem>>
    %2009 = vector.broadcast %2008 : f32 to vector<8x8xf32>
    %2010 = arith.mulf %2009, %2003 : vector<8x8xf32>
    %2011 = arith.addf %1967, %2010 : vector<8x8xf32>
    %c394 = arith.constant 394 : index
    %2012 = memref.load %arg1[%c394] : memref<580xf32, #tpu.memory_space<smem>>
    %2013 = vector.broadcast %2012 : f32 to vector<8x8xf32>
    %2014 = arith.mulf %2013, %2003 : vector<8x8xf32>
    %2015 = arith.addf %1971, %2014 : vector<8x8xf32>
    %c395 = arith.constant 395 : index
    %2016 = memref.load %arg1[%c395] : memref<580xf32, #tpu.memory_space<smem>>
    %2017 = vector.broadcast %2016 : f32 to vector<8x8xf32>
    %2018 = arith.mulf %2017, %2003 : vector<8x8xf32>
    %2019 = arith.addf %1975, %2018 : vector<8x8xf32>
    %2020 = vector.extract_strided_slice %749 {offsets = [1, 0], sizes = [7, 8], strides = [1, 1]} : vector<8x8xf32> to vector<7x8xf32>
    %cst_275 = arith.constant 0.000000e+00 : f32
    %2021 = vector.broadcast %cst_275 : f32 to vector<1x8xf32>
    %2022 = tpu.concatenate %2020, %2021 in 0 : vector<7x8xf32>, vector<1x8xf32> -> vector<8x8xf32>
    %cst_276 = arith.constant 0.000000e+00 : f32
    %2023 = vector.broadcast %cst_276 : f32 to vector<8x1xf32>
    %2024 = vector.extract_strided_slice %2022 {offsets = [0, 0], sizes = [8, 7], strides = [1, 1]} : vector<8x8xf32> to vector<8x7xf32>
    %2025 = tpu.concatenate %2023, %2024 in 1 : vector<8x1xf32>, vector<8x7xf32> -> vector<8x8xf32>
    %c396 = arith.constant 396 : index
    %2026 = memref.load %arg1[%c396] : memref<580xf32, #tpu.memory_space<smem>>
    %2027 = vector.broadcast %2026 : f32 to vector<8x8xf32>
    %2028 = arith.mulf %2027, %2025 : vector<8x8xf32>
    %2029 = arith.addf %1985, %2028 : vector<8x8xf32>
    %c397 = arith.constant 397 : index
    %2030 = memref.load %arg1[%c397] : memref<580xf32, #tpu.memory_space<smem>>
    %2031 = vector.broadcast %2030 : f32 to vector<8x8xf32>
    %2032 = arith.mulf %2031, %2025 : vector<8x8xf32>
    %2033 = arith.addf %1989, %2032 : vector<8x8xf32>
    %c398 = arith.constant 398 : index
    %2034 = memref.load %arg1[%c398] : memref<580xf32, #tpu.memory_space<smem>>
    %2035 = vector.broadcast %2034 : f32 to vector<8x8xf32>
    %2036 = arith.mulf %2035, %2025 : vector<8x8xf32>
    %2037 = arith.addf %1993, %2036 : vector<8x8xf32>
    %c399 = arith.constant 399 : index
    %2038 = memref.load %arg1[%c399] : memref<580xf32, #tpu.memory_space<smem>>
    %2039 = vector.broadcast %2038 : f32 to vector<8x8xf32>
    %2040 = arith.mulf %2039, %2025 : vector<8x8xf32>
    %2041 = arith.addf %1997, %2040 : vector<8x8xf32>
    %2042 = vector.extract_strided_slice %827 {offsets = [1, 0], sizes = [7, 8], strides = [1, 1]} : vector<8x8xf32> to vector<7x8xf32>
    %cst_277 = arith.constant 0.000000e+00 : f32
    %2043 = vector.broadcast %cst_277 : f32 to vector<1x8xf32>
    %2044 = tpu.concatenate %2042, %2043 in 0 : vector<7x8xf32>, vector<1x8xf32> -> vector<8x8xf32>
    %cst_278 = arith.constant 0.000000e+00 : f32
    %2045 = vector.broadcast %cst_278 : f32 to vector<8x1xf32>
    %2046 = vector.extract_strided_slice %2044 {offsets = [0, 0], sizes = [8, 7], strides = [1, 1]} : vector<8x8xf32> to vector<8x7xf32>
    %2047 = tpu.concatenate %2045, %2046 in 1 : vector<8x1xf32>, vector<8x7xf32> -> vector<8x8xf32>
    %c400 = arith.constant 400 : index
    %2048 = memref.load %arg1[%c400] : memref<580xf32, #tpu.memory_space<smem>>
    %2049 = vector.broadcast %2048 : f32 to vector<8x8xf32>
    %2050 = arith.mulf %2049, %2047 : vector<8x8xf32>
    %2051 = arith.addf %2007, %2050 : vector<8x8xf32>
    %c401 = arith.constant 401 : index
    %2052 = memref.load %arg1[%c401] : memref<580xf32, #tpu.memory_space<smem>>
    %2053 = vector.broadcast %2052 : f32 to vector<8x8xf32>
    %2054 = arith.mulf %2053, %2047 : vector<8x8xf32>
    %2055 = arith.addf %2011, %2054 : vector<8x8xf32>
    %c402 = arith.constant 402 : index
    %2056 = memref.load %arg1[%c402] : memref<580xf32, #tpu.memory_space<smem>>
    %2057 = vector.broadcast %2056 : f32 to vector<8x8xf32>
    %2058 = arith.mulf %2057, %2047 : vector<8x8xf32>
    %2059 = arith.addf %2015, %2058 : vector<8x8xf32>
    %c403 = arith.constant 403 : index
    %2060 = memref.load %arg1[%c403] : memref<580xf32, #tpu.memory_space<smem>>
    %2061 = vector.broadcast %2060 : f32 to vector<8x8xf32>
    %2062 = arith.mulf %2061, %2047 : vector<8x8xf32>
    %2063 = arith.addf %2019, %2062 : vector<8x8xf32>
    %2064 = vector.extract_strided_slice %905 {offsets = [1, 0], sizes = [7, 8], strides = [1, 1]} : vector<8x8xf32> to vector<7x8xf32>
    %cst_279 = arith.constant 0.000000e+00 : f32
    %2065 = vector.broadcast %cst_279 : f32 to vector<1x8xf32>
    %2066 = tpu.concatenate %2064, %2065 in 0 : vector<7x8xf32>, vector<1x8xf32> -> vector<8x8xf32>
    %cst_280 = arith.constant 0.000000e+00 : f32
    %2067 = vector.broadcast %cst_280 : f32 to vector<8x1xf32>
    %2068 = vector.extract_strided_slice %2066 {offsets = [0, 0], sizes = [8, 7], strides = [1, 1]} : vector<8x8xf32> to vector<8x7xf32>
    %2069 = tpu.concatenate %2067, %2068 in 1 : vector<8x1xf32>, vector<8x7xf32> -> vector<8x8xf32>
    %c404 = arith.constant 404 : index
    %2070 = memref.load %arg1[%c404] : memref<580xf32, #tpu.memory_space<smem>>
    %2071 = vector.broadcast %2070 : f32 to vector<8x8xf32>
    %2072 = arith.mulf %2071, %2069 : vector<8x8xf32>
    %2073 = arith.addf %2029, %2072 : vector<8x8xf32>
    %c405 = arith.constant 405 : index
    %2074 = memref.load %arg1[%c405] : memref<580xf32, #tpu.memory_space<smem>>
    %2075 = vector.broadcast %2074 : f32 to vector<8x8xf32>
    %2076 = arith.mulf %2075, %2069 : vector<8x8xf32>
    %2077 = arith.addf %2033, %2076 : vector<8x8xf32>
    %c406 = arith.constant 406 : index
    %2078 = memref.load %arg1[%c406] : memref<580xf32, #tpu.memory_space<smem>>
    %2079 = vector.broadcast %2078 : f32 to vector<8x8xf32>
    %2080 = arith.mulf %2079, %2069 : vector<8x8xf32>
    %2081 = arith.addf %2037, %2080 : vector<8x8xf32>
    %c407 = arith.constant 407 : index
    %2082 = memref.load %arg1[%c407] : memref<580xf32, #tpu.memory_space<smem>>
    %2083 = vector.broadcast %2082 : f32 to vector<8x8xf32>
    %2084 = arith.mulf %2083, %2069 : vector<8x8xf32>
    %2085 = arith.addf %2041, %2084 : vector<8x8xf32>
    %2086 = vector.extract_strided_slice %983 {offsets = [1, 0], sizes = [7, 8], strides = [1, 1]} : vector<8x8xf32> to vector<7x8xf32>
    %cst_281 = arith.constant 0.000000e+00 : f32
    %2087 = vector.broadcast %cst_281 : f32 to vector<1x8xf32>
    %2088 = tpu.concatenate %2086, %2087 in 0 : vector<7x8xf32>, vector<1x8xf32> -> vector<8x8xf32>
    %cst_282 = arith.constant 0.000000e+00 : f32
    %2089 = vector.broadcast %cst_282 : f32 to vector<8x1xf32>
    %2090 = vector.extract_strided_slice %2088 {offsets = [0, 0], sizes = [8, 7], strides = [1, 1]} : vector<8x8xf32> to vector<8x7xf32>
    %2091 = tpu.concatenate %2089, %2090 in 1 : vector<8x1xf32>, vector<8x7xf32> -> vector<8x8xf32>
    %c408 = arith.constant 408 : index
    %2092 = memref.load %arg1[%c408] : memref<580xf32, #tpu.memory_space<smem>>
    %2093 = vector.broadcast %2092 : f32 to vector<8x8xf32>
    %2094 = arith.mulf %2093, %2091 : vector<8x8xf32>
    %2095 = arith.addf %2051, %2094 : vector<8x8xf32>
    %c409 = arith.constant 409 : index
    %2096 = memref.load %arg1[%c409] : memref<580xf32, #tpu.memory_space<smem>>
    %2097 = vector.broadcast %2096 : f32 to vector<8x8xf32>
    %2098 = arith.mulf %2097, %2091 : vector<8x8xf32>
    %2099 = arith.addf %2055, %2098 : vector<8x8xf32>
    %c410 = arith.constant 410 : index
    %2100 = memref.load %arg1[%c410] : memref<580xf32, #tpu.memory_space<smem>>
    %2101 = vector.broadcast %2100 : f32 to vector<8x8xf32>
    %2102 = arith.mulf %2101, %2091 : vector<8x8xf32>
    %2103 = arith.addf %2059, %2102 : vector<8x8xf32>
    %c411 = arith.constant 411 : index
    %2104 = memref.load %arg1[%c411] : memref<580xf32, #tpu.memory_space<smem>>
    %2105 = vector.broadcast %2104 : f32 to vector<8x8xf32>
    %2106 = arith.mulf %2105, %2091 : vector<8x8xf32>
    %2107 = arith.addf %2063, %2106 : vector<8x8xf32>
    %2108 = vector.extract_strided_slice %665 {offsets = [1, 0], sizes = [7, 8], strides = [1, 1]} : vector<8x8xf32> to vector<7x8xf32>
    %cst_283 = arith.constant 0.000000e+00 : f32
    %2109 = vector.broadcast %cst_283 : f32 to vector<1x8xf32>
    %2110 = tpu.concatenate %2108, %2109 in 0 : vector<7x8xf32>, vector<1x8xf32> -> vector<8x8xf32>
    %c412 = arith.constant 412 : index
    %2111 = memref.load %arg1[%c412] : memref<580xf32, #tpu.memory_space<smem>>
    %2112 = vector.broadcast %2111 : f32 to vector<8x8xf32>
    %2113 = arith.mulf %2112, %2110 : vector<8x8xf32>
    %2114 = arith.addf %2073, %2113 : vector<8x8xf32>
    %c413 = arith.constant 413 : index
    %2115 = memref.load %arg1[%c413] : memref<580xf32, #tpu.memory_space<smem>>
    %2116 = vector.broadcast %2115 : f32 to vector<8x8xf32>
    %2117 = arith.mulf %2116, %2110 : vector<8x8xf32>
    %2118 = arith.addf %2077, %2117 : vector<8x8xf32>
    %c414 = arith.constant 414 : index
    %2119 = memref.load %arg1[%c414] : memref<580xf32, #tpu.memory_space<smem>>
    %2120 = vector.broadcast %2119 : f32 to vector<8x8xf32>
    %2121 = arith.mulf %2120, %2110 : vector<8x8xf32>
    %2122 = arith.addf %2081, %2121 : vector<8x8xf32>
    %c415 = arith.constant 415 : index
    %2123 = memref.load %arg1[%c415] : memref<580xf32, #tpu.memory_space<smem>>
    %2124 = vector.broadcast %2123 : f32 to vector<8x8xf32>
    %2125 = arith.mulf %2124, %2110 : vector<8x8xf32>
    %2126 = arith.addf %2085, %2125 : vector<8x8xf32>
    %2127 = vector.extract_strided_slice %667 {offsets = [1, 0], sizes = [7, 8], strides = [1, 1]} : vector<8x8xf32> to vector<7x8xf32>
    %cst_284 = arith.constant 0.000000e+00 : f32
    %2128 = vector.broadcast %cst_284 : f32 to vector<1x8xf32>
    %2129 = tpu.concatenate %2127, %2128 in 0 : vector<7x8xf32>, vector<1x8xf32> -> vector<8x8xf32>
    %c416 = arith.constant 416 : index
    %2130 = memref.load %arg1[%c416] : memref<580xf32, #tpu.memory_space<smem>>
    %2131 = vector.broadcast %2130 : f32 to vector<8x8xf32>
    %2132 = arith.mulf %2131, %2129 : vector<8x8xf32>
    %2133 = arith.addf %2095, %2132 : vector<8x8xf32>
    %c417 = arith.constant 417 : index
    %2134 = memref.load %arg1[%c417] : memref<580xf32, #tpu.memory_space<smem>>
    %2135 = vector.broadcast %2134 : f32 to vector<8x8xf32>
    %2136 = arith.mulf %2135, %2129 : vector<8x8xf32>
    %2137 = arith.addf %2099, %2136 : vector<8x8xf32>
    %c418 = arith.constant 418 : index
    %2138 = memref.load %arg1[%c418] : memref<580xf32, #tpu.memory_space<smem>>
    %2139 = vector.broadcast %2138 : f32 to vector<8x8xf32>
    %2140 = arith.mulf %2139, %2129 : vector<8x8xf32>
    %2141 = arith.addf %2103, %2140 : vector<8x8xf32>
    %c419 = arith.constant 419 : index
    %2142 = memref.load %arg1[%c419] : memref<580xf32, #tpu.memory_space<smem>>
    %2143 = vector.broadcast %2142 : f32 to vector<8x8xf32>
    %2144 = arith.mulf %2143, %2129 : vector<8x8xf32>
    %2145 = arith.addf %2107, %2144 : vector<8x8xf32>
    %2146 = vector.extract_strided_slice %669 {offsets = [1, 0], sizes = [7, 8], strides = [1, 1]} : vector<8x8xf32> to vector<7x8xf32>
    %cst_285 = arith.constant 0.000000e+00 : f32
    %2147 = vector.broadcast %cst_285 : f32 to vector<1x8xf32>
    %2148 = tpu.concatenate %2146, %2147 in 0 : vector<7x8xf32>, vector<1x8xf32> -> vector<8x8xf32>
    %c420 = arith.constant 420 : index
    %2149 = memref.load %arg1[%c420] : memref<580xf32, #tpu.memory_space<smem>>
    %2150 = vector.broadcast %2149 : f32 to vector<8x8xf32>
    %2151 = arith.mulf %2150, %2148 : vector<8x8xf32>
    %2152 = arith.addf %2114, %2151 : vector<8x8xf32>
    %c421 = arith.constant 421 : index
    %2153 = memref.load %arg1[%c421] : memref<580xf32, #tpu.memory_space<smem>>
    %2154 = vector.broadcast %2153 : f32 to vector<8x8xf32>
    %2155 = arith.mulf %2154, %2148 : vector<8x8xf32>
    %2156 = arith.addf %2118, %2155 : vector<8x8xf32>
    %c422 = arith.constant 422 : index
    %2157 = memref.load %arg1[%c422] : memref<580xf32, #tpu.memory_space<smem>>
    %2158 = vector.broadcast %2157 : f32 to vector<8x8xf32>
    %2159 = arith.mulf %2158, %2148 : vector<8x8xf32>
    %2160 = arith.addf %2122, %2159 : vector<8x8xf32>
    %c423 = arith.constant 423 : index
    %2161 = memref.load %arg1[%c423] : memref<580xf32, #tpu.memory_space<smem>>
    %2162 = vector.broadcast %2161 : f32 to vector<8x8xf32>
    %2163 = arith.mulf %2162, %2148 : vector<8x8xf32>
    %2164 = arith.addf %2126, %2163 : vector<8x8xf32>
    %2165 = vector.extract_strided_slice %671 {offsets = [1, 0], sizes = [7, 8], strides = [1, 1]} : vector<8x8xf32> to vector<7x8xf32>
    %cst_286 = arith.constant 0.000000e+00 : f32
    %2166 = vector.broadcast %cst_286 : f32 to vector<1x8xf32>
    %2167 = tpu.concatenate %2165, %2166 in 0 : vector<7x8xf32>, vector<1x8xf32> -> vector<8x8xf32>
    %c424 = arith.constant 424 : index
    %2168 = memref.load %arg1[%c424] : memref<580xf32, #tpu.memory_space<smem>>
    %2169 = vector.broadcast %2168 : f32 to vector<8x8xf32>
    %2170 = arith.mulf %2169, %2167 : vector<8x8xf32>
    %2171 = arith.addf %2133, %2170 : vector<8x8xf32>
    %c425 = arith.constant 425 : index
    %2172 = memref.load %arg1[%c425] : memref<580xf32, #tpu.memory_space<smem>>
    %2173 = vector.broadcast %2172 : f32 to vector<8x8xf32>
    %2174 = arith.mulf %2173, %2167 : vector<8x8xf32>
    %2175 = arith.addf %2137, %2174 : vector<8x8xf32>
    %c426 = arith.constant 426 : index
    %2176 = memref.load %arg1[%c426] : memref<580xf32, #tpu.memory_space<smem>>
    %2177 = vector.broadcast %2176 : f32 to vector<8x8xf32>
    %2178 = arith.mulf %2177, %2167 : vector<8x8xf32>
    %2179 = arith.addf %2141, %2178 : vector<8x8xf32>
    %c427 = arith.constant 427 : index
    %2180 = memref.load %arg1[%c427] : memref<580xf32, #tpu.memory_space<smem>>
    %2181 = vector.broadcast %2180 : f32 to vector<8x8xf32>
    %2182 = arith.mulf %2181, %2167 : vector<8x8xf32>
    %2183 = arith.addf %2145, %2182 : vector<8x8xf32>
    %2184 = vector.extract_strided_slice %749 {offsets = [1, 0], sizes = [7, 8], strides = [1, 1]} : vector<8x8xf32> to vector<7x8xf32>
    %cst_287 = arith.constant 0.000000e+00 : f32
    %2185 = vector.broadcast %cst_287 : f32 to vector<1x8xf32>
    %2186 = tpu.concatenate %2184, %2185 in 0 : vector<7x8xf32>, vector<1x8xf32> -> vector<8x8xf32>
    %c428 = arith.constant 428 : index
    %2187 = memref.load %arg1[%c428] : memref<580xf32, #tpu.memory_space<smem>>
    %2188 = vector.broadcast %2187 : f32 to vector<8x8xf32>
    %2189 = arith.mulf %2188, %2186 : vector<8x8xf32>
    %2190 = arith.addf %2152, %2189 : vector<8x8xf32>
    %c429 = arith.constant 429 : index
    %2191 = memref.load %arg1[%c429] : memref<580xf32, #tpu.memory_space<smem>>
    %2192 = vector.broadcast %2191 : f32 to vector<8x8xf32>
    %2193 = arith.mulf %2192, %2186 : vector<8x8xf32>
    %2194 = arith.addf %2156, %2193 : vector<8x8xf32>
    %c430 = arith.constant 430 : index
    %2195 = memref.load %arg1[%c430] : memref<580xf32, #tpu.memory_space<smem>>
    %2196 = vector.broadcast %2195 : f32 to vector<8x8xf32>
    %2197 = arith.mulf %2196, %2186 : vector<8x8xf32>
    %2198 = arith.addf %2160, %2197 : vector<8x8xf32>
    %c431 = arith.constant 431 : index
    %2199 = memref.load %arg1[%c431] : memref<580xf32, #tpu.memory_space<smem>>
    %2200 = vector.broadcast %2199 : f32 to vector<8x8xf32>
    %2201 = arith.mulf %2200, %2186 : vector<8x8xf32>
    %2202 = arith.addf %2164, %2201 : vector<8x8xf32>
    %2203 = vector.extract_strided_slice %827 {offsets = [1, 0], sizes = [7, 8], strides = [1, 1]} : vector<8x8xf32> to vector<7x8xf32>
    %cst_288 = arith.constant 0.000000e+00 : f32
    %2204 = vector.broadcast %cst_288 : f32 to vector<1x8xf32>
    %2205 = tpu.concatenate %2203, %2204 in 0 : vector<7x8xf32>, vector<1x8xf32> -> vector<8x8xf32>
    %c432 = arith.constant 432 : index
    %2206 = memref.load %arg1[%c432] : memref<580xf32, #tpu.memory_space<smem>>
    %2207 = vector.broadcast %2206 : f32 to vector<8x8xf32>
    %2208 = arith.mulf %2207, %2205 : vector<8x8xf32>
    %2209 = arith.addf %2171, %2208 : vector<8x8xf32>
    %c433 = arith.constant 433 : index
    %2210 = memref.load %arg1[%c433] : memref<580xf32, #tpu.memory_space<smem>>
    %2211 = vector.broadcast %2210 : f32 to vector<8x8xf32>
    %2212 = arith.mulf %2211, %2205 : vector<8x8xf32>
    %2213 = arith.addf %2175, %2212 : vector<8x8xf32>
    %c434 = arith.constant 434 : index
    %2214 = memref.load %arg1[%c434] : memref<580xf32, #tpu.memory_space<smem>>
    %2215 = vector.broadcast %2214 : f32 to vector<8x8xf32>
    %2216 = arith.mulf %2215, %2205 : vector<8x8xf32>
    %2217 = arith.addf %2179, %2216 : vector<8x8xf32>
    %c435 = arith.constant 435 : index
    %2218 = memref.load %arg1[%c435] : memref<580xf32, #tpu.memory_space<smem>>
    %2219 = vector.broadcast %2218 : f32 to vector<8x8xf32>
    %2220 = arith.mulf %2219, %2205 : vector<8x8xf32>
    %2221 = arith.addf %2183, %2220 : vector<8x8xf32>
    %2222 = vector.extract_strided_slice %905 {offsets = [1, 0], sizes = [7, 8], strides = [1, 1]} : vector<8x8xf32> to vector<7x8xf32>
    %cst_289 = arith.constant 0.000000e+00 : f32
    %2223 = vector.broadcast %cst_289 : f32 to vector<1x8xf32>
    %2224 = tpu.concatenate %2222, %2223 in 0 : vector<7x8xf32>, vector<1x8xf32> -> vector<8x8xf32>
    %c436 = arith.constant 436 : index
    %2225 = memref.load %arg1[%c436] : memref<580xf32, #tpu.memory_space<smem>>
    %2226 = vector.broadcast %2225 : f32 to vector<8x8xf32>
    %2227 = arith.mulf %2226, %2224 : vector<8x8xf32>
    %2228 = arith.addf %2190, %2227 : vector<8x8xf32>
    %c437 = arith.constant 437 : index
    %2229 = memref.load %arg1[%c437] : memref<580xf32, #tpu.memory_space<smem>>
    %2230 = vector.broadcast %2229 : f32 to vector<8x8xf32>
    %2231 = arith.mulf %2230, %2224 : vector<8x8xf32>
    %2232 = arith.addf %2194, %2231 : vector<8x8xf32>
    %c438 = arith.constant 438 : index
    %2233 = memref.load %arg1[%c438] : memref<580xf32, #tpu.memory_space<smem>>
    %2234 = vector.broadcast %2233 : f32 to vector<8x8xf32>
    %2235 = arith.mulf %2234, %2224 : vector<8x8xf32>
    %2236 = arith.addf %2198, %2235 : vector<8x8xf32>
    %c439 = arith.constant 439 : index
    %2237 = memref.load %arg1[%c439] : memref<580xf32, #tpu.memory_space<smem>>
    %2238 = vector.broadcast %2237 : f32 to vector<8x8xf32>
    %2239 = arith.mulf %2238, %2224 : vector<8x8xf32>
    %2240 = arith.addf %2202, %2239 : vector<8x8xf32>
    %2241 = vector.extract_strided_slice %983 {offsets = [1, 0], sizes = [7, 8], strides = [1, 1]} : vector<8x8xf32> to vector<7x8xf32>
    %cst_290 = arith.constant 0.000000e+00 : f32
    %2242 = vector.broadcast %cst_290 : f32 to vector<1x8xf32>
    %2243 = tpu.concatenate %2241, %2242 in 0 : vector<7x8xf32>, vector<1x8xf32> -> vector<8x8xf32>
    %c440 = arith.constant 440 : index
    %2244 = memref.load %arg1[%c440] : memref<580xf32, #tpu.memory_space<smem>>
    %2245 = vector.broadcast %2244 : f32 to vector<8x8xf32>
    %2246 = arith.mulf %2245, %2243 : vector<8x8xf32>
    %2247 = arith.addf %2209, %2246 : vector<8x8xf32>
    %c441 = arith.constant 441 : index
    %2248 = memref.load %arg1[%c441] : memref<580xf32, #tpu.memory_space<smem>>
    %2249 = vector.broadcast %2248 : f32 to vector<8x8xf32>
    %2250 = arith.mulf %2249, %2243 : vector<8x8xf32>
    %2251 = arith.addf %2213, %2250 : vector<8x8xf32>
    %c442 = arith.constant 442 : index
    %2252 = memref.load %arg1[%c442] : memref<580xf32, #tpu.memory_space<smem>>
    %2253 = vector.broadcast %2252 : f32 to vector<8x8xf32>
    %2254 = arith.mulf %2253, %2243 : vector<8x8xf32>
    %2255 = arith.addf %2217, %2254 : vector<8x8xf32>
    %c443 = arith.constant 443 : index
    %2256 = memref.load %arg1[%c443] : memref<580xf32, #tpu.memory_space<smem>>
    %2257 = vector.broadcast %2256 : f32 to vector<8x8xf32>
    %2258 = arith.mulf %2257, %2243 : vector<8x8xf32>
    %2259 = arith.addf %2221, %2258 : vector<8x8xf32>
    %2260 = vector.extract_strided_slice %665 {offsets = [1, 0], sizes = [7, 8], strides = [1, 1]} : vector<8x8xf32> to vector<7x8xf32>
    %cst_291 = arith.constant 0.000000e+00 : f32
    %2261 = vector.broadcast %cst_291 : f32 to vector<1x8xf32>
    %2262 = tpu.concatenate %2260, %2261 in 0 : vector<7x8xf32>, vector<1x8xf32> -> vector<8x8xf32>
    %2263 = vector.extract_strided_slice %2262 {offsets = [0, 1], sizes = [8, 7], strides = [1, 1]} : vector<8x8xf32> to vector<8x7xf32>
    %cst_292 = arith.constant 0.000000e+00 : f32
    %2264 = vector.broadcast %cst_292 : f32 to vector<8x1xf32>
    %2265 = tpu.concatenate %2263, %2264 in 1 : vector<8x7xf32>, vector<8x1xf32> -> vector<8x8xf32>
    %c444 = arith.constant 444 : index
    %2266 = memref.load %arg1[%c444] : memref<580xf32, #tpu.memory_space<smem>>
    %2267 = vector.broadcast %2266 : f32 to vector<8x8xf32>
    %2268 = arith.mulf %2267, %2265 : vector<8x8xf32>
    %2269 = arith.addf %2228, %2268 : vector<8x8xf32>
    %c445 = arith.constant 445 : index
    %2270 = memref.load %arg1[%c445] : memref<580xf32, #tpu.memory_space<smem>>
    %2271 = vector.broadcast %2270 : f32 to vector<8x8xf32>
    %2272 = arith.mulf %2271, %2265 : vector<8x8xf32>
    %2273 = arith.addf %2232, %2272 : vector<8x8xf32>
    %c446 = arith.constant 446 : index
    %2274 = memref.load %arg1[%c446] : memref<580xf32, #tpu.memory_space<smem>>
    %2275 = vector.broadcast %2274 : f32 to vector<8x8xf32>
    %2276 = arith.mulf %2275, %2265 : vector<8x8xf32>
    %2277 = arith.addf %2236, %2276 : vector<8x8xf32>
    %c447 = arith.constant 447 : index
    %2278 = memref.load %arg1[%c447] : memref<580xf32, #tpu.memory_space<smem>>
    %2279 = vector.broadcast %2278 : f32 to vector<8x8xf32>
    %2280 = arith.mulf %2279, %2265 : vector<8x8xf32>
    %2281 = arith.addf %2240, %2280 : vector<8x8xf32>
    %2282 = vector.extract_strided_slice %667 {offsets = [1, 0], sizes = [7, 8], strides = [1, 1]} : vector<8x8xf32> to vector<7x8xf32>
    %cst_293 = arith.constant 0.000000e+00 : f32
    %2283 = vector.broadcast %cst_293 : f32 to vector<1x8xf32>
    %2284 = tpu.concatenate %2282, %2283 in 0 : vector<7x8xf32>, vector<1x8xf32> -> vector<8x8xf32>
    %2285 = vector.extract_strided_slice %2284 {offsets = [0, 1], sizes = [8, 7], strides = [1, 1]} : vector<8x8xf32> to vector<8x7xf32>
    %cst_294 = arith.constant 0.000000e+00 : f32
    %2286 = vector.broadcast %cst_294 : f32 to vector<8x1xf32>
    %2287 = tpu.concatenate %2285, %2286 in 1 : vector<8x7xf32>, vector<8x1xf32> -> vector<8x8xf32>
    %c448 = arith.constant 448 : index
    %2288 = memref.load %arg1[%c448] : memref<580xf32, #tpu.memory_space<smem>>
    %2289 = vector.broadcast %2288 : f32 to vector<8x8xf32>
    %2290 = arith.mulf %2289, %2287 : vector<8x8xf32>
    %2291 = arith.addf %2247, %2290 : vector<8x8xf32>
    %c449 = arith.constant 449 : index
    %2292 = memref.load %arg1[%c449] : memref<580xf32, #tpu.memory_space<smem>>
    %2293 = vector.broadcast %2292 : f32 to vector<8x8xf32>
    %2294 = arith.mulf %2293, %2287 : vector<8x8xf32>
    %2295 = arith.addf %2251, %2294 : vector<8x8xf32>
    %c450 = arith.constant 450 : index
    %2296 = memref.load %arg1[%c450] : memref<580xf32, #tpu.memory_space<smem>>
    %2297 = vector.broadcast %2296 : f32 to vector<8x8xf32>
    %2298 = arith.mulf %2297, %2287 : vector<8x8xf32>
    %2299 = arith.addf %2255, %2298 : vector<8x8xf32>
    %c451 = arith.constant 451 : index
    %2300 = memref.load %arg1[%c451] : memref<580xf32, #tpu.memory_space<smem>>
    %2301 = vector.broadcast %2300 : f32 to vector<8x8xf32>
    %2302 = arith.mulf %2301, %2287 : vector<8x8xf32>
    %2303 = arith.addf %2259, %2302 : vector<8x8xf32>
    %2304 = vector.extract_strided_slice %669 {offsets = [1, 0], sizes = [7, 8], strides = [1, 1]} : vector<8x8xf32> to vector<7x8xf32>
    %cst_295 = arith.constant 0.000000e+00 : f32
    %2305 = vector.broadcast %cst_295 : f32 to vector<1x8xf32>
    %2306 = tpu.concatenate %2304, %2305 in 0 : vector<7x8xf32>, vector<1x8xf32> -> vector<8x8xf32>
    %2307 = vector.extract_strided_slice %2306 {offsets = [0, 1], sizes = [8, 7], strides = [1, 1]} : vector<8x8xf32> to vector<8x7xf32>
    %cst_296 = arith.constant 0.000000e+00 : f32
    %2308 = vector.broadcast %cst_296 : f32 to vector<8x1xf32>
    %2309 = tpu.concatenate %2307, %2308 in 1 : vector<8x7xf32>, vector<8x1xf32> -> vector<8x8xf32>
    %c452 = arith.constant 452 : index
    %2310 = memref.load %arg1[%c452] : memref<580xf32, #tpu.memory_space<smem>>
    %2311 = vector.broadcast %2310 : f32 to vector<8x8xf32>
    %2312 = arith.mulf %2311, %2309 : vector<8x8xf32>
    %2313 = arith.addf %2269, %2312 : vector<8x8xf32>
    %c453 = arith.constant 453 : index
    %2314 = memref.load %arg1[%c453] : memref<580xf32, #tpu.memory_space<smem>>
    %2315 = vector.broadcast %2314 : f32 to vector<8x8xf32>
    %2316 = arith.mulf %2315, %2309 : vector<8x8xf32>
    %2317 = arith.addf %2273, %2316 : vector<8x8xf32>
    %c454 = arith.constant 454 : index
    %2318 = memref.load %arg1[%c454] : memref<580xf32, #tpu.memory_space<smem>>
    %2319 = vector.broadcast %2318 : f32 to vector<8x8xf32>
    %2320 = arith.mulf %2319, %2309 : vector<8x8xf32>
    %2321 = arith.addf %2277, %2320 : vector<8x8xf32>
    %c455 = arith.constant 455 : index
    %2322 = memref.load %arg1[%c455] : memref<580xf32, #tpu.memory_space<smem>>
    %2323 = vector.broadcast %2322 : f32 to vector<8x8xf32>
    %2324 = arith.mulf %2323, %2309 : vector<8x8xf32>
    %2325 = arith.addf %2281, %2324 : vector<8x8xf32>
    %2326 = vector.extract_strided_slice %671 {offsets = [1, 0], sizes = [7, 8], strides = [1, 1]} : vector<8x8xf32> to vector<7x8xf32>
    %cst_297 = arith.constant 0.000000e+00 : f32
    %2327 = vector.broadcast %cst_297 : f32 to vector<1x8xf32>
    %2328 = tpu.concatenate %2326, %2327 in 0 : vector<7x8xf32>, vector<1x8xf32> -> vector<8x8xf32>
    %2329 = vector.extract_strided_slice %2328 {offsets = [0, 1], sizes = [8, 7], strides = [1, 1]} : vector<8x8xf32> to vector<8x7xf32>
    %cst_298 = arith.constant 0.000000e+00 : f32
    %2330 = vector.broadcast %cst_298 : f32 to vector<8x1xf32>
    %2331 = tpu.concatenate %2329, %2330 in 1 : vector<8x7xf32>, vector<8x1xf32> -> vector<8x8xf32>
    %c456 = arith.constant 456 : index
    %2332 = memref.load %arg1[%c456] : memref<580xf32, #tpu.memory_space<smem>>
    %2333 = vector.broadcast %2332 : f32 to vector<8x8xf32>
    %2334 = arith.mulf %2333, %2331 : vector<8x8xf32>
    %2335 = arith.addf %2291, %2334 : vector<8x8xf32>
    %c457 = arith.constant 457 : index
    %2336 = memref.load %arg1[%c457] : memref<580xf32, #tpu.memory_space<smem>>
    %2337 = vector.broadcast %2336 : f32 to vector<8x8xf32>
    %2338 = arith.mulf %2337, %2331 : vector<8x8xf32>
    %2339 = arith.addf %2295, %2338 : vector<8x8xf32>
    %c458 = arith.constant 458 : index
    %2340 = memref.load %arg1[%c458] : memref<580xf32, #tpu.memory_space<smem>>
    %2341 = vector.broadcast %2340 : f32 to vector<8x8xf32>
    %2342 = arith.mulf %2341, %2331 : vector<8x8xf32>
    %2343 = arith.addf %2299, %2342 : vector<8x8xf32>
    %c459 = arith.constant 459 : index
    %2344 = memref.load %arg1[%c459] : memref<580xf32, #tpu.memory_space<smem>>
    %2345 = vector.broadcast %2344 : f32 to vector<8x8xf32>
    %2346 = arith.mulf %2345, %2331 : vector<8x8xf32>
    %2347 = arith.addf %2303, %2346 : vector<8x8xf32>
    %2348 = vector.extract_strided_slice %749 {offsets = [1, 0], sizes = [7, 8], strides = [1, 1]} : vector<8x8xf32> to vector<7x8xf32>
    %cst_299 = arith.constant 0.000000e+00 : f32
    %2349 = vector.broadcast %cst_299 : f32 to vector<1x8xf32>
    %2350 = tpu.concatenate %2348, %2349 in 0 : vector<7x8xf32>, vector<1x8xf32> -> vector<8x8xf32>
    %2351 = vector.extract_strided_slice %2350 {offsets = [0, 1], sizes = [8, 7], strides = [1, 1]} : vector<8x8xf32> to vector<8x7xf32>
    %cst_300 = arith.constant 0.000000e+00 : f32
    %2352 = vector.broadcast %cst_300 : f32 to vector<8x1xf32>
    %2353 = tpu.concatenate %2351, %2352 in 1 : vector<8x7xf32>, vector<8x1xf32> -> vector<8x8xf32>
    %c460 = arith.constant 460 : index
    %2354 = memref.load %arg1[%c460] : memref<580xf32, #tpu.memory_space<smem>>
    %2355 = vector.broadcast %2354 : f32 to vector<8x8xf32>
    %2356 = arith.mulf %2355, %2353 : vector<8x8xf32>
    %2357 = arith.addf %2313, %2356 : vector<8x8xf32>
    %c461 = arith.constant 461 : index
    %2358 = memref.load %arg1[%c461] : memref<580xf32, #tpu.memory_space<smem>>
    %2359 = vector.broadcast %2358 : f32 to vector<8x8xf32>
    %2360 = arith.mulf %2359, %2353 : vector<8x8xf32>
    %2361 = arith.addf %2317, %2360 : vector<8x8xf32>
    %c462 = arith.constant 462 : index
    %2362 = memref.load %arg1[%c462] : memref<580xf32, #tpu.memory_space<smem>>
    %2363 = vector.broadcast %2362 : f32 to vector<8x8xf32>
    %2364 = arith.mulf %2363, %2353 : vector<8x8xf32>
    %2365 = arith.addf %2321, %2364 : vector<8x8xf32>
    %c463 = arith.constant 463 : index
    %2366 = memref.load %arg1[%c463] : memref<580xf32, #tpu.memory_space<smem>>
    %2367 = vector.broadcast %2366 : f32 to vector<8x8xf32>
    %2368 = arith.mulf %2367, %2353 : vector<8x8xf32>
    %2369 = arith.addf %2325, %2368 : vector<8x8xf32>
    %2370 = vector.extract_strided_slice %827 {offsets = [1, 0], sizes = [7, 8], strides = [1, 1]} : vector<8x8xf32> to vector<7x8xf32>
    %cst_301 = arith.constant 0.000000e+00 : f32
    %2371 = vector.broadcast %cst_301 : f32 to vector<1x8xf32>
    %2372 = tpu.concatenate %2370, %2371 in 0 : vector<7x8xf32>, vector<1x8xf32> -> vector<8x8xf32>
    %2373 = vector.extract_strided_slice %2372 {offsets = [0, 1], sizes = [8, 7], strides = [1, 1]} : vector<8x8xf32> to vector<8x7xf32>
    %cst_302 = arith.constant 0.000000e+00 : f32
    %2374 = vector.broadcast %cst_302 : f32 to vector<8x1xf32>
    %2375 = tpu.concatenate %2373, %2374 in 1 : vector<8x7xf32>, vector<8x1xf32> -> vector<8x8xf32>
    %c464 = arith.constant 464 : index
    %2376 = memref.load %arg1[%c464] : memref<580xf32, #tpu.memory_space<smem>>
    %2377 = vector.broadcast %2376 : f32 to vector<8x8xf32>
    %2378 = arith.mulf %2377, %2375 : vector<8x8xf32>
    %2379 = arith.addf %2335, %2378 : vector<8x8xf32>
    %c465 = arith.constant 465 : index
    %2380 = memref.load %arg1[%c465] : memref<580xf32, #tpu.memory_space<smem>>
    %2381 = vector.broadcast %2380 : f32 to vector<8x8xf32>
    %2382 = arith.mulf %2381, %2375 : vector<8x8xf32>
    %2383 = arith.addf %2339, %2382 : vector<8x8xf32>
    %c466 = arith.constant 466 : index
    %2384 = memref.load %arg1[%c466] : memref<580xf32, #tpu.memory_space<smem>>
    %2385 = vector.broadcast %2384 : f32 to vector<8x8xf32>
    %2386 = arith.mulf %2385, %2375 : vector<8x8xf32>
    %2387 = arith.addf %2343, %2386 : vector<8x8xf32>
    %c467 = arith.constant 467 : index
    %2388 = memref.load %arg1[%c467] : memref<580xf32, #tpu.memory_space<smem>>
    %2389 = vector.broadcast %2388 : f32 to vector<8x8xf32>
    %2390 = arith.mulf %2389, %2375 : vector<8x8xf32>
    %2391 = arith.addf %2347, %2390 : vector<8x8xf32>
    %2392 = vector.extract_strided_slice %905 {offsets = [1, 0], sizes = [7, 8], strides = [1, 1]} : vector<8x8xf32> to vector<7x8xf32>
    %cst_303 = arith.constant 0.000000e+00 : f32
    %2393 = vector.broadcast %cst_303 : f32 to vector<1x8xf32>
    %2394 = tpu.concatenate %2392, %2393 in 0 : vector<7x8xf32>, vector<1x8xf32> -> vector<8x8xf32>
    %2395 = vector.extract_strided_slice %2394 {offsets = [0, 1], sizes = [8, 7], strides = [1, 1]} : vector<8x8xf32> to vector<8x7xf32>
    %cst_304 = arith.constant 0.000000e+00 : f32
    %2396 = vector.broadcast %cst_304 : f32 to vector<8x1xf32>
    %2397 = tpu.concatenate %2395, %2396 in 1 : vector<8x7xf32>, vector<8x1xf32> -> vector<8x8xf32>
    %c468 = arith.constant 468 : index
    %2398 = memref.load %arg1[%c468] : memref<580xf32, #tpu.memory_space<smem>>
    %2399 = vector.broadcast %2398 : f32 to vector<8x8xf32>
    %2400 = arith.mulf %2399, %2397 : vector<8x8xf32>
    %2401 = arith.addf %2357, %2400 : vector<8x8xf32>
    %c469 = arith.constant 469 : index
    %2402 = memref.load %arg1[%c469] : memref<580xf32, #tpu.memory_space<smem>>
    %2403 = vector.broadcast %2402 : f32 to vector<8x8xf32>
    %2404 = arith.mulf %2403, %2397 : vector<8x8xf32>
    %2405 = arith.addf %2361, %2404 : vector<8x8xf32>
    %c470 = arith.constant 470 : index
    %2406 = memref.load %arg1[%c470] : memref<580xf32, #tpu.memory_space<smem>>
    %2407 = vector.broadcast %2406 : f32 to vector<8x8xf32>
    %2408 = arith.mulf %2407, %2397 : vector<8x8xf32>
    %2409 = arith.addf %2365, %2408 : vector<8x8xf32>
    %c471 = arith.constant 471 : index
    %2410 = memref.load %arg1[%c471] : memref<580xf32, #tpu.memory_space<smem>>
    %2411 = vector.broadcast %2410 : f32 to vector<8x8xf32>
    %2412 = arith.mulf %2411, %2397 : vector<8x8xf32>
    %2413 = arith.addf %2369, %2412 : vector<8x8xf32>
    %2414 = vector.extract_strided_slice %983 {offsets = [1, 0], sizes = [7, 8], strides = [1, 1]} : vector<8x8xf32> to vector<7x8xf32>
    %cst_305 = arith.constant 0.000000e+00 : f32
    %2415 = vector.broadcast %cst_305 : f32 to vector<1x8xf32>
    %2416 = tpu.concatenate %2414, %2415 in 0 : vector<7x8xf32>, vector<1x8xf32> -> vector<8x8xf32>
    %2417 = vector.extract_strided_slice %2416 {offsets = [0, 1], sizes = [8, 7], strides = [1, 1]} : vector<8x8xf32> to vector<8x7xf32>
    %cst_306 = arith.constant 0.000000e+00 : f32
    %2418 = vector.broadcast %cst_306 : f32 to vector<8x1xf32>
    %2419 = tpu.concatenate %2417, %2418 in 1 : vector<8x7xf32>, vector<8x1xf32> -> vector<8x8xf32>
    %c472 = arith.constant 472 : index
    %2420 = memref.load %arg1[%c472] : memref<580xf32, #tpu.memory_space<smem>>
    %2421 = vector.broadcast %2420 : f32 to vector<8x8xf32>
    %2422 = arith.mulf %2421, %2419 : vector<8x8xf32>
    %2423 = arith.addf %2379, %2422 : vector<8x8xf32>
    %c473 = arith.constant 473 : index
    %2424 = memref.load %arg1[%c473] : memref<580xf32, #tpu.memory_space<smem>>
    %2425 = vector.broadcast %2424 : f32 to vector<8x8xf32>
    %2426 = arith.mulf %2425, %2419 : vector<8x8xf32>
    %2427 = arith.addf %2383, %2426 : vector<8x8xf32>
    %c474 = arith.constant 474 : index
    %2428 = memref.load %arg1[%c474] : memref<580xf32, #tpu.memory_space<smem>>
    %2429 = vector.broadcast %2428 : f32 to vector<8x8xf32>
    %2430 = arith.mulf %2429, %2419 : vector<8x8xf32>
    %2431 = arith.addf %2387, %2430 : vector<8x8xf32>
    %c475 = arith.constant 475 : index
    %2432 = memref.load %arg1[%c475] : memref<580xf32, #tpu.memory_space<smem>>
    %2433 = vector.broadcast %2432 : f32 to vector<8x8xf32>
    %2434 = arith.mulf %2433, %2419 : vector<8x8xf32>
    %2435 = arith.addf %2391, %2434 : vector<8x8xf32>
    %2436 = arith.addf %2401, %2423 : vector<8x8xf32>
    %2437 = arith.addf %2405, %2427 : vector<8x8xf32>
    %2438 = arith.addf %2409, %2431 : vector<8x8xf32>
    %2439 = arith.addf %2413, %2435 : vector<8x8xf32>
    %c516 = arith.constant 516 : index
    %2440 = memref.load %arg1[%c516] : memref<580xf32, #tpu.memory_space<smem>>
    %2441 = vector.broadcast %2440 : f32 to vector<8x8xf32>
    %cst_307 = arith.constant 0.000000e+00 : f32
    %2442 = vector.broadcast %cst_307 : f32 to vector<8x8xf32>
    %c480 = arith.constant 480 : index
    %2443 = memref.load %arg1[%c480] : memref<580xf32, #tpu.memory_space<smem>>
    %cst_308 = arith.constant 0.000000e+00 : f32
    %2444 = vector.broadcast %cst_308 : f32 to vector<1x8xf32>
    %2445 = vector.extract_strided_slice %2436 {offsets = [0, 0], sizes = [7, 8], strides = [1, 1]} : vector<8x8xf32> to vector<7x8xf32>
    %2446 = tpu.concatenate %2444, %2445 in 0 : vector<1x8xf32>, vector<7x8xf32> -> vector<8x8xf32>
    %cst_309 = arith.constant 0.000000e+00 : f32
    %2447 = vector.broadcast %cst_309 : f32 to vector<8x1xf32>
    %2448 = vector.extract_strided_slice %2446 {offsets = [0, 0], sizes = [8, 7], strides = [1, 1]} : vector<8x8xf32> to vector<8x7xf32>
    %2449 = tpu.concatenate %2447, %2448 in 1 : vector<8x1xf32>, vector<8x7xf32> -> vector<8x8xf32>
    %2450 = vector.broadcast %2443 : f32 to vector<8x8xf32>
    %2451 = arith.mulf %2450, %2449 : vector<8x8xf32>
    %2452 = arith.addf %2441, %2451 : vector<8x8xf32>
    %c484 = arith.constant 484 : index
    %2453 = memref.load %arg1[%c484] : memref<580xf32, #tpu.memory_space<smem>>
    %cst_310 = arith.constant 0.000000e+00 : f32
    %2454 = vector.broadcast %cst_310 : f32 to vector<1x8xf32>
    %2455 = vector.extract_strided_slice %2436 {offsets = [0, 0], sizes = [7, 8], strides = [1, 1]} : vector<8x8xf32> to vector<7x8xf32>
    %2456 = tpu.concatenate %2454, %2455 in 0 : vector<1x8xf32>, vector<7x8xf32> -> vector<8x8xf32>
    %2457 = vector.broadcast %2453 : f32 to vector<8x8xf32>
    %2458 = arith.mulf %2457, %2456 : vector<8x8xf32>
    %2459 = arith.addf %2442, %2458 : vector<8x8xf32>
    %c488 = arith.constant 488 : index
    %2460 = memref.load %arg1[%c488] : memref<580xf32, #tpu.memory_space<smem>>
    %cst_311 = arith.constant 0.000000e+00 : f32
    %2461 = vector.broadcast %cst_311 : f32 to vector<1x8xf32>
    %2462 = vector.extract_strided_slice %2436 {offsets = [0, 0], sizes = [7, 8], strides = [1, 1]} : vector<8x8xf32> to vector<7x8xf32>
    %2463 = tpu.concatenate %2461, %2462 in 0 : vector<1x8xf32>, vector<7x8xf32> -> vector<8x8xf32>
    %2464 = vector.extract_strided_slice %2463 {offsets = [0, 1], sizes = [8, 7], strides = [1, 1]} : vector<8x8xf32> to vector<8x7xf32>
    %cst_312 = arith.constant 0.000000e+00 : f32
    %2465 = vector.broadcast %cst_312 : f32 to vector<8x1xf32>
    %2466 = tpu.concatenate %2464, %2465 in 1 : vector<8x7xf32>, vector<8x1xf32> -> vector<8x8xf32>
    %2467 = vector.broadcast %2460 : f32 to vector<8x8xf32>
    %2468 = arith.mulf %2467, %2466 : vector<8x8xf32>
    %2469 = arith.addf %2452, %2468 : vector<8x8xf32>
    %c492 = arith.constant 492 : index
    %2470 = memref.load %arg1[%c492] : memref<580xf32, #tpu.memory_space<smem>>
    %cst_313 = arith.constant 0.000000e+00 : f32
    %2471 = vector.broadcast %cst_313 : f32 to vector<8x1xf32>
    %2472 = vector.extract_strided_slice %2436 {offsets = [0, 0], sizes = [8, 7], strides = [1, 1]} : vector<8x8xf32> to vector<8x7xf32>
    %2473 = tpu.concatenate %2471, %2472 in 1 : vector<8x1xf32>, vector<8x7xf32> -> vector<8x8xf32>
    %2474 = vector.broadcast %2470 : f32 to vector<8x8xf32>
    %2475 = arith.mulf %2474, %2473 : vector<8x8xf32>
    %2476 = arith.addf %2459, %2475 : vector<8x8xf32>
    %c496 = arith.constant 496 : index
    %2477 = memref.load %arg1[%c496] : memref<580xf32, #tpu.memory_space<smem>>
    %2478 = vector.broadcast %2477 : f32 to vector<8x8xf32>
    %2479 = arith.mulf %2478, %2436 : vector<8x8xf32>
    %2480 = arith.addf %2469, %2479 : vector<8x8xf32>
    %c500 = arith.constant 500 : index
    %2481 = memref.load %arg1[%c500] : memref<580xf32, #tpu.memory_space<smem>>
    %2482 = vector.extract_strided_slice %2436 {offsets = [0, 1], sizes = [8, 7], strides = [1, 1]} : vector<8x8xf32> to vector<8x7xf32>
    %cst_314 = arith.constant 0.000000e+00 : f32
    %2483 = vector.broadcast %cst_314 : f32 to vector<8x1xf32>
    %2484 = tpu.concatenate %2482, %2483 in 1 : vector<8x7xf32>, vector<8x1xf32> -> vector<8x8xf32>
    %2485 = vector.broadcast %2481 : f32 to vector<8x8xf32>
    %2486 = arith.mulf %2485, %2484 : vector<8x8xf32>
    %2487 = arith.addf %2476, %2486 : vector<8x8xf32>
    %c504 = arith.constant 504 : index
    %2488 = memref.load %arg1[%c504] : memref<580xf32, #tpu.memory_space<smem>>
    %2489 = vector.extract_strided_slice %2436 {offsets = [1, 0], sizes = [7, 8], strides = [1, 1]} : vector<8x8xf32> to vector<7x8xf32>
    %cst_315 = arith.constant 0.000000e+00 : f32
    %2490 = vector.broadcast %cst_315 : f32 to vector<1x8xf32>
    %2491 = tpu.concatenate %2489, %2490 in 0 : vector<7x8xf32>, vector<1x8xf32> -> vector<8x8xf32>
    %cst_316 = arith.constant 0.000000e+00 : f32
    %2492 = vector.broadcast %cst_316 : f32 to vector<8x1xf32>
    %2493 = vector.extract_strided_slice %2491 {offsets = [0, 0], sizes = [8, 7], strides = [1, 1]} : vector<8x8xf32> to vector<8x7xf32>
    %2494 = tpu.concatenate %2492, %2493 in 1 : vector<8x1xf32>, vector<8x7xf32> -> vector<8x8xf32>
    %2495 = vector.broadcast %2488 : f32 to vector<8x8xf32>
    %2496 = arith.mulf %2495, %2494 : vector<8x8xf32>
    %2497 = arith.addf %2480, %2496 : vector<8x8xf32>
    %c508 = arith.constant 508 : index
    %2498 = memref.load %arg1[%c508] : memref<580xf32, #tpu.memory_space<smem>>
    %2499 = vector.extract_strided_slice %2436 {offsets = [1, 0], sizes = [7, 8], strides = [1, 1]} : vector<8x8xf32> to vector<7x8xf32>
    %cst_317 = arith.constant 0.000000e+00 : f32
    %2500 = vector.broadcast %cst_317 : f32 to vector<1x8xf32>
    %2501 = tpu.concatenate %2499, %2500 in 0 : vector<7x8xf32>, vector<1x8xf32> -> vector<8x8xf32>
    %2502 = vector.broadcast %2498 : f32 to vector<8x8xf32>
    %2503 = arith.mulf %2502, %2501 : vector<8x8xf32>
    %2504 = arith.addf %2487, %2503 : vector<8x8xf32>
    %c512 = arith.constant 512 : index
    %2505 = memref.load %arg1[%c512] : memref<580xf32, #tpu.memory_space<smem>>
    %2506 = vector.extract_strided_slice %2436 {offsets = [1, 0], sizes = [7, 8], strides = [1, 1]} : vector<8x8xf32> to vector<7x8xf32>
    %cst_318 = arith.constant 0.000000e+00 : f32
    %2507 = vector.broadcast %cst_318 : f32 to vector<1x8xf32>
    %2508 = tpu.concatenate %2506, %2507 in 0 : vector<7x8xf32>, vector<1x8xf32> -> vector<8x8xf32>
    %2509 = vector.extract_strided_slice %2508 {offsets = [0, 1], sizes = [8, 7], strides = [1, 1]} : vector<8x8xf32> to vector<8x7xf32>
    %cst_319 = arith.constant 0.000000e+00 : f32
    %2510 = vector.broadcast %cst_319 : f32 to vector<8x1xf32>
    %2511 = tpu.concatenate %2509, %2510 in 1 : vector<8x7xf32>, vector<8x1xf32> -> vector<8x8xf32>
    %2512 = vector.broadcast %2505 : f32 to vector<8x8xf32>
    %2513 = arith.mulf %2512, %2511 : vector<8x8xf32>
    %2514 = arith.addf %2497, %2513 : vector<8x8xf32>
    %2515 = arith.addf %2514, %2504 : vector<8x8xf32>
    %c517 = arith.constant 517 : index
    %2516 = memref.load %arg1[%c517] : memref<580xf32, #tpu.memory_space<smem>>
    %2517 = vector.broadcast %2516 : f32 to vector<8x8xf32>
    %cst_320 = arith.constant 0.000000e+00 : f32
    %2518 = vector.broadcast %cst_320 : f32 to vector<8x8xf32>
    %c481 = arith.constant 481 : index
    %2519 = memref.load %arg1[%c481] : memref<580xf32, #tpu.memory_space<smem>>
    %cst_321 = arith.constant 0.000000e+00 : f32
    %2520 = vector.broadcast %cst_321 : f32 to vector<1x8xf32>
    %2521 = vector.extract_strided_slice %2437 {offsets = [0, 0], sizes = [7, 8], strides = [1, 1]} : vector<8x8xf32> to vector<7x8xf32>
    %2522 = tpu.concatenate %2520, %2521 in 0 : vector<1x8xf32>, vector<7x8xf32> -> vector<8x8xf32>
    %cst_322 = arith.constant 0.000000e+00 : f32
    %2523 = vector.broadcast %cst_322 : f32 to vector<8x1xf32>
    %2524 = vector.extract_strided_slice %2522 {offsets = [0, 0], sizes = [8, 7], strides = [1, 1]} : vector<8x8xf32> to vector<8x7xf32>
    %2525 = tpu.concatenate %2523, %2524 in 1 : vector<8x1xf32>, vector<8x7xf32> -> vector<8x8xf32>
    %2526 = vector.broadcast %2519 : f32 to vector<8x8xf32>
    %2527 = arith.mulf %2526, %2525 : vector<8x8xf32>
    %2528 = arith.addf %2517, %2527 : vector<8x8xf32>
    %c485 = arith.constant 485 : index
    %2529 = memref.load %arg1[%c485] : memref<580xf32, #tpu.memory_space<smem>>
    %cst_323 = arith.constant 0.000000e+00 : f32
    %2530 = vector.broadcast %cst_323 : f32 to vector<1x8xf32>
    %2531 = vector.extract_strided_slice %2437 {offsets = [0, 0], sizes = [7, 8], strides = [1, 1]} : vector<8x8xf32> to vector<7x8xf32>
    %2532 = tpu.concatenate %2530, %2531 in 0 : vector<1x8xf32>, vector<7x8xf32> -> vector<8x8xf32>
    %2533 = vector.broadcast %2529 : f32 to vector<8x8xf32>
    %2534 = arith.mulf %2533, %2532 : vector<8x8xf32>
    %2535 = arith.addf %2518, %2534 : vector<8x8xf32>
    %c489 = arith.constant 489 : index
    %2536 = memref.load %arg1[%c489] : memref<580xf32, #tpu.memory_space<smem>>
    %cst_324 = arith.constant 0.000000e+00 : f32
    %2537 = vector.broadcast %cst_324 : f32 to vector<1x8xf32>
    %2538 = vector.extract_strided_slice %2437 {offsets = [0, 0], sizes = [7, 8], strides = [1, 1]} : vector<8x8xf32> to vector<7x8xf32>
    %2539 = tpu.concatenate %2537, %2538 in 0 : vector<1x8xf32>, vector<7x8xf32> -> vector<8x8xf32>
    %2540 = vector.extract_strided_slice %2539 {offsets = [0, 1], sizes = [8, 7], strides = [1, 1]} : vector<8x8xf32> to vector<8x7xf32>
    %cst_325 = arith.constant 0.000000e+00 : f32
    %2541 = vector.broadcast %cst_325 : f32 to vector<8x1xf32>
    %2542 = tpu.concatenate %2540, %2541 in 1 : vector<8x7xf32>, vector<8x1xf32> -> vector<8x8xf32>
    %2543 = vector.broadcast %2536 : f32 to vector<8x8xf32>
    %2544 = arith.mulf %2543, %2542 : vector<8x8xf32>
    %2545 = arith.addf %2528, %2544 : vector<8x8xf32>
    %c493 = arith.constant 493 : index
    %2546 = memref.load %arg1[%c493] : memref<580xf32, #tpu.memory_space<smem>>
    %cst_326 = arith.constant 0.000000e+00 : f32
    %2547 = vector.broadcast %cst_326 : f32 to vector<8x1xf32>
    %2548 = vector.extract_strided_slice %2437 {offsets = [0, 0], sizes = [8, 7], strides = [1, 1]} : vector<8x8xf32> to vector<8x7xf32>
    %2549 = tpu.concatenate %2547, %2548 in 1 : vector<8x1xf32>, vector<8x7xf32> -> vector<8x8xf32>
    %2550 = vector.broadcast %2546 : f32 to vector<8x8xf32>
    %2551 = arith.mulf %2550, %2549 : vector<8x8xf32>
    %2552 = arith.addf %2535, %2551 : vector<8x8xf32>
    %c497 = arith.constant 497 : index
    %2553 = memref.load %arg1[%c497] : memref<580xf32, #tpu.memory_space<smem>>
    %2554 = vector.broadcast %2553 : f32 to vector<8x8xf32>
    %2555 = arith.mulf %2554, %2437 : vector<8x8xf32>
    %2556 = arith.addf %2545, %2555 : vector<8x8xf32>
    %c501 = arith.constant 501 : index
    %2557 = memref.load %arg1[%c501] : memref<580xf32, #tpu.memory_space<smem>>
    %2558 = vector.extract_strided_slice %2437 {offsets = [0, 1], sizes = [8, 7], strides = [1, 1]} : vector<8x8xf32> to vector<8x7xf32>
    %cst_327 = arith.constant 0.000000e+00 : f32
    %2559 = vector.broadcast %cst_327 : f32 to vector<8x1xf32>
    %2560 = tpu.concatenate %2558, %2559 in 1 : vector<8x7xf32>, vector<8x1xf32> -> vector<8x8xf32>
    %2561 = vector.broadcast %2557 : f32 to vector<8x8xf32>
    %2562 = arith.mulf %2561, %2560 : vector<8x8xf32>
    %2563 = arith.addf %2552, %2562 : vector<8x8xf32>
    %c505 = arith.constant 505 : index
    %2564 = memref.load %arg1[%c505] : memref<580xf32, #tpu.memory_space<smem>>
    %2565 = vector.extract_strided_slice %2437 {offsets = [1, 0], sizes = [7, 8], strides = [1, 1]} : vector<8x8xf32> to vector<7x8xf32>
    %cst_328 = arith.constant 0.000000e+00 : f32
    %2566 = vector.broadcast %cst_328 : f32 to vector<1x8xf32>
    %2567 = tpu.concatenate %2565, %2566 in 0 : vector<7x8xf32>, vector<1x8xf32> -> vector<8x8xf32>
    %cst_329 = arith.constant 0.000000e+00 : f32
    %2568 = vector.broadcast %cst_329 : f32 to vector<8x1xf32>
    %2569 = vector.extract_strided_slice %2567 {offsets = [0, 0], sizes = [8, 7], strides = [1, 1]} : vector<8x8xf32> to vector<8x7xf32>
    %2570 = tpu.concatenate %2568, %2569 in 1 : vector<8x1xf32>, vector<8x7xf32> -> vector<8x8xf32>
    %2571 = vector.broadcast %2564 : f32 to vector<8x8xf32>
    %2572 = arith.mulf %2571, %2570 : vector<8x8xf32>
    %2573 = arith.addf %2556, %2572 : vector<8x8xf32>
    %c509 = arith.constant 509 : index
    %2574 = memref.load %arg1[%c509] : memref<580xf32, #tpu.memory_space<smem>>
    %2575 = vector.extract_strided_slice %2437 {offsets = [1, 0], sizes = [7, 8], strides = [1, 1]} : vector<8x8xf32> to vector<7x8xf32>
    %cst_330 = arith.constant 0.000000e+00 : f32
    %2576 = vector.broadcast %cst_330 : f32 to vector<1x8xf32>
    %2577 = tpu.concatenate %2575, %2576 in 0 : vector<7x8xf32>, vector<1x8xf32> -> vector<8x8xf32>
    %2578 = vector.broadcast %2574 : f32 to vector<8x8xf32>
    %2579 = arith.mulf %2578, %2577 : vector<8x8xf32>
    %2580 = arith.addf %2563, %2579 : vector<8x8xf32>
    %c513 = arith.constant 513 : index
    %2581 = memref.load %arg1[%c513] : memref<580xf32, #tpu.memory_space<smem>>
    %2582 = vector.extract_strided_slice %2437 {offsets = [1, 0], sizes = [7, 8], strides = [1, 1]} : vector<8x8xf32> to vector<7x8xf32>
    %cst_331 = arith.constant 0.000000e+00 : f32
    %2583 = vector.broadcast %cst_331 : f32 to vector<1x8xf32>
    %2584 = tpu.concatenate %2582, %2583 in 0 : vector<7x8xf32>, vector<1x8xf32> -> vector<8x8xf32>
    %2585 = vector.extract_strided_slice %2584 {offsets = [0, 1], sizes = [8, 7], strides = [1, 1]} : vector<8x8xf32> to vector<8x7xf32>
    %cst_332 = arith.constant 0.000000e+00 : f32
    %2586 = vector.broadcast %cst_332 : f32 to vector<8x1xf32>
    %2587 = tpu.concatenate %2585, %2586 in 1 : vector<8x7xf32>, vector<8x1xf32> -> vector<8x8xf32>
    %2588 = vector.broadcast %2581 : f32 to vector<8x8xf32>
    %2589 = arith.mulf %2588, %2587 : vector<8x8xf32>
    %2590 = arith.addf %2573, %2589 : vector<8x8xf32>
    %2591 = arith.addf %2590, %2580 : vector<8x8xf32>
    %c518 = arith.constant 518 : index
    %2592 = memref.load %arg1[%c518] : memref<580xf32, #tpu.memory_space<smem>>
    %2593 = vector.broadcast %2592 : f32 to vector<8x8xf32>
    %cst_333 = arith.constant 0.000000e+00 : f32
    %2594 = vector.broadcast %cst_333 : f32 to vector<8x8xf32>
    %c482 = arith.constant 482 : index
    %2595 = memref.load %arg1[%c482] : memref<580xf32, #tpu.memory_space<smem>>
    %cst_334 = arith.constant 0.000000e+00 : f32
    %2596 = vector.broadcast %cst_334 : f32 to vector<1x8xf32>
    %2597 = vector.extract_strided_slice %2438 {offsets = [0, 0], sizes = [7, 8], strides = [1, 1]} : vector<8x8xf32> to vector<7x8xf32>
    %2598 = tpu.concatenate %2596, %2597 in 0 : vector<1x8xf32>, vector<7x8xf32> -> vector<8x8xf32>
    %cst_335 = arith.constant 0.000000e+00 : f32
    %2599 = vector.broadcast %cst_335 : f32 to vector<8x1xf32>
    %2600 = vector.extract_strided_slice %2598 {offsets = [0, 0], sizes = [8, 7], strides = [1, 1]} : vector<8x8xf32> to vector<8x7xf32>
    %2601 = tpu.concatenate %2599, %2600 in 1 : vector<8x1xf32>, vector<8x7xf32> -> vector<8x8xf32>
    %2602 = vector.broadcast %2595 : f32 to vector<8x8xf32>
    %2603 = arith.mulf %2602, %2601 : vector<8x8xf32>
    %2604 = arith.addf %2593, %2603 : vector<8x8xf32>
    %c486 = arith.constant 486 : index
    %2605 = memref.load %arg1[%c486] : memref<580xf32, #tpu.memory_space<smem>>
    %cst_336 = arith.constant 0.000000e+00 : f32
    %2606 = vector.broadcast %cst_336 : f32 to vector<1x8xf32>
    %2607 = vector.extract_strided_slice %2438 {offsets = [0, 0], sizes = [7, 8], strides = [1, 1]} : vector<8x8xf32> to vector<7x8xf32>
    %2608 = tpu.concatenate %2606, %2607 in 0 : vector<1x8xf32>, vector<7x8xf32> -> vector<8x8xf32>
    %2609 = vector.broadcast %2605 : f32 to vector<8x8xf32>
    %2610 = arith.mulf %2609, %2608 : vector<8x8xf32>
    %2611 = arith.addf %2594, %2610 : vector<8x8xf32>
    %c490 = arith.constant 490 : index
    %2612 = memref.load %arg1[%c490] : memref<580xf32, #tpu.memory_space<smem>>
    %cst_337 = arith.constant 0.000000e+00 : f32
    %2613 = vector.broadcast %cst_337 : f32 to vector<1x8xf32>
    %2614 = vector.extract_strided_slice %2438 {offsets = [0, 0], sizes = [7, 8], strides = [1, 1]} : vector<8x8xf32> to vector<7x8xf32>
    %2615 = tpu.concatenate %2613, %2614 in 0 : vector<1x8xf32>, vector<7x8xf32> -> vector<8x8xf32>
    %2616 = vector.extract_strided_slice %2615 {offsets = [0, 1], sizes = [8, 7], strides = [1, 1]} : vector<8x8xf32> to vector<8x7xf32>
    %cst_338 = arith.constant 0.000000e+00 : f32
    %2617 = vector.broadcast %cst_338 : f32 to vector<8x1xf32>
    %2618 = tpu.concatenate %2616, %2617 in 1 : vector<8x7xf32>, vector<8x1xf32> -> vector<8x8xf32>
    %2619 = vector.broadcast %2612 : f32 to vector<8x8xf32>
    %2620 = arith.mulf %2619, %2618 : vector<8x8xf32>
    %2621 = arith.addf %2604, %2620 : vector<8x8xf32>
    %c494 = arith.constant 494 : index
    %2622 = memref.load %arg1[%c494] : memref<580xf32, #tpu.memory_space<smem>>
    %cst_339 = arith.constant 0.000000e+00 : f32
    %2623 = vector.broadcast %cst_339 : f32 to vector<8x1xf32>
    %2624 = vector.extract_strided_slice %2438 {offsets = [0, 0], sizes = [8, 7], strides = [1, 1]} : vector<8x8xf32> to vector<8x7xf32>
    %2625 = tpu.concatenate %2623, %2624 in 1 : vector<8x1xf32>, vector<8x7xf32> -> vector<8x8xf32>
    %2626 = vector.broadcast %2622 : f32 to vector<8x8xf32>
    %2627 = arith.mulf %2626, %2625 : vector<8x8xf32>
    %2628 = arith.addf %2611, %2627 : vector<8x8xf32>
    %c498 = arith.constant 498 : index
    %2629 = memref.load %arg1[%c498] : memref<580xf32, #tpu.memory_space<smem>>
    %2630 = vector.broadcast %2629 : f32 to vector<8x8xf32>
    %2631 = arith.mulf %2630, %2438 : vector<8x8xf32>
    %2632 = arith.addf %2621, %2631 : vector<8x8xf32>
    %c502 = arith.constant 502 : index
    %2633 = memref.load %arg1[%c502] : memref<580xf32, #tpu.memory_space<smem>>
    %2634 = vector.extract_strided_slice %2438 {offsets = [0, 1], sizes = [8, 7], strides = [1, 1]} : vector<8x8xf32> to vector<8x7xf32>
    %cst_340 = arith.constant 0.000000e+00 : f32
    %2635 = vector.broadcast %cst_340 : f32 to vector<8x1xf32>
    %2636 = tpu.concatenate %2634, %2635 in 1 : vector<8x7xf32>, vector<8x1xf32> -> vector<8x8xf32>
    %2637 = vector.broadcast %2633 : f32 to vector<8x8xf32>
    %2638 = arith.mulf %2637, %2636 : vector<8x8xf32>
    %2639 = arith.addf %2628, %2638 : vector<8x8xf32>
    %c506 = arith.constant 506 : index
    %2640 = memref.load %arg1[%c506] : memref<580xf32, #tpu.memory_space<smem>>
    %2641 = vector.extract_strided_slice %2438 {offsets = [1, 0], sizes = [7, 8], strides = [1, 1]} : vector<8x8xf32> to vector<7x8xf32>
    %cst_341 = arith.constant 0.000000e+00 : f32
    %2642 = vector.broadcast %cst_341 : f32 to vector<1x8xf32>
    %2643 = tpu.concatenate %2641, %2642 in 0 : vector<7x8xf32>, vector<1x8xf32> -> vector<8x8xf32>
    %cst_342 = arith.constant 0.000000e+00 : f32
    %2644 = vector.broadcast %cst_342 : f32 to vector<8x1xf32>
    %2645 = vector.extract_strided_slice %2643 {offsets = [0, 0], sizes = [8, 7], strides = [1, 1]} : vector<8x8xf32> to vector<8x7xf32>
    %2646 = tpu.concatenate %2644, %2645 in 1 : vector<8x1xf32>, vector<8x7xf32> -> vector<8x8xf32>
    %2647 = vector.broadcast %2640 : f32 to vector<8x8xf32>
    %2648 = arith.mulf %2647, %2646 : vector<8x8xf32>
    %2649 = arith.addf %2632, %2648 : vector<8x8xf32>
    %c510 = arith.constant 510 : index
    %2650 = memref.load %arg1[%c510] : memref<580xf32, #tpu.memory_space<smem>>
    %2651 = vector.extract_strided_slice %2438 {offsets = [1, 0], sizes = [7, 8], strides = [1, 1]} : vector<8x8xf32> to vector<7x8xf32>
    %cst_343 = arith.constant 0.000000e+00 : f32
    %2652 = vector.broadcast %cst_343 : f32 to vector<1x8xf32>
    %2653 = tpu.concatenate %2651, %2652 in 0 : vector<7x8xf32>, vector<1x8xf32> -> vector<8x8xf32>
    %2654 = vector.broadcast %2650 : f32 to vector<8x8xf32>
    %2655 = arith.mulf %2654, %2653 : vector<8x8xf32>
    %2656 = arith.addf %2639, %2655 : vector<8x8xf32>
    %c514 = arith.constant 514 : index
    %2657 = memref.load %arg1[%c514] : memref<580xf32, #tpu.memory_space<smem>>
    %2658 = vector.extract_strided_slice %2438 {offsets = [1, 0], sizes = [7, 8], strides = [1, 1]} : vector<8x8xf32> to vector<7x8xf32>
    %cst_344 = arith.constant 0.000000e+00 : f32
    %2659 = vector.broadcast %cst_344 : f32 to vector<1x8xf32>
    %2660 = tpu.concatenate %2658, %2659 in 0 : vector<7x8xf32>, vector<1x8xf32> -> vector<8x8xf32>
    %2661 = vector.extract_strided_slice %2660 {offsets = [0, 1], sizes = [8, 7], strides = [1, 1]} : vector<8x8xf32> to vector<8x7xf32>
    %cst_345 = arith.constant 0.000000e+00 : f32
    %2662 = vector.broadcast %cst_345 : f32 to vector<8x1xf32>
    %2663 = tpu.concatenate %2661, %2662 in 1 : vector<8x7xf32>, vector<8x1xf32> -> vector<8x8xf32>
    %2664 = vector.broadcast %2657 : f32 to vector<8x8xf32>
    %2665 = arith.mulf %2664, %2663 : vector<8x8xf32>
    %2666 = arith.addf %2649, %2665 : vector<8x8xf32>
    %2667 = arith.addf %2666, %2656 : vector<8x8xf32>
    %c519 = arith.constant 519 : index
    %2668 = memref.load %arg1[%c519] : memref<580xf32, #tpu.memory_space<smem>>
    %2669 = vector.broadcast %2668 : f32 to vector<8x8xf32>
    %cst_346 = arith.constant 0.000000e+00 : f32
    %2670 = vector.broadcast %cst_346 : f32 to vector<8x8xf32>
    %c483 = arith.constant 483 : index
    %2671 = memref.load %arg1[%c483] : memref<580xf32, #tpu.memory_space<smem>>
    %cst_347 = arith.constant 0.000000e+00 : f32
    %2672 = vector.broadcast %cst_347 : f32 to vector<1x8xf32>
    %2673 = vector.extract_strided_slice %2439 {offsets = [0, 0], sizes = [7, 8], strides = [1, 1]} : vector<8x8xf32> to vector<7x8xf32>
    %2674 = tpu.concatenate %2672, %2673 in 0 : vector<1x8xf32>, vector<7x8xf32> -> vector<8x8xf32>
    %cst_348 = arith.constant 0.000000e+00 : f32
    %2675 = vector.broadcast %cst_348 : f32 to vector<8x1xf32>
    %2676 = vector.extract_strided_slice %2674 {offsets = [0, 0], sizes = [8, 7], strides = [1, 1]} : vector<8x8xf32> to vector<8x7xf32>
    %2677 = tpu.concatenate %2675, %2676 in 1 : vector<8x1xf32>, vector<8x7xf32> -> vector<8x8xf32>
    %2678 = vector.broadcast %2671 : f32 to vector<8x8xf32>
    %2679 = arith.mulf %2678, %2677 : vector<8x8xf32>
    %2680 = arith.addf %2669, %2679 : vector<8x8xf32>
    %c487 = arith.constant 487 : index
    %2681 = memref.load %arg1[%c487] : memref<580xf32, #tpu.memory_space<smem>>
    %cst_349 = arith.constant 0.000000e+00 : f32
    %2682 = vector.broadcast %cst_349 : f32 to vector<1x8xf32>
    %2683 = vector.extract_strided_slice %2439 {offsets = [0, 0], sizes = [7, 8], strides = [1, 1]} : vector<8x8xf32> to vector<7x8xf32>
    %2684 = tpu.concatenate %2682, %2683 in 0 : vector<1x8xf32>, vector<7x8xf32> -> vector<8x8xf32>
    %2685 = vector.broadcast %2681 : f32 to vector<8x8xf32>
    %2686 = arith.mulf %2685, %2684 : vector<8x8xf32>
    %2687 = arith.addf %2670, %2686 : vector<8x8xf32>
    %c491 = arith.constant 491 : index
    %2688 = memref.load %arg1[%c491] : memref<580xf32, #tpu.memory_space<smem>>
    %cst_350 = arith.constant 0.000000e+00 : f32
    %2689 = vector.broadcast %cst_350 : f32 to vector<1x8xf32>
    %2690 = vector.extract_strided_slice %2439 {offsets = [0, 0], sizes = [7, 8], strides = [1, 1]} : vector<8x8xf32> to vector<7x8xf32>
    %2691 = tpu.concatenate %2689, %2690 in 0 : vector<1x8xf32>, vector<7x8xf32> -> vector<8x8xf32>
    %2692 = vector.extract_strided_slice %2691 {offsets = [0, 1], sizes = [8, 7], strides = [1, 1]} : vector<8x8xf32> to vector<8x7xf32>
    %cst_351 = arith.constant 0.000000e+00 : f32
    %2693 = vector.broadcast %cst_351 : f32 to vector<8x1xf32>
    %2694 = tpu.concatenate %2692, %2693 in 1 : vector<8x7xf32>, vector<8x1xf32> -> vector<8x8xf32>
    %2695 = vector.broadcast %2688 : f32 to vector<8x8xf32>
    %2696 = arith.mulf %2695, %2694 : vector<8x8xf32>
    %2697 = arith.addf %2680, %2696 : vector<8x8xf32>
    %c495 = arith.constant 495 : index
    %2698 = memref.load %arg1[%c495] : memref<580xf32, #tpu.memory_space<smem>>
    %cst_352 = arith.constant 0.000000e+00 : f32
    %2699 = vector.broadcast %cst_352 : f32 to vector<8x1xf32>
    %2700 = vector.extract_strided_slice %2439 {offsets = [0, 0], sizes = [8, 7], strides = [1, 1]} : vector<8x8xf32> to vector<8x7xf32>
    %2701 = tpu.concatenate %2699, %2700 in 1 : vector<8x1xf32>, vector<8x7xf32> -> vector<8x8xf32>
    %2702 = vector.broadcast %2698 : f32 to vector<8x8xf32>
    %2703 = arith.mulf %2702, %2701 : vector<8x8xf32>
    %2704 = arith.addf %2687, %2703 : vector<8x8xf32>
    %c499 = arith.constant 499 : index
    %2705 = memref.load %arg1[%c499] : memref<580xf32, #tpu.memory_space<smem>>
    %2706 = vector.broadcast %2705 : f32 to vector<8x8xf32>
    %2707 = arith.mulf %2706, %2439 : vector<8x8xf32>
    %2708 = arith.addf %2697, %2707 : vector<8x8xf32>
    %c503 = arith.constant 503 : index
    %2709 = memref.load %arg1[%c503] : memref<580xf32, #tpu.memory_space<smem>>
    %2710 = vector.extract_strided_slice %2439 {offsets = [0, 1], sizes = [8, 7], strides = [1, 1]} : vector<8x8xf32> to vector<8x7xf32>
    %cst_353 = arith.constant 0.000000e+00 : f32
    %2711 = vector.broadcast %cst_353 : f32 to vector<8x1xf32>
    %2712 = tpu.concatenate %2710, %2711 in 1 : vector<8x7xf32>, vector<8x1xf32> -> vector<8x8xf32>
    %2713 = vector.broadcast %2709 : f32 to vector<8x8xf32>
    %2714 = arith.mulf %2713, %2712 : vector<8x8xf32>
    %2715 = arith.addf %2704, %2714 : vector<8x8xf32>
    %c507 = arith.constant 507 : index
    %2716 = memref.load %arg1[%c507] : memref<580xf32, #tpu.memory_space<smem>>
    %2717 = vector.extract_strided_slice %2439 {offsets = [1, 0], sizes = [7, 8], strides = [1, 1]} : vector<8x8xf32> to vector<7x8xf32>
    %cst_354 = arith.constant 0.000000e+00 : f32
    %2718 = vector.broadcast %cst_354 : f32 to vector<1x8xf32>
    %2719 = tpu.concatenate %2717, %2718 in 0 : vector<7x8xf32>, vector<1x8xf32> -> vector<8x8xf32>
    %cst_355 = arith.constant 0.000000e+00 : f32
    %2720 = vector.broadcast %cst_355 : f32 to vector<8x1xf32>
    %2721 = vector.extract_strided_slice %2719 {offsets = [0, 0], sizes = [8, 7], strides = [1, 1]} : vector<8x8xf32> to vector<8x7xf32>
    %2722 = tpu.concatenate %2720, %2721 in 1 : vector<8x1xf32>, vector<8x7xf32> -> vector<8x8xf32>
    %2723 = vector.broadcast %2716 : f32 to vector<8x8xf32>
    %2724 = arith.mulf %2723, %2722 : vector<8x8xf32>
    %2725 = arith.addf %2708, %2724 : vector<8x8xf32>
    %c511 = arith.constant 511 : index
    %2726 = memref.load %arg1[%c511] : memref<580xf32, #tpu.memory_space<smem>>
    %2727 = vector.extract_strided_slice %2439 {offsets = [1, 0], sizes = [7, 8], strides = [1, 1]} : vector<8x8xf32> to vector<7x8xf32>
    %cst_356 = arith.constant 0.000000e+00 : f32
    %2728 = vector.broadcast %cst_356 : f32 to vector<1x8xf32>
    %2729 = tpu.concatenate %2727, %2728 in 0 : vector<7x8xf32>, vector<1x8xf32> -> vector<8x8xf32>
    %2730 = vector.broadcast %2726 : f32 to vector<8x8xf32>
    %2731 = arith.mulf %2730, %2729 : vector<8x8xf32>
    %2732 = arith.addf %2715, %2731 : vector<8x8xf32>
    %c515 = arith.constant 515 : index
    %2733 = memref.load %arg1[%c515] : memref<580xf32, #tpu.memory_space<smem>>
    %2734 = vector.extract_strided_slice %2439 {offsets = [1, 0], sizes = [7, 8], strides = [1, 1]} : vector<8x8xf32> to vector<7x8xf32>
    %cst_357 = arith.constant 0.000000e+00 : f32
    %2735 = vector.broadcast %cst_357 : f32 to vector<1x8xf32>
    %2736 = tpu.concatenate %2734, %2735 in 0 : vector<7x8xf32>, vector<1x8xf32> -> vector<8x8xf32>
    %2737 = vector.extract_strided_slice %2736 {offsets = [0, 1], sizes = [8, 7], strides = [1, 1]} : vector<8x8xf32> to vector<8x7xf32>
    %cst_358 = arith.constant 0.000000e+00 : f32
    %2738 = vector.broadcast %cst_358 : f32 to vector<8x1xf32>
    %2739 = tpu.concatenate %2737, %2738 in 1 : vector<8x7xf32>, vector<8x1xf32> -> vector<8x8xf32>
    %2740 = vector.broadcast %2733 : f32 to vector<8x8xf32>
    %2741 = arith.mulf %2740, %2739 : vector<8x8xf32>
    %2742 = arith.addf %2725, %2741 : vector<8x8xf32>
    %2743 = arith.addf %2742, %2732 : vector<8x8xf32>
    %c536 = arith.constant 536 : index
    %2744 = memref.load %arg1[%c536] : memref<580xf32, #tpu.memory_space<smem>>
    %2745 = vector.broadcast %2744 : f32 to vector<8x8xf32>
    %c537 = arith.constant 537 : index
    %2746 = memref.load %arg1[%c537] : memref<580xf32, #tpu.memory_space<smem>>
    %2747 = vector.broadcast %2746 : f32 to vector<8x8xf32>
    %c538 = arith.constant 538 : index
    %2748 = memref.load %arg1[%c538] : memref<580xf32, #tpu.memory_space<smem>>
    %2749 = vector.broadcast %2748 : f32 to vector<8x8xf32>
    %c539 = arith.constant 539 : index
    %2750 = memref.load %arg1[%c539] : memref<580xf32, #tpu.memory_space<smem>>
    %2751 = vector.broadcast %2750 : f32 to vector<8x8xf32>
    %cst_359 = arith.constant 0.000000e+00 : f32
    %2752 = vector.broadcast %cst_359 : f32 to vector<8x8xf32>
    %cst_360 = arith.constant 0.000000e+00 : f32
    %2753 = vector.broadcast %cst_360 : f32 to vector<8x8xf32>
    %cst_361 = arith.constant 0.000000e+00 : f32
    %2754 = vector.broadcast %cst_361 : f32 to vector<8x8xf32>
    %cst_362 = arith.constant 0.000000e+00 : f32
    %2755 = vector.broadcast %cst_362 : f32 to vector<8x8xf32>
    %c0_363 = arith.constant 0 : index
    %c12_364 = arith.constant 12 : index
    %c0_365 = arith.constant 0 : index
    %c0_366 = arith.constant 0 : index
    %2756 = vector.load %arg2[%c0_363, %c12_364, %c0_365, %c0_366] : memref<1x16x9x9xf32, #tpu.memory_space<vmem>>, vector<1x1x8x8xf32>
    %2757 = vector.shape_cast %2756 : vector<1x1x8x8xf32> to vector<8x8xf32>
    %c520 = arith.constant 520 : index
    %2758 = memref.load %arg1[%c520] : memref<580xf32, #tpu.memory_space<smem>>
    %2759 = vector.broadcast %2758 : f32 to vector<8x8xf32>
    %2760 = arith.mulf %2759, %2757 : vector<8x8xf32>
    %2761 = arith.addf %2745, %2760 : vector<8x8xf32>
    %c521 = arith.constant 521 : index
    %2762 = memref.load %arg1[%c521] : memref<580xf32, #tpu.memory_space<smem>>
    %2763 = vector.broadcast %2762 : f32 to vector<8x8xf32>
    %2764 = arith.mulf %2763, %2757 : vector<8x8xf32>
    %2765 = arith.addf %2747, %2764 : vector<8x8xf32>
    %c522 = arith.constant 522 : index
    %2766 = memref.load %arg1[%c522] : memref<580xf32, #tpu.memory_space<smem>>
    %2767 = vector.broadcast %2766 : f32 to vector<8x8xf32>
    %2768 = arith.mulf %2767, %2757 : vector<8x8xf32>
    %2769 = arith.addf %2749, %2768 : vector<8x8xf32>
    %c523 = arith.constant 523 : index
    %2770 = memref.load %arg1[%c523] : memref<580xf32, #tpu.memory_space<smem>>
    %2771 = vector.broadcast %2770 : f32 to vector<8x8xf32>
    %2772 = arith.mulf %2771, %2757 : vector<8x8xf32>
    %2773 = arith.addf %2751, %2772 : vector<8x8xf32>
    %c0_367 = arith.constant 0 : index
    %c13_368 = arith.constant 13 : index
    %c0_369 = arith.constant 0 : index
    %c0_370 = arith.constant 0 : index
    %2774 = vector.load %arg2[%c0_367, %c13_368, %c0_369, %c0_370] : memref<1x16x9x9xf32, #tpu.memory_space<vmem>>, vector<1x1x8x8xf32>
    %2775 = vector.shape_cast %2774 : vector<1x1x8x8xf32> to vector<8x8xf32>
    %c524 = arith.constant 524 : index
    %2776 = memref.load %arg1[%c524] : memref<580xf32, #tpu.memory_space<smem>>
    %2777 = vector.broadcast %2776 : f32 to vector<8x8xf32>
    %2778 = arith.mulf %2777, %2775 : vector<8x8xf32>
    %2779 = arith.addf %2752, %2778 : vector<8x8xf32>
    %c525 = arith.constant 525 : index
    %2780 = memref.load %arg1[%c525] : memref<580xf32, #tpu.memory_space<smem>>
    %2781 = vector.broadcast %2780 : f32 to vector<8x8xf32>
    %2782 = arith.mulf %2781, %2775 : vector<8x8xf32>
    %2783 = arith.addf %2753, %2782 : vector<8x8xf32>
    %c526 = arith.constant 526 : index
    %2784 = memref.load %arg1[%c526] : memref<580xf32, #tpu.memory_space<smem>>
    %2785 = vector.broadcast %2784 : f32 to vector<8x8xf32>
    %2786 = arith.mulf %2785, %2775 : vector<8x8xf32>
    %2787 = arith.addf %2754, %2786 : vector<8x8xf32>
    %c527 = arith.constant 527 : index
    %2788 = memref.load %arg1[%c527] : memref<580xf32, #tpu.memory_space<smem>>
    %2789 = vector.broadcast %2788 : f32 to vector<8x8xf32>
    %2790 = arith.mulf %2789, %2775 : vector<8x8xf32>
    %2791 = arith.addf %2755, %2790 : vector<8x8xf32>
    %c0_371 = arith.constant 0 : index
    %c14_372 = arith.constant 14 : index
    %c0_373 = arith.constant 0 : index
    %c0_374 = arith.constant 0 : index
    %2792 = vector.load %arg2[%c0_371, %c14_372, %c0_373, %c0_374] : memref<1x16x9x9xf32, #tpu.memory_space<vmem>>, vector<1x1x8x8xf32>
    %2793 = vector.shape_cast %2792 : vector<1x1x8x8xf32> to vector<8x8xf32>
    %c528 = arith.constant 528 : index
    %2794 = memref.load %arg1[%c528] : memref<580xf32, #tpu.memory_space<smem>>
    %2795 = vector.broadcast %2794 : f32 to vector<8x8xf32>
    %2796 = arith.mulf %2795, %2793 : vector<8x8xf32>
    %2797 = arith.addf %2761, %2796 : vector<8x8xf32>
    %c529 = arith.constant 529 : index
    %2798 = memref.load %arg1[%c529] : memref<580xf32, #tpu.memory_space<smem>>
    %2799 = vector.broadcast %2798 : f32 to vector<8x8xf32>
    %2800 = arith.mulf %2799, %2793 : vector<8x8xf32>
    %2801 = arith.addf %2765, %2800 : vector<8x8xf32>
    %c530 = arith.constant 530 : index
    %2802 = memref.load %arg1[%c530] : memref<580xf32, #tpu.memory_space<smem>>
    %2803 = vector.broadcast %2802 : f32 to vector<8x8xf32>
    %2804 = arith.mulf %2803, %2793 : vector<8x8xf32>
    %2805 = arith.addf %2769, %2804 : vector<8x8xf32>
    %c531 = arith.constant 531 : index
    %2806 = memref.load %arg1[%c531] : memref<580xf32, #tpu.memory_space<smem>>
    %2807 = vector.broadcast %2806 : f32 to vector<8x8xf32>
    %2808 = arith.mulf %2807, %2793 : vector<8x8xf32>
    %2809 = arith.addf %2773, %2808 : vector<8x8xf32>
    %c0_375 = arith.constant 0 : index
    %c15_376 = arith.constant 15 : index
    %c0_377 = arith.constant 0 : index
    %c0_378 = arith.constant 0 : index
    %2810 = vector.load %arg2[%c0_375, %c15_376, %c0_377, %c0_378] : memref<1x16x9x9xf32, #tpu.memory_space<vmem>>, vector<1x1x8x8xf32>
    %2811 = vector.shape_cast %2810 : vector<1x1x8x8xf32> to vector<8x8xf32>
    %c532 = arith.constant 532 : index
    %2812 = memref.load %arg1[%c532] : memref<580xf32, #tpu.memory_space<smem>>
    %2813 = vector.broadcast %2812 : f32 to vector<8x8xf32>
    %2814 = arith.mulf %2813, %2811 : vector<8x8xf32>
    %2815 = arith.addf %2779, %2814 : vector<8x8xf32>
    %c533 = arith.constant 533 : index
    %2816 = memref.load %arg1[%c533] : memref<580xf32, #tpu.memory_space<smem>>
    %2817 = vector.broadcast %2816 : f32 to vector<8x8xf32>
    %2818 = arith.mulf %2817, %2811 : vector<8x8xf32>
    %2819 = arith.addf %2783, %2818 : vector<8x8xf32>
    %c534 = arith.constant 534 : index
    %2820 = memref.load %arg1[%c534] : memref<580xf32, #tpu.memory_space<smem>>
    %2821 = vector.broadcast %2820 : f32 to vector<8x8xf32>
    %2822 = arith.mulf %2821, %2811 : vector<8x8xf32>
    %2823 = arith.addf %2787, %2822 : vector<8x8xf32>
    %c535 = arith.constant 535 : index
    %2824 = memref.load %arg1[%c535] : memref<580xf32, #tpu.memory_space<smem>>
    %2825 = vector.broadcast %2824 : f32 to vector<8x8xf32>
    %2826 = arith.mulf %2825, %2811 : vector<8x8xf32>
    %2827 = arith.addf %2791, %2826 : vector<8x8xf32>
    %2828 = arith.addf %2797, %2815 : vector<8x8xf32>
    %2829 = arith.addf %2801, %2819 : vector<8x8xf32>
    %2830 = arith.addf %2805, %2823 : vector<8x8xf32>
    %2831 = arith.addf %2809, %2827 : vector<8x8xf32>
    %c576 = arith.constant 576 : index
    %2832 = memref.load %arg1[%c576] : memref<580xf32, #tpu.memory_space<smem>>
    %2833 = vector.broadcast %2832 : f32 to vector<8x8xf32>
    %cst_379 = arith.constant 0.000000e+00 : f32
    %2834 = vector.broadcast %cst_379 : f32 to vector<8x8xf32>
    %c540 = arith.constant 540 : index
    %2835 = memref.load %arg1[%c540] : memref<580xf32, #tpu.memory_space<smem>>
    %cst_380 = arith.constant 0.000000e+00 : f32
    %2836 = vector.broadcast %cst_380 : f32 to vector<1x8xf32>
    %2837 = vector.extract_strided_slice %2828 {offsets = [0, 0], sizes = [7, 8], strides = [1, 1]} : vector<8x8xf32> to vector<7x8xf32>
    %2838 = tpu.concatenate %2836, %2837 in 0 : vector<1x8xf32>, vector<7x8xf32> -> vector<8x8xf32>
    %cst_381 = arith.constant 0.000000e+00 : f32
    %2839 = vector.broadcast %cst_381 : f32 to vector<8x1xf32>
    %2840 = vector.extract_strided_slice %2838 {offsets = [0, 0], sizes = [8, 7], strides = [1, 1]} : vector<8x8xf32> to vector<8x7xf32>
    %2841 = tpu.concatenate %2839, %2840 in 1 : vector<8x1xf32>, vector<8x7xf32> -> vector<8x8xf32>
    %2842 = vector.broadcast %2835 : f32 to vector<8x8xf32>
    %2843 = arith.mulf %2842, %2841 : vector<8x8xf32>
    %2844 = arith.addf %2833, %2843 : vector<8x8xf32>
    %c544 = arith.constant 544 : index
    %2845 = memref.load %arg1[%c544] : memref<580xf32, #tpu.memory_space<smem>>
    %cst_382 = arith.constant 0.000000e+00 : f32
    %2846 = vector.broadcast %cst_382 : f32 to vector<1x8xf32>
    %2847 = vector.extract_strided_slice %2828 {offsets = [0, 0], sizes = [7, 8], strides = [1, 1]} : vector<8x8xf32> to vector<7x8xf32>
    %2848 = tpu.concatenate %2846, %2847 in 0 : vector<1x8xf32>, vector<7x8xf32> -> vector<8x8xf32>
    %2849 = vector.broadcast %2845 : f32 to vector<8x8xf32>
    %2850 = arith.mulf %2849, %2848 : vector<8x8xf32>
    %2851 = arith.addf %2834, %2850 : vector<8x8xf32>
    %c548 = arith.constant 548 : index
    %2852 = memref.load %arg1[%c548] : memref<580xf32, #tpu.memory_space<smem>>
    %cst_383 = arith.constant 0.000000e+00 : f32
    %2853 = vector.broadcast %cst_383 : f32 to vector<1x8xf32>
    %2854 = vector.extract_strided_slice %2828 {offsets = [0, 0], sizes = [7, 8], strides = [1, 1]} : vector<8x8xf32> to vector<7x8xf32>
    %2855 = tpu.concatenate %2853, %2854 in 0 : vector<1x8xf32>, vector<7x8xf32> -> vector<8x8xf32>
    %2856 = vector.extract_strided_slice %2855 {offsets = [0, 1], sizes = [8, 7], strides = [1, 1]} : vector<8x8xf32> to vector<8x7xf32>
    %cst_384 = arith.constant 0.000000e+00 : f32
    %2857 = vector.broadcast %cst_384 : f32 to vector<8x1xf32>
    %2858 = tpu.concatenate %2856, %2857 in 1 : vector<8x7xf32>, vector<8x1xf32> -> vector<8x8xf32>
    %2859 = vector.broadcast %2852 : f32 to vector<8x8xf32>
    %2860 = arith.mulf %2859, %2858 : vector<8x8xf32>
    %2861 = arith.addf %2844, %2860 : vector<8x8xf32>
    %c552 = arith.constant 552 : index
    %2862 = memref.load %arg1[%c552] : memref<580xf32, #tpu.memory_space<smem>>
    %cst_385 = arith.constant 0.000000e+00 : f32
    %2863 = vector.broadcast %cst_385 : f32 to vector<8x1xf32>
    %2864 = vector.extract_strided_slice %2828 {offsets = [0, 0], sizes = [8, 7], strides = [1, 1]} : vector<8x8xf32> to vector<8x7xf32>
    %2865 = tpu.concatenate %2863, %2864 in 1 : vector<8x1xf32>, vector<8x7xf32> -> vector<8x8xf32>
    %2866 = vector.broadcast %2862 : f32 to vector<8x8xf32>
    %2867 = arith.mulf %2866, %2865 : vector<8x8xf32>
    %2868 = arith.addf %2851, %2867 : vector<8x8xf32>
    %c556 = arith.constant 556 : index
    %2869 = memref.load %arg1[%c556] : memref<580xf32, #tpu.memory_space<smem>>
    %2870 = vector.broadcast %2869 : f32 to vector<8x8xf32>
    %2871 = arith.mulf %2870, %2828 : vector<8x8xf32>
    %2872 = arith.addf %2861, %2871 : vector<8x8xf32>
    %c560 = arith.constant 560 : index
    %2873 = memref.load %arg1[%c560] : memref<580xf32, #tpu.memory_space<smem>>
    %2874 = vector.extract_strided_slice %2828 {offsets = [0, 1], sizes = [8, 7], strides = [1, 1]} : vector<8x8xf32> to vector<8x7xf32>
    %cst_386 = arith.constant 0.000000e+00 : f32
    %2875 = vector.broadcast %cst_386 : f32 to vector<8x1xf32>
    %2876 = tpu.concatenate %2874, %2875 in 1 : vector<8x7xf32>, vector<8x1xf32> -> vector<8x8xf32>
    %2877 = vector.broadcast %2873 : f32 to vector<8x8xf32>
    %2878 = arith.mulf %2877, %2876 : vector<8x8xf32>
    %2879 = arith.addf %2868, %2878 : vector<8x8xf32>
    %c564 = arith.constant 564 : index
    %2880 = memref.load %arg1[%c564] : memref<580xf32, #tpu.memory_space<smem>>
    %2881 = vector.extract_strided_slice %2828 {offsets = [1, 0], sizes = [7, 8], strides = [1, 1]} : vector<8x8xf32> to vector<7x8xf32>
    %cst_387 = arith.constant 0.000000e+00 : f32
    %2882 = vector.broadcast %cst_387 : f32 to vector<1x8xf32>
    %2883 = tpu.concatenate %2881, %2882 in 0 : vector<7x8xf32>, vector<1x8xf32> -> vector<8x8xf32>
    %cst_388 = arith.constant 0.000000e+00 : f32
    %2884 = vector.broadcast %cst_388 : f32 to vector<8x1xf32>
    %2885 = vector.extract_strided_slice %2883 {offsets = [0, 0], sizes = [8, 7], strides = [1, 1]} : vector<8x8xf32> to vector<8x7xf32>
    %2886 = tpu.concatenate %2884, %2885 in 1 : vector<8x1xf32>, vector<8x7xf32> -> vector<8x8xf32>
    %2887 = vector.broadcast %2880 : f32 to vector<8x8xf32>
    %2888 = arith.mulf %2887, %2886 : vector<8x8xf32>
    %2889 = arith.addf %2872, %2888 : vector<8x8xf32>
    %c568 = arith.constant 568 : index
    %2890 = memref.load %arg1[%c568] : memref<580xf32, #tpu.memory_space<smem>>
    %2891 = vector.extract_strided_slice %2828 {offsets = [1, 0], sizes = [7, 8], strides = [1, 1]} : vector<8x8xf32> to vector<7x8xf32>
    %cst_389 = arith.constant 0.000000e+00 : f32
    %2892 = vector.broadcast %cst_389 : f32 to vector<1x8xf32>
    %2893 = tpu.concatenate %2891, %2892 in 0 : vector<7x8xf32>, vector<1x8xf32> -> vector<8x8xf32>
    %2894 = vector.broadcast %2890 : f32 to vector<8x8xf32>
    %2895 = arith.mulf %2894, %2893 : vector<8x8xf32>
    %2896 = arith.addf %2879, %2895 : vector<8x8xf32>
    %c572 = arith.constant 572 : index
    %2897 = memref.load %arg1[%c572] : memref<580xf32, #tpu.memory_space<smem>>
    %2898 = vector.extract_strided_slice %2828 {offsets = [1, 0], sizes = [7, 8], strides = [1, 1]} : vector<8x8xf32> to vector<7x8xf32>
    %cst_390 = arith.constant 0.000000e+00 : f32
    %2899 = vector.broadcast %cst_390 : f32 to vector<1x8xf32>
    %2900 = tpu.concatenate %2898, %2899 in 0 : vector<7x8xf32>, vector<1x8xf32> -> vector<8x8xf32>
    %2901 = vector.extract_strided_slice %2900 {offsets = [0, 1], sizes = [8, 7], strides = [1, 1]} : vector<8x8xf32> to vector<8x7xf32>
    %cst_391 = arith.constant 0.000000e+00 : f32
    %2902 = vector.broadcast %cst_391 : f32 to vector<8x1xf32>
    %2903 = tpu.concatenate %2901, %2902 in 1 : vector<8x7xf32>, vector<8x1xf32> -> vector<8x8xf32>
    %2904 = vector.broadcast %2897 : f32 to vector<8x8xf32>
    %2905 = arith.mulf %2904, %2903 : vector<8x8xf32>
    %2906 = arith.addf %2889, %2905 : vector<8x8xf32>
    %2907 = arith.addf %2906, %2896 : vector<8x8xf32>
    %c577 = arith.constant 577 : index
    %2908 = memref.load %arg1[%c577] : memref<580xf32, #tpu.memory_space<smem>>
    %2909 = vector.broadcast %2908 : f32 to vector<8x8xf32>
    %cst_392 = arith.constant 0.000000e+00 : f32
    %2910 = vector.broadcast %cst_392 : f32 to vector<8x8xf32>
    %c541 = arith.constant 541 : index
    %2911 = memref.load %arg1[%c541] : memref<580xf32, #tpu.memory_space<smem>>
    %cst_393 = arith.constant 0.000000e+00 : f32
    %2912 = vector.broadcast %cst_393 : f32 to vector<1x8xf32>
    %2913 = vector.extract_strided_slice %2829 {offsets = [0, 0], sizes = [7, 8], strides = [1, 1]} : vector<8x8xf32> to vector<7x8xf32>
    %2914 = tpu.concatenate %2912, %2913 in 0 : vector<1x8xf32>, vector<7x8xf32> -> vector<8x8xf32>
    %cst_394 = arith.constant 0.000000e+00 : f32
    %2915 = vector.broadcast %cst_394 : f32 to vector<8x1xf32>
    %2916 = vector.extract_strided_slice %2914 {offsets = [0, 0], sizes = [8, 7], strides = [1, 1]} : vector<8x8xf32> to vector<8x7xf32>
    %2917 = tpu.concatenate %2915, %2916 in 1 : vector<8x1xf32>, vector<8x7xf32> -> vector<8x8xf32>
    %2918 = vector.broadcast %2911 : f32 to vector<8x8xf32>
    %2919 = arith.mulf %2918, %2917 : vector<8x8xf32>
    %2920 = arith.addf %2909, %2919 : vector<8x8xf32>
    %c545 = arith.constant 545 : index
    %2921 = memref.load %arg1[%c545] : memref<580xf32, #tpu.memory_space<smem>>
    %cst_395 = arith.constant 0.000000e+00 : f32
    %2922 = vector.broadcast %cst_395 : f32 to vector<1x8xf32>
    %2923 = vector.extract_strided_slice %2829 {offsets = [0, 0], sizes = [7, 8], strides = [1, 1]} : vector<8x8xf32> to vector<7x8xf32>
    %2924 = tpu.concatenate %2922, %2923 in 0 : vector<1x8xf32>, vector<7x8xf32> -> vector<8x8xf32>
    %2925 = vector.broadcast %2921 : f32 to vector<8x8xf32>
    %2926 = arith.mulf %2925, %2924 : vector<8x8xf32>
    %2927 = arith.addf %2910, %2926 : vector<8x8xf32>
    %c549 = arith.constant 549 : index
    %2928 = memref.load %arg1[%c549] : memref<580xf32, #tpu.memory_space<smem>>
    %cst_396 = arith.constant 0.000000e+00 : f32
    %2929 = vector.broadcast %cst_396 : f32 to vector<1x8xf32>
    %2930 = vector.extract_strided_slice %2829 {offsets = [0, 0], sizes = [7, 8], strides = [1, 1]} : vector<8x8xf32> to vector<7x8xf32>
    %2931 = tpu.concatenate %2929, %2930 in 0 : vector<1x8xf32>, vector<7x8xf32> -> vector<8x8xf32>
    %2932 = vector.extract_strided_slice %2931 {offsets = [0, 1], sizes = [8, 7], strides = [1, 1]} : vector<8x8xf32> to vector<8x7xf32>
    %cst_397 = arith.constant 0.000000e+00 : f32
    %2933 = vector.broadcast %cst_397 : f32 to vector<8x1xf32>
    %2934 = tpu.concatenate %2932, %2933 in 1 : vector<8x7xf32>, vector<8x1xf32> -> vector<8x8xf32>
    %2935 = vector.broadcast %2928 : f32 to vector<8x8xf32>
    %2936 = arith.mulf %2935, %2934 : vector<8x8xf32>
    %2937 = arith.addf %2920, %2936 : vector<8x8xf32>
    %c553 = arith.constant 553 : index
    %2938 = memref.load %arg1[%c553] : memref<580xf32, #tpu.memory_space<smem>>
    %cst_398 = arith.constant 0.000000e+00 : f32
    %2939 = vector.broadcast %cst_398 : f32 to vector<8x1xf32>
    %2940 = vector.extract_strided_slice %2829 {offsets = [0, 0], sizes = [8, 7], strides = [1, 1]} : vector<8x8xf32> to vector<8x7xf32>
    %2941 = tpu.concatenate %2939, %2940 in 1 : vector<8x1xf32>, vector<8x7xf32> -> vector<8x8xf32>
    %2942 = vector.broadcast %2938 : f32 to vector<8x8xf32>
    %2943 = arith.mulf %2942, %2941 : vector<8x8xf32>
    %2944 = arith.addf %2927, %2943 : vector<8x8xf32>
    %c557 = arith.constant 557 : index
    %2945 = memref.load %arg1[%c557] : memref<580xf32, #tpu.memory_space<smem>>
    %2946 = vector.broadcast %2945 : f32 to vector<8x8xf32>
    %2947 = arith.mulf %2946, %2829 : vector<8x8xf32>
    %2948 = arith.addf %2937, %2947 : vector<8x8xf32>
    %c561 = arith.constant 561 : index
    %2949 = memref.load %arg1[%c561] : memref<580xf32, #tpu.memory_space<smem>>
    %2950 = vector.extract_strided_slice %2829 {offsets = [0, 1], sizes = [8, 7], strides = [1, 1]} : vector<8x8xf32> to vector<8x7xf32>
    %cst_399 = arith.constant 0.000000e+00 : f32
    %2951 = vector.broadcast %cst_399 : f32 to vector<8x1xf32>
    %2952 = tpu.concatenate %2950, %2951 in 1 : vector<8x7xf32>, vector<8x1xf32> -> vector<8x8xf32>
    %2953 = vector.broadcast %2949 : f32 to vector<8x8xf32>
    %2954 = arith.mulf %2953, %2952 : vector<8x8xf32>
    %2955 = arith.addf %2944, %2954 : vector<8x8xf32>
    %c565 = arith.constant 565 : index
    %2956 = memref.load %arg1[%c565] : memref<580xf32, #tpu.memory_space<smem>>
    %2957 = vector.extract_strided_slice %2829 {offsets = [1, 0], sizes = [7, 8], strides = [1, 1]} : vector<8x8xf32> to vector<7x8xf32>
    %cst_400 = arith.constant 0.000000e+00 : f32
    %2958 = vector.broadcast %cst_400 : f32 to vector<1x8xf32>
    %2959 = tpu.concatenate %2957, %2958 in 0 : vector<7x8xf32>, vector<1x8xf32> -> vector<8x8xf32>
    %cst_401 = arith.constant 0.000000e+00 : f32
    %2960 = vector.broadcast %cst_401 : f32 to vector<8x1xf32>
    %2961 = vector.extract_strided_slice %2959 {offsets = [0, 0], sizes = [8, 7], strides = [1, 1]} : vector<8x8xf32> to vector<8x7xf32>
    %2962 = tpu.concatenate %2960, %2961 in 1 : vector<8x1xf32>, vector<8x7xf32> -> vector<8x8xf32>
    %2963 = vector.broadcast %2956 : f32 to vector<8x8xf32>
    %2964 = arith.mulf %2963, %2962 : vector<8x8xf32>
    %2965 = arith.addf %2948, %2964 : vector<8x8xf32>
    %c569 = arith.constant 569 : index
    %2966 = memref.load %arg1[%c569] : memref<580xf32, #tpu.memory_space<smem>>
    %2967 = vector.extract_strided_slice %2829 {offsets = [1, 0], sizes = [7, 8], strides = [1, 1]} : vector<8x8xf32> to vector<7x8xf32>
    %cst_402 = arith.constant 0.000000e+00 : f32
    %2968 = vector.broadcast %cst_402 : f32 to vector<1x8xf32>
    %2969 = tpu.concatenate %2967, %2968 in 0 : vector<7x8xf32>, vector<1x8xf32> -> vector<8x8xf32>
    %2970 = vector.broadcast %2966 : f32 to vector<8x8xf32>
    %2971 = arith.mulf %2970, %2969 : vector<8x8xf32>
    %2972 = arith.addf %2955, %2971 : vector<8x8xf32>
    %c573 = arith.constant 573 : index
    %2973 = memref.load %arg1[%c573] : memref<580xf32, #tpu.memory_space<smem>>
    %2974 = vector.extract_strided_slice %2829 {offsets = [1, 0], sizes = [7, 8], strides = [1, 1]} : vector<8x8xf32> to vector<7x8xf32>
    %cst_403 = arith.constant 0.000000e+00 : f32
    %2975 = vector.broadcast %cst_403 : f32 to vector<1x8xf32>
    %2976 = tpu.concatenate %2974, %2975 in 0 : vector<7x8xf32>, vector<1x8xf32> -> vector<8x8xf32>
    %2977 = vector.extract_strided_slice %2976 {offsets = [0, 1], sizes = [8, 7], strides = [1, 1]} : vector<8x8xf32> to vector<8x7xf32>
    %cst_404 = arith.constant 0.000000e+00 : f32
    %2978 = vector.broadcast %cst_404 : f32 to vector<8x1xf32>
    %2979 = tpu.concatenate %2977, %2978 in 1 : vector<8x7xf32>, vector<8x1xf32> -> vector<8x8xf32>
    %2980 = vector.broadcast %2973 : f32 to vector<8x8xf32>
    %2981 = arith.mulf %2980, %2979 : vector<8x8xf32>
    %2982 = arith.addf %2965, %2981 : vector<8x8xf32>
    %2983 = arith.addf %2982, %2972 : vector<8x8xf32>
    %c578 = arith.constant 578 : index
    %2984 = memref.load %arg1[%c578] : memref<580xf32, #tpu.memory_space<smem>>
    %2985 = vector.broadcast %2984 : f32 to vector<8x8xf32>
    %cst_405 = arith.constant 0.000000e+00 : f32
    %2986 = vector.broadcast %cst_405 : f32 to vector<8x8xf32>
    %c542 = arith.constant 542 : index
    %2987 = memref.load %arg1[%c542] : memref<580xf32, #tpu.memory_space<smem>>
    %cst_406 = arith.constant 0.000000e+00 : f32
    %2988 = vector.broadcast %cst_406 : f32 to vector<1x8xf32>
    %2989 = vector.extract_strided_slice %2830 {offsets = [0, 0], sizes = [7, 8], strides = [1, 1]} : vector<8x8xf32> to vector<7x8xf32>
    %2990 = tpu.concatenate %2988, %2989 in 0 : vector<1x8xf32>, vector<7x8xf32> -> vector<8x8xf32>
    %cst_407 = arith.constant 0.000000e+00 : f32
    %2991 = vector.broadcast %cst_407 : f32 to vector<8x1xf32>
    %2992 = vector.extract_strided_slice %2990 {offsets = [0, 0], sizes = [8, 7], strides = [1, 1]} : vector<8x8xf32> to vector<8x7xf32>
    %2993 = tpu.concatenate %2991, %2992 in 1 : vector<8x1xf32>, vector<8x7xf32> -> vector<8x8xf32>
    %2994 = vector.broadcast %2987 : f32 to vector<8x8xf32>
    %2995 = arith.mulf %2994, %2993 : vector<8x8xf32>
    %2996 = arith.addf %2985, %2995 : vector<8x8xf32>
    %c546 = arith.constant 546 : index
    %2997 = memref.load %arg1[%c546] : memref<580xf32, #tpu.memory_space<smem>>
    %cst_408 = arith.constant 0.000000e+00 : f32
    %2998 = vector.broadcast %cst_408 : f32 to vector<1x8xf32>
    %2999 = vector.extract_strided_slice %2830 {offsets = [0, 0], sizes = [7, 8], strides = [1, 1]} : vector<8x8xf32> to vector<7x8xf32>
    %3000 = tpu.concatenate %2998, %2999 in 0 : vector<1x8xf32>, vector<7x8xf32> -> vector<8x8xf32>
    %3001 = vector.broadcast %2997 : f32 to vector<8x8xf32>
    %3002 = arith.mulf %3001, %3000 : vector<8x8xf32>
    %3003 = arith.addf %2986, %3002 : vector<8x8xf32>
    %c550 = arith.constant 550 : index
    %3004 = memref.load %arg1[%c550] : memref<580xf32, #tpu.memory_space<smem>>
    %cst_409 = arith.constant 0.000000e+00 : f32
    %3005 = vector.broadcast %cst_409 : f32 to vector<1x8xf32>
    %3006 = vector.extract_strided_slice %2830 {offsets = [0, 0], sizes = [7, 8], strides = [1, 1]} : vector<8x8xf32> to vector<7x8xf32>
    %3007 = tpu.concatenate %3005, %3006 in 0 : vector<1x8xf32>, vector<7x8xf32> -> vector<8x8xf32>
    %3008 = vector.extract_strided_slice %3007 {offsets = [0, 1], sizes = [8, 7], strides = [1, 1]} : vector<8x8xf32> to vector<8x7xf32>
    %cst_410 = arith.constant 0.000000e+00 : f32
    %3009 = vector.broadcast %cst_410 : f32 to vector<8x1xf32>
    %3010 = tpu.concatenate %3008, %3009 in 1 : vector<8x7xf32>, vector<8x1xf32> -> vector<8x8xf32>
    %3011 = vector.broadcast %3004 : f32 to vector<8x8xf32>
    %3012 = arith.mulf %3011, %3010 : vector<8x8xf32>
    %3013 = arith.addf %2996, %3012 : vector<8x8xf32>
    %c554 = arith.constant 554 : index
    %3014 = memref.load %arg1[%c554] : memref<580xf32, #tpu.memory_space<smem>>
    %cst_411 = arith.constant 0.000000e+00 : f32
    %3015 = vector.broadcast %cst_411 : f32 to vector<8x1xf32>
    %3016 = vector.extract_strided_slice %2830 {offsets = [0, 0], sizes = [8, 7], strides = [1, 1]} : vector<8x8xf32> to vector<8x7xf32>
    %3017 = tpu.concatenate %3015, %3016 in 1 : vector<8x1xf32>, vector<8x7xf32> -> vector<8x8xf32>
    %3018 = vector.broadcast %3014 : f32 to vector<8x8xf32>
    %3019 = arith.mulf %3018, %3017 : vector<8x8xf32>
    %3020 = arith.addf %3003, %3019 : vector<8x8xf32>
    %c558 = arith.constant 558 : index
    %3021 = memref.load %arg1[%c558] : memref<580xf32, #tpu.memory_space<smem>>
    %3022 = vector.broadcast %3021 : f32 to vector<8x8xf32>
    %3023 = arith.mulf %3022, %2830 : vector<8x8xf32>
    %3024 = arith.addf %3013, %3023 : vector<8x8xf32>
    %c562 = arith.constant 562 : index
    %3025 = memref.load %arg1[%c562] : memref<580xf32, #tpu.memory_space<smem>>
    %3026 = vector.extract_strided_slice %2830 {offsets = [0, 1], sizes = [8, 7], strides = [1, 1]} : vector<8x8xf32> to vector<8x7xf32>
    %cst_412 = arith.constant 0.000000e+00 : f32
    %3027 = vector.broadcast %cst_412 : f32 to vector<8x1xf32>
    %3028 = tpu.concatenate %3026, %3027 in 1 : vector<8x7xf32>, vector<8x1xf32> -> vector<8x8xf32>
    %3029 = vector.broadcast %3025 : f32 to vector<8x8xf32>
    %3030 = arith.mulf %3029, %3028 : vector<8x8xf32>
    %3031 = arith.addf %3020, %3030 : vector<8x8xf32>
    %c566 = arith.constant 566 : index
    %3032 = memref.load %arg1[%c566] : memref<580xf32, #tpu.memory_space<smem>>
    %3033 = vector.extract_strided_slice %2830 {offsets = [1, 0], sizes = [7, 8], strides = [1, 1]} : vector<8x8xf32> to vector<7x8xf32>
    %cst_413 = arith.constant 0.000000e+00 : f32
    %3034 = vector.broadcast %cst_413 : f32 to vector<1x8xf32>
    %3035 = tpu.concatenate %3033, %3034 in 0 : vector<7x8xf32>, vector<1x8xf32> -> vector<8x8xf32>
    %cst_414 = arith.constant 0.000000e+00 : f32
    %3036 = vector.broadcast %cst_414 : f32 to vector<8x1xf32>
    %3037 = vector.extract_strided_slice %3035 {offsets = [0, 0], sizes = [8, 7], strides = [1, 1]} : vector<8x8xf32> to vector<8x7xf32>
    %3038 = tpu.concatenate %3036, %3037 in 1 : vector<8x1xf32>, vector<8x7xf32> -> vector<8x8xf32>
    %3039 = vector.broadcast %3032 : f32 to vector<8x8xf32>
    %3040 = arith.mulf %3039, %3038 : vector<8x8xf32>
    %3041 = arith.addf %3024, %3040 : vector<8x8xf32>
    %c570 = arith.constant 570 : index
    %3042 = memref.load %arg1[%c570] : memref<580xf32, #tpu.memory_space<smem>>
    %3043 = vector.extract_strided_slice %2830 {offsets = [1, 0], sizes = [7, 8], strides = [1, 1]} : vector<8x8xf32> to vector<7x8xf32>
    %cst_415 = arith.constant 0.000000e+00 : f32
    %3044 = vector.broadcast %cst_415 : f32 to vector<1x8xf32>
    %3045 = tpu.concatenate %3043, %3044 in 0 : vector<7x8xf32>, vector<1x8xf32> -> vector<8x8xf32>
    %3046 = vector.broadcast %3042 : f32 to vector<8x8xf32>
    %3047 = arith.mulf %3046, %3045 : vector<8x8xf32>
    %3048 = arith.addf %3031, %3047 : vector<8x8xf32>
    %c574 = arith.constant 574 : index
    %3049 = memref.load %arg1[%c574] : memref<580xf32, #tpu.memory_space<smem>>
    %3050 = vector.extract_strided_slice %2830 {offsets = [1, 0], sizes = [7, 8], strides = [1, 1]} : vector<8x8xf32> to vector<7x8xf32>
    %cst_416 = arith.constant 0.000000e+00 : f32
    %3051 = vector.broadcast %cst_416 : f32 to vector<1x8xf32>
    %3052 = tpu.concatenate %3050, %3051 in 0 : vector<7x8xf32>, vector<1x8xf32> -> vector<8x8xf32>
    %3053 = vector.extract_strided_slice %3052 {offsets = [0, 1], sizes = [8, 7], strides = [1, 1]} : vector<8x8xf32> to vector<8x7xf32>
    %cst_417 = arith.constant 0.000000e+00 : f32
    %3054 = vector.broadcast %cst_417 : f32 to vector<8x1xf32>
    %3055 = tpu.concatenate %3053, %3054 in 1 : vector<8x7xf32>, vector<8x1xf32> -> vector<8x8xf32>
    %3056 = vector.broadcast %3049 : f32 to vector<8x8xf32>
    %3057 = arith.mulf %3056, %3055 : vector<8x8xf32>
    %3058 = arith.addf %3041, %3057 : vector<8x8xf32>
    %3059 = arith.addf %3058, %3048 : vector<8x8xf32>
    %c579 = arith.constant 579 : index
    %3060 = memref.load %arg1[%c579] : memref<580xf32, #tpu.memory_space<smem>>
    %3061 = vector.broadcast %3060 : f32 to vector<8x8xf32>
    %cst_418 = arith.constant 0.000000e+00 : f32
    %3062 = vector.broadcast %cst_418 : f32 to vector<8x8xf32>
    %c543 = arith.constant 543 : index
    %3063 = memref.load %arg1[%c543] : memref<580xf32, #tpu.memory_space<smem>>
    %cst_419 = arith.constant 0.000000e+00 : f32
    %3064 = vector.broadcast %cst_419 : f32 to vector<1x8xf32>
    %3065 = vector.extract_strided_slice %2831 {offsets = [0, 0], sizes = [7, 8], strides = [1, 1]} : vector<8x8xf32> to vector<7x8xf32>
    %3066 = tpu.concatenate %3064, %3065 in 0 : vector<1x8xf32>, vector<7x8xf32> -> vector<8x8xf32>
    %cst_420 = arith.constant 0.000000e+00 : f32
    %3067 = vector.broadcast %cst_420 : f32 to vector<8x1xf32>
    %3068 = vector.extract_strided_slice %3066 {offsets = [0, 0], sizes = [8, 7], strides = [1, 1]} : vector<8x8xf32> to vector<8x7xf32>
    %3069 = tpu.concatenate %3067, %3068 in 1 : vector<8x1xf32>, vector<8x7xf32> -> vector<8x8xf32>
    %3070 = vector.broadcast %3063 : f32 to vector<8x8xf32>
    %3071 = arith.mulf %3070, %3069 : vector<8x8xf32>
    %3072 = arith.addf %3061, %3071 : vector<8x8xf32>
    %c547 = arith.constant 547 : index
    %3073 = memref.load %arg1[%c547] : memref<580xf32, #tpu.memory_space<smem>>
    %cst_421 = arith.constant 0.000000e+00 : f32
    %3074 = vector.broadcast %cst_421 : f32 to vector<1x8xf32>
    %3075 = vector.extract_strided_slice %2831 {offsets = [0, 0], sizes = [7, 8], strides = [1, 1]} : vector<8x8xf32> to vector<7x8xf32>
    %3076 = tpu.concatenate %3074, %3075 in 0 : vector<1x8xf32>, vector<7x8xf32> -> vector<8x8xf32>
    %3077 = vector.broadcast %3073 : f32 to vector<8x8xf32>
    %3078 = arith.mulf %3077, %3076 : vector<8x8xf32>
    %3079 = arith.addf %3062, %3078 : vector<8x8xf32>
    %c551 = arith.constant 551 : index
    %3080 = memref.load %arg1[%c551] : memref<580xf32, #tpu.memory_space<smem>>
    %cst_422 = arith.constant 0.000000e+00 : f32
    %3081 = vector.broadcast %cst_422 : f32 to vector<1x8xf32>
    %3082 = vector.extract_strided_slice %2831 {offsets = [0, 0], sizes = [7, 8], strides = [1, 1]} : vector<8x8xf32> to vector<7x8xf32>
    %3083 = tpu.concatenate %3081, %3082 in 0 : vector<1x8xf32>, vector<7x8xf32> -> vector<8x8xf32>
    %3084 = vector.extract_strided_slice %3083 {offsets = [0, 1], sizes = [8, 7], strides = [1, 1]} : vector<8x8xf32> to vector<8x7xf32>
    %cst_423 = arith.constant 0.000000e+00 : f32
    %3085 = vector.broadcast %cst_423 : f32 to vector<8x1xf32>
    %3086 = tpu.concatenate %3084, %3085 in 1 : vector<8x7xf32>, vector<8x1xf32> -> vector<8x8xf32>
    %3087 = vector.broadcast %3080 : f32 to vector<8x8xf32>
    %3088 = arith.mulf %3087, %3086 : vector<8x8xf32>
    %3089 = arith.addf %3072, %3088 : vector<8x8xf32>
    %c555 = arith.constant 555 : index
    %3090 = memref.load %arg1[%c555] : memref<580xf32, #tpu.memory_space<smem>>
    %cst_424 = arith.constant 0.000000e+00 : f32
    %3091 = vector.broadcast %cst_424 : f32 to vector<8x1xf32>
    %3092 = vector.extract_strided_slice %2831 {offsets = [0, 0], sizes = [8, 7], strides = [1, 1]} : vector<8x8xf32> to vector<8x7xf32>
    %3093 = tpu.concatenate %3091, %3092 in 1 : vector<8x1xf32>, vector<8x7xf32> -> vector<8x8xf32>
    %3094 = vector.broadcast %3090 : f32 to vector<8x8xf32>
    %3095 = arith.mulf %3094, %3093 : vector<8x8xf32>
    %3096 = arith.addf %3079, %3095 : vector<8x8xf32>
    %c559 = arith.constant 559 : index
    %3097 = memref.load %arg1[%c559] : memref<580xf32, #tpu.memory_space<smem>>
    %3098 = vector.broadcast %3097 : f32 to vector<8x8xf32>
    %3099 = arith.mulf %3098, %2831 : vector<8x8xf32>
    %3100 = arith.addf %3089, %3099 : vector<8x8xf32>
    %c563 = arith.constant 563 : index
    %3101 = memref.load %arg1[%c563] : memref<580xf32, #tpu.memory_space<smem>>
    %3102 = vector.extract_strided_slice %2831 {offsets = [0, 1], sizes = [8, 7], strides = [1, 1]} : vector<8x8xf32> to vector<8x7xf32>
    %cst_425 = arith.constant 0.000000e+00 : f32
    %3103 = vector.broadcast %cst_425 : f32 to vector<8x1xf32>
    %3104 = tpu.concatenate %3102, %3103 in 1 : vector<8x7xf32>, vector<8x1xf32> -> vector<8x8xf32>
    %3105 = vector.broadcast %3101 : f32 to vector<8x8xf32>
    %3106 = arith.mulf %3105, %3104 : vector<8x8xf32>
    %3107 = arith.addf %3096, %3106 : vector<8x8xf32>
    %c567 = arith.constant 567 : index
    %3108 = memref.load %arg1[%c567] : memref<580xf32, #tpu.memory_space<smem>>
    %3109 = vector.extract_strided_slice %2831 {offsets = [1, 0], sizes = [7, 8], strides = [1, 1]} : vector<8x8xf32> to vector<7x8xf32>
    %cst_426 = arith.constant 0.000000e+00 : f32
    %3110 = vector.broadcast %cst_426 : f32 to vector<1x8xf32>
    %3111 = tpu.concatenate %3109, %3110 in 0 : vector<7x8xf32>, vector<1x8xf32> -> vector<8x8xf32>
    %cst_427 = arith.constant 0.000000e+00 : f32
    %3112 = vector.broadcast %cst_427 : f32 to vector<8x1xf32>
    %3113 = vector.extract_strided_slice %3111 {offsets = [0, 0], sizes = [8, 7], strides = [1, 1]} : vector<8x8xf32> to vector<8x7xf32>
    %3114 = tpu.concatenate %3112, %3113 in 1 : vector<8x1xf32>, vector<8x7xf32> -> vector<8x8xf32>
    %3115 = vector.broadcast %3108 : f32 to vector<8x8xf32>
    %3116 = arith.mulf %3115, %3114 : vector<8x8xf32>
    %3117 = arith.addf %3100, %3116 : vector<8x8xf32>
    %c571 = arith.constant 571 : index
    %3118 = memref.load %arg1[%c571] : memref<580xf32, #tpu.memory_space<smem>>
    %3119 = vector.extract_strided_slice %2831 {offsets = [1, 0], sizes = [7, 8], strides = [1, 1]} : vector<8x8xf32> to vector<7x8xf32>
    %cst_428 = arith.constant 0.000000e+00 : f32
    %3120 = vector.broadcast %cst_428 : f32 to vector<1x8xf32>
    %3121 = tpu.concatenate %3119, %3120 in 0 : vector<7x8xf32>, vector<1x8xf32> -> vector<8x8xf32>
    %3122 = vector.broadcast %3118 : f32 to vector<8x8xf32>
    %3123 = arith.mulf %3122, %3121 : vector<8x8xf32>
    %3124 = arith.addf %3107, %3123 : vector<8x8xf32>
    %c575 = arith.constant 575 : index
    %3125 = memref.load %arg1[%c575] : memref<580xf32, #tpu.memory_space<smem>>
    %3126 = vector.extract_strided_slice %2831 {offsets = [1, 0], sizes = [7, 8], strides = [1, 1]} : vector<8x8xf32> to vector<7x8xf32>
    %cst_429 = arith.constant 0.000000e+00 : f32
    %3127 = vector.broadcast %cst_429 : f32 to vector<1x8xf32>
    %3128 = tpu.concatenate %3126, %3127 in 0 : vector<7x8xf32>, vector<1x8xf32> -> vector<8x8xf32>
    %3129 = vector.extract_strided_slice %3128 {offsets = [0, 1], sizes = [8, 7], strides = [1, 1]} : vector<8x8xf32> to vector<8x7xf32>
    %cst_430 = arith.constant 0.000000e+00 : f32
    %3130 = vector.broadcast %cst_430 : f32 to vector<8x1xf32>
    %3131 = tpu.concatenate %3129, %3130 in 1 : vector<8x7xf32>, vector<8x1xf32> -> vector<8x8xf32>
    %3132 = vector.broadcast %3125 : f32 to vector<8x8xf32>
    %3133 = arith.mulf %3132, %3131 : vector<8x8xf32>
    %3134 = arith.addf %3117, %3133 : vector<8x8xf32>
    %3135 = arith.addf %3134, %3124 : vector<8x8xf32>
    %3136 = arith.addf %2436, %2828 : vector<8x8xf32>
    %cst_431 = arith.constant 0.000000e+00 : f32
    %3137 = vector.broadcast %cst_431 : f32 to vector<8x8xf32>
    %3138 = arith.maximumf %3136, %3137 : vector<8x8xf32>
    %3139 = arith.addf %2437, %2829 : vector<8x8xf32>
    %cst_432 = arith.constant 0.000000e+00 : f32
    %3140 = vector.broadcast %cst_432 : f32 to vector<8x8xf32>
    %3141 = arith.maximumf %3139, %3140 : vector<8x8xf32>
    %3142 = arith.addf %2438, %2830 : vector<8x8xf32>
    %cst_433 = arith.constant 0.000000e+00 : f32
    %3143 = vector.broadcast %cst_433 : f32 to vector<8x8xf32>
    %3144 = arith.maximumf %3142, %3143 : vector<8x8xf32>
    %3145 = arith.addf %2439, %2831 : vector<8x8xf32>
    %cst_434 = arith.constant 0.000000e+00 : f32
    %3146 = vector.broadcast %cst_434 : f32 to vector<8x8xf32>
    %3147 = arith.maximumf %3145, %3146 : vector<8x8xf32>
    %3148 = arith.addf %2515, %2907 : vector<8x8xf32>
    %cst_435 = arith.constant 0.000000e+00 : f32
    %3149 = vector.broadcast %cst_435 : f32 to vector<8x8xf32>
    %3150 = arith.maximumf %3148, %3149 : vector<8x8xf32>
    %3151 = arith.addf %2591, %2983 : vector<8x8xf32>
    %cst_436 = arith.constant 0.000000e+00 : f32
    %3152 = vector.broadcast %cst_436 : f32 to vector<8x8xf32>
    %3153 = arith.maximumf %3151, %3152 : vector<8x8xf32>
    %3154 = arith.addf %2667, %3059 : vector<8x8xf32>
    %cst_437 = arith.constant 0.000000e+00 : f32
    %3155 = vector.broadcast %cst_437 : f32 to vector<8x8xf32>
    %3156 = arith.maximumf %3154, %3155 : vector<8x8xf32>
    %3157 = arith.addf %2743, %3135 : vector<8x8xf32>
    %cst_438 = arith.constant 0.000000e+00 : f32
    %3158 = vector.broadcast %cst_438 : f32 to vector<8x8xf32>
    %3159 = arith.maximumf %3157, %3158 : vector<8x8xf32>
    %3160 = vector.shape_cast %3138 : vector<8x8xf32> to vector<1x8x8xf32>
    %3161 = vector.shape_cast %3141 : vector<8x8xf32> to vector<1x8x8xf32>
    %3162 = vector.shape_cast %3144 : vector<8x8xf32> to vector<1x8x8xf32>
    %3163 = vector.shape_cast %3147 : vector<8x8xf32> to vector<1x8x8xf32>
    %3164 = vector.shape_cast %3150 : vector<8x8xf32> to vector<1x8x8xf32>
    %3165 = vector.shape_cast %3153 : vector<8x8xf32> to vector<1x8x8xf32>
    %3166 = vector.shape_cast %3156 : vector<8x8xf32> to vector<1x8x8xf32>
    %3167 = vector.shape_cast %3159 : vector<8x8xf32> to vector<1x8x8xf32>
    %3168 = tpu.concatenate %3160, %3161, %3162, %3163, %3164, %3165, %3166, %3167 in 0 : vector<1x8x8xf32>, vector<1x8x8xf32>, vector<1x8x8xf32>, vector<1x8x8xf32>, vector<1x8x8xf32>, vector<1x8x8xf32>, vector<1x8x8xf32>, vector<1x8x8xf32> -> vector<8x8x8xf32>
    %c0_439 = arith.constant 0 : index
    %c0_440 = arith.constant 0 : index
    %c0_441 = arith.constant 0 : index
    %c0_442 = arith.constant 0 : index
    %3169 = vector.load %arg3[%c0_439, %c0_440, %c0_441, %c0_442] : memref<1x8x8x8xf32, #tpu.memory_space<vmem>>, vector<1x8x8x8xf32>
    %3170 = vector.shape_cast %3169 : vector<1x8x8x8xf32> to vector<8x8x8xf32>
    %3171 = vector.shape_cast %3168 : vector<8x8x8xf32> to vector<1x8x8x8xf32>
    tpu.vector_store %arg3[%c0_439, %c0_440, %c0_441, %c0_442], %3171 {strides = array<i32>} : memref<1x8x8x8xf32, #tpu.memory_space<vmem>>, vector<1x8x8x8xf32>,
    return
  }
  func.func @transform_0(%arg0: i32) -> i32 {
    %c0_i32 = arith.constant 0 : i32
    %c0_i32_0 = arith.constant 0 : i32
    return %c0_i32 : i32
  }
  func.func @transform_1(%arg0: i32) -> (i32, i32, i32, i32) {
    %c0_i32 = arith.constant 0 : i32
    %c0_i32_0 = arith.constant 0 : i32
    %c0_i32_1 = arith.constant 0 : i32
    %c0_i32_2 = arith.constant 0 : i32
    return %arg0, %c0_i32, %c0_i32_0, %c0_i32_1 : i32, i32, i32, i32
  }
  func.func @transform_2(%arg0: i32) -> (i32, i32, i32, i32) {
    %c0_i32 = arith.constant 0 : i32
    %c0_i32_0 = arith.constant 0 : i32
    %c0_i32_1 = arith.constant 0 : i32
    %c0_i32_2 = arith.constant 0 : i32
    return %arg0, %c0_i32, %c0_i32_0, %c0_i32_1 : i32, i32, i32, i32
  }
}

</mosaic_0001>

<llo_original>
// kernel: tpu_custom_call.1
$region0: #{tpu_custom_call.1}
  #allocation0 [shape = 'u32[]', space=smem, size = 0x4, offset = 0x4, fixed_abs, tag = 'smem constant byte address 0x4 - core index']
  #allocation1 [shape = 'u32[144,128]{1,0:T(1,128)}', space=vmem, size = 0x12000, scoped, tag = 'internal scratch']
  %s0 = inlined_call_operand.vmem [shape: f32[580], index: 0, kind: input, shape index: {}]
  %s1 = inlined_call_operand.vmem [shape: f32[2,16,9,9], index: 1, kind: input, shape index: {}]
  %s2 = inlined_call_operand.hbm [shape: f32[2,8,8,8], index: 2, kind: output, shape index: {}]
  %s3 = sld [smem:[#allocation0]]
  $region45: #{tpu_custom_call.1} parent=0
    _
  %s5 = ssub.s32 1, %s3
  %s6 = scalar_select 0, %s5, %s3
  $region1: #{tpu_custom_call.1} parent=0
    #allocation2 [shape = 'u8[2560]{0}', space=smem, size = 0xa00, scoped, tag = 'input window, operand 0, single buffered']
    #allocation3 [shape = 's32[2]{0}', space=sflag, size = 0x8, scoped, tag = 'scoped memory for tpu_custom_call.1']
    #allocation4 [shape = 's32[2]{0}', space=sflag, size = 0x8, scoped, tag = 'scoped memory for tpu_custom_call.1']
    #allocation5 [shape = 'u8[65536]{0}', space=vmem, size = 0x10000, scoped, tag = 'output window, operand 0']
    %7 = vsyncpa [#allocation4], 0
    %8 = vsyncpa [#allocation3], 0
    %s9 = scalar_lea.sflag [#allocation3], 1
    %10 = vsyncpa %s9, 0
    loop: start=0, step=1, limit=4
    $region2: #{tpu_custom_call.1} parent=1 // loop_pre_header
      _
    $region3: #{tpu_custom_call.1} parent=1 // loop_header
      %s12 = sphi 0, %s16
      %p13 = scmp.ge.s32.totalorder %s12, 4
      %s20 = sphi 0, %s20
      %s22 = sphi 0, %s20
      %s23 = sphi 0, %s22
      %s37 = sphi 0, %s23
      %s43 = sphi 0, %s45
      %s46 = sphi 0, %s43
      %s47 = sphi 0, %s46
      %s63 = sphi 0, %s47
      %s69 = sphi 0, %s71
      %s72 = sphi 0, %s69
      %s73 = sphi 0, %s72
      %s89 = sphi 0, %s73
    $region4: #{tpu_custom_call.1} parent=1 // loop_header_branch
      %15 = sbr.rel (%p13) target = $region8
    $region5: #{tpu_custom_call.1} parent=1 // loop_body
      %s17 = ssub.s32 %s12, 1
      %s18 = ssub.s32 %s12, 2
      %s19 = sadd.s32 %s12, 1
      %s21 = sadd.s32 %s20, 1
      %p24 = scmp.eq.s32.totalorder %s12, 1
      %p25 = scmp.ne.s32.totalorder %s20, %s22
      %p26 = scmp.eq.s32.totalorder %s12, 0
      %p27 = por %p25, %p26
      %p28 = scmp.ne.s32.totalorder %s20, %s22
      %p29 = scmp.eq.s32.totalorder %s17, 1
      %p30 = por %p28, %p29
      %p31 = scmp.ne.s32.totalorder %s22, %s23
      %p32 = scmp.eq.s32.totalorder %s17, 0
      %p33 = por %p31, %p32
      %p34 = scmp.ne.s32.totalorder %s22, %s23
      %p35 = scmp.eq.s32.totalorder %s18, 1
      %p36 = por %p34, %p35
      %p38 = scmp.ne.s32.totalorder %s23, %s37
      %p39 = scmp.eq.s32.totalorder %s18, 0
      %p40 = por %p38, %p39
      %s41 = ssub.s32 %s12, %s19
      %p42 = scmp.eq.s32.totalorder %s41, 0
      %s44 = sadd.s32 %s43, 1
      %s45 = scalar_select %p42, %s43, %s44
      %p48 = pneg %p42
      %p49 = scmp.eq.s32.totalorder %s12, 1
      %p50 = por %p48, %p49
      %p51 = scmp.ne.s32.totalorder %s43, %s46
      %p52 = scmp.eq.s32.totalorder %s12, 0
      %p53 = por %p51, %p52
      %p54 = scmp.ne.s32.totalorder %s43, %s46
      %p55 = scmp.eq.s32.totalorder %s17, 1
      %p56 = por %p54, %p55
      %p57 = scmp.ne.s32.totalorder %s46, %s47
      %p58 = scmp.eq.s32.totalorder %s17, 0
      %p59 = por %p57, %p58
      %p60 = scmp.ne.s32.totalorder %s46, %s47
      %p61 = scmp.eq.s32.totalorder %s18, 1
      %p62 = por %p60, %p61
      %p64 = scmp.ne.s32.totalorder %s47, %s63
      %p65 = scmp.eq.s32.totalorder %s18, 0
      %p66 = por %p64, %p65
      %s67 = ssub.s32 %s12, %s19
      %p68 = scmp.eq.s32.totalorder %s67, 0
      %s70 = sadd.s32 %s69, 1
      %s71 = scalar_select %p68, %s69, %s70
      %p74 = pneg %p68
      %p75 = scmp.eq.s32.totalorder %s12, 1
      %p76 = por %p74, %p75
      %p77 = scmp.ne.s32.totalorder %s69, %s72
      %p78 = scmp.eq.s32.totalorder %s12, 0
      %p79 = por %p77, %p78
      %p80 = scmp.ne.s32.totalorder %s69, %s72
      %p81 = scmp.eq.s32.totalorder %s17, 1
      %p82 = por %p80, %p81
      %p83 = scmp.ne.s32.totalorder %s72, %s73
      %p84 = scmp.eq.s32.totalorder %s17, 0
      %p85 = por %p83, %p84
      %p86 = scmp.ne.s32.totalorder %s72, %s73
      %p87 = scmp.eq.s32.totalorder %s18, 1
      %p88 = por %p86, %p87
      %p90 = scmp.ne.s32.totalorder %s73, %s89
      %p91 = scmp.eq.s32.totalorder %s18, 0
      %p92 = por %p90, %p91
      %p93 = scmp.le.s32.totalorder 1, %s12
      %p94 = scmp.lt.s32.totalorder %s12, 3
      %p95 = pnand %p93, %p94
      %p96 = pneg %p95
      // Predicated region
      $region9: #{tpu_custom_call.1} parent=5 // pred_check
        _
      $region10: #{tpu_custom_call.1} parent=5 // pred_check_branch
        %98 = sbr.rel (%p95) target = $region12
      $region11: #{tpu_custom_call.1} parent=5 // pred_region
        %s99 = ssub.s32 %s12, 1
        // Predicated region
        $region13: #{tpu_custom_call.1} parent=11 // pred_check
          %p100 = pneg %p33
        $region14: #{tpu_custom_call.1} parent=11 // pred_check_branch
          %102 = sbr.rel (%p100) target = $region16
        $region15: #{tpu_custom_call.1} parent=11 // pred_region
          %s104 = ssub.s32 80, 80
          %105 = vsyncadd [#allocation4], %s104
          %s107 = sshll.u32 %s0, 4
          %s108 = int_to_ptr.vmem [resolvable:$true] %s107
          %110 = dma.vmem_to_smem %s108, 80, [#allocation2], [#allocation4]
        $region16: #{tpu_custom_call.1} parent=11 // pred_fallthru
          _
      $region12: #{tpu_custom_call.1} parent=5 // pred_fallthru
        _
      %p111 = scmp.lt.s32.totalorder %s12, 2
      // Predicated region
      $region17: #{tpu_custom_call.1} parent=5 // pred_check
        %p112 = pneg %p111
      $region18: #{tpu_custom_call.1} parent=5 // pred_check_branch
        %114 = sbr.rel (%p112) target = $region20
      $region19: #{tpu_custom_call.1} parent=5 // pred_region
        // Predicated region
        $region21: #{tpu_custom_call.1} parent=19 // pred_check
          %p115 = pneg %p53
        $region22: #{tpu_custom_call.1} parent=19 // pred_check_branch
          %117 = sbr.rel (%p115) target = $region24
        $region23: #{tpu_custom_call.1} parent=19 // pred_region
          %p118 = scmp.lt.s32.totalorder %s12, 1
          %s119 = scalar_select %p118, %s12, 1
          %s120 = smul.addr %s119, 32
          %s121 = smul.addr %s120, 8
          %s122 = scalar_lea.vmem %s1, %s121
        $region24: #{tpu_custom_call.1} parent=19 // pred_fallthru
          _
      $region20: #{tpu_custom_call.1} parent=5 // pred_fallthru
        _
      %p123 = scmp.le.s32.totalorder 1, %s12
      %p124 = scmp.lt.s32.totalorder %s12, 3
      %p125 = pnand %p123, %p124
      %p126 = pneg %p125
      // Predicated region
      $region25: #{tpu_custom_call.1} parent=5 // pred_check
        _
      $region26: #{tpu_custom_call.1} parent=5 // pred_check_branch
        %128 = sbr.rel (%p125) target = $region28
      $region27: #{tpu_custom_call.1} parent=5 // pred_region
        %s129 = ssub.s32 %s12, 1
        // Predicated region
        $region29: #{tpu_custom_call.1} parent=27 // pred_check
          %p130 = pneg %p33
        $region30: #{tpu_custom_call.1} parent=27 // pred_check_branch
          %132 = sbr.rel (%p130) target = $region32
        $region31: #{tpu_custom_call.1} parent=27 // pred_region
          %133 = dma.done [#allocation4], 80
        $region32: #{tpu_custom_call.1} parent=27 // pred_fallthru
          _
        %134 = sfence
        %p135 = pneg %p33
        %p136 = pneg %p30
        %p137 = scmp.lt.s32.totalorder %s17, 1
        %s138 = scalar_select %p137, %s17, 1
        %s139 = smul.addr %s138, 32
        %s140 = smul.addr %s139, 8
        %s141 = scalar_lea.vmem %s1, %s140
        %p142 = pneg %p59
        %p143 = pneg %p56
        %p144 = pneg %p85
        %p145 = pneg %p82
        %s146 = sand.u32 %s72, 1
        %s147 = scalar_lea.sflag [#allocation3], %s146
        %s148 = sand.u32 %s72, 1
        %s149 = smul.addr %s148, 64
        %s150 = scalar_lea.vmem [#allocation5], %s149
        %p151 = scmp.lt.s32.totalorder %s17, 1
        %s152 = scalar_select %p151, %s17, 1
        %s153 = smul.addr %s152, 32
        %s154 = smul.addr %s153, 8
        %s155 = scalar_lea.vmem %s1, %s154
        %s156 = sld [smem:[#allocation2 + $0x90]]
        %v157 = vstv %s156
        %s158 = sld [smem:[#allocation2 + $0x91]]
        %v159 = vstv %s158
        %s160 = sld [smem:[#allocation2 + $0x92]]
        %v161 = vstv %s160
        %s162 = sld [smem:[#allocation2 + $0x93]]
        %v163 = vstv %s162
        %v164 = vld [vmem:[%s155] sm:$0xff]
        %s165 = sld [smem:[#allocation2]]
        %v166 = vstv %s165
        %v167 = vmul.f32 %v166, %v164
        %v168 = vadd.f32 %v157, %v167
        %s169 = sld [smem:[#allocation2 + $0x1]]
        %v170 = vstv %s169
        %v171 = vmul.f32 %v170, %v164
        %v172 = vadd.f32 %v159, %v171
        %s173 = sld [smem:[#allocation2 + $0x2]]
        %v174 = vstv %s173
        %v175 = vmul.f32 %v174, %v164
        %v176 = vadd.f32 %v161, %v175
        %s177 = sld [smem:[#allocation2 + $0x3]]
        %v178 = vstv %s177
        %v179 = vmul.f32 %v178, %v164
        %v180 = vadd.f32 %v163, %v179
        %s181 = scalar_lea.vmem %s155, 16
        %v182 = vld [vmem:[%s181] sm:$0xff]
        %s183 = sld [smem:[#allocation2 + $0x4]]
        %v184 = vstv %s183
        %v185 = vmul.f32 %v184, %v182
        %v186 = vadd.f32 %v185, 0.0
        %s187 = sld [smem:[#allocation2 + $0x5]]
        %v188 = vstv %s187
        %v189 = vmul.f32 %v188, %v182
        %v190 = vadd.f32 %v189, 0.0
        %s191 = sld [smem:[#allocation2 + $0x6]]
        %v192 = vstv %s191
        %v193 = vmul.f32 %v192, %v182
        %v194 = vadd.f32 %v193, 0.0
        %s195 = sld [smem:[#allocation2 + $0x7]]
        %v196 = vstv %s195
        %v197 = vmul.f32 %v196, %v182
        %v198 = vadd.f32 %v197, 0.0
        %s199 = scalar_lea.vmem %s155, 32
        %v200 = vld [vmem:[%s199] sm:$0xff]
        %s201 = sld [smem:[#allocation2 + $0x8]]
        %v202 = vstv %s201
        %v203 = vmul.f32 %v202, %v200
        %v204 = vadd.f32 %v168, %v203
        %s205 = sld [smem:[#allocation2 + $0x9]]
        %v206 = vstv %s205
        %v207 = vmul.f32 %v206, %v200
        %v208 = vadd.f32 %v172, %v207
        %s209 = sld [smem:[#allocation2 + $0xa]]
        %v210 = vstv %s209
        %v211 = vmul.f32 %v210, %v200
        %v212 = vadd.f32 %v176, %v211
        %s213 = sld [smem:[#allocation2 + $0xb]]
        %v214 = vstv %s213
        %v215 = vmul.f32 %v214, %v200
        %v216 = vadd.f32 %v180, %v215
        %s217 = scalar_lea.vmem %s155, 48
        %v218 = vld [vmem:[%s217] sm:$0xff]
        %s219 = sld [smem:[#allocation2 + $0xc]]
        %v220 = vstv %s219
        %v221 = vmul.f32 %v220, %v218
        %v222 = vadd.f32 %v186, %v221
        %s223 = sld [smem:[#allocation2 + $0xd]]
        %v224 = vstv %s223
        %v225 = vmul.f32 %v224, %v218
        %v226 = vadd.f32 %v190, %v225
        %s227 = sld [smem:[#allocation2 + $0xe]]
        %v228 = vstv %s227
        %v229 = vmul.f32 %v228, %v218
        %v230 = vadd.f32 %v194, %v229
        %s231 = sld [smem:[#allocation2 + $0xf]]
        %v232 = vstv %s231
        %v233 = vmul.f32 %v232, %v218
        %v234 = vadd.f32 %v198, %v233
        %s235 = scalar_lea.vmem %s155, 64
        %v236 = vld [vmem:[%s235] sm:$0xff]
        %s237 = sld [smem:[#allocation2 + $0x10]]
        %v238 = vstv %s237
        %v239 = vmul.f32 %v238, %v236
        %v240 = vadd.f32 %v204, %v239
        %s241 = sld [smem:[#allocation2 + $0x11]]
        %v242 = vstv %s241
        %v243 = vmul.f32 %v242, %v236
        %v244 = vadd.f32 %v208, %v243
        %s245 = sld [smem:[#allocation2 + $0x12]]
        %v246 = vstv %s245
        %v247 = vmul.f32 %v246, %v236
        %v248 = vadd.f32 %v212, %v247
        %s249 = sld [smem:[#allocation2 + $0x13]]
        %v250 = vstv %s249
        %v251 = vmul.f32 %v250, %v236
        %v252 = vadd.f32 %v216, %v251
        %s253 = scalar_lea.vmem %s155, 80
        %v254 = vld [vmem:[%s253] sm:$0xff]
        %s255 = sld [smem:[#allocation2 + $0x14]]
        %v256 = vstv %s255
        %v257 = vmul.f32 %v256, %v254
        %v258 = vadd.f32 %v222, %v257
        %s259 = sld [smem:[#allocation2 + $0x15]]
        %v260 = vstv %s259
        %v261 = vmul.f32 %v260, %v254
        %v262 = vadd.f32 %v226, %v261
        %s263 = sld [smem:[#allocation2 + $0x16]]
        %v264 = vstv %s263
        %v265 = vmul.f32 %v264, %v254
        %v266 = vadd.f32 %v230, %v265
        %s267 = sld [smem:[#allocation2 + $0x17]]
        %v268 = vstv %s267
        %v269 = vmul.f32 %v268, %v254
        %v270 = vadd.f32 %v234, %v269
        %s271 = scalar_lea.vmem %s155, 96
        %v272 = vld [vmem:[%s271] sm:$0xff]
        %s273 = sld [smem:[#allocation2 + $0x18]]
        %v274 = vstv %s273
        %v275 = vmul.f32 %v274, %v272
        %v276 = vadd.f32 %v240, %v275
        %s277 = sld [smem:[#allocation2 + $0x19]]
        %v278 = vstv %s277
        %v279 = vmul.f32 %v278, %v272
        %v280 = vadd.f32 %v244, %v279
        %s281 = sld [smem:[#allocation2 + $0x1a]]
        %v282 = vstv %s281
        %v283 = vmul.f32 %v282, %v272
        %v284 = vadd.f32 %v248, %v283
        %s285 = sld [smem:[#allocation2 + $0x1b]]
        %v286 = vstv %s285
        %v287 = vmul.f32 %v286, %v272
        %v288 = vadd.f32 %v252, %v287
        %s289 = scalar_lea.vmem %s155, 112
        %v290 = vld [vmem:[%s289] sm:$0xff]
        %s291 = sld [smem:[#allocation2 + $0x1c]]
        %v292 = vstv %s291
        %v293 = vmul.f32 %v292, %v290
        %v294 = vadd.f32 %v258, %v293
        %s295 = sld [smem:[#allocation2 + $0x1d]]
        %v296 = vstv %s295
        %v297 = vmul.f32 %v296, %v290
        %v298 = vadd.f32 %v262, %v297
        %s299 = sld [smem:[#allocation2 + $0x1e]]
        %v300 = vstv %s299
        %v301 = vmul.f32 %v300, %v290
        %v302 = vadd.f32 %v266, %v301
        %s303 = sld [smem:[#allocation2 + $0x1f]]
        %v304 = vstv %s303
        %v305 = vmul.f32 %v304, %v290
        %v306 = vadd.f32 %v270, %v305
        %s307 = sld [smem:[#allocation2 + $0x20]]
        %v308 = vstv %s307
        %v309 = vmul.f32 %v308, %v164
        %311 = vrot.lane.b32.xlu0 %v309, 127
        %v312 = vpop.permute.xlu0 %311
        %v314 = vadd.f32 %v276, %v312
        %s315 = sld [smem:[#allocation2 + $0x21]]
        %v316 = vstv %s315
        %v317 = vmul.f32 %v316, %v164
        %319 = vrot.lane.b32.xlu0 %v317, 127
        %v320 = vpop.permute.xlu0 %319
        %v322 = vadd.f32 %v280, %v320
        %s323 = sld [smem:[#allocation2 + $0x22]]
        %v324 = vstv %s323
        %v325 = vmul.f32 %v324, %v164
        %327 = vrot.lane.b32.xlu0 %v325, 127
        %v328 = vpop.permute.xlu0 %327
        %v330 = vadd.f32 %v284, %v328
        %s331 = sld [smem:[#allocation2 + $0x23]]
        %v332 = vstv %s331
        %v333 = vmul.f32 %v332, %v164
        %335 = vrot.lane.b32.xlu0 %v333, 127
        %v336 = vpop.permute.xlu0 %335
        %v338 = vadd.f32 %v288, %v336
        %s339 = sld [smem:[#allocation2 + $0x24]]
        %v340 = vstv %s339
        %v341 = vmul.f32 %v340, %v182
        %343 = vrot.lane.b32.xlu0 %v341, 127
        %v344 = vpop.permute.xlu0 %343
        %v346 = vadd.f32 %v294, %v344
        %s347 = sld [smem:[#allocation2 + $0x25]]
        %v348 = vstv %s347
        %v349 = vmul.f32 %v348, %v182
        %351 = vrot.lane.b32.xlu0 %v349, 127
        %v352 = vpop.permute.xlu0 %351
        %v354 = vadd.f32 %v298, %v352
        %s355 = sld [smem:[#allocation2 + $0x26]]
        %v356 = vstv %s355
        %v357 = vmul.f32 %v356, %v182
        %359 = vrot.lane.b32.xlu0 %v357, 127
        %v360 = vpop.permute.xlu0 %359
        %v362 = vadd.f32 %v302, %v360
        %s363 = sld [smem:[#allocation2 + $0x27]]
        %v364 = vstv %s363
        %v365 = vmul.f32 %v364, %v182
        %367 = vrot.lane.b32.xlu0 %v365, 127
        %v368 = vpop.permute.xlu0 %367
        %v370 = vadd.f32 %v306, %v368
        %s371 = sld [smem:[#allocation2 + $0x28]]
        %v372 = vstv %s371
        %v373 = vmul.f32 %v372, %v200
        %375 = vrot.lane.b32.xlu0 %v373, 127
        %v376 = vpop.permute.xlu0 %375
        %v378 = vadd.f32 %v314, %v376
        %s379 = sld [smem:[#allocation2 + $0x29]]
        %v380 = vstv %s379
        %v381 = vmul.f32 %v380, %v200
        %383 = vrot.lane.b32.xlu0 %v381, 127
        %v384 = vpop.permute.xlu0 %383
        %v386 = vadd.f32 %v322, %v384
        %s387 = sld [smem:[#allocation2 + $0x2a]]
        %v388 = vstv %s387
        %v389 = vmul.f32 %v388, %v200
        %391 = vrot.lane.b32.xlu0 %v389, 127
        %v392 = vpop.permute.xlu0 %391
        %v394 = vadd.f32 %v330, %v392
        %s395 = sld [smem:[#allocation2 + $0x2b]]
        %v396 = vstv %s395
        %v397 = vmul.f32 %v396, %v200
        %399 = vrot.lane.b32.xlu0 %v397, 127
        %v400 = vpop.permute.xlu0 %399
        %v402 = vadd.f32 %v338, %v400
        %s403 = sld [smem:[#allocation2 + $0x2c]]
        %v404 = vstv %s403
        %v405 = vmul.f32 %v404, %v218
        %407 = vrot.lane.b32.xlu0 %v405, 127
        %v408 = vpop.permute.xlu0 %407
        %v410 = vadd.f32 %v346, %v408
        %s411 = sld [smem:[#allocation2 + $0x2d]]
        %v412 = vstv %s411
        %v413 = vmul.f32 %v412, %v218
        %415 = vrot.lane.b32.xlu0 %v413, 127
        %v416 = vpop.permute.xlu0 %415
        %v418 = vadd.f32 %v354, %v416
        %s419 = sld [smem:[#allocation2 + $0x2e]]
        %v420 = vstv %s419
        %v421 = vmul.f32 %v420, %v218
        %423 = vrot.lane.b32.xlu0 %v421, 127
        %v424 = vpop.permute.xlu0 %423
        %v426 = vadd.f32 %v362, %v424
        %s427 = sld [smem:[#allocation2 + $0x2f]]
        %v428 = vstv %s427
        %v429 = vmul.f32 %v428, %v218
        %431 = vrot.lane.b32.xlu0 %v429, 127
        %v432 = vpop.permute.xlu0 %431
        %v434 = vadd.f32 %v370, %v432
        %s435 = scalar_lea.vmem %s155, 128
        %v436 = vld [vmem:[%s435] sm:$0xff]
        %s437 = sld [smem:[#allocation2 + $0x30]]
        %v438 = vstv %s437
        %v439 = vmul.f32 %v438, %v436
        %v440 = vadd.f32 %v378, %v439
        %s441 = sld [smem:[#allocation2 + $0x31]]
        %v442 = vstv %s441
        %v443 = vmul.f32 %v442, %v436
        %v444 = vadd.f32 %v386, %v443
        %s445 = sld [smem:[#allocation2 + $0x32]]
        %v446 = vstv %s445
        %v447 = vmul.f32 %v446, %v436
        %v448 = vadd.f32 %v394, %v447
        %s449 = sld [smem:[#allocation2 + $0x33]]
        %v450 = vstv %s449
        %v451 = vmul.f32 %v450, %v436
        %v452 = vadd.f32 %v402, %v451
        %s453 = scalar_lea.vmem %s155, 144
        %v454 = vld [vmem:[%s453] sm:$0xff]
        %s455 = sld [smem:[#allocation2 + $0x34]]
        %v456 = vstv %s455
        %v457 = vmul.f32 %v456, %v454
        %v458 = vadd.f32 %v410, %v457
        %s459 = sld [smem:[#allocation2 + $0x35]]
        %v460 = vstv %s459
        %v461 = vmul.f32 %v460, %v454
        %v462 = vadd.f32 %v418, %v461
        %s463 = sld [smem:[#allocation2 + $0x36]]
        %v464 = vstv %s463
        %v465 = vmul.f32 %v464, %v454
        %v466 = vadd.f32 %v426, %v465
        %s467 = sld [smem:[#allocation2 + $0x37]]
        %v468 = vstv %s467
        %v469 = vmul.f32 %v468, %v454
        %v470 = vadd.f32 %v434, %v469
        %s471 = scalar_lea.vmem %s155, 160
        %v472 = vld [vmem:[%s471] sm:$0xff]
        %s473 = sld [smem:[#allocation2 + $0x38]]
        %v474 = vstv %s473
        %v475 = vmul.f32 %v474, %v472
        %v476 = vadd.f32 %v440, %v475
        %s477 = sld [smem:[#allocation2 + $0x39]]
        %v478 = vstv %s477
        %v479 = vmul.f32 %v478, %v472
        %v480 = vadd.f32 %v444, %v479
        %s481 = sld [smem:[#allocation2 + $0x3a]]
        %v482 = vstv %s481
        %v483 = vmul.f32 %v482, %v472
        %v484 = vadd.f32 %v448, %v483
        %s485 = sld [smem:[#allocation2 + $0x3b]]
        %v486 = vstv %s485
        %v487 = vmul.f32 %v486, %v472
        %v488 = vadd.f32 %v452, %v487
        %s489 = scalar_lea.vmem %s155, 176
        %v490 = vld [vmem:[%s489] sm:$0xff]
        %s491 = sld [smem:[#allocation2 + $0x3c]]
        %v492 = vstv %s491
        %v493 = vmul.f32 %v492, %v490
        %v494 = vadd.f32 %v458, %v493
        %s495 = sld [smem:[#allocation2 + $0x3d]]
        %v496 = vstv %s495
        %v497 = vmul.f32 %v496, %v490
        %v498 = vadd.f32 %v462, %v497
        %s499 = sld [smem:[#allocation2 + $0x3e]]
        %v500 = vstv %s499
        %v501 = vmul.f32 %v500, %v490
        %v502 = vadd.f32 %v466, %v501
        %s503 = sld [smem:[#allocation2 + $0x3f]]
        %v504 = vstv %s503
        %v505 = vmul.f32 %v504, %v490
        %v506 = vadd.f32 %v470, %v505
        %s507 = scalar_lea.vmem %s155, 192
        %v508 = vld [vmem:[%s507] sm:$0xff]
        %s509 = sld [smem:[#allocation2 + $0x40]]
        %v510 = vstv %s509
        %v511 = vmul.f32 %v510, %v508
        %v512 = vadd.f32 %v476, %v511
        %s513 = sld [smem:[#allocation2 + $0x41]]
        %v514 = vstv %s513
        %v515 = vmul.f32 %v514, %v508
        %v516 = vadd.f32 %v480, %v515
        %s517 = sld [smem:[#allocation2 + $0x42]]
        %v518 = vstv %s517
        %v519 = vmul.f32 %v518, %v508
        %v520 = vadd.f32 %v484, %v519
        %s521 = sld [smem:[#allocation2 + $0x43]]
        %v522 = vstv %s521
        %v523 = vmul.f32 %v522, %v508
        %v524 = vadd.f32 %v488, %v523
        %s525 = scalar_lea.vmem %s155, 208
        %v526 = vld [vmem:[%s525] sm:$0xff]
        %s527 = sld [smem:[#allocation2 + $0x44]]
        %v528 = vstv %s527
        %v529 = vmul.f32 %v528, %v526
        %v530 = vadd.f32 %v494, %v529
        %s531 = sld [smem:[#allocation2 + $0x45]]
        %v532 = vstv %s531
        %v533 = vmul.f32 %v532, %v526
        %v534 = vadd.f32 %v498, %v533
        %s535 = sld [smem:[#allocation2 + $0x46]]
        %v536 = vstv %s535
        %v537 = vmul.f32 %v536, %v526
        %v538 = vadd.f32 %v502, %v537
        %s539 = sld [smem:[#allocation2 + $0x47]]
        %v540 = vstv %s539
        %v541 = vmul.f32 %v540, %v526
        %v542 = vadd.f32 %v506, %v541
        %s543 = scalar_lea.vmem %s155, 224
        %v544 = vld [vmem:[%s543] sm:$0xff]
        %s545 = sld [smem:[#allocation2 + $0x48]]
        %v546 = vstv %s545
        %v547 = vmul.f32 %v546, %v544
        %v548 = vadd.f32 %v512, %v547
        %s549 = sld [smem:[#allocation2 + $0x49]]
        %v550 = vstv %s549
        %v551 = vmul.f32 %v550, %v544
        %v552 = vadd.f32 %v516, %v551
        %s553 = sld [smem:[#allocation2 + $0x4a]]
        %v554 = vstv %s553
        %v555 = vmul.f32 %v554, %v544
        %v556 = vadd.f32 %v520, %v555
        %s557 = sld [smem:[#allocation2 + $0x4b]]
        %v558 = vstv %s557
        %v559 = vmul.f32 %v558, %v544
        %v560 = vadd.f32 %v524, %v559
        %s561 = scalar_lea.vmem %s155, 240
        %v562 = vld [vmem:[%s561] sm:$0xff]
        %s563 = sld [smem:[#allocation2 + $0x4c]]
        %v564 = vstv %s563
        %v565 = vmul.f32 %v564, %v562
        %v566 = vadd.f32 %v530, %v565
        %s567 = sld [smem:[#allocation2 + $0x4d]]
        %v568 = vstv %s567
        %v569 = vmul.f32 %v568, %v562
        %v570 = vadd.f32 %v534, %v569
        %s571 = sld [smem:[#allocation2 + $0x4e]]
        %v572 = vstv %s571
        %v573 = vmul.f32 %v572, %v562
        %v574 = vadd.f32 %v538, %v573
        %s575 = sld [smem:[#allocation2 + $0x4f]]
        %v576 = vstv %s575
        %v577 = vmul.f32 %v576, %v562
        %v578 = vadd.f32 %v542, %v577
        %s579 = sld [smem:[#allocation2 + $0x50]]
        %v580 = vstv %s579
        %v581 = vmul.f32 %v580, %v436
        %583 = vrot.lane.b32.xlu0 %v581, 127
        %v584 = vpop.permute.xlu0 %583
        %v586 = vadd.f32 %v548, %v584
        %s587 = sld [smem:[#allocation2 + $0x51]]
        %v588 = vstv %s587
        %v589 = vmul.f32 %v588, %v436
        %591 = vrot.lane.b32.xlu0 %v589, 127
        %v592 = vpop.permute.xlu0 %591
        %v594 = vadd.f32 %v552, %v592
        %s595 = sld [smem:[#allocation2 + $0x52]]
        %v596 = vstv %s595
        %v597 = vmul.f32 %v596, %v436
        %599 = vrot.lane.b32.xlu0 %v597, 127
        %v600 = vpop.permute.xlu0 %599
        %v602 = vadd.f32 %v556, %v600
        %s603 = sld [smem:[#allocation2 + $0x53]]
        %v604 = vstv %s603
        %v605 = vmul.f32 %v604, %v436
        %607 = vrot.lane.b32.xlu0 %v605, 127
        %v608 = vpop.permute.xlu0 %607
        %v610 = vadd.f32 %v560, %v608
        %s611 = sld [smem:[#allocation2 + $0x54]]
        %v612 = vstv %s611
        %v613 = vmul.f32 %v612, %v454
        %615 = vrot.lane.b32.xlu0 %v613, 127
        %v616 = vpop.permute.xlu0 %615
        %v618 = vadd.f32 %v566, %v616
        %s619 = sld [smem:[#allocation2 + $0x55]]
        %v620 = vstv %s619
        %v621 = vmul.f32 %v620, %v454
        %623 = vrot.lane.b32.xlu0 %v621, 127
        %v624 = vpop.permute.xlu0 %623
        %v626 = vadd.f32 %v570, %v624
        %s627 = sld [smem:[#allocation2 + $0x56]]
        %v628 = vstv %s627
        %v629 = vmul.f32 %v628, %v454
        %631 = vrot.lane.b32.xlu0 %v629, 127
        %v632 = vpop.permute.xlu0 %631
        %v634 = vadd.f32 %v574, %v632
        %s635 = sld [smem:[#allocation2 + $0x57]]
        %v636 = vstv %s635
        %v637 = vmul.f32 %v636, %v454
        %639 = vrot.lane.b32.xlu0 %v637, 127
        %v640 = vpop.permute.xlu0 %639
        %v642 = vadd.f32 %v578, %v640
        %s643 = sld [smem:[#allocation2 + $0x58]]
        %v644 = vstv %s643
        %v645 = vmul.f32 %v644, %v472
        %647 = vrot.lane.b32.xlu0 %v645, 127
        %v648 = vpop.permute.xlu0 %647
        %v650 = vadd.f32 %v586, %v648
        %s651 = sld [smem:[#allocation2 + $0x59]]
        %v652 = vstv %s651
        %v653 = vmul.f32 %v652, %v472
        %655 = vrot.lane.b32.xlu0 %v653, 127
        %v656 = vpop.permute.xlu0 %655
        %v658 = vadd.f32 %v594, %v656
        %s659 = sld [smem:[#allocation2 + $0x5a]]
        %v660 = vstv %s659
        %v661 = vmul.f32 %v660, %v472
        %663 = vrot.lane.b32.xlu0 %v661, 127
        %v664 = vpop.permute.xlu0 %663
        %v666 = vadd.f32 %v602, %v664
        %s667 = sld [smem:[#allocation2 + $0x5b]]
        %v668 = vstv %s667
        %v669 = vmul.f32 %v668, %v472
        %671 = vrot.lane.b32.xlu0 %v669, 127
        %v672 = vpop.permute.xlu0 %671
        %v674 = vadd.f32 %v610, %v672
        %s675 = sld [smem:[#allocation2 + $0x5c]]
        %v676 = vstv %s675
        %v677 = vmul.f32 %v676, %v490
        %679 = vrot.lane.b32.xlu0 %v677, 127
        %v680 = vpop.permute.xlu0 %679
        %v682 = vadd.f32 %v618, %v680
        %s683 = sld [smem:[#allocation2 + $0x5d]]
        %v684 = vstv %s683
        %v685 = vmul.f32 %v684, %v490
        %687 = vrot.lane.b32.xlu0 %v685, 127
        %v688 = vpop.permute.xlu0 %687
        %v690 = vadd.f32 %v626, %v688
        %s691 = sld [smem:[#allocation2 + $0x5e]]
        %v692 = vstv %s691
        %v693 = vmul.f32 %v692, %v490
        %695 = vrot.lane.b32.xlu0 %v693, 127
        %v696 = vpop.permute.xlu0 %695
        %v698 = vadd.f32 %v634, %v696
        %s699 = sld [smem:[#allocation2 + $0x5f]]
        %v700 = vstv %s699
        %v701 = vmul.f32 %v700, %v490
        %703 = vrot.lane.b32.xlu0 %v701, 127
        %v704 = vpop.permute.xlu0 %703
        %v706 = vadd.f32 %v642, %v704
        %v707 = vld [vmem:[%s155 + $0x1] sm:$0xff]
        %s708 = sld [smem:[#allocation2 + $0x60]]
        %v709 = vstv %s708
        %v710 = vmul.f32 %v709, %v707
        %v711 = vadd.f32 %v650, %v710
        %s712 = sld [smem:[#allocation2 + $0x61]]
        %v713 = vstv %s712
        %v714 = vmul.f32 %v713, %v707
        %v715 = vadd.f32 %v658, %v714
        %s716 = sld [smem:[#allocation2 + $0x62]]
        %v717 = vstv %s716
        %v718 = vmul.f32 %v717, %v707
        %v719 = vadd.f32 %v666, %v718
        %s720 = sld [smem:[#allocation2 + $0x63]]
        %v721 = vstv %s720
        %v722 = vmul.f32 %v721, %v707
        %v723 = vadd.f32 %v674, %v722
        %v724 = vld [vmem:[%s181 + $0x1] sm:$0xff]
        %s725 = sld [smem:[#allocation2 + $0x64]]
        %v726 = vstv %s725
        %v727 = vmul.f32 %v726, %v724
        %v728 = vadd.f32 %v682, %v727
        %s729 = sld [smem:[#allocation2 + $0x65]]
        %v730 = vstv %s729
        %v731 = vmul.f32 %v730, %v724
        %v732 = vadd.f32 %v690, %v731
        %s733 = sld [smem:[#allocation2 + $0x66]]
        %v734 = vstv %s733
        %v735 = vmul.f32 %v734, %v724
        %v736 = vadd.f32 %v698, %v735
        %s737 = sld [smem:[#allocation2 + $0x67]]
        %v738 = vstv %s737
        %v739 = vmul.f32 %v738, %v724
        %v740 = vadd.f32 %v706, %v739
        %v741 = vld [vmem:[%s199 + $0x1] sm:$0xff]
        %s742 = sld [smem:[#allocation2 + $0x68]]
        %v743 = vstv %s742
        %v744 = vmul.f32 %v743, %v741
        %v745 = vadd.f32 %v711, %v744
        %s746 = sld [smem:[#allocation2 + $0x69]]
        %v747 = vstv %s746
        %v748 = vmul.f32 %v747, %v741
        %v749 = vadd.f32 %v715, %v748
        %s750 = sld [smem:[#allocation2 + $0x6a]]
        %v751 = vstv %s750
        %v752 = vmul.f32 %v751, %v741
        %v753 = vadd.f32 %v719, %v752
        %s754 = sld [smem:[#allocation2 + $0x6b]]
        %v755 = vstv %s754
        %v756 = vmul.f32 %v755, %v741
        %v757 = vadd.f32 %v723, %v756
        %v758 = vld [vmem:[%s217 + $0x1] sm:$0xff]
        %s759 = sld [smem:[#allocation2 + $0x6c]]
        %v760 = vstv %s759
        %v761 = vmul.f32 %v760, %v758
        %v762 = vadd.f32 %v728, %v761
        %s763 = sld [smem:[#allocation2 + $0x6d]]
        %v764 = vstv %s763
        %v765 = vmul.f32 %v764, %v758
        %v766 = vadd.f32 %v732, %v765
        %s767 = sld [smem:[#allocation2 + $0x6e]]
        %v768 = vstv %s767
        %v769 = vmul.f32 %v768, %v758
        %v770 = vadd.f32 %v736, %v769
        %s771 = sld [smem:[#allocation2 + $0x6f]]
        %v772 = vstv %s771
        %v773 = vmul.f32 %v772, %v758
        %v774 = vadd.f32 %v740, %v773
        %v775 = vld [vmem:[%s235 + $0x1] sm:$0xff]
        %s776 = sld [smem:[#allocation2 + $0x70]]
        %v777 = vstv %s776
        %v778 = vmul.f32 %v777, %v775
        %v779 = vadd.f32 %v745, %v778
        %s780 = sld [smem:[#allocation2 + $0x71]]
        %v781 = vstv %s780
        %v782 = vmul.f32 %v781, %v775
        %v783 = vadd.f32 %v749, %v782
        %s784 = sld [smem:[#allocation2 + $0x72]]
        %v785 = vstv %s784
        %v786 = vmul.f32 %v785, %v775
        %v787 = vadd.f32 %v753, %v786
        %s788 = sld [smem:[#allocation2 + $0x73]]
        %v789 = vstv %s788
        %v790 = vmul.f32 %v789, %v775
        %v791 = vadd.f32 %v757, %v790
        %v792 = vld [vmem:[%s253 + $0x1] sm:$0xff]
        %s793 = sld [smem:[#allocation2 + $0x74]]
        %v794 = vstv %s793
        %v795 = vmul.f32 %v794, %v792
        %v796 = vadd.f32 %v762, %v795
        %s797 = sld [smem:[#allocation2 + $0x75]]
        %v798 = vstv %s797
        %v799 = vmul.f32 %v798, %v792
        %v800 = vadd.f32 %v766, %v799
        %s801 = sld [smem:[#allocation2 + $0x76]]
        %v802 = vstv %s801
        %v803 = vmul.f32 %v802, %v792
        %v804 = vadd.f32 %v770, %v803
        %s805 = sld [smem:[#allocation2 + $0x77]]
        %v806 = vstv %s805
        %v807 = vmul.f32 %v806, %v792
        %v808 = vadd.f32 %v774, %v807
        %v809 = vld [vmem:[%s271 + $0x1] sm:$0xff]
        %s810 = sld [smem:[#allocation2 + $0x78]]
        %v811 = vstv %s810
        %v812 = vmul.f32 %v811, %v809
        %v813 = vadd.f32 %v779, %v812
        %s814 = sld [smem:[#allocation2 + $0x79]]
        %v815 = vstv %s814
        %v816 = vmul.f32 %v815, %v809
        %v817 = vadd.f32 %v783, %v816
        %s818 = sld [smem:[#allocation2 + $0x7a]]
        %v819 = vstv %s818
        %v820 = vmul.f32 %v819, %v809
        %v821 = vadd.f32 %v787, %v820
        %s822 = sld [smem:[#allocation2 + $0x7b]]
        %v823 = vstv %s822
        %v824 = vmul.f32 %v823, %v809
        %v825 = vadd.f32 %v791, %v824
        %v826 = vld [vmem:[%s289 + $0x1] sm:$0xff]
        %s827 = sld [smem:[#allocation2 + $0x7c]]
        %v828 = vstv %s827
        %v829 = vmul.f32 %v828, %v826
        %v830 = vadd.f32 %v796, %v829
        %s831 = sld [smem:[#allocation2 + $0x7d]]
        %v832 = vstv %s831
        %v833 = vmul.f32 %v832, %v826
        %v834 = vadd.f32 %v800, %v833
        %s835 = sld [smem:[#allocation2 + $0x7e]]
        %v836 = vstv %s835
        %v837 = vmul.f32 %v836, %v826
        %v838 = vadd.f32 %v804, %v837
        %s839 = sld [smem:[#allocation2 + $0x7f]]
        %v840 = vstv %s839
        %v841 = vmul.f32 %v840, %v826
        %v842 = vadd.f32 %v808, %v841
        %s843 = sld [smem:[#allocation2 + $0x80]]
        %v844 = vstv %s843
        %v845 = vmul.f32 %v844, %v707
        %847 = vrot.lane.b32.xlu0 %v845, 127
        %v848 = vpop.permute.xlu0 %847
        %v850 = vadd.f32 %v813, %v848
        %s851 = sld [smem:[#allocation2 + $0x81]]
        %v852 = vstv %s851
        %v853 = vmul.f32 %v852, %v707
        %855 = vrot.lane.b32.xlu0 %v853, 127
        %v856 = vpop.permute.xlu0 %855
        %v858 = vadd.f32 %v817, %v856
        %s859 = sld [smem:[#allocation2 + $0x82]]
        %v860 = vstv %s859
        %v861 = vmul.f32 %v860, %v707
        %863 = vrot.lane.b32.xlu0 %v861, 127
        %v864 = vpop.permute.xlu0 %863
        %v866 = vadd.f32 %v821, %v864
        %s867 = sld [smem:[#allocation2 + $0x83]]
        %v868 = vstv %s867
        %v869 = vmul.f32 %v868, %v707
        %871 = vrot.lane.b32.xlu0 %v869, 127
        %v872 = vpop.permute.xlu0 %871
        %v874 = vadd.f32 %v825, %v872
        %s875 = sld [smem:[#allocation2 + $0x84]]
        %v876 = vstv %s875
        %v877 = vmul.f32 %v876, %v724
        %879 = vrot.lane.b32.xlu0 %v877, 127
        %v880 = vpop.permute.xlu0 %879
        %v882 = vadd.f32 %v830, %v880
        %s883 = sld [smem:[#allocation2 + $0x85]]
        %v884 = vstv %s883
        %v885 = vmul.f32 %v884, %v724
        %887 = vrot.lane.b32.xlu0 %v885, 127
        %v888 = vpop.permute.xlu0 %887
        %v890 = vadd.f32 %v834, %v888
        %s891 = sld [smem:[#allocation2 + $0x86]]
        %v892 = vstv %s891
        %v893 = vmul.f32 %v892, %v724
        %895 = vrot.lane.b32.xlu0 %v893, 127
        %v896 = vpop.permute.xlu0 %895
        %v898 = vadd.f32 %v838, %v896
        %s899 = sld [smem:[#allocation2 + $0x87]]
        %v900 = vstv %s899
        %v901 = vmul.f32 %v900, %v724
        %903 = vrot.lane.b32.xlu0 %v901, 127
        %v904 = vpop.permute.xlu0 %903
        %v906 = vadd.f32 %v842, %v904
        %s907 = sld [smem:[#allocation2 + $0x88]]
        %v908 = vstv %s907
        %v909 = vmul.f32 %v908, %v741
        %911 = vrot.lane.b32.xlu0 %v909, 127
        %v912 = vpop.permute.xlu0 %911
        %v914 = vadd.f32 %v850, %v912
        %s915 = sld [smem:[#allocation2 + $0x89]]
        %v916 = vstv %s915
        %v917 = vmul.f32 %v916, %v741
        %919 = vrot.lane.b32.xlu0 %v917, 127
        %v920 = vpop.permute.xlu0 %919
        %v922 = vadd.f32 %v858, %v920
        %s923 = sld [smem:[#allocation2 + $0x8a]]
        %v924 = vstv %s923
        %v925 = vmul.f32 %v924, %v741
        %927 = vrot.lane.b32.xlu0 %v925, 127
        %v928 = vpop.permute.xlu0 %927
        %v930 = vadd.f32 %v866, %v928
        %s931 = sld [smem:[#allocation2 + $0x8b]]
        %v932 = vstv %s931
        %v933 = vmul.f32 %v932, %v741
        %935 = vrot.lane.b32.xlu0 %v933, 127
        %v936 = vpop.permute.xlu0 %935
        %v938 = vadd.f32 %v874, %v936
        %s939 = sld [smem:[#allocation2 + $0x8c]]
        %v940 = vstv %s939
        %v941 = vmul.f32 %v940, %v758
        %943 = vrot.lane.b32.xlu0 %v941, 127
        %v944 = vpop.permute.xlu0 %943
        %v946 = vadd.f32 %v882, %v944
        %s947 = sld [smem:[#allocation2 + $0x8d]]
        %v948 = vstv %s947
        %v949 = vmul.f32 %v948, %v758
        %951 = vrot.lane.b32.xlu0 %v949, 127
        %v952 = vpop.permute.xlu0 %951
        %v954 = vadd.f32 %v890, %v952
        %s955 = sld [smem:[#allocation2 + $0x8e]]
        %v956 = vstv %s955
        %v957 = vmul.f32 %v956, %v758
        %959 = vrot.lane.b32.xlu0 %v957, 127
        %v960 = vpop.permute.xlu0 %959
        %v962 = vadd.f32 %v898, %v960
        %s963 = sld [smem:[#allocation2 + $0x8f]]
        %v964 = vstv %s963
        %v965 = vmul.f32 %v964, %v758
        %967 = vrot.lane.b32.xlu0 %v965, 127
        %v968 = vpop.permute.xlu0 %967
        %v970 = vadd.f32 %v906, %v968
        %v971 = vadd.f32 %v914, %v946
        %v972 = vadd.f32 %v922, %v954
        %v973 = vadd.f32 %v930, %v962
        %v974 = vadd.f32 %v938, %v970
        %v975 = vmax.f32 %v971, 0.0
        %v976 = vmax.f32 %v972, 0.0
        %v977 = vmax.f32 %v973, 0.0
        %v978 = vmax.f32 %v974, 0.0
        %s979 = sld [smem:[#allocation2 + $0xb8]]
        %v980 = vstv %s979
        %s981 = sld [smem:[#allocation2 + $0x94]]
        %v983 = vrot.slane %v975, 7
        %vm985 = vcmask 1040384
        %v986 = vsel %vm985, 0.0, %v983
        %988 = vrot.lane.b32.xlu0 %v986, 1
        %v989 = vpop.permute.xlu0 %988
        %vm991 = vcmask 7168
        %v992 = vsel %vm991, 0.0, %v989
        %v993 = vstv %s981
        %v994 = vmul.f32 %v993, %v992
        %v995 = vadd.f32 %v980, %v994
        %s996 = sld [smem:[#allocation2 + $0x98]]
        %v997 = vstv %s996
        %v998 = vmul.f32 %v997, %v986
        %v999 = vadd.f32 %v998, 0.0
        %s1000 = sld [smem:[#allocation2 + $0x9c]]
        %1001 = vrot.lane.b32.xlu0 %v986, 127
        %v1002 = vpop.permute.xlu0 %1001
        %vm1004 = vcmask 56320
        %v1005 = vsel %vm1004, %v1002, 0.0
        %v1006 = vstv %s1000
        %v1007 = vmul.f32 %v1006, %v1005
        %v1008 = vadd.f32 %v995, %v1007
        %s1009 = sld [smem:[#allocation2 + $0xa0]]
        %1010 = vrot.lane.b32.xlu0 %v975, 1
        %v1011 = vpop.permute.xlu0 %1010
        %v1013 = vsel %vm991, 0.0, %v1011
        %v1014 = vstv %s1009
        %v1015 = vmul.f32 %v1014, %v1013
        %v1016 = vadd.f32 %v999, %v1015
        %s1017 = sld [smem:[#allocation2 + $0xa4]]
        %v1018 = vstv %s1017
        %v1019 = vmul.f32 %v1018, %v975
        %v1020 = vadd.f32 %v1008, %v1019
        %s1021 = sld [smem:[#allocation2 + $0xa8]]
        %1022 = vrot.lane.b32.xlu0 %v975, 127
        %v1023 = vpop.permute.xlu0 %1022
        %v1025 = vsel %vm1004, %v1023, 0.0
        %v1026 = vstv %s1021
        %v1027 = vmul.f32 %v1026, %v1025
        %v1028 = vadd.f32 %v1016, %v1027
        %s1029 = sld [smem:[#allocation2 + $0xac]]
        %v1030 = vrot.slane %v975, 1
        %vm1032 = vcmask 1046528
        %v1033 = vsel %vm1032, %v1030, 0.0
        %1035 = vrot.lane.b32.xlu0 %v1033, 1
        %v1036 = vpop.permute.xlu0 %1035
        %v1038 = vsel %vm991, 0.0, %v1036
        %v1039 = vstv %s1029
        %v1040 = vmul.f32 %v1039, %v1038
        %v1041 = vadd.f32 %v1020, %v1040
        %s1042 = sld [smem:[#allocation2 + $0xb0]]
        %v1043 = vstv %s1042
        %v1044 = vmul.f32 %v1043, %v1033
        %v1045 = vadd.f32 %v1028, %v1044
        %s1046 = sld [smem:[#allocation2 + $0xb4]]
        %1047 = vrot.lane.b32.xlu0 %v1033, 127
        %v1048 = vpop.permute.xlu0 %1047
        %v1050 = vsel %vm1004, %v1048, 0.0
        %v1051 = vstv %s1046
        %v1052 = vmul.f32 %v1051, %v1050
        %v1053 = vadd.f32 %v1041, %v1052
        %v1054 = vadd.f32 %v1053, %v1045
        %v1055 = vmax.f32 %v1054, 0.0
        %s1056 = sld [smem:[#allocation2 + $0xb9]]
        %v1057 = vstv %s1056
        %s1058 = sld [smem:[#allocation2 + $0x95]]
        %v1060 = vrot.slane %v976, 7
        %v1062 = vsel %vm985, 0.0, %v1060
        %1064 = vrot.lane.b32.xlu0 %v1062, 1
        %v1065 = vpop.permute.xlu0 %1064
        %v1067 = vsel %vm991, 0.0, %v1065
        %v1068 = vstv %s1058
        %v1069 = vmul.f32 %v1068, %v1067
        %v1070 = vadd.f32 %v1057, %v1069
        %s1071 = sld [smem:[#allocation2 + $0x99]]
        %v1072 = vstv %s1071
        %v1073 = vmul.f32 %v1072, %v1062
        %v1074 = vadd.f32 %v1073, 0.0
        %s1075 = sld [smem:[#allocation2 + $0x9d]]
        %1076 = vrot.lane.b32.xlu0 %v1062, 127
        %v1077 = vpop.permute.xlu0 %1076
        %v1079 = vsel %vm1004, %v1077, 0.0
        %v1080 = vstv %s1075
        %v1081 = vmul.f32 %v1080, %v1079
        %v1082 = vadd.f32 %v1070, %v1081
        %s1083 = sld [smem:[#allocation2 + $0xa1]]
        %1084 = vrot.lane.b32.xlu0 %v976, 1
        %v1085 = vpop.permute.xlu0 %1084
        %v1087 = vsel %vm991, 0.0, %v1085
        %v1088 = vstv %s1083
        %v1089 = vmul.f32 %v1088, %v1087
        %v1090 = vadd.f32 %v1074, %v1089
        %s1091 = sld [smem:[#allocation2 + $0xa5]]
        %v1092 = vstv %s1091
        %v1093 = vmul.f32 %v1092, %v976
        %v1094 = vadd.f32 %v1082, %v1093
        %s1095 = sld [smem:[#allocation2 + $0xa9]]
        %1096 = vrot.lane.b32.xlu0 %v976, 127
        %v1097 = vpop.permute.xlu0 %1096
        %v1099 = vsel %vm1004, %v1097, 0.0
        %v1100 = vstv %s1095
        %v1101 = vmul.f32 %v1100, %v1099
        %v1102 = vadd.f32 %v1090, %v1101
        %s1103 = sld [smem:[#allocation2 + $0xad]]
        %v1104 = vrot.slane %v976, 1
        %v1106 = vsel %vm1032, %v1104, 0.0
        %1108 = vrot.lane.b32.xlu0 %v1106, 1
        %v1109 = vpop.permute.xlu0 %1108
        %v1111 = vsel %vm991, 0.0, %v1109
        %v1112 = vstv %s1103
        %v1113 = vmul.f32 %v1112, %v1111
        %v1114 = vadd.f32 %v1094, %v1113
        %s1115 = sld [smem:[#allocation2 + $0xb1]]
        %v1116 = vstv %s1115
        %v1117 = vmul.f32 %v1116, %v1106
        %v1118 = vadd.f32 %v1102, %v1117
        %s1119 = sld [smem:[#allocation2 + $0xb5]]
        %1120 = vrot.lane.b32.xlu0 %v1106, 127
        %v1121 = vpop.permute.xlu0 %1120
        %v1123 = vsel %vm1004, %v1121, 0.0
        %v1124 = vstv %s1119
        %v1125 = vmul.f32 %v1124, %v1123
        %v1126 = vadd.f32 %v1114, %v1125
        %v1127 = vadd.f32 %v1126, %v1118
        %v1128 = vmax.f32 %v1127, 0.0
        %s1129 = sld [smem:[#allocation2 + $0xba]]
        %v1130 = vstv %s1129
        %s1131 = sld [smem:[#allocation2 + $0x96]]
        %v1133 = vrot.slane %v977, 7
        %v1135 = vsel %vm985, 0.0, %v1133
        %1137 = vrot.lane.b32.xlu0 %v1135, 1
        %v1138 = vpop.permute.xlu0 %1137
        %v1140 = vsel %vm991, 0.0, %v1138
        %v1141 = vstv %s1131
        %v1142 = vmul.f32 %v1141, %v1140
        %v1143 = vadd.f32 %v1130, %v1142
        %s1144 = sld [smem:[#allocation2 + $0x9a]]
        %v1145 = vstv %s1144
        %v1146 = vmul.f32 %v1145, %v1135
        %v1147 = vadd.f32 %v1146, 0.0
        %s1148 = sld [smem:[#allocation2 + $0x9e]]
        %1149 = vrot.lane.b32.xlu0 %v1135, 127
        %v1150 = vpop.permute.xlu0 %1149
        %v1152 = vsel %vm1004, %v1150, 0.0
        %v1153 = vstv %s1148
        %v1154 = vmul.f32 %v1153, %v1152
        %v1155 = vadd.f32 %v1143, %v1154
        %s1156 = sld [smem:[#allocation2 + $0xa2]]
        %1157 = vrot.lane.b32.xlu0 %v977, 1
        %v1158 = vpop.permute.xlu0 %1157
        %v1160 = vsel %vm991, 0.0, %v1158
        %v1161 = vstv %s1156
        %v1162 = vmul.f32 %v1161, %v1160
        %v1163 = vadd.f32 %v1147, %v1162
        %s1164 = sld [smem:[#allocation2 + $0xa6]]
        %v1165 = vstv %s1164
        %v1166 = vmul.f32 %v1165, %v977
        %v1167 = vadd.f32 %v1155, %v1166
        %s1168 = sld [smem:[#allocation2 + $0xaa]]
        %1169 = vrot.lane.b32.xlu0 %v977, 127
        %v1170 = vpop.permute.xlu0 %1169
        %v1172 = vsel %vm1004, %v1170, 0.0
        %v1173 = vstv %s1168
        %v1174 = vmul.f32 %v1173, %v1172
        %v1175 = vadd.f32 %v1163, %v1174
        %s1176 = sld [smem:[#allocation2 + $0xae]]
        %v1177 = vrot.slane %v977, 1
        %v1179 = vsel %vm1032, %v1177, 0.0
        %1181 = vrot.lane.b32.xlu0 %v1179, 1
        %v1182 = vpop.permute.xlu0 %1181
        %v1184 = vsel %vm991, 0.0, %v1182
        %v1185 = vstv %s1176
        %v1186 = vmul.f32 %v1185, %v1184
        %v1187 = vadd.f32 %v1167, %v1186
        %s1188 = sld [smem:[#allocation2 + $0xb2]]
        %v1189 = vstv %s1188
        %v1190 = vmul.f32 %v1189, %v1179
        %v1191 = vadd.f32 %v1175, %v1190
        %s1192 = sld [smem:[#allocation2 + $0xb6]]
        %1193 = vrot.lane.b32.xlu0 %v1179, 127
        %v1194 = vpop.permute.xlu0 %1193
        %v1196 = vsel %vm1004, %v1194, 0.0
        %v1197 = vstv %s1192
        %v1198 = vmul.f32 %v1197, %v1196
        %v1199 = vadd.f32 %v1187, %v1198
        %v1200 = vadd.f32 %v1199, %v1191
        %v1201 = vmax.f32 %v1200, 0.0
        %s1202 = sld [smem:[#allocation2 + $0xbb]]
        %v1203 = vstv %s1202
        %s1204 = sld [smem:[#allocation2 + $0x97]]
        %v1206 = vrot.slane %v978, 7
        %v1208 = vsel %vm985, 0.0, %v1206
        %1210 = vrot.lane.b32.xlu0 %v1208, 1
        %v1211 = vpop.permute.xlu0 %1210
        %v1213 = vsel %vm991, 0.0, %v1211
        %v1214 = vstv %s1204
        %v1215 = vmul.f32 %v1214, %v1213
        %v1216 = vadd.f32 %v1203, %v1215
        %s1217 = sld [smem:[#allocation2 + $0x9b]]
        %v1218 = vstv %s1217
        %v1219 = vmul.f32 %v1218, %v1208
        %v1220 = vadd.f32 %v1219, 0.0
        %s1221 = sld [smem:[#allocation2 + $0x9f]]
        %1222 = vrot.lane.b32.xlu0 %v1208, 127
        %v1223 = vpop.permute.xlu0 %1222
        %v1225 = vsel %vm1004, %v1223, 0.0
        %v1226 = vstv %s1221
        %v1227 = vmul.f32 %v1226, %v1225
        %v1228 = vadd.f32 %v1216, %v1227
        %s1229 = sld [smem:[#allocation2 + $0xa3]]
        %1230 = vrot.lane.b32.xlu0 %v978, 1
        %v1231 = vpop.permute.xlu0 %1230
        %v1233 = vsel %vm991, 0.0, %v1231
        %v1234 = vstv %s1229
        %v1235 = vmul.f32 %v1234, %v1233
        %v1236 = vadd.f32 %v1220, %v1235
        %s1237 = sld [smem:[#allocation2 + $0xa7]]
        %v1238 = vstv %s1237
        %v1239 = vmul.f32 %v1238, %v978
        %v1240 = vadd.f32 %v1228, %v1239
        %s1241 = sld [smem:[#allocation2 + $0xab]]
        %1242 = vrot.lane.b32.xlu0 %v978, 127
        %v1243 = vpop.permute.xlu0 %1242
        %v1245 = vsel %vm1004, %v1243, 0.0
        %v1246 = vstv %s1241
        %v1247 = vmul.f32 %v1246, %v1245
        %v1248 = vadd.f32 %v1236, %v1247
        %s1249 = sld [smem:[#allocation2 + $0xaf]]
        %v1250 = vrot.slane %v978, 1
        %v1252 = vsel %vm1032, %v1250, 0.0
        %1254 = vrot.lane.b32.xlu0 %v1252, 1
        %v1255 = vpop.permute.xlu0 %1254
        %v1257 = vsel %vm991, 0.0, %v1255
        %v1258 = vstv %s1249
        %v1259 = vmul.f32 %v1258, %v1257
        %v1260 = vadd.f32 %v1240, %v1259
        %s1261 = sld [smem:[#allocation2 + $0xb3]]
        %v1262 = vstv %s1261
        %v1263 = vmul.f32 %v1262, %v1252
        %v1264 = vadd.f32 %v1248, %v1263
        %s1265 = sld [smem:[#allocation2 + $0xb7]]
        %1266 = vrot.lane.b32.xlu0 %v1252, 127
        %v1267 = vpop.permute.xlu0 %1266
        %v1269 = vsel %vm1004, %v1267, 0.0
        %v1270 = vstv %s1265
        %v1271 = vmul.f32 %v1270, %v1269
        %v1272 = vadd.f32 %v1260, %v1271
        %v1273 = vadd.f32 %v1272, %v1264
        %v1274 = vmax.f32 %v1273, 0.0
        %s1275 = sld [smem:[#allocation2 + $0x1dc]]
        %v1276 = vstv %s1275
        %s1277 = sld [smem:[#allocation2 + $0x1dd]]
        %v1278 = vstv %s1277
        %s1279 = sld [smem:[#allocation2 + $0x1de]]
        %v1280 = vstv %s1279
        %s1281 = sld [smem:[#allocation2 + $0x1df]]
        %v1282 = vstv %s1281
        %s1283 = sld [smem:[#allocation2 + $0xbc]]
        %v1284 = vstv %s1283
        %v1285 = vmul.f32 %v1284, %v992
        %v1286 = vadd.f32 %v1276, %v1285
        %s1287 = sld [smem:[#allocation2 + $0xbd]]
        %v1288 = vstv %s1287
        %v1289 = vmul.f32 %v1288, %v992
        %v1290 = vadd.f32 %v1278, %v1289
        %s1291 = sld [smem:[#allocation2 + $0xbe]]
        %v1292 = vstv %s1291
        %v1293 = vmul.f32 %v1292, %v992
        %v1294 = vadd.f32 %v1280, %v1293
        %s1295 = sld [smem:[#allocation2 + $0xbf]]
        %v1296 = vstv %s1295
        %v1297 = vmul.f32 %v1296, %v992
        %v1298 = vadd.f32 %v1282, %v1297
        %s1299 = sld [smem:[#allocation2 + $0xc0]]
        %v1300 = vstv %s1299
        %v1301 = vmul.f32 %v1300, %v1067
        %v1302 = vadd.f32 %v1301, 0.0
        %s1303 = sld [smem:[#allocation2 + $0xc1]]
        %v1304 = vstv %s1303
        %v1305 = vmul.f32 %v1304, %v1067
        %v1306 = vadd.f32 %v1305, 0.0
        %s1307 = sld [smem:[#allocation2 + $0xc2]]
        %v1308 = vstv %s1307
        %v1309 = vmul.f32 %v1308, %v1067
        %v1310 = vadd.f32 %v1309, 0.0
        %s1311 = sld [smem:[#allocation2 + $0xc3]]
        %v1312 = vstv %s1311
        %v1313 = vmul.f32 %v1312, %v1067
        %v1314 = vadd.f32 %v1313, 0.0
        %s1315 = sld [smem:[#allocation2 + $0xc4]]
        %v1316 = vstv %s1315
        %v1317 = vmul.f32 %v1316, %v1140
        %v1318 = vadd.f32 %v1286, %v1317
        %s1319 = sld [smem:[#allocation2 + $0xc5]]
        %v1320 = vstv %s1319
        %v1321 = vmul.f32 %v1320, %v1140
        %v1322 = vadd.f32 %v1290, %v1321
        %s1323 = sld [smem:[#allocation2 + $0xc6]]
        %v1324 = vstv %s1323
        %v1325 = vmul.f32 %v1324, %v1140
        %v1326 = vadd.f32 %v1294, %v1325
        %s1327 = sld [smem:[#allocation2 + $0xc7]]
        %v1328 = vstv %s1327
        %v1329 = vmul.f32 %v1328, %v1140
        %v1330 = vadd.f32 %v1298, %v1329
        %s1331 = sld [smem:[#allocation2 + $0xc8]]
        %v1332 = vstv %s1331
        %v1333 = vmul.f32 %v1332, %v1213
        %v1334 = vadd.f32 %v1302, %v1333
        %s1335 = sld [smem:[#allocation2 + $0xc9]]
        %v1336 = vstv %s1335
        %v1337 = vmul.f32 %v1336, %v1213
        %v1338 = vadd.f32 %v1306, %v1337
        %s1339 = sld [smem:[#allocation2 + $0xca]]
        %v1340 = vstv %s1339
        %v1341 = vmul.f32 %v1340, %v1213
        %v1342 = vadd.f32 %v1310, %v1341
        %s1343 = sld [smem:[#allocation2 + $0xcb]]
        %v1344 = vstv %s1343
        %v1345 = vmul.f32 %v1344, %v1213
        %v1346 = vadd.f32 %v1314, %v1345
        %v1348 = vrot.slane %v1055, 7
        %v1350 = vsel %vm985, 0.0, %v1348
        %1352 = vrot.lane.b32.xlu0 %v1350, 1
        %v1353 = vpop.permute.xlu0 %1352
        %v1355 = vsel %vm991, 0.0, %v1353
        %s1356 = sld [smem:[#allocation2 + $0xcc]]
        %v1357 = vstv %s1356
        %v1358 = vmul.f32 %v1357, %v1355
        %v1359 = vadd.f32 %v1318, %v1358
        %s1360 = sld [smem:[#allocation2 + $0xcd]]
        %v1361 = vstv %s1360
        %v1362 = vmul.f32 %v1361, %v1355
        %v1363 = vadd.f32 %v1322, %v1362
        %s1364 = sld [smem:[#allocation2 + $0xce]]
        %v1365 = vstv %s1364
        %v1366 = vmul.f32 %v1365, %v1355
        %v1367 = vadd.f32 %v1326, %v1366
        %s1368 = sld [smem:[#allocation2 + $0xcf]]
        %v1369 = vstv %s1368
        %v1370 = vmul.f32 %v1369, %v1355
        %v1371 = vadd.f32 %v1330, %v1370
        %v1373 = vrot.slane %v1128, 7
        %v1375 = vsel %vm985, 0.0, %v1373
        %1377 = vrot.lane.b32.xlu0 %v1375, 1
        %v1378 = vpop.permute.xlu0 %1377
        %v1380 = vsel %vm991, 0.0, %v1378
        %s1381 = sld [smem:[#allocation2 + $0xd0]]
        %v1382 = vstv %s1381
        %v1383 = vmul.f32 %v1382, %v1380
        %v1384 = vadd.f32 %v1334, %v1383
        %s1385 = sld [smem:[#allocation2 + $0xd1]]
        %v1386 = vstv %s1385
        %v1387 = vmul.f32 %v1386, %v1380
        %v1388 = vadd.f32 %v1338, %v1387
        %s1389 = sld [smem:[#allocation2 + $0xd2]]
        %v1390 = vstv %s1389
        %v1391 = vmul.f32 %v1390, %v1380
        %v1392 = vadd.f32 %v1342, %v1391
        %s1393 = sld [smem:[#allocation2 + $0xd3]]
        %v1394 = vstv %s1393
        %v1395 = vmul.f32 %v1394, %v1380
        %v1396 = vadd.f32 %v1346, %v1395
        %v1398 = vrot.slane %v1201, 7
        %v1400 = vsel %vm985, 0.0, %v1398
        %1402 = vrot.lane.b32.xlu0 %v1400, 1
        %v1403 = vpop.permute.xlu0 %1402
        %v1405 = vsel %vm991, 0.0, %v1403
        %s1406 = sld [smem:[#allocation2 + $0xd4]]
        %v1407 = vstv %s1406
        %v1408 = vmul.f32 %v1407, %v1405
        %v1409 = vadd.f32 %v1359, %v1408
        %s1410 = sld [smem:[#allocation2 + $0xd5]]
        %v1411 = vstv %s1410
        %v1412 = vmul.f32 %v1411, %v1405
        %v1413 = vadd.f32 %v1363, %v1412
        %s1414 = sld [smem:[#allocation2 + $0xd6]]
        %v1415 = vstv %s1414
        %v1416 = vmul.f32 %v1415, %v1405
        %v1417 = vadd.f32 %v1367, %v1416
        %s1418 = sld [smem:[#allocation2 + $0xd7]]
        %v1419 = vstv %s1418
        %v1420 = vmul.f32 %v1419, %v1405
        %v1421 = vadd.f32 %v1371, %v1420
        %v1423 = vrot.slane %v1274, 7
        %v1425 = vsel %vm985, 0.0, %v1423
        %1427 = vrot.lane.b32.xlu0 %v1425, 1
        %v1428 = vpop.permute.xlu0 %1427
        %v1430 = vsel %vm991, 0.0, %v1428
        %s1431 = sld [smem:[#allocation2 + $0xd8]]
        %v1432 = vstv %s1431
        %v1433 = vmul.f32 %v1432, %v1430
        %v1434 = vadd.f32 %v1384, %v1433
        %s1435 = sld [smem:[#allocation2 + $0xd9]]
        %v1436 = vstv %s1435
        %v1437 = vmul.f32 %v1436, %v1430
        %v1438 = vadd.f32 %v1388, %v1437
        %s1439 = sld [smem:[#allocation2 + $0xda]]
        %v1440 = vstv %s1439
        %v1441 = vmul.f32 %v1440, %v1430
        %v1442 = vadd.f32 %v1392, %v1441
        %s1443 = sld [smem:[#allocation2 + $0xdb]]
        %v1444 = vstv %s1443
        %v1445 = vmul.f32 %v1444, %v1430
        %v1446 = vadd.f32 %v1396, %v1445
        %s1447 = sld [smem:[#allocation2 + $0xdc]]
        %v1448 = vstv %s1447
        %v1449 = vmul.f32 %v1448, %v986
        %v1450 = vadd.f32 %v1409, %v1449
        %s1451 = sld [smem:[#allocation2 + $0xdd]]
        %v1452 = vstv %s1451
        %v1453 = vmul.f32 %v1452, %v986
        %v1454 = vadd.f32 %v1413, %v1453
        %s1455 = sld [smem:[#allocation2 + $0xde]]
        %v1456 = vstv %s1455
        %v1457 = vmul.f32 %v1456, %v986
        %v1458 = vadd.f32 %v1417, %v1457
        %s1459 = sld [smem:[#allocation2 + $0xdf]]
        %v1460 = vstv %s1459
        %v1461 = vmul.f32 %v1460, %v986
        %v1462 = vadd.f32 %v1421, %v1461
        %s1463 = sld [smem:[#allocation2 + $0xe0]]
        %v1464 = vstv %s1463
        %v1465 = vmul.f32 %v1464, %v1062
        %v1466 = vadd.f32 %v1434, %v1465
        %s1467 = sld [smem:[#allocation2 + $0xe1]]
        %v1468 = vstv %s1467
        %v1469 = vmul.f32 %v1468, %v1062
        %v1470 = vadd.f32 %v1438, %v1469
        %s1471 = sld [smem:[#allocation2 + $0xe2]]
        %v1472 = vstv %s1471
        %v1473 = vmul.f32 %v1472, %v1062
        %v1474 = vadd.f32 %v1442, %v1473
        %s1475 = sld [smem:[#allocation2 + $0xe3]]
        %v1476 = vstv %s1475
        %v1477 = vmul.f32 %v1476, %v1062
        %v1478 = vadd.f32 %v1446, %v1477
        %s1479 = sld [smem:[#allocation2 + $0xe4]]
        %v1480 = vstv %s1479
        %v1481 = vmul.f32 %v1480, %v1135
        %v1482 = vadd.f32 %v1450, %v1481
        %s1483 = sld [smem:[#allocation2 + $0xe5]]
        %v1484 = vstv %s1483
        %v1485 = vmul.f32 %v1484, %v1135
        %v1486 = vadd.f32 %v1454, %v1485
        %s1487 = sld [smem:[#allocation2 + $0xe6]]
        %v1488 = vstv %s1487
        %v1489 = vmul.f32 %v1488, %v1135
        %v1490 = vadd.f32 %v1458, %v1489
        %s1491 = sld [smem:[#allocation2 + $0xe7]]
        %v1492 = vstv %s1491
        %v1493 = vmul.f32 %v1492, %v1135
        %v1494 = vadd.f32 %v1462, %v1493
        %s1495 = sld [smem:[#allocation2 + $0xe8]]
        %v1496 = vstv %s1495
        %v1497 = vmul.f32 %v1496, %v1208
        %v1498 = vadd.f32 %v1466, %v1497
        %s1499 = sld [smem:[#allocation2 + $0xe9]]
        %v1500 = vstv %s1499
        %v1501 = vmul.f32 %v1500, %v1208
        %v1502 = vadd.f32 %v1470, %v1501
        %s1503 = sld [smem:[#allocation2 + $0xea]]
        %v1504 = vstv %s1503
        %v1505 = vmul.f32 %v1504, %v1208
        %v1506 = vadd.f32 %v1474, %v1505
        %s1507 = sld [smem:[#allocation2 + $0xeb]]
        %v1508 = vstv %s1507
        %v1509 = vmul.f32 %v1508, %v1208
        %v1510 = vadd.f32 %v1478, %v1509
        %s1511 = sld [smem:[#allocation2 + $0xec]]
        %v1512 = vstv %s1511
        %v1513 = vmul.f32 %v1512, %v1350
        %v1514 = vadd.f32 %v1482, %v1513
        %s1515 = sld [smem:[#allocation2 + $0xed]]
        %v1516 = vstv %s1515
        %v1517 = vmul.f32 %v1516, %v1350
        %v1518 = vadd.f32 %v1486, %v1517
        %s1519 = sld [smem:[#allocation2 + $0xee]]
        %v1520 = vstv %s1519
        %v1521 = vmul.f32 %v1520, %v1350
        %v1522 = vadd.f32 %v1490, %v1521
        %s1523 = sld [smem:[#allocation2 + $0xef]]
        %v1524 = vstv %s1523
        %v1525 = vmul.f32 %v1524, %v1350
        %v1526 = vadd.f32 %v1494, %v1525
        %s1527 = sld [smem:[#allocation2 + $0xf0]]
        %v1528 = vstv %s1527
        %v1529 = vmul.f32 %v1528, %v1375
        %v1530 = vadd.f32 %v1498, %v1529
        %s1531 = sld [smem:[#allocation2 + $0xf1]]
        %v1532 = vstv %s1531
        %v1533 = vmul.f32 %v1532, %v1375
        %v1534 = vadd.f32 %v1502, %v1533
        %s1535 = sld [smem:[#allocation2 + $0xf2]]
        %v1536 = vstv %s1535
        %v1537 = vmul.f32 %v1536, %v1375
        %v1538 = vadd.f32 %v1506, %v1537
        %s1539 = sld [smem:[#allocation2 + $0xf3]]
        %v1540 = vstv %s1539
        %v1541 = vmul.f32 %v1540, %v1375
        %v1542 = vadd.f32 %v1510, %v1541
        %s1543 = sld [smem:[#allocation2 + $0xf4]]
        %v1544 = vstv %s1543
        %v1545 = vmul.f32 %v1544, %v1400
        %v1546 = vadd.f32 %v1514, %v1545
        %s1547 = sld [smem:[#allocation2 + $0xf5]]
        %v1548 = vstv %s1547
        %v1549 = vmul.f32 %v1548, %v1400
        %v1550 = vadd.f32 %v1518, %v1549
        %s1551 = sld [smem:[#allocation2 + $0xf6]]
        %v1552 = vstv %s1551
        %v1553 = vmul.f32 %v1552, %v1400
        %v1554 = vadd.f32 %v1522, %v1553
        %s1555 = sld [smem:[#allocation2 + $0xf7]]
        %v1556 = vstv %s1555
        %v1557 = vmul.f32 %v1556, %v1400
        %v1558 = vadd.f32 %v1526, %v1557
        %s1559 = sld [smem:[#allocation2 + $0xf8]]
        %v1560 = vstv %s1559
        %v1561 = vmul.f32 %v1560, %v1425
        %v1562 = vadd.f32 %v1530, %v1561
        %s1563 = sld [smem:[#allocation2 + $0xf9]]
        %v1564 = vstv %s1563
        %v1565 = vmul.f32 %v1564, %v1425
        %v1566 = vadd.f32 %v1534, %v1565
        %s1567 = sld [smem:[#allocation2 + $0xfa]]
        %v1568 = vstv %s1567
        %v1569 = vmul.f32 %v1568, %v1425
        %v1570 = vadd.f32 %v1538, %v1569
        %s1571 = sld [smem:[#allocation2 + $0xfb]]
        %v1572 = vstv %s1571
        %v1573 = vmul.f32 %v1572, %v1425
        %v1574 = vadd.f32 %v1542, %v1573
        %s1575 = sld [smem:[#allocation2 + $0xfc]]
        %v1576 = vstv %s1575
        %v1577 = vmul.f32 %v1576, %v1005
        %v1578 = vadd.f32 %v1546, %v1577
        %s1579 = sld [smem:[#allocation2 + $0xfd]]
        %v1580 = vstv %s1579
        %v1581 = vmul.f32 %v1580, %v1005
        %v1582 = vadd.f32 %v1550, %v1581
        %s1583 = sld [smem:[#allocation2 + $0xfe]]
        %v1584 = vstv %s1583
        %v1585 = vmul.f32 %v1584, %v1005
        %v1586 = vadd.f32 %v1554, %v1585
        %s1587 = sld [smem:[#allocation2 + $0xff]]
        %v1588 = vstv %s1587
        %v1589 = vmul.f32 %v1588, %v1005
        %v1590 = vadd.f32 %v1558, %v1589
        %s1591 = sld [smem:[#allocation2 + $0x100]]
        %v1592 = vstv %s1591
        %v1593 = vmul.f32 %v1592, %v1079
        %v1594 = vadd.f32 %v1562, %v1593
        %s1595 = sld [smem:[#allocation2 + $0x101]]
        %v1596 = vstv %s1595
        %v1597 = vmul.f32 %v1596, %v1079
        %v1598 = vadd.f32 %v1566, %v1597
        %s1599 = sld [smem:[#allocation2 + $0x102]]
        %v1600 = vstv %s1599
        %v1601 = vmul.f32 %v1600, %v1079
        %v1602 = vadd.f32 %v1570, %v1601
        %s1603 = sld [smem:[#allocation2 + $0x103]]
        %v1604 = vstv %s1603
        %v1605 = vmul.f32 %v1604, %v1079
        %v1606 = vadd.f32 %v1574, %v1605
        %s1607 = sld [smem:[#allocation2 + $0x104]]
        %v1608 = vstv %s1607
        %v1609 = vmul.f32 %v1608, %v1152
        %v1610 = vadd.f32 %v1578, %v1609
        %s1611 = sld [smem:[#allocation2 + $0x105]]
        %v1612 = vstv %s1611
        %v1613 = vmul.f32 %v1612, %v1152
        %v1614 = vadd.f32 %v1582, %v1613
        %s1615 = sld [smem:[#allocation2 + $0x106]]
        %v1616 = vstv %s1615
        %v1617 = vmul.f32 %v1616, %v1152
        %v1618 = vadd.f32 %v1586, %v1617
        %s1619 = sld [smem:[#allocation2 + $0x107]]
        %v1620 = vstv %s1619
        %v1621 = vmul.f32 %v1620, %v1152
        %v1622 = vadd.f32 %v1590, %v1621
        %s1623 = sld [smem:[#allocation2 + $0x108]]
        %v1624 = vstv %s1623
        %v1625 = vmul.f32 %v1624, %v1225
        %v1626 = vadd.f32 %v1594, %v1625
        %s1627 = sld [smem:[#allocation2 + $0x109]]
        %v1628 = vstv %s1627
        %v1629 = vmul.f32 %v1628, %v1225
        %v1630 = vadd.f32 %v1598, %v1629
        %s1631 = sld [smem:[#allocation2 + $0x10a]]
        %v1632 = vstv %s1631
        %v1633 = vmul.f32 %v1632, %v1225
        %v1634 = vadd.f32 %v1602, %v1633
        %s1635 = sld [smem:[#allocation2 + $0x10b]]
        %v1636 = vstv %s1635
        %v1637 = vmul.f32 %v1636, %v1225
        %v1638 = vadd.f32 %v1606, %v1637
        %1639 = vrot.lane.b32.xlu0 %v1350, 127
        %v1640 = vpop.permute.xlu0 %1639
        %v1642 = vsel %vm1004, %v1640, 0.0
        %s1643 = sld [smem:[#allocation2 + $0x10c]]
        %v1644 = vstv %s1643
        %v1645 = vmul.f32 %v1644, %v1642
        %v1646 = vadd.f32 %v1610, %v1645
        %s1647 = sld [smem:[#allocation2 + $0x10d]]
        %v1648 = vstv %s1647
        %v1649 = vmul.f32 %v1648, %v1642
        %v1650 = vadd.f32 %v1614, %v1649
        %s1651 = sld [smem:[#allocation2 + $0x10e]]
        %v1652 = vstv %s1651
        %v1653 = vmul.f32 %v1652, %v1642
        %v1654 = vadd.f32 %v1618, %v1653
        %s1655 = sld [smem:[#allocation2 + $0x10f]]
        %v1656 = vstv %s1655
        %v1657 = vmul.f32 %v1656, %v1642
        %v1658 = vadd.f32 %v1622, %v1657
        %1659 = vrot.lane.b32.xlu0 %v1375, 127
        %v1660 = vpop.permute.xlu0 %1659
        %v1662 = vsel %vm1004, %v1660, 0.0
        %s1663 = sld [smem:[#allocation2 + $0x110]]
        %v1664 = vstv %s1663
        %v1665 = vmul.f32 %v1664, %v1662
        %v1666 = vadd.f32 %v1626, %v1665
        %s1667 = sld [smem:[#allocation2 + $0x111]]
        %v1668 = vstv %s1667
        %v1669 = vmul.f32 %v1668, %v1662
        %v1670 = vadd.f32 %v1630, %v1669
        %s1671 = sld [smem:[#allocation2 + $0x112]]
        %v1672 = vstv %s1671
        %v1673 = vmul.f32 %v1672, %v1662
        %v1674 = vadd.f32 %v1634, %v1673
        %s1675 = sld [smem:[#allocation2 + $0x113]]
        %v1676 = vstv %s1675
        %v1677 = vmul.f32 %v1676, %v1662
        %v1678 = vadd.f32 %v1638, %v1677
        %1679 = vrot.lane.b32.xlu0 %v1400, 127
        %v1680 = vpop.permute.xlu0 %1679
        %v1682 = vsel %vm1004, %v1680, 0.0
        %s1683 = sld [smem:[#allocation2 + $0x114]]
        %v1684 = vstv %s1683
        %v1685 = vmul.f32 %v1684, %v1682
        %v1686 = vadd.f32 %v1646, %v1685
        %s1687 = sld [smem:[#allocation2 + $0x115]]
        %v1688 = vstv %s1687
        %v1689 = vmul.f32 %v1688, %v1682
        %v1690 = vadd.f32 %v1650, %v1689
        %s1691 = sld [smem:[#allocation2 + $0x116]]
        %v1692 = vstv %s1691
        %v1693 = vmul.f32 %v1692, %v1682
        %v1694 = vadd.f32 %v1654, %v1693
        %s1695 = sld [smem:[#allocation2 + $0x117]]
        %v1696 = vstv %s1695
        %v1697 = vmul.f32 %v1696, %v1682
        %v1698 = vadd.f32 %v1658, %v1697
        %1699 = vrot.lane.b32.xlu0 %v1425, 127
        %v1700 = vpop.permute.xlu0 %1699
        %v1702 = vsel %vm1004, %v1700, 0.0
        %s1703 = sld [smem:[#allocation2 + $0x118]]
        %v1704 = vstv %s1703
        %v1705 = vmul.f32 %v1704, %v1702
        %v1706 = vadd.f32 %v1666, %v1705
        %s1707 = sld [smem:[#allocation2 + $0x119]]
        %v1708 = vstv %s1707
        %v1709 = vmul.f32 %v1708, %v1702
        %v1710 = vadd.f32 %v1670, %v1709
        %s1711 = sld [smem:[#allocation2 + $0x11a]]
        %v1712 = vstv %s1711
        %v1713 = vmul.f32 %v1712, %v1702
        %v1714 = vadd.f32 %v1674, %v1713
        %s1715 = sld [smem:[#allocation2 + $0x11b]]
        %v1716 = vstv %s1715
        %v1717 = vmul.f32 %v1716, %v1702
        %v1718 = vadd.f32 %v1678, %v1717
        %s1719 = sld [smem:[#allocation2 + $0x11c]]
        %v1720 = vstv %s1719
        %v1721 = vmul.f32 %v1720, %v1013
        %v1722 = vadd.f32 %v1686, %v1721
        %s1723 = sld [smem:[#allocation2 + $0x11d]]
        %v1724 = vstv %s1723
        %v1725 = vmul.f32 %v1724, %v1013
        %v1726 = vadd.f32 %v1690, %v1725
        %s1727 = sld [smem:[#allocation2 + $0x11e]]
        %v1728 = vstv %s1727
        %v1729 = vmul.f32 %v1728, %v1013
        %v1730 = vadd.f32 %v1694, %v1729
        %s1731 = sld [smem:[#allocation2 + $0x11f]]
        %v1732 = vstv %s1731
        %v1733 = vmul.f32 %v1732, %v1013
        %v1734 = vadd.f32 %v1698, %v1733
        %s1735 = sld [smem:[#allocation2 + $0x120]]
        %v1736 = vstv %s1735
        %v1737 = vmul.f32 %v1736, %v1087
        %v1738 = vadd.f32 %v1706, %v1737
        %s1739 = sld [smem:[#allocation2 + $0x121]]
        %v1740 = vstv %s1739
        %v1741 = vmul.f32 %v1740, %v1087
        %v1742 = vadd.f32 %v1710, %v1741
        %s1743 = sld [smem:[#allocation2 + $0x122]]
        %v1744 = vstv %s1743
        %v1745 = vmul.f32 %v1744, %v1087
        %v1746 = vadd.f32 %v1714, %v1745
        %s1747 = sld [smem:[#allocation2 + $0x123]]
        %v1748 = vstv %s1747
        %v1749 = vmul.f32 %v1748, %v1087
        %v1750 = vadd.f32 %v1718, %v1749
        %s1751 = sld [smem:[#allocation2 + $0x124]]
        %v1752 = vstv %s1751
        %v1753 = vmul.f32 %v1752, %v1160
        %v1754 = vadd.f32 %v1722, %v1753
        %s1755 = sld [smem:[#allocation2 + $0x125]]
        %v1756 = vstv %s1755
        %v1757 = vmul.f32 %v1756, %v1160
        %v1758 = vadd.f32 %v1726, %v1757
        %s1759 = sld [smem:[#allocation2 + $0x126]]
        %v1760 = vstv %s1759
        %v1761 = vmul.f32 %v1760, %v1160
        %v1762 = vadd.f32 %v1730, %v1761
        %s1763 = sld [smem:[#allocation2 + $0x127]]
        %v1764 = vstv %s1763
        %v1765 = vmul.f32 %v1764, %v1160
        %v1766 = vadd.f32 %v1734, %v1765
        %s1767 = sld [smem:[#allocation2 + $0x128]]
        %v1768 = vstv %s1767
        %v1769 = vmul.f32 %v1768, %v1233
        %v1770 = vadd.f32 %v1738, %v1769
        %s1771 = sld [smem:[#allocation2 + $0x129]]
        %v1772 = vstv %s1771
        %v1773 = vmul.f32 %v1772, %v1233
        %v1774 = vadd.f32 %v1742, %v1773
        %s1775 = sld [smem:[#allocation2 + $0x12a]]
        %v1776 = vstv %s1775
        %v1777 = vmul.f32 %v1776, %v1233
        %v1778 = vadd.f32 %v1746, %v1777
        %s1779 = sld [smem:[#allocation2 + $0x12b]]
        %v1780 = vstv %s1779
        %v1781 = vmul.f32 %v1780, %v1233
        %v1782 = vadd.f32 %v1750, %v1781
        %1783 = vrot.lane.b32.xlu0 %v1055, 1
        %v1784 = vpop.permute.xlu0 %1783
        %v1786 = vsel %vm991, 0.0, %v1784
        %s1787 = sld [smem:[#allocation2 + $0x12c]]
        %v1788 = vstv %s1787
        %v1789 = vmul.f32 %v1788, %v1786
        %v1790 = vadd.f32 %v1754, %v1789
        %s1791 = sld [smem:[#allocation2 + $0x12d]]
        %v1792 = vstv %s1791
        %v1793 = vmul.f32 %v1792, %v1786
        %v1794 = vadd.f32 %v1758, %v1793
        %s1795 = sld [smem:[#allocation2 + $0x12e]]
        %v1796 = vstv %s1795
        %v1797 = vmul.f32 %v1796, %v1786
        %v1798 = vadd.f32 %v1762, %v1797
        %s1799 = sld [smem:[#allocation2 + $0x12f]]
        %v1800 = vstv %s1799
        %v1801 = vmul.f32 %v1800, %v1786
        %v1802 = vadd.f32 %v1766, %v1801
        %1803 = vrot.lane.b32.xlu0 %v1128, 1
        %v1804 = vpop.permute.xlu0 %1803
        %v1806 = vsel %vm991, 0.0, %v1804
        %s1807 = sld [smem:[#allocation2 + $0x130]]
        %v1808 = vstv %s1807
        %v1809 = vmul.f32 %v1808, %v1806
        %v1810 = vadd.f32 %v1770, %v1809
        %s1811 = sld [smem:[#allocation2 + $0x131]]
        %v1812 = vstv %s1811
        %v1813 = vmul.f32 %v1812, %v1806
        %v1814 = vadd.f32 %v1774, %v1813
        %s1815 = sld [smem:[#allocation2 + $0x132]]
        %v1816 = vstv %s1815
        %v1817 = vmul.f32 %v1816, %v1806
        %v1818 = vadd.f32 %v1778, %v1817
        %s1819 = sld [smem:[#allocation2 + $0x133]]
        %v1820 = vstv %s1819
        %v1821 = vmul.f32 %v1820, %v1806
        %v1822 = vadd.f32 %v1782, %v1821
        %1823 = vrot.lane.b32.xlu0 %v1201, 1
        %v1824 = vpop.permute.xlu0 %1823
        %v1826 = vsel %vm991, 0.0, %v1824
        %s1827 = sld [smem:[#allocation2 + $0x134]]
        %v1828 = vstv %s1827
        %v1829 = vmul.f32 %v1828, %v1826
        %v1830 = vadd.f32 %v1790, %v1829
        %s1831 = sld [smem:[#allocation2 + $0x135]]
        %v1832 = vstv %s1831
        %v1833 = vmul.f32 %v1832, %v1826
        %v1834 = vadd.f32 %v1794, %v1833
        %s1835 = sld [smem:[#allocation2 + $0x136]]
        %v1836 = vstv %s1835
        %v1837 = vmul.f32 %v1836, %v1826
        %v1838 = vadd.f32 %v1798, %v1837
        %s1839 = sld [smem:[#allocation2 + $0x137]]
        %v1840 = vstv %s1839
        %v1841 = vmul.f32 %v1840, %v1826
        %v1842 = vadd.f32 %v1802, %v1841
        %1843 = vrot.lane.b32.xlu0 %v1274, 1
        %v1844 = vpop.permute.xlu0 %1843
        %v1846 = vsel %vm991, 0.0, %v1844
        %s1847 = sld [smem:[#allocation2 + $0x138]]
        %v1848 = vstv %s1847
        %v1849 = vmul.f32 %v1848, %v1846
        %v1850 = vadd.f32 %v1810, %v1849
        %s1851 = sld [smem:[#allocation2 + $0x139]]
        %v1852 = vstv %s1851
        %v1853 = vmul.f32 %v1852, %v1846
        %v1854 = vadd.f32 %v1814, %v1853
        %s1855 = sld [smem:[#allocation2 + $0x13a]]
        %v1856 = vstv %s1855
        %v1857 = vmul.f32 %v1856, %v1846
        %v1858 = vadd.f32 %v1818, %v1857
        %s1859 = sld [smem:[#allocation2 + $0x13b]]
        %v1860 = vstv %s1859
        %v1861 = vmul.f32 %v1860, %v1846
        %v1862 = vadd.f32 %v1822, %v1861
        %s1863 = sld [smem:[#allocation2 + $0x13c]]
        %v1864 = vstv %s1863
        %v1865 = vmul.f32 %v1864, %v975
        %v1866 = vadd.f32 %v1830, %v1865
        %s1867 = sld [smem:[#allocation2 + $0x13d]]
        %v1868 = vstv %s1867
        %v1869 = vmul.f32 %v1868, %v975
        %v1870 = vadd.f32 %v1834, %v1869
        %s1871 = sld [smem:[#allocation2 + $0x13e]]
        %v1872 = vstv %s1871
        %v1873 = vmul.f32 %v1872, %v975
        %v1874 = vadd.f32 %v1838, %v1873
        %s1875 = sld [smem:[#allocation2 + $0x13f]]
        %v1876 = vstv %s1875
        %v1877 = vmul.f32 %v1876, %v975
        %v1878 = vadd.f32 %v1842, %v1877
        %s1879 = sld [smem:[#allocation2 + $0x140]]
        %v1880 = vstv %s1879
        %v1881 = vmul.f32 %v1880, %v976
        %v1882 = vadd.f32 %v1850, %v1881
        %s1883 = sld [smem:[#allocation2 + $0x141]]
        %v1884 = vstv %s1883
        %v1885 = vmul.f32 %v1884, %v976
        %v1886 = vadd.f32 %v1854, %v1885
        %s1887 = sld [smem:[#allocation2 + $0x142]]
        %v1888 = vstv %s1887
        %v1889 = vmul.f32 %v1888, %v976
        %v1890 = vadd.f32 %v1858, %v1889
        %s1891 = sld [smem:[#allocation2 + $0x143]]
        %v1892 = vstv %s1891
        %v1893 = vmul.f32 %v1892, %v976
        %v1894 = vadd.f32 %v1862, %v1893
        %s1895 = sld [smem:[#allocation2 + $0x144]]
        %v1896 = vstv %s1895
        %v1897 = vmul.f32 %v1896, %v977
        %v1898 = vadd.f32 %v1866, %v1897
        %s1899 = sld [smem:[#allocation2 + $0x145]]
        %v1900 = vstv %s1899
        %v1901 = vmul.f32 %v1900, %v977
        %v1902 = vadd.f32 %v1870, %v1901
        %s1903 = sld [smem:[#allocation2 + $0x146]]
        %v1904 = vstv %s1903
        %v1905 = vmul.f32 %v1904, %v977
        %v1906 = vadd.f32 %v1874, %v1905
        %s1907 = sld [smem:[#allocation2 + $0x147]]
        %v1908 = vstv %s1907
        %v1909 = vmul.f32 %v1908, %v977
        %v1910 = vadd.f32 %v1878, %v1909
        %s1911 = sld [smem:[#allocation2 + $0x148]]
        %v1912 = vstv %s1911
        %v1913 = vmul.f32 %v1912, %v978
        %v1914 = vadd.f32 %v1882, %v1913
        %s1915 = sld [smem:[#allocation2 + $0x149]]
        %v1916 = vstv %s1915
        %v1917 = vmul.f32 %v1916, %v978
        %v1918 = vadd.f32 %v1886, %v1917
        %s1919 = sld [smem:[#allocation2 + $0x14a]]
        %v1920 = vstv %s1919
        %v1921 = vmul.f32 %v1920, %v978
        %v1922 = vadd.f32 %v1890, %v1921
        %s1923 = sld [smem:[#allocation2 + $0x14b]]
        %v1924 = vstv %s1923
        %v1925 = vmul.f32 %v1924, %v978
        %v1926 = vadd.f32 %v1894, %v1925
        %s1927 = sld [smem:[#allocation2 + $0x14c]]
        %v1928 = vstv %s1927
        %v1929 = vmul.f32 %v1928, %v1055
        %v1930 = vadd.f32 %v1898, %v1929
        %s1931 = sld [smem:[#allocation2 + $0x14d]]
        %v1932 = vstv %s1931
        %v1933 = vmul.f32 %v1932, %v1055
        %v1934 = vadd.f32 %v1902, %v1933
        %s1935 = sld [smem:[#allocation2 + $0x14e]]
        %v1936 = vstv %s1935
        %v1937 = vmul.f32 %v1936, %v1055
        %v1938 = vadd.f32 %v1906, %v1937
        %s1939 = sld [smem:[#allocation2 + $0x14f]]
        %v1940 = vstv %s1939
        %v1941 = vmul.f32 %v1940, %v1055
        %v1942 = vadd.f32 %v1910, %v1941
        %s1943 = sld [smem:[#allocation2 + $0x150]]
        %v1944 = vstv %s1943
        %v1945 = vmul.f32 %v1944, %v1128
        %v1946 = vadd.f32 %v1914, %v1945
        %s1947 = sld [smem:[#allocation2 + $0x151]]
        %v1948 = vstv %s1947
        %v1949 = vmul.f32 %v1948, %v1128
        %v1950 = vadd.f32 %v1918, %v1949
        %s1951 = sld [smem:[#allocation2 + $0x152]]
        %v1952 = vstv %s1951
        %v1953 = vmul.f32 %v1952, %v1128
        %v1954 = vadd.f32 %v1922, %v1953
        %s1955 = sld [smem:[#allocation2 + $0x153]]
        %v1956 = vstv %s1955
        %v1957 = vmul.f32 %v1956, %v1128
        %v1958 = vadd.f32 %v1926, %v1957
        %s1959 = sld [smem:[#allocation2 + $0x154]]
        %v1960 = vstv %s1959
        %v1961 = vmul.f32 %v1960, %v1201
        %v1962 = vadd.f32 %v1930, %v1961
        %s1963 = sld [smem:[#allocation2 + $0x155]]
        %v1964 = vstv %s1963
        %v1965 = vmul.f32 %v1964, %v1201
        %v1966 = vadd.f32 %v1934, %v1965
        %s1967 = sld [smem:[#allocation2 + $0x156]]
        %v1968 = vstv %s1967
        %v1969 = vmul.f32 %v1968, %v1201
        %v1970 = vadd.f32 %v1938, %v1969
        %s1971 = sld [smem:[#allocation2 + $0x157]]
        %v1972 = vstv %s1971
        %v1973 = vmul.f32 %v1972, %v1201
        %v1974 = vadd.f32 %v1942, %v1973
        %s1975 = sld [smem:[#allocation2 + $0x158]]
        %v1976 = vstv %s1975
        %v1977 = vmul.f32 %v1976, %v1274
        %v1978 = vadd.f32 %v1946, %v1977
        %s1979 = sld [smem:[#allocation2 + $0x159]]
        %v1980 = vstv %s1979
        %v1981 = vmul.f32 %v1980, %v1274
        %v1982 = vadd.f32 %v1950, %v1981
        %s1983 = sld [smem:[#allocation2 + $0x15a]]
        %v1984 = vstv %s1983
        %v1985 = vmul.f32 %v1984, %v1274
        %v1986 = vadd.f32 %v1954, %v1985
        %s1987 = sld [smem:[#allocation2 + $0x15b]]
        %v1988 = vstv %s1987
        %v1989 = vmul.f32 %v1988, %v1274
        %v1990 = vadd.f32 %v1958, %v1989
        %s1991 = sld [smem:[#allocation2 + $0x15c]]
        %v1992 = vstv %s1991
        %v1993 = vmul.f32 %v1992, %v1025
        %v1994 = vadd.f32 %v1962, %v1993
        %s1995 = sld [smem:[#allocation2 + $0x15d]]
        %v1996 = vstv %s1995
        %v1997 = vmul.f32 %v1996, %v1025
        %v1998 = vadd.f32 %v1966, %v1997
        %s1999 = sld [smem:[#allocation2 + $0x15e]]
        %v2000 = vstv %s1999
        %v2001 = vmul.f32 %v2000, %v1025
        %v2002 = vadd.f32 %v1970, %v2001
        %s2003 = sld [smem:[#allocation2 + $0x15f]]
        %v2004 = vstv %s2003
        %v2005 = vmul.f32 %v2004, %v1025
        %v2006 = vadd.f32 %v1974, %v2005
        %s2007 = sld [smem:[#allocation2 + $0x160]]
        %v2008 = vstv %s2007
        %v2009 = vmul.f32 %v2008, %v1099
        %v2010 = vadd.f32 %v1978, %v2009
        %s2011 = sld [smem:[#allocation2 + $0x161]]
        %v2012 = vstv %s2011
        %v2013 = vmul.f32 %v2012, %v1099
        %v2014 = vadd.f32 %v1982, %v2013
        %s2015 = sld [smem:[#allocation2 + $0x162]]
        %v2016 = vstv %s2015
        %v2017 = vmul.f32 %v2016, %v1099
        %v2018 = vadd.f32 %v1986, %v2017
        %s2019 = sld [smem:[#allocation2 + $0x163]]
        %v2020 = vstv %s2019
        %v2021 = vmul.f32 %v2020, %v1099
        %v2022 = vadd.f32 %v1990, %v2021
        %s2023 = sld [smem:[#allocation2 + $0x164]]
        %v2024 = vstv %s2023
        %v2025 = vmul.f32 %v2024, %v1172
        %v2026 = vadd.f32 %v1994, %v2025
        %s2027 = sld [smem:[#allocation2 + $0x165]]
        %v2028 = vstv %s2027
        %v2029 = vmul.f32 %v2028, %v1172
        %v2030 = vadd.f32 %v1998, %v2029
        %s2031 = sld [smem:[#allocation2 + $0x166]]
        %v2032 = vstv %s2031
        %v2033 = vmul.f32 %v2032, %v1172
        %v2034 = vadd.f32 %v2002, %v2033
        %s2035 = sld [smem:[#allocation2 + $0x167]]
        %v2036 = vstv %s2035
        %v2037 = vmul.f32 %v2036, %v1172
        %v2038 = vadd.f32 %v2006, %v2037
        %s2039 = sld [smem:[#allocation2 + $0x168]]
        %v2040 = vstv %s2039
        %v2041 = vmul.f32 %v2040, %v1245
        %v2042 = vadd.f32 %v2010, %v2041
        %s2043 = sld [smem:[#allocation2 + $0x169]]
        %v2044 = vstv %s2043
        %v2045 = vmul.f32 %v2044, %v1245
        %v2046 = vadd.f32 %v2014, %v2045
        %s2047 = sld [smem:[#allocation2 + $0x16a]]
        %v2048 = vstv %s2047
        %v2049 = vmul.f32 %v2048, %v1245
        %v2050 = vadd.f32 %v2018, %v2049
        %s2051 = sld [smem:[#allocation2 + $0x16b]]
        %v2052 = vstv %s2051
        %v2053 = vmul.f32 %v2052, %v1245
        %v2054 = vadd.f32 %v2022, %v2053
        %2055 = vrot.lane.b32.xlu0 %v1055, 127
        %v2056 = vpop.permute.xlu0 %2055
        %v2058 = vsel %vm1004, %v2056, 0.0
        %s2059 = sld [smem:[#allocation2 + $0x16c]]
        %v2060 = vstv %s2059
        %v2061 = vmul.f32 %v2060, %v2058
        %v2062 = vadd.f32 %v2026, %v2061
        %s2063 = sld [smem:[#allocation2 + $0x16d]]
        %v2064 = vstv %s2063
        %v2065 = vmul.f32 %v2064, %v2058
        %v2066 = vadd.f32 %v2030, %v2065
        %s2067 = sld [smem:[#allocation2 + $0x16e]]
        %v2068 = vstv %s2067
        %v2069 = vmul.f32 %v2068, %v2058
        %v2070 = vadd.f32 %v2034, %v2069
        %s2071 = sld [smem:[#allocation2 + $0x16f]]
        %v2072 = vstv %s2071
        %v2073 = vmul.f32 %v2072, %v2058
        %v2074 = vadd.f32 %v2038, %v2073
        %2075 = vrot.lane.b32.xlu0 %v1128, 127
        %v2076 = vpop.permute.xlu0 %2075
        %v2078 = vsel %vm1004, %v2076, 0.0
        %s2079 = sld [smem:[#allocation2 + $0x170]]
        %v2080 = vstv %s2079
        %v2081 = vmul.f32 %v2080, %v2078
        %v2082 = vadd.f32 %v2042, %v2081
        %s2083 = sld [smem:[#allocation2 + $0x171]]
        %v2084 = vstv %s2083
        %v2085 = vmul.f32 %v2084, %v2078
        %v2086 = vadd.f32 %v2046, %v2085
        %s2087 = sld [smem:[#allocation2 + $0x172]]
        %v2088 = vstv %s2087
        %v2089 = vmul.f32 %v2088, %v2078
        %v2090 = vadd.f32 %v2050, %v2089
        %s2091 = sld [smem:[#allocation2 + $0x173]]
        %v2092 = vstv %s2091
        %v2093 = vmul.f32 %v2092, %v2078
        %v2094 = vadd.f32 %v2054, %v2093
        %2095 = vrot.lane.b32.xlu0 %v1201, 127
        %v2096 = vpop.permute.xlu0 %2095
        %v2098 = vsel %vm1004, %v2096, 0.0
        %s2099 = sld [smem:[#allocation2 + $0x174]]
        %v2100 = vstv %s2099
        %v2101 = vmul.f32 %v2100, %v2098
        %v2102 = vadd.f32 %v2062, %v2101
        %s2103 = sld [smem:[#allocation2 + $0x175]]
        %v2104 = vstv %s2103
        %v2105 = vmul.f32 %v2104, %v2098
        %v2106 = vadd.f32 %v2066, %v2105
        %s2107 = sld [smem:[#allocation2 + $0x176]]
        %v2108 = vstv %s2107
        %v2109 = vmul.f32 %v2108, %v2098
        %v2110 = vadd.f32 %v2070, %v2109
        %s2111 = sld [smem:[#allocation2 + $0x177]]
        %v2112 = vstv %s2111
        %v2113 = vmul.f32 %v2112, %v2098
        %v2114 = vadd.f32 %v2074, %v2113
        %2115 = vrot.lane.b32.xlu0 %v1274, 127
        %v2116 = vpop.permute.xlu0 %2115
        %v2118 = vsel %vm1004, %v2116, 0.0
        %s2119 = sld [smem:[#allocation2 + $0x178]]
        %v2120 = vstv %s2119
        %v2121 = vmul.f32 %v2120, %v2118
        %v2122 = vadd.f32 %v2082, %v2121
        %s2123 = sld [smem:[#allocation2 + $0x179]]
        %v2124 = vstv %s2123
        %v2125 = vmul.f32 %v2124, %v2118
        %v2126 = vadd.f32 %v2086, %v2125
        %s2127 = sld [smem:[#allocation2 + $0x17a]]
        %v2128 = vstv %s2127
        %v2129 = vmul.f32 %v2128, %v2118
        %v2130 = vadd.f32 %v2090, %v2129
        %s2131 = sld [smem:[#allocation2 + $0x17b]]
        %v2132 = vstv %s2131
        %v2133 = vmul.f32 %v2132, %v2118
        %v2134 = vadd.f32 %v2094, %v2133
        %s2135 = sld [smem:[#allocation2 + $0x17c]]
        %v2136 = vstv %s2135
        %v2137 = vmul.f32 %v2136, %v1038
        %v2138 = vadd.f32 %v2102, %v2137
        %s2139 = sld [smem:[#allocation2 + $0x17d]]
        %v2140 = vstv %s2139
        %v2141 = vmul.f32 %v2140, %v1038
        %v2142 = vadd.f32 %v2106, %v2141
        %s2143 = sld [smem:[#allocation2 + $0x17e]]
        %v2144 = vstv %s2143
        %v2145 = vmul.f32 %v2144, %v1038
        %v2146 = vadd.f32 %v2110, %v2145
        %s2147 = sld [smem:[#allocation2 + $0x17f]]
        %v2148 = vstv %s2147
        %v2149 = vmul.f32 %v2148, %v1038
        %v2150 = vadd.f32 %v2114, %v2149
        %s2151 = sld [smem:[#allocation2 + $0x180]]
        %v2152 = vstv %s2151
        %v2153 = vmul.f32 %v2152, %v1111
        %v2154 = vadd.f32 %v2122, %v2153
        %s2155 = sld [smem:[#allocation2 + $0x181]]
        %v2156 = vstv %s2155
        %v2157 = vmul.f32 %v2156, %v1111
        %v2158 = vadd.f32 %v2126, %v2157
        %s2159 = sld [smem:[#allocation2 + $0x182]]
        %v2160 = vstv %s2159
        %v2161 = vmul.f32 %v2160, %v1111
        %v2162 = vadd.f32 %v2130, %v2161
        %s2163 = sld [smem:[#allocation2 + $0x183]]
        %v2164 = vstv %s2163
        %v2165 = vmul.f32 %v2164, %v1111
        %v2166 = vadd.f32 %v2134, %v2165
        %s2167 = sld [smem:[#allocation2 + $0x184]]
        %v2168 = vstv %s2167
        %v2169 = vmul.f32 %v2168, %v1184
        %v2170 = vadd.f32 %v2138, %v2169
        %s2171 = sld [smem:[#allocation2 + $0x185]]
        %v2172 = vstv %s2171
        %v2173 = vmul.f32 %v2172, %v1184
        %v2174 = vadd.f32 %v2142, %v2173
        %s2175 = sld [smem:[#allocation2 + $0x186]]
        %v2176 = vstv %s2175
        %v2177 = vmul.f32 %v2176, %v1184
        %v2178 = vadd.f32 %v2146, %v2177
        %s2179 = sld [smem:[#allocation2 + $0x187]]
        %v2180 = vstv %s2179
        %v2181 = vmul.f32 %v2180, %v1184
        %v2182 = vadd.f32 %v2150, %v2181
        %s2183 = sld [smem:[#allocation2 + $0x188]]
        %v2184 = vstv %s2183
        %v2185 = vmul.f32 %v2184, %v1257
        %v2186 = vadd.f32 %v2154, %v2185
        %s2187 = sld [smem:[#allocation2 + $0x189]]
        %v2188 = vstv %s2187
        %v2189 = vmul.f32 %v2188, %v1257
        %v2190 = vadd.f32 %v2158, %v2189
        %s2191 = sld [smem:[#allocation2 + $0x18a]]
        %v2192 = vstv %s2191
        %v2193 = vmul.f32 %v2192, %v1257
        %v2194 = vadd.f32 %v2162, %v2193
        %s2195 = sld [smem:[#allocation2 + $0x18b]]
        %v2196 = vstv %s2195
        %v2197 = vmul.f32 %v2196, %v1257
        %v2198 = vadd.f32 %v2166, %v2197
        %v2199 = vrot.slane %v1055, 1
        %v2201 = vsel %vm1032, %v2199, 0.0
        %2203 = vrot.lane.b32.xlu0 %v2201, 1
        %v2204 = vpop.permute.xlu0 %2203
        %v2206 = vsel %vm991, 0.0, %v2204
        %s2207 = sld [smem:[#allocation2 + $0x18c]]
        %v2208 = vstv %s2207
        %v2209 = vmul.f32 %v2208, %v2206
        %v2210 = vadd.f32 %v2170, %v2209
        %s2211 = sld [smem:[#allocation2 + $0x18d]]
        %v2212 = vstv %s2211
        %v2213 = vmul.f32 %v2212, %v2206
        %v2214 = vadd.f32 %v2174, %v2213
        %s2215 = sld [smem:[#allocation2 + $0x18e]]
        %v2216 = vstv %s2215
        %v2217 = vmul.f32 %v2216, %v2206
        %v2218 = vadd.f32 %v2178, %v2217
        %s2219 = sld [smem:[#allocation2 + $0x18f]]
        %v2220 = vstv %s2219
        %v2221 = vmul.f32 %v2220, %v2206
        %v2222 = vadd.f32 %v2182, %v2221
        %v2223 = vrot.slane %v1128, 1
        %v2225 = vsel %vm1032, %v2223, 0.0
        %2227 = vrot.lane.b32.xlu0 %v2225, 1
        %v2228 = vpop.permute.xlu0 %2227
        %v2230 = vsel %vm991, 0.0, %v2228
        %s2231 = sld [smem:[#allocation2 + $0x190]]
        %v2232 = vstv %s2231
        %v2233 = vmul.f32 %v2232, %v2230
        %v2234 = vadd.f32 %v2186, %v2233
        %s2235 = sld [smem:[#allocation2 + $0x191]]
        %v2236 = vstv %s2235
        %v2237 = vmul.f32 %v2236, %v2230
        %v2238 = vadd.f32 %v2190, %v2237
        %s2239 = sld [smem:[#allocation2 + $0x192]]
        %v2240 = vstv %s2239
        %v2241 = vmul.f32 %v2240, %v2230
        %v2242 = vadd.f32 %v2194, %v2241
        %s2243 = sld [smem:[#allocation2 + $0x193]]
        %v2244 = vstv %s2243
        %v2245 = vmul.f32 %v2244, %v2230
        %v2246 = vadd.f32 %v2198, %v2245
        %v2247 = vrot.slane %v1201, 1
        %v2249 = vsel %vm1032, %v2247, 0.0
        %2251 = vrot.lane.b32.xlu0 %v2249, 1
        %v2252 = vpop.permute.xlu0 %2251
        %v2254 = vsel %vm991, 0.0, %v2252
        %s2255 = sld [smem:[#allocation2 + $0x194]]
        %v2256 = vstv %s2255
        %v2257 = vmul.f32 %v2256, %v2254
        %v2258 = vadd.f32 %v2210, %v2257
        %s2259 = sld [smem:[#allocation2 + $0x195]]
        %v2260 = vstv %s2259
        %v2261 = vmul.f32 %v2260, %v2254
        %v2262 = vadd.f32 %v2214, %v2261
        %s2263 = sld [smem:[#allocation2 + $0x196]]
        %v2264 = vstv %s2263
        %v2265 = vmul.f32 %v2264, %v2254
        %v2266 = vadd.f32 %v2218, %v2265
        %s2267 = sld [smem:[#allocation2 + $0x197]]
        %v2268 = vstv %s2267
        %v2269 = vmul.f32 %v2268, %v2254
        %v2270 = vadd.f32 %v2222, %v2269
        %v2271 = vrot.slane %v1274, 1
        %v2273 = vsel %vm1032, %v2271, 0.0
        %2275 = vrot.lane.b32.xlu0 %v2273, 1
        %v2276 = vpop.permute.xlu0 %2275
        %v2278 = vsel %vm991, 0.0, %v2276
        %s2279 = sld [smem:[#allocation2 + $0x198]]
        %v2280 = vstv %s2279
        %v2281 = vmul.f32 %v2280, %v2278
        %v2282 = vadd.f32 %v2234, %v2281
        %s2283 = sld [smem:[#allocation2 + $0x199]]
        %v2284 = vstv %s2283
        %v2285 = vmul.f32 %v2284, %v2278
        %v2286 = vadd.f32 %v2238, %v2285
        %s2287 = sld [smem:[#allocation2 + $0x19a]]
        %v2288 = vstv %s2287
        %v2289 = vmul.f32 %v2288, %v2278
        %v2290 = vadd.f32 %v2242, %v2289
        %s2291 = sld [smem:[#allocation2 + $0x19b]]
        %v2292 = vstv %s2291
        %v2293 = vmul.f32 %v2292, %v2278
        %v2294 = vadd.f32 %v2246, %v2293
        %s2295 = sld [smem:[#allocation2 + $0x19c]]
        %v2296 = vstv %s2295
        %v2297 = vmul.f32 %v2296, %v1033
        %v2298 = vadd.f32 %v2258, %v2297
        %s2299 = sld [smem:[#allocation2 + $0x19d]]
        %v2300 = vstv %s2299
        %v2301 = vmul.f32 %v2300, %v1033
        %v2302 = vadd.f32 %v2262, %v2301
        %s2303 = sld [smem:[#allocation2 + $0x19e]]
        %v2304 = vstv %s2303
        %v2305 = vmul.f32 %v2304, %v1033
        %v2306 = vadd.f32 %v2266, %v2305
        %s2307 = sld [smem:[#allocation2 + $0x19f]]
        %v2308 = vstv %s2307
        %v2309 = vmul.f32 %v2308, %v1033
        %v2310 = vadd.f32 %v2270, %v2309
        %s2311 = sld [smem:[#allocation2 + $0x1a0]]
        %v2312 = vstv %s2311
        %v2313 = vmul.f32 %v2312, %v1106
        %v2314 = vadd.f32 %v2282, %v2313
        %s2315 = sld [smem:[#allocation2 + $0x1a1]]
        %v2316 = vstv %s2315
        %v2317 = vmul.f32 %v2316, %v1106
        %v2318 = vadd.f32 %v2286, %v2317
        %s2319 = sld [smem:[#allocation2 + $0x1a2]]
        %v2320 = vstv %s2319
        %v2321 = vmul.f32 %v2320, %v1106
        %v2322 = vadd.f32 %v2290, %v2321
        %s2323 = sld [smem:[#allocation2 + $0x1a3]]
        %v2324 = vstv %s2323
        %v2325 = vmul.f32 %v2324, %v1106
        %v2326 = vadd.f32 %v2294, %v2325
        %s2327 = sld [smem:[#allocation2 + $0x1a4]]
        %v2328 = vstv %s2327
        %v2329 = vmul.f32 %v2328, %v1179
        %v2330 = vadd.f32 %v2298, %v2329
        %s2331 = sld [smem:[#allocation2 + $0x1a5]]
        %v2332 = vstv %s2331
        %v2333 = vmul.f32 %v2332, %v1179
        %v2334 = vadd.f32 %v2302, %v2333
        %s2335 = sld [smem:[#allocation2 + $0x1a6]]
        %v2336 = vstv %s2335
        %v2337 = vmul.f32 %v2336, %v1179
        %v2338 = vadd.f32 %v2306, %v2337
        %s2339 = sld [smem:[#allocation2 + $0x1a7]]
        %v2340 = vstv %s2339
        %v2341 = vmul.f32 %v2340, %v1179
        %v2342 = vadd.f32 %v2310, %v2341
        %s2343 = sld [smem:[#allocation2 + $0x1a8]]
        %v2344 = vstv %s2343
        %v2345 = vmul.f32 %v2344, %v1252
        %v2346 = vadd.f32 %v2314, %v2345
        %s2347 = sld [smem:[#allocation2 + $0x1a9]]
        %v2348 = vstv %s2347
        %v2349 = vmul.f32 %v2348, %v1252
        %v2350 = vadd.f32 %v2318, %v2349
        %s2351 = sld [smem:[#allocation2 + $0x1aa]]
        %v2352 = vstv %s2351
        %v2353 = vmul.f32 %v2352, %v1252
        %v2354 = vadd.f32 %v2322, %v2353
        %s2355 = sld [smem:[#allocation2 + $0x1ab]]
        %v2356 = vstv %s2355
        %v2357 = vmul.f32 %v2356, %v1252
        %v2358 = vadd.f32 %v2326, %v2357
        %s2359 = sld [smem:[#allocation2 + $0x1ac]]
        %v2360 = vstv %s2359
        %v2361 = vmul.f32 %v2360, %v2201
        %v2362 = vadd.f32 %v2330, %v2361
        %s2363 = sld [smem:[#allocation2 + $0x1ad]]
        %v2364 = vstv %s2363
        %v2365 = vmul.f32 %v2364, %v2201
        %v2366 = vadd.f32 %v2334, %v2365
        %s2367 = sld [smem:[#allocation2 + $0x1ae]]
        %v2368 = vstv %s2367
        %v2369 = vmul.f32 %v2368, %v2201
        %v2370 = vadd.f32 %v2338, %v2369
        %s2371 = sld [smem:[#allocation2 + $0x1af]]
        %v2372 = vstv %s2371
        %v2373 = vmul.f32 %v2372, %v2201
        %v2374 = vadd.f32 %v2342, %v2373
        %s2375 = sld [smem:[#allocation2 + $0x1b0]]
        %v2376 = vstv %s2375
        %v2377 = vmul.f32 %v2376, %v2225
        %v2378 = vadd.f32 %v2346, %v2377
        %s2379 = sld [smem:[#allocation2 + $0x1b1]]
        %v2380 = vstv %s2379
        %v2381 = vmul.f32 %v2380, %v2225
        %v2382 = vadd.f32 %v2350, %v2381
        %s2383 = sld [smem:[#allocation2 + $0x1b2]]
        %v2384 = vstv %s2383
        %v2385 = vmul.f32 %v2384, %v2225
        %v2386 = vadd.f32 %v2354, %v2385
        %s2387 = sld [smem:[#allocation2 + $0x1b3]]
        %v2388 = vstv %s2387
        %v2389 = vmul.f32 %v2388, %v2225
        %v2390 = vadd.f32 %v2358, %v2389
        %s2391 = sld [smem:[#allocation2 + $0x1b4]]
        %v2392 = vstv %s2391
        %v2393 = vmul.f32 %v2392, %v2249
        %v2394 = vadd.f32 %v2362, %v2393
        %s2395 = sld [smem:[#allocation2 + $0x1b5]]
        %v2396 = vstv %s2395
        %v2397 = vmul.f32 %v2396, %v2249
        %v2398 = vadd.f32 %v2366, %v2397
        %s2399 = sld [smem:[#allocation2 + $0x1b6]]
        %v2400 = vstv %s2399
        %v2401 = vmul.f32 %v2400, %v2249
        %v2402 = vadd.f32 %v2370, %v2401
        %s2403 = sld [smem:[#allocation2 + $0x1b7]]
        %v2404 = vstv %s2403
        %v2405 = vmul.f32 %v2404, %v2249
        %v2406 = vadd.f32 %v2374, %v2405
        %s2407 = sld [smem:[#allocation2 + $0x1b8]]
        %v2408 = vstv %s2407
        %v2409 = vmul.f32 %v2408, %v2273
        %v2410 = vadd.f32 %v2378, %v2409
        %s2411 = sld [smem:[#allocation2 + $0x1b9]]
        %v2412 = vstv %s2411
        %v2413 = vmul.f32 %v2412, %v2273
        %v2414 = vadd.f32 %v2382, %v2413
        %s2415 = sld [smem:[#allocation2 + $0x1ba]]
        %v2416 = vstv %s2415
        %v2417 = vmul.f32 %v2416, %v2273
        %v2418 = vadd.f32 %v2386, %v2417
        %s2419 = sld [smem:[#allocation2 + $0x1bb]]
        %v2420 = vstv %s2419
        %v2421 = vmul.f32 %v2420, %v2273
        %v2422 = vadd.f32 %v2390, %v2421
        %s2423 = sld [smem:[#allocation2 + $0x1bc]]
        %v2424 = vstv %s2423
        %v2425 = vmul.f32 %v2424, %v1050
        %v2426 = vadd.f32 %v2394, %v2425
        %s2427 = sld [smem:[#allocation2 + $0x1bd]]
        %v2428 = vstv %s2427
        %v2429 = vmul.f32 %v2428, %v1050
        %v2430 = vadd.f32 %v2398, %v2429
        %s2431 = sld [smem:[#allocation2 + $0x1be]]
        %v2432 = vstv %s2431
        %v2433 = vmul.f32 %v2432, %v1050
        %v2434 = vadd.f32 %v2402, %v2433
        %s2435 = sld [smem:[#allocation2 + $0x1bf]]
        %v2436 = vstv %s2435
        %v2437 = vmul.f32 %v2436, %v1050
        %v2438 = vadd.f32 %v2406, %v2437
        %s2439 = sld [smem:[#allocation2 + $0x1c0]]
        %v2440 = vstv %s2439
        %v2441 = vmul.f32 %v2440, %v1123
        %v2442 = vadd.f32 %v2410, %v2441
        %s2443 = sld [smem:[#allocation2 + $0x1c1]]
        %v2444 = vstv %s2443
        %v2445 = vmul.f32 %v2444, %v1123
        %v2446 = vadd.f32 %v2414, %v2445
        %s2447 = sld [smem:[#allocation2 + $0x1c2]]
        %v2448 = vstv %s2447
        %v2449 = vmul.f32 %v2448, %v1123
        %v2450 = vadd.f32 %v2418, %v2449
        %s2451 = sld [smem:[#allocation2 + $0x1c3]]
        %v2452 = vstv %s2451
        %v2453 = vmul.f32 %v2452, %v1123
        %v2454 = vadd.f32 %v2422, %v2453
        %s2455 = sld [smem:[#allocation2 + $0x1c4]]
        %v2456 = vstv %s2455
        %v2457 = vmul.f32 %v2456, %v1196
        %v2458 = vadd.f32 %v2426, %v2457
        %s2459 = sld [smem:[#allocation2 + $0x1c5]]
        %v2460 = vstv %s2459
        %v2461 = vmul.f32 %v2460, %v1196
        %v2462 = vadd.f32 %v2430, %v2461
        %s2463 = sld [smem:[#allocation2 + $0x1c6]]
        %v2464 = vstv %s2463
        %v2465 = vmul.f32 %v2464, %v1196
        %v2466 = vadd.f32 %v2434, %v2465
        %s2467 = sld [smem:[#allocation2 + $0x1c7]]
        %v2468 = vstv %s2467
        %v2469 = vmul.f32 %v2468, %v1196
        %v2470 = vadd.f32 %v2438, %v2469
        %s2471 = sld [smem:[#allocation2 + $0x1c8]]
        %v2472 = vstv %s2471
        %v2473 = vmul.f32 %v2472, %v1269
        %v2474 = vadd.f32 %v2442, %v2473
        %s2475 = sld [smem:[#allocation2 + $0x1c9]]
        %v2476 = vstv %s2475
        %v2477 = vmul.f32 %v2476, %v1269
        %v2478 = vadd.f32 %v2446, %v2477
        %s2479 = sld [smem:[#allocation2 + $0x1ca]]
        %v2480 = vstv %s2479
        %v2481 = vmul.f32 %v2480, %v1269
        %v2482 = vadd.f32 %v2450, %v2481
        %s2483 = sld [smem:[#allocation2 + $0x1cb]]
        %v2484 = vstv %s2483
        %v2485 = vmul.f32 %v2484, %v1269
        %v2486 = vadd.f32 %v2454, %v2485
        %2487 = vrot.lane.b32.xlu0 %v2201, 127
        %v2488 = vpop.permute.xlu0 %2487
        %v2490 = vsel %vm1004, %v2488, 0.0
        %s2491 = sld [smem:[#allocation2 + $0x1cc]]
        %v2492 = vstv %s2491
        %v2493 = vmul.f32 %v2492, %v2490
        %v2494 = vadd.f32 %v2458, %v2493
        %s2495 = sld [smem:[#allocation2 + $0x1cd]]
        %v2496 = vstv %s2495
        %v2497 = vmul.f32 %v2496, %v2490
        %v2498 = vadd.f32 %v2462, %v2497
        %s2499 = sld [smem:[#allocation2 + $0x1ce]]
        %v2500 = vstv %s2499
        %v2501 = vmul.f32 %v2500, %v2490
        %v2502 = vadd.f32 %v2466, %v2501
        %s2503 = sld [smem:[#allocation2 + $0x1cf]]
        %v2504 = vstv %s2503
        %v2505 = vmul.f32 %v2504, %v2490
        %v2506 = vadd.f32 %v2470, %v2505
        %2507 = vrot.lane.b32.xlu0 %v2225, 127
        %v2508 = vpop.permute.xlu0 %2507
        %v2510 = vsel %vm1004, %v2508, 0.0
        %s2511 = sld [smem:[#allocation2 + $0x1d0]]
        %v2512 = vstv %s2511
        %v2513 = vmul.f32 %v2512, %v2510
        %v2514 = vadd.f32 %v2474, %v2513
        %s2515 = sld [smem:[#allocation2 + $0x1d1]]
        %v2516 = vstv %s2515
        %v2517 = vmul.f32 %v2516, %v2510
        %v2518 = vadd.f32 %v2478, %v2517
        %s2519 = sld [smem:[#allocation2 + $0x1d2]]
        %v2520 = vstv %s2519
        %v2521 = vmul.f32 %v2520, %v2510
        %v2522 = vadd.f32 %v2482, %v2521
        %s2523 = sld [smem:[#allocation2 + $0x1d3]]
        %v2524 = vstv %s2523
        %v2525 = vmul.f32 %v2524, %v2510
        %v2526 = vadd.f32 %v2486, %v2525
        %2527 = vrot.lane.b32.xlu0 %v2249, 127
        %v2528 = vpop.permute.xlu0 %2527
        %v2530 = vsel %vm1004, %v2528, 0.0
        %s2531 = sld [smem:[#allocation2 + $0x1d4]]
        %v2532 = vstv %s2531
        %v2533 = vmul.f32 %v2532, %v2530
        %v2534 = vadd.f32 %v2494, %v2533
        %s2535 = sld [smem:[#allocation2 + $0x1d5]]
        %v2536 = vstv %s2535
        %v2537 = vmul.f32 %v2536, %v2530
        %v2538 = vadd.f32 %v2498, %v2537
        %s2539 = sld [smem:[#allocation2 + $0x1d6]]
        %v2540 = vstv %s2539
        %v2541 = vmul.f32 %v2540, %v2530
        %v2542 = vadd.f32 %v2502, %v2541
        %s2543 = sld [smem:[#allocation2 + $0x1d7]]
        %v2544 = vstv %s2543
        %v2545 = vmul.f32 %v2544, %v2530
        %v2546 = vadd.f32 %v2506, %v2545
        %2547 = vrot.lane.b32.xlu0 %v2273, 127
        %v2548 = vpop.permute.xlu0 %2547
        %v2550 = vsel %vm1004, %v2548, 0.0
        %s2551 = sld [smem:[#allocation2 + $0x1d8]]
        %v2552 = vstv %s2551
        %v2553 = vmul.f32 %v2552, %v2550
        %v2554 = vadd.f32 %v2514, %v2553
        %s2555 = sld [smem:[#allocation2 + $0x1d9]]
        %v2556 = vstv %s2555
        %v2557 = vmul.f32 %v2556, %v2550
        %v2558 = vadd.f32 %v2518, %v2557
        %s2559 = sld [smem:[#allocation2 + $0x1da]]
        %v2560 = vstv %s2559
        %v2561 = vmul.f32 %v2560, %v2550
        %v2562 = vadd.f32 %v2522, %v2561
        %s2563 = sld [smem:[#allocation2 + $0x1db]]
        %v2564 = vstv %s2563
        %v2565 = vmul.f32 %v2564, %v2550
        %v2566 = vadd.f32 %v2526, %v2565
        %v2567 = vadd.f32 %v2534, %v2554
        %v2568 = vadd.f32 %v2538, %v2558
        %v2569 = vadd.f32 %v2542, %v2562
        %v2570 = vadd.f32 %v2546, %v2566
        %s2571 = sld [smem:[#allocation2 + $0x204]]
        %v2572 = vstv %s2571
        %s2573 = sld [smem:[#allocation2 + $0x1e0]]
        %v2575 = vrot.slane %v2567, 7
        %v2577 = vsel %vm985, 0.0, %v2575
        %2579 = vrot.lane.b32.xlu0 %v2577, 1
        %v2580 = vpop.permute.xlu0 %2579
        %v2582 = vsel %vm991, 0.0, %v2580
        %v2583 = vstv %s2573
        %v2584 = vmul.f32 %v2583, %v2582
        %v2585 = vadd.f32 %v2572, %v2584
        %s2586 = sld [smem:[#allocation2 + $0x1e4]]
        %v2587 = vstv %s2586
        %v2588 = vmul.f32 %v2587, %v2577
        %v2589 = vadd.f32 %v2588, 0.0
        %s2590 = sld [smem:[#allocation2 + $0x1e8]]
        %2591 = vrot.lane.b32.xlu0 %v2577, 127
        %v2592 = vpop.permute.xlu0 %2591
        %v2594 = vsel %vm1004, %v2592, 0.0
        %v2595 = vstv %s2590
        %v2596 = vmul.f32 %v2595, %v2594
        %v2597 = vadd.f32 %v2585, %v2596
        %s2598 = sld [smem:[#allocation2 + $0x1ec]]
        %2599 = vrot.lane.b32.xlu0 %v2567, 1
        %v2600 = vpop.permute.xlu0 %2599
        %v2602 = vsel %vm991, 0.0, %v2600
        %v2603 = vstv %s2598
        %v2604 = vmul.f32 %v2603, %v2602
        %v2605 = vadd.f32 %v2589, %v2604
        %s2606 = sld [smem:[#allocation2 + $0x1f0]]
        %v2607 = vstv %s2606
        %v2608 = vmul.f32 %v2607, %v2567
        %v2609 = vadd.f32 %v2597, %v2608
        %s2610 = sld [smem:[#allocation2 + $0x1f4]]
        %2611 = vrot.lane.b32.xlu0 %v2567, 127
        %v2612 = vpop.permute.xlu0 %2611
        %v2614 = vsel %vm1004, %v2612, 0.0
        %v2615 = vstv %s2610
        %v2616 = vmul.f32 %v2615, %v2614
        %v2617 = vadd.f32 %v2605, %v2616
        %s2618 = sld [smem:[#allocation2 + $0x1f8]]
        %v2619 = vrot.slane %v2567, 1
        %v2621 = vsel %vm1032, %v2619, 0.0
        %2623 = vrot.lane.b32.xlu0 %v2621, 1
        %v2624 = vpop.permute.xlu0 %2623
        %v2626 = vsel %vm991, 0.0, %v2624
        %v2627 = vstv %s2618
        %v2628 = vmul.f32 %v2627, %v2626
        %v2629 = vadd.f32 %v2609, %v2628
        %s2630 = sld [smem:[#allocation2 + $0x1fc]]
        %v2631 = vstv %s2630
        %v2632 = vmul.f32 %v2631, %v2621
        %v2633 = vadd.f32 %v2617, %v2632
        %s2634 = sld [smem:[#allocation2 + $0x200]]
        %2635 = vrot.lane.b32.xlu0 %v2621, 127
        %v2636 = vpop.permute.xlu0 %2635
        %v2638 = vsel %vm1004, %v2636, 0.0
        %v2639 = vstv %s2634
        %v2640 = vmul.f32 %v2639, %v2638
        %v2641 = vadd.f32 %v2629, %v2640
        %v2642 = vadd.f32 %v2641, %v2633
        %s2643 = sld [smem:[#allocation2 + $0x205]]
        %v2644 = vstv %s2643
        %s2645 = sld [smem:[#allocation2 + $0x1e1]]
        %v2647 = vrot.slane %v2568, 7
        %v2649 = vsel %vm985, 0.0, %v2647
        %2651 = vrot.lane.b32.xlu0 %v2649, 1
        %v2652 = vpop.permute.xlu0 %2651
        %v2654 = vsel %vm991, 0.0, %v2652
        %v2655 = vstv %s2645
        %v2656 = vmul.f32 %v2655, %v2654
        %v2657 = vadd.f32 %v2644, %v2656
        %s2658 = sld [smem:[#allocation2 + $0x1e5]]
        %v2659 = vstv %s2658
        %v2660 = vmul.f32 %v2659, %v2649
        %v2661 = vadd.f32 %v2660, 0.0
        %s2662 = sld [smem:[#allocation2 + $0x1e9]]
        %2663 = vrot.lane.b32.xlu0 %v2649, 127
        %v2664 = vpop.permute.xlu0 %2663
        %v2666 = vsel %vm1004, %v2664, 0.0
        %v2667 = vstv %s2662
        %v2668 = vmul.f32 %v2667, %v2666
        %v2669 = vadd.f32 %v2657, %v2668
        %s2670 = sld [smem:[#allocation2 + $0x1ed]]
        %2671 = vrot.lane.b32.xlu0 %v2568, 1
        %v2672 = vpop.permute.xlu0 %2671
        %v2674 = vsel %vm991, 0.0, %v2672
        %v2675 = vstv %s2670
        %v2676 = vmul.f32 %v2675, %v2674
        %v2677 = vadd.f32 %v2661, %v2676
        %s2678 = sld [smem:[#allocation2 + $0x1f1]]
        %v2679 = vstv %s2678
        %v2680 = vmul.f32 %v2679, %v2568
        %v2681 = vadd.f32 %v2669, %v2680
        %s2682 = sld [smem:[#allocation2 + $0x1f5]]
        %2683 = vrot.lane.b32.xlu0 %v2568, 127
        %v2684 = vpop.permute.xlu0 %2683
        %v2686 = vsel %vm1004, %v2684, 0.0
        %v2687 = vstv %s2682
        %v2688 = vmul.f32 %v2687, %v2686
        %v2689 = vadd.f32 %v2677, %v2688
        %s2690 = sld [smem:[#allocation2 + $0x1f9]]
        %v2691 = vrot.slane %v2568, 1
        %v2693 = vsel %vm1032, %v2691, 0.0
        %2695 = vrot.lane.b32.xlu0 %v2693, 1
        %v2696 = vpop.permute.xlu0 %2695
        %v2698 = vsel %vm991, 0.0, %v2696
        %v2699 = vstv %s2690
        %v2700 = vmul.f32 %v2699, %v2698
        %v2701 = vadd.f32 %v2681, %v2700
        %s2702 = sld [smem:[#allocation2 + $0x1fd]]
        %v2703 = vstv %s2702
        %v2704 = vmul.f32 %v2703, %v2693
        %v2705 = vadd.f32 %v2689, %v2704
        %s2706 = sld [smem:[#allocation2 + $0x201]]
        %2707 = vrot.lane.b32.xlu0 %v2693, 127
        %v2708 = vpop.permute.xlu0 %2707
        %v2710 = vsel %vm1004, %v2708, 0.0
        %v2711 = vstv %s2706
        %v2712 = vmul.f32 %v2711, %v2710
        %v2713 = vadd.f32 %v2701, %v2712
        %v2714 = vadd.f32 %v2713, %v2705
        %s2715 = sld [smem:[#allocation2 + $0x206]]
        %v2716 = vstv %s2715
        %s2717 = sld [smem:[#allocation2 + $0x1e2]]
        %v2719 = vrot.slane %v2569, 7
        %v2721 = vsel %vm985, 0.0, %v2719
        %2723 = vrot.lane.b32.xlu0 %v2721, 1
        %v2724 = vpop.permute.xlu0 %2723
        %v2726 = vsel %vm991, 0.0, %v2724
        %v2727 = vstv %s2717
        %v2728 = vmul.f32 %v2727, %v2726
        %v2729 = vadd.f32 %v2716, %v2728
        %s2730 = sld [smem:[#allocation2 + $0x1e6]]
        %v2731 = vstv %s2730
        %v2732 = vmul.f32 %v2731, %v2721
        %v2733 = vadd.f32 %v2732, 0.0
        %s2734 = sld [smem:[#allocation2 + $0x1ea]]
        %2735 = vrot.lane.b32.xlu0 %v2721, 127
        %v2736 = vpop.permute.xlu0 %2735
        %v2738 = vsel %vm1004, %v2736, 0.0
        %v2739 = vstv %s2734
        %v2740 = vmul.f32 %v2739, %v2738
        %v2741 = vadd.f32 %v2729, %v2740
        %s2742 = sld [smem:[#allocation2 + $0x1ee]]
        %2743 = vrot.lane.b32.xlu0 %v2569, 1
        %v2744 = vpop.permute.xlu0 %2743
        %v2746 = vsel %vm991, 0.0, %v2744
        %v2747 = vstv %s2742
        %v2748 = vmul.f32 %v2747, %v2746
        %v2749 = vadd.f32 %v2733, %v2748
        %s2750 = sld [smem:[#allocation2 + $0x1f2]]
        %v2751 = vstv %s2750
        %v2752 = vmul.f32 %v2751, %v2569
        %v2753 = vadd.f32 %v2741, %v2752
        %s2754 = sld [smem:[#allocation2 + $0x1f6]]
        %2755 = vrot.lane.b32.xlu0 %v2569, 127
        %v2756 = vpop.permute.xlu0 %2755
        %v2758 = vsel %vm1004, %v2756, 0.0
        %v2759 = vstv %s2754
        %v2760 = vmul.f32 %v2759, %v2758
        %v2761 = vadd.f32 %v2749, %v2760
        %s2762 = sld [smem:[#allocation2 + $0x1fa]]
        %v2763 = vrot.slane %v2569, 1
        %v2765 = vsel %vm1032, %v2763, 0.0
        %2767 = vrot.lane.b32.xlu0 %v2765, 1
        %v2768 = vpop.permute.xlu0 %2767
        %v2770 = vsel %vm991, 0.0, %v2768
        %v2771 = vstv %s2762
        %v2772 = vmul.f32 %v2771, %v2770
        %v2773 = vadd.f32 %v2753, %v2772
        %s2774 = sld [smem:[#allocation2 + $0x1fe]]
        %v2775 = vstv %s2774
        %v2776 = vmul.f32 %v2775, %v2765
        %v2777 = vadd.f32 %v2761, %v2776
        %s2778 = sld [smem:[#allocation2 + $0x202]]
        %2779 = vrot.lane.b32.xlu0 %v2765, 127
        %v2780 = vpop.permute.xlu0 %2779
        %v2782 = vsel %vm1004, %v2780, 0.0
        %v2783 = vstv %s2778
        %v2784 = vmul.f32 %v2783, %v2782
        %v2785 = vadd.f32 %v2773, %v2784
        %v2786 = vadd.f32 %v2785, %v2777
        %s2787 = sld [smem:[#allocation2 + $0x207]]
        %v2788 = vstv %s2787
        %s2789 = sld [smem:[#allocation2 + $0x1e3]]
        %v2791 = vrot.slane %v2570, 7
        %v2793 = vsel %vm985, 0.0, %v2791
        %2795 = vrot.lane.b32.xlu0 %v2793, 1
        %v2796 = vpop.permute.xlu0 %2795
        %v2798 = vsel %vm991, 0.0, %v2796
        %v2799 = vstv %s2789
        %v2800 = vmul.f32 %v2799, %v2798
        %v2801 = vadd.f32 %v2788, %v2800
        %s2802 = sld [smem:[#allocation2 + $0x1e7]]
        %v2803 = vstv %s2802
        %v2804 = vmul.f32 %v2803, %v2793
        %v2805 = vadd.f32 %v2804, 0.0
        %s2806 = sld [smem:[#allocation2 + $0x1eb]]
        %2807 = vrot.lane.b32.xlu0 %v2793, 127
        %v2808 = vpop.permute.xlu0 %2807
        %v2810 = vsel %vm1004, %v2808, 0.0
        %v2811 = vstv %s2806
        %v2812 = vmul.f32 %v2811, %v2810
        %v2813 = vadd.f32 %v2801, %v2812
        %s2814 = sld [smem:[#allocation2 + $0x1ef]]
        %2815 = vrot.lane.b32.xlu0 %v2570, 1
        %v2816 = vpop.permute.xlu0 %2815
        %v2818 = vsel %vm991, 0.0, %v2816
        %v2819 = vstv %s2814
        %v2820 = vmul.f32 %v2819, %v2818
        %v2821 = vadd.f32 %v2805, %v2820
        %s2822 = sld [smem:[#allocation2 + $0x1f3]]
        %v2823 = vstv %s2822
        %v2824 = vmul.f32 %v2823, %v2570
        %v2825 = vadd.f32 %v2813, %v2824
        %s2826 = sld [smem:[#allocation2 + $0x1f7]]
        %2827 = vrot.lane.b32.xlu0 %v2570, 127
        %v2828 = vpop.permute.xlu0 %2827
        %v2830 = vsel %vm1004, %v2828, 0.0
        %v2831 = vstv %s2826
        %v2832 = vmul.f32 %v2831, %v2830
        %v2833 = vadd.f32 %v2821, %v2832
        %s2834 = sld [smem:[#allocation2 + $0x1fb]]
        %v2835 = vrot.slane %v2570, 1
        %v2837 = vsel %vm1032, %v2835, 0.0
        %2839 = vrot.lane.b32.xlu0 %v2837, 1
        %v2840 = vpop.permute.xlu0 %2839
        %v2842 = vsel %vm991, 0.0, %v2840
        %v2843 = vstv %s2834
        %v2844 = vmul.f32 %v2843, %v2842
        %v2845 = vadd.f32 %v2825, %v2844
        %s2846 = sld [smem:[#allocation2 + $0x1ff]]
        %v2847 = vstv %s2846
        %v2848 = vmul.f32 %v2847, %v2837
        %v2849 = vadd.f32 %v2833, %v2848
        %s2850 = sld [smem:[#allocation2 + $0x203]]
        %2851 = vrot.lane.b32.xlu0 %v2837, 127
        %v2852 = vpop.permute.xlu0 %2851
        %v2854 = vsel %vm1004, %v2852, 0.0
        %v2855 = vstv %s2850
        %v2856 = vmul.f32 %v2855, %v2854
        %v2857 = vadd.f32 %v2845, %v2856
        %v2858 = vadd.f32 %v2857, %v2849
        %s2859 = sld [smem:[#allocation2 + $0x218]]
        %v2860 = vstv %s2859
        %s2861 = sld [smem:[#allocation2 + $0x219]]
        %v2862 = vstv %s2861
        %s2863 = sld [smem:[#allocation2 + $0x21a]]
        %v2864 = vstv %s2863
        %s2865 = sld [smem:[#allocation2 + $0x21b]]
        %v2866 = vstv %s2865
        %s2867 = sld [smem:[#allocation2 + $0x208]]
        %v2868 = vstv %s2867
        %v2869 = vmul.f32 %v2868, %v508
        %v2870 = vadd.f32 %v2860, %v2869
        %s2871 = sld [smem:[#allocation2 + $0x209]]
        %v2872 = vstv %s2871
        %v2873 = vmul.f32 %v2872, %v508
        %v2874 = vadd.f32 %v2862, %v2873
        %s2875 = sld [smem:[#allocation2 + $0x20a]]
        %v2876 = vstv %s2875
        %v2877 = vmul.f32 %v2876, %v508
        %v2878 = vadd.f32 %v2864, %v2877
        %s2879 = sld [smem:[#allocation2 + $0x20b]]
        %v2880 = vstv %s2879
        %v2881 = vmul.f32 %v2880, %v508
        %v2882 = vadd.f32 %v2866, %v2881
        %s2883 = sld [smem:[#allocation2 + $0x20c]]
        %v2884 = vstv %s2883
        %v2885 = vmul.f32 %v2884, %v526
        %v2886 = vadd.f32 %v2885, 0.0
        %s2887 = sld [smem:[#allocation2 + $0x20d]]
        %v2888 = vstv %s2887
        %v2889 = vmul.f32 %v2888, %v526
        %v2890 = vadd.f32 %v2889, 0.0
        %s2891 = sld [smem:[#allocation2 + $0x20e]]
        %v2892 = vstv %s2891
        %v2893 = vmul.f32 %v2892, %v526
        %v2894 = vadd.f32 %v2893, 0.0
        %s2895 = sld [smem:[#allocation2 + $0x20f]]
        %v2896 = vstv %s2895
        %v2897 = vmul.f32 %v2896, %v526
        %v2898 = vadd.f32 %v2897, 0.0
        %s2899 = sld [smem:[#allocation2 + $0x210]]
        %v2900 = vstv %s2899
        %v2901 = vmul.f32 %v2900, %v544
        %v2902 = vadd.f32 %v2870, %v2901
        %s2903 = sld [smem:[#allocation2 + $0x211]]
        %v2904 = vstv %s2903
        %v2905 = vmul.f32 %v2904, %v544
        %v2906 = vadd.f32 %v2874, %v2905
        %s2907 = sld [smem:[#allocation2 + $0x212]]
        %v2908 = vstv %s2907
        %v2909 = vmul.f32 %v2908, %v544
        %v2910 = vadd.f32 %v2878, %v2909
        %s2911 = sld [smem:[#allocation2 + $0x213]]
        %v2912 = vstv %s2911
        %v2913 = vmul.f32 %v2912, %v544
        %v2914 = vadd.f32 %v2882, %v2913
        %s2915 = sld [smem:[#allocation2 + $0x214]]
        %v2916 = vstv %s2915
        %v2917 = vmul.f32 %v2916, %v562
        %v2918 = vadd.f32 %v2886, %v2917
        %s2919 = sld [smem:[#allocation2 + $0x215]]
        %v2920 = vstv %s2919
        %v2921 = vmul.f32 %v2920, %v562
        %v2922 = vadd.f32 %v2890, %v2921
        %s2923 = sld [smem:[#allocation2 + $0x216]]
        %v2924 = vstv %s2923
        %v2925 = vmul.f32 %v2924, %v562
        %v2926 = vadd.f32 %v2894, %v2925
        %s2927 = sld [smem:[#allocation2 + $0x217]]
        %v2928 = vstv %s2927
        %v2929 = vmul.f32 %v2928, %v562
        %v2930 = vadd.f32 %v2898, %v2929
        %v2931 = vadd.f32 %v2902, %v2918
        %v2932 = vadd.f32 %v2906, %v2922
        %v2933 = vadd.f32 %v2910, %v2926
        %v2934 = vadd.f32 %v2914, %v2930
        %s2935 = sld [smem:[#allocation2 + $0x240]]
        %v2936 = vstv %s2935
        %s2937 = sld [smem:[#allocation2 + $0x21c]]
        %v2939 = vrot.slane %v2931, 7
        %v2941 = vsel %vm985, 0.0, %v2939
        %2943 = vrot.lane.b32.xlu0 %v2941, 1
        %v2944 = vpop.permute.xlu0 %2943
        %v2946 = vsel %vm991, 0.0, %v2944
        %v2947 = vstv %s2937
        %v2948 = vmul.f32 %v2947, %v2946
        %v2949 = vadd.f32 %v2936, %v2948
        %s2950 = sld [smem:[#allocation2 + $0x220]]
        %v2951 = vstv %s2950
        %v2952 = vmul.f32 %v2951, %v2941
        %v2953 = vadd.f32 %v2952, 0.0
        %s2954 = sld [smem:[#allocation2 + $0x224]]
        %2955 = vrot.lane.b32.xlu0 %v2941, 127
        %v2956 = vpop.permute.xlu0 %2955
        %v2958 = vsel %vm1004, %v2956, 0.0
        %v2959 = vstv %s2954
        %v2960 = vmul.f32 %v2959, %v2958
        %v2961 = vadd.f32 %v2949, %v2960
        %s2962 = sld [smem:[#allocation2 + $0x228]]
        %2963 = vrot.lane.b32.xlu0 %v2931, 1
        %v2964 = vpop.permute.xlu0 %2963
        %v2966 = vsel %vm991, 0.0, %v2964
        %v2967 = vstv %s2962
        %v2968 = vmul.f32 %v2967, %v2966
        %v2969 = vadd.f32 %v2953, %v2968
        %s2970 = sld [smem:[#allocation2 + $0x22c]]
        %v2971 = vstv %s2970
        %v2972 = vmul.f32 %v2971, %v2931
        %v2973 = vadd.f32 %v2961, %v2972
        %s2974 = sld [smem:[#allocation2 + $0x230]]
        %2975 = vrot.lane.b32.xlu0 %v2931, 127
        %v2976 = vpop.permute.xlu0 %2975
        %v2978 = vsel %vm1004, %v2976, 0.0
        %v2979 = vstv %s2974
        %v2980 = vmul.f32 %v2979, %v2978
        %v2981 = vadd.f32 %v2969, %v2980
        %s2982 = sld [smem:[#allocation2 + $0x234]]
        %v2983 = vrot.slane %v2931, 1
        %v2985 = vsel %vm1032, %v2983, 0.0
        %2987 = vrot.lane.b32.xlu0 %v2985, 1
        %v2988 = vpop.permute.xlu0 %2987
        %v2990 = vsel %vm991, 0.0, %v2988
        %v2991 = vstv %s2982
        %v2992 = vmul.f32 %v2991, %v2990
        %v2993 = vadd.f32 %v2973, %v2992
        %s2994 = sld [smem:[#allocation2 + $0x238]]
        %v2995 = vstv %s2994
        %v2996 = vmul.f32 %v2995, %v2985
        %v2997 = vadd.f32 %v2981, %v2996
        %s2998 = sld [smem:[#allocation2 + $0x23c]]
        %2999 = vrot.lane.b32.xlu0 %v2985, 127
        %v3000 = vpop.permute.xlu0 %2999
        %v3002 = vsel %vm1004, %v3000, 0.0
        %v3003 = vstv %s2998
        %v3004 = vmul.f32 %v3003, %v3002
        %v3005 = vadd.f32 %v2993, %v3004
        %v3006 = vadd.f32 %v3005, %v2997
        %s3007 = sld [smem:[#allocation2 + $0x241]]
        %v3008 = vstv %s3007
        %s3009 = sld [smem:[#allocation2 + $0x21d]]
        %v3011 = vrot.slane %v2932, 7
        %v3013 = vsel %vm985, 0.0, %v3011
        %3015 = vrot.lane.b32.xlu0 %v3013, 1
        %v3016 = vpop.permute.xlu0 %3015
        %v3018 = vsel %vm991, 0.0, %v3016
        %v3019 = vstv %s3009
        %v3020 = vmul.f32 %v3019, %v3018
        %v3021 = vadd.f32 %v3008, %v3020
        %s3022 = sld [smem:[#allocation2 + $0x221]]
        %v3023 = vstv %s3022
        %v3024 = vmul.f32 %v3023, %v3013
        %v3025 = vadd.f32 %v3024, 0.0
        %s3026 = sld [smem:[#allocation2 + $0x225]]
        %3027 = vrot.lane.b32.xlu0 %v3013, 127
        %v3028 = vpop.permute.xlu0 %3027
        %v3030 = vsel %vm1004, %v3028, 0.0
        %v3031 = vstv %s3026
        %v3032 = vmul.f32 %v3031, %v3030
        %v3033 = vadd.f32 %v3021, %v3032
        %s3034 = sld [smem:[#allocation2 + $0x229]]
        %3035 = vrot.lane.b32.xlu0 %v2932, 1
        %v3036 = vpop.permute.xlu0 %3035
        %v3038 = vsel %vm991, 0.0, %v3036
        %v3039 = vstv %s3034
        %v3040 = vmul.f32 %v3039, %v3038
        %v3041 = vadd.f32 %v3025, %v3040
        %s3042 = sld [smem:[#allocation2 + $0x22d]]
        %v3043 = vstv %s3042
        %v3044 = vmul.f32 %v3043, %v2932
        %v3045 = vadd.f32 %v3033, %v3044
        %s3046 = sld [smem:[#allocation2 + $0x231]]
        %3047 = vrot.lane.b32.xlu0 %v2932, 127
        %v3048 = vpop.permute.xlu0 %3047
        %v3050 = vsel %vm1004, %v3048, 0.0
        %v3051 = vstv %s3046
        %v3052 = vmul.f32 %v3051, %v3050
        %v3053 = vadd.f32 %v3041, %v3052
        %s3054 = sld [smem:[#allocation2 + $0x235]]
        %v3055 = vrot.slane %v2932, 1
        %v3057 = vsel %vm1032, %v3055, 0.0
        %3059 = vrot.lane.b32.xlu0 %v3057, 1
        %v3060 = vpop.permute.xlu0 %3059
        %v3062 = vsel %vm991, 0.0, %v3060
        %v3063 = vstv %s3054
        %v3064 = vmul.f32 %v3063, %v3062
        %v3065 = vadd.f32 %v3045, %v3064
        %s3066 = sld [smem:[#allocation2 + $0x239]]
        %v3067 = vstv %s3066
        %v3068 = vmul.f32 %v3067, %v3057
        %v3069 = vadd.f32 %v3053, %v3068
        %s3070 = sld [smem:[#allocation2 + $0x23d]]
        %3071 = vrot.lane.b32.xlu0 %v3057, 127
        %v3072 = vpop.permute.xlu0 %3071
        %v3074 = vsel %vm1004, %v3072, 0.0
        %v3075 = vstv %s3070
        %v3076 = vmul.f32 %v3075, %v3074
        %v3077 = vadd.f32 %v3065, %v3076
        %v3078 = vadd.f32 %v3077, %v3069
        %s3079 = sld [smem:[#allocation2 + $0x242]]
        %v3080 = vstv %s3079
        %s3081 = sld [smem:[#allocation2 + $0x21e]]
        %v3083 = vrot.slane %v2933, 7
        %v3085 = vsel %vm985, 0.0, %v3083
        %3087 = vrot.lane.b32.xlu0 %v3085, 1
        %v3088 = vpop.permute.xlu0 %3087
        %v3090 = vsel %vm991, 0.0, %v3088
        %v3091 = vstv %s3081
        %v3092 = vmul.f32 %v3091, %v3090
        %v3093 = vadd.f32 %v3080, %v3092
        %s3094 = sld [smem:[#allocation2 + $0x222]]
        %v3095 = vstv %s3094
        %v3096 = vmul.f32 %v3095, %v3085
        %v3097 = vadd.f32 %v3096, 0.0
        %s3098 = sld [smem:[#allocation2 + $0x226]]
        %3099 = vrot.lane.b32.xlu0 %v3085, 127
        %v3100 = vpop.permute.xlu0 %3099
        %v3102 = vsel %vm1004, %v3100, 0.0
        %v3103 = vstv %s3098
        %v3104 = vmul.f32 %v3103, %v3102
        %v3105 = vadd.f32 %v3093, %v3104
        %s3106 = sld [smem:[#allocation2 + $0x22a]]
        %3107 = vrot.lane.b32.xlu0 %v2933, 1
        %v3108 = vpop.permute.xlu0 %3107
        %v3110 = vsel %vm991, 0.0, %v3108
        %v3111 = vstv %s3106
        %v3112 = vmul.f32 %v3111, %v3110
        %v3113 = vadd.f32 %v3097, %v3112
        %s3114 = sld [smem:[#allocation2 + $0x22e]]
        %v3115 = vstv %s3114
        %v3116 = vmul.f32 %v3115, %v2933
        %v3117 = vadd.f32 %v3105, %v3116
        %s3118 = sld [smem:[#allocation2 + $0x232]]
        %3119 = vrot.lane.b32.xlu0 %v2933, 127
        %v3120 = vpop.permute.xlu0 %3119
        %v3122 = vsel %vm1004, %v3120, 0.0
        %v3123 = vstv %s3118
        %v3124 = vmul.f32 %v3123, %v3122
        %v3125 = vadd.f32 %v3113, %v3124
        %s3126 = sld [smem:[#allocation2 + $0x236]]
        %v3127 = vrot.slane %v2933, 1
        %v3129 = vsel %vm1032, %v3127, 0.0
        %3131 = vrot.lane.b32.xlu0 %v3129, 1
        %v3132 = vpop.permute.xlu0 %3131
        %v3134 = vsel %vm991, 0.0, %v3132
        %v3135 = vstv %s3126
        %v3136 = vmul.f32 %v3135, %v3134
        %v3137 = vadd.f32 %v3117, %v3136
        %s3138 = sld [smem:[#allocation2 + $0x23a]]
        %v3139 = vstv %s3138
        %v3140 = vmul.f32 %v3139, %v3129
        %v3141 = vadd.f32 %v3125, %v3140
        %s3142 = sld [smem:[#allocation2 + $0x23e]]
        %3143 = vrot.lane.b32.xlu0 %v3129, 127
        %v3144 = vpop.permute.xlu0 %3143
        %v3146 = vsel %vm1004, %v3144, 0.0
        %v3147 = vstv %s3142
        %v3148 = vmul.f32 %v3147, %v3146
        %v3149 = vadd.f32 %v3137, %v3148
        %v3150 = vadd.f32 %v3149, %v3141
        %s3151 = sld [smem:[#allocation2 + $0x243]]
        %v3152 = vstv %s3151
        %s3153 = sld [smem:[#allocation2 + $0x21f]]
        %v3155 = vrot.slane %v2934, 7
        %v3157 = vsel %vm985, 0.0, %v3155
        %3159 = vrot.lane.b32.xlu0 %v3157, 1
        %v3160 = vpop.permute.xlu0 %3159
        %v3162 = vsel %vm991, 0.0, %v3160
        %v3163 = vstv %s3153
        %v3164 = vmul.f32 %v3163, %v3162
        %v3165 = vadd.f32 %v3152, %v3164
        %s3166 = sld [smem:[#allocation2 + $0x223]]
        %v3167 = vstv %s3166
        %v3168 = vmul.f32 %v3167, %v3157
        %v3169 = vadd.f32 %v3168, 0.0
        %s3170 = sld [smem:[#allocation2 + $0x227]]
        %3171 = vrot.lane.b32.xlu0 %v3157, 127
        %v3172 = vpop.permute.xlu0 %3171
        %v3174 = vsel %vm1004, %v3172, 0.0
        %v3175 = vstv %s3170
        %v3176 = vmul.f32 %v3175, %v3174
        %v3177 = vadd.f32 %v3165, %v3176
        %s3178 = sld [smem:[#allocation2 + $0x22b]]
        %3179 = vrot.lane.b32.xlu0 %v2934, 1
        %v3180 = vpop.permute.xlu0 %3179
        %v3182 = vsel %vm991, 0.0, %v3180
        %v3183 = vstv %s3178
        %v3184 = vmul.f32 %v3183, %v3182
        %v3185 = vadd.f32 %v3169, %v3184
        %s3186 = sld [smem:[#allocation2 + $0x22f]]
        %v3187 = vstv %s3186
        %v3188 = vmul.f32 %v3187, %v2934
        %v3189 = vadd.f32 %v3177, %v3188
        %s3190 = sld [smem:[#allocation2 + $0x233]]
        %3191 = vrot.lane.b32.xlu0 %v2934, 127
        %v3192 = vpop.permute.xlu0 %3191
        %v3194 = vsel %vm1004, %v3192, 0.0
        %v3195 = vstv %s3190
        %v3196 = vmul.f32 %v3195, %v3194
        %v3197 = vadd.f32 %v3185, %v3196
        %s3198 = sld [smem:[#allocation2 + $0x237]]
        %v3199 = vrot.slane %v2934, 1
        %v3201 = vsel %vm1032, %v3199, 0.0
        %3203 = vrot.lane.b32.xlu0 %v3201, 1
        %v3204 = vpop.permute.xlu0 %3203
        %v3206 = vsel %vm991, 0.0, %v3204
        %v3207 = vstv %s3198
        %v3208 = vmul.f32 %v3207, %v3206
        %v3209 = vadd.f32 %v3189, %v3208
        %s3210 = sld [smem:[#allocation2 + $0x23b]]
        %v3211 = vstv %s3210
        %v3212 = vmul.f32 %v3211, %v3201
        %v3213 = vadd.f32 %v3197, %v3212
        %s3214 = sld [smem:[#allocation2 + $0x23f]]
        %3215 = vrot.lane.b32.xlu0 %v3201, 127
        %v3216 = vpop.permute.xlu0 %3215
        %v3218 = vsel %vm1004, %v3216, 0.0
        %v3219 = vstv %s3214
        %v3220 = vmul.f32 %v3219, %v3218
        %v3221 = vadd.f32 %v3209, %v3220
        %v3222 = vadd.f32 %v3221, %v3213
        %v3223 = vadd.f32 %v2567, %v2931
        %v3224 = vmax.f32 %v3223, 0.0
        %v3225 = vadd.f32 %v2568, %v2932
        %v3226 = vmax.f32 %v3225, 0.0
        %v3227 = vadd.f32 %v2569, %v2933
        %v3228 = vmax.f32 %v3227, 0.0
        %v3229 = vadd.f32 %v2570, %v2934
        %v3230 = vmax.f32 %v3229, 0.0
        %v3231 = vadd.f32 %v2642, %v3006
        %v3232 = vmax.f32 %v3231, 0.0
        %v3233 = vadd.f32 %v2714, %v3078
        %v3234 = vmax.f32 %v3233, 0.0
        %v3235 = vadd.f32 %v2786, %v3150
        %v3236 = vmax.f32 %v3235, 0.0
        %v3237 = vadd.f32 %v2858, %v3222
        %v3238 = vmax.f32 %v3237, 0.0
        %vm3239 = vcmask 64512
        %3240 = vst.msk [vmem:[%s150] sm:$0xff] %vm3239, %v3224
        %3241 = vst.msk [vmem:[%s150 + $0x8] sm:$0xff] %vm3239, %v3226
        %3242 = vst.msk [vmem:[%s150 + $0x10] sm:$0xff] %vm3239, %v3228
        %3243 = vst.msk [vmem:[%s150 + $0x18] sm:$0xff] %vm3239, %v3230
        %3244 = vst.msk [vmem:[%s150 + $0x20] sm:$0xff] %vm3239, %v3232
        %3245 = vst.msk [vmem:[%s150 + $0x28] sm:$0xff] %vm3239, %v3234
        %3246 = vst.msk [vmem:[%s150 + $0x30] sm:$0xff] %vm3239, %v3236
        %3247 = vst.msk [vmem:[%s150 + $0x38] sm:$0xff] %vm3239, %v3238
        %s3248 = sand.u32 %s72, 1
        %s3249 = scalar_lea.sflag [#allocation3], %s3248
        %s3250 = sand.u32 %s72, 1
        %s3251 = smul.addr %s3250, 64
        %s3252 = scalar_lea.vmem [#allocation5], %s3251
        // Predicated region
        $region33: #{tpu_custom_call.1} parent=27 // pred_check
          %p3253 = pneg %p82
        $region34: #{tpu_custom_call.1} parent=27 // pred_check_branch
          %3255 = sbr.rel (%p3253) target = $region36
        $region35: #{tpu_custom_call.1} parent=27 // pred_region
          %s3257 = ssub.s32 1024, 1024
          %3258 = vsyncadd %s3249, %s3257
          %s3259 = smul.addr %s17, 8
          %s3260 = smul.addr %s3259, 128
          %s3261 = scalar_lea.hbm %s2, %s3260
          %s3262 = sshll.u32 %s3252, 4
          %s3263 = int_to_ptr.vmem [resolvable:$true] %s3262
          %3268 = dma.vmem_to_hbm [thread:$0]  %s3263, 1024, %s3261, %s3249, 128, 128, 8
        $region36: #{tpu_custom_call.1} parent=27 // pred_fallthru
          _
      $region28: #{tpu_custom_call.1} parent=5 // pred_fallthru
        _
      %p3269 = scmp.le.s32.totalorder 2, %s12
      // Predicated region
      $region37: #{tpu_custom_call.1} parent=5 // pred_check
        %p3270 = pneg %p3269
      $region38: #{tpu_custom_call.1} parent=5 // pred_check_branch
        %3272 = sbr.rel (%p3270) target = $region40
      $region39: #{tpu_custom_call.1} parent=5 // pred_region
        %s3273 = ssub.s32 %s12, 2
        // Predicated region
        $region41: #{tpu_custom_call.1} parent=39 // pred_check
          %p3274 = pneg %p88
        $region42: #{tpu_custom_call.1} parent=39 // pred_check_branch
          %3276 = sbr.rel (%p3274) target = $region44
        $region43: #{tpu_custom_call.1} parent=39 // pred_region
          %s3277 = sand.u32 %s73, 1
          %s3278 = scalar_lea.sflag [#allocation3], %s3277
          %s3279 = sand.u32 %s73, 1
          %s3280 = smul.addr %s3279, 64
          %s3281 = scalar_lea.vmem [#allocation5], %s3280
          %3282 = dma.done %s3278, 1024
        $region44: #{tpu_custom_call.1} parent=39 // pred_fallthru
          _
      $region40: #{tpu_custom_call.1} parent=5 // pred_fallthru
        _
    $region6: #{tpu_custom_call.1} parent=1 // loop_footer
      %s16 = sadd.s32 1, %s12
    $region7: #{tpu_custom_call.1} parent=1 // loop_footer_branch
      %11 = sbr.rel target = $region3
    $region8: #{tpu_custom_call.1} parent=1 // loop_exit
      _
    %3283 = vsyncpa [#allocation3], 1
    %s3284 = scalar_lea.sflag [#allocation3], 1
    %3285 = vsyncpa %s3284, 1
    %3286 = vsyncpa [#allocation4], 1
    %s3287 = scalar_lea.sflag [#allocation4], 1
    %3288 = vsyncpa %s3287, 1

</llo_original>
